<compile_context>
chip_gen: v7x
topology: tpu7x:2x2x1
jax: 0.10.0
libtpu: 0.0.40
codegen_flags: <defaults>
</compile_context>

<pallas_src>
import functools
import math

import jax
import jax.numpy as jnp
from jax.experimental import pallas as pl
from jax.experimental.pallas import tpu as pltpu

LN_EPS = 1e-12  # RecBole layer_norm_eps default


def _layer_norm(x, gamma, beta, eps=LN_EPS):
    mu = jnp.mean(x, axis=-1, keepdims=True)
    var = jnp.mean((x - mu) ** 2, axis=-1, keepdims=True)
    return (x - mu) * jax.lax.rsqrt(var + eps) * gamma + beta


def _gelu_exact(x):
    # x * 0.5 * (1 + erf(x/sqrt(2))) — matches RecBole/PyTorch exact GELU.
    # erf via Abramowitz & Stegun 7.1.26 polynomial (|err| < 1.5e-7).  The
    # divide is pushed to the EUP slot with pl.reciprocal(approx=True)
    # (rel err ~2^-12, well under the bf16 matmul noise already present) and
    # the sign select picks a +/-1 constant instead of negating the poly.
    a1, a2, a3, a4, a5 = 0.254829592, -0.284496736, 1.421413741, -1.453152027, 1.061405429
    p = 0.3275911
    z = x * (1.0 / math.sqrt(2.0))
    az = jnp.abs(z)
    t = pl.reciprocal(1.0 + p * az, approx=True)
    poly = ((((a5 * t + a4) * t + a3) * t + a2) * t + a1) * t
    y = 1.0 - poly * jnp.exp(-az * az)
    erf = jnp.where(z >= 0.0, 1.0, -1.0) * y
    return 0.5 * x * (1.0 + erf)


# ---------------------------------------------------------------------------
# Fused SASRec + AdaptiveGating kernel (one batch tile per grid step)
# ---------------------------------------------------------------------------
def fused_kernel(x_ref, pad_ref, sel_last_ref,
                 lnin_g_ref, lnin_b_ref,
                 wqkv_ref, bqkv_ref, wo_ref, bo_ref, ln1_g_ref, ln1_b_ref,
                 w1_ref, b1_ref, w2_ref, b2_ref, ln2_g_ref, ln2_b_ref,
                 gw1_ref, gb1_ref, gw2_ref, gb2_ref, sel_ref,
                 out_ref, *, n_heads, n_layers, compute_dtype):
    cdt = compute_dtype
    TB, S, H = x_ref.shape
    dh = H // n_heads
    scale = 1.0 / math.sqrt(dh)
    NEG = jnp.float32(-10000.0)

    # Additive masks, decomposed (no (TB,S,S) f32 mask is kept live):
    #   shared (S,S) causal part + per-sequence (TB,S) key-padding part.
    qpos = jax.lax.broadcasted_iota(jnp.int32, (S, S), 0)
    kpos = jax.lax.broadcasted_iota(jnp.int32, (S, S), 1)
    causal_add = jnp.where(kpos <= qpos, 0.0, NEG)                    # (S, S)
    key_pad_add = (1.0 - pad_ref[...][:, 0, :]) * NEG                 # (TB, S)

    # ---- input LayerNorm on flattened rows (dropout = identity at eval) ----
    x = _layer_norm(x_ref[...].reshape(TB * S, H), lnin_g_ref[...], lnin_b_ref[...])

    # ---- n_layers SASRec transformer blocks (static unroll over layers) ----
    for l in range(n_layers):
        # fused QKV projection on (TB*S, H) rows — one wide MXU pass
        qkv = jnp.dot(x.astype(cdt), wqkv_ref[l].astype(cdt),
                      preferred_element_type=jnp.float32) + bqkv_ref[l]    # (TB*S, 3H)
        q_all = qkv[:, :H] * scale            # fold 1/sqrt(dh) into Q (not the scores)
        wo_l = wo_ref[l]                                                    # (H, H)

        attn = jnp.zeros((TB * S, H), jnp.float32)
        for h in range(n_heads):              # static head loop; batched over TB
            qh = q_all[:, h * dh:(h + 1) * dh].reshape(TB, S, dh).astype(cdt)
            kh = qkv[:, H + h * dh:H + (h + 1) * dh].reshape(TB, S, dh).astype(cdt)
            vh = qkv[:, 2 * H + h * dh:2 * H + (h + 1) * dh].reshape(TB, S, dh).astype(cdt)

            s = jnp.einsum('bqd,bkd->bqk', qh, kh,
                           preferred_element_type=jnp.float32)
            s = s + causal_add[None] + key_pad_add[:, None, :]
            s = s - jnp.max(s, axis=-1, keepdims=True)
            pexp = jnp.exp(s)
            pexp = pexp * pl.reciprocal(jnp.sum(pexp, axis=-1, keepdims=True),
                                        approx=True)
            ctx = jnp.einsum('bqk,bkd->bqd', pexp.astype(cdt), vh,
                             preferred_element_type=jnp.float32)            # (TB,S,dh)
            # accumulate the output projection per head (no concat / relayout)
            attn = attn + jnp.dot(ctx.reshape(TB * S, dh).astype(cdt),
                                  wo_l[h * dh:(h + 1) * dh, :].astype(cdt),
                                  preferred_element_type=jnp.float32)
        h1 = _layer_norm(attn + bo_ref[l] + x, ln1_g_ref[l], ln1_b_ref[l])

        f = jnp.dot(h1.astype(cdt), w1_ref[l].astype(cdt),
                    preferred_element_type=jnp.float32) + b1_ref[l]
        f = _gelu_exact(f)                                                  # exact erf GELU
        f = jnp.dot(f.astype(cdt), w2_ref[l].astype(cdt),
                    preferred_element_type=jnp.float32) + b2_ref[l]
        x = _layer_norm(f + h1, ln2_g_ref[l], ln2_b_ref[l])

    # ---- gather_indexes: one-hot(last valid position) built in the wrapper ----
    hidden = jnp.sum(x.reshape(TB, S, H) * sel_last_ref[...][:, 0, :, None], axis=1)  # (TB,H)

    # ---- AdaptiveGating: MLP(H->32->G) + scatter-add via one-hot matmul ----
    z = jnp.dot(hidden.astype(cdt), gw1_ref[...].astype(cdt),
                preferred_element_type=jnp.float32) + gb1_ref[...]
    z = jnp.maximum(z, 0.0)                                                 # ReLU
    g = jnp.dot(z.astype(cdt), gw2_ref[...].astype(cdt),
                preferred_element_type=jnp.float32) + gb2_ref[...]          # (TB, G)
    gated = hidden + jnp.dot(g.astype(cdt), sel_ref[...].astype(cdt),
                             preferred_element_type=jnp.float32)            # dup-idx accumulate
    out_ref[...] = gated.reshape(TB, 1, H).astype(out_ref.dtype)


# ---------------------------------------------------------------------------
# Generation-dependent VMEM limit / tile sizing
# ---------------------------------------------------------------------------
def _tpu_vmem_and_cores():
    """Return (vmem_limit_bytes, two_tensorcores?) for the current chip."""
    try:
        cap = int(pltpu.get_tpu_info().vmem_capacity_bytes)
    except Exception:                       # no TPU info available: be conservative
        return 48 * 1024 * 1024, True
    two_tc = cap <= 64 * 1024 * 1024        # 64 MiB VMEM part => v7x (2 TCs/chip)
    return min(96 * 1024 * 1024, (cap * 3) // 4), two_tc


def _pick_batch_tile(B, S, H, inner, n_layers, vmem_limit, two_tc):
    # Target ~512 flattened rows (TB*S) per grid step.  Only on 2-TC parts
    # (v7x) keep >= 2 grid steps so both TensorCores get work; on single-TC
    # v5e/v6e prefer one fat step (fewer per-step overheads, bigger MXU M).
    tb = max(1, min(B, -(-512 // S)))
    if two_tc and B >= 2:
        tb = min(tb, -(-B // 2))

    def est_bytes(t):
        rows = t * S
        act = 4 * rows * (6 * H + 2 * inner) + 8 * rows * S      # f32 temps + scores
        io = 2 * (4 * rows * H + 8 * t * S + 4 * t * H)          # double-buffered blocks
        wts = n_layers * (8 * H * H + 4 * H * inner) \
            + 4 * n_layers * (5 * H + inner) + 8 * H * 64        # single-buffered weights
        return act + io + wts

    while tb > 1 and est_bytes(tb) > vmem_limit // 2:
        tb = max(1, tb // 2)
    return tb


# ---------------------------------------------------------------------------
# Forward: plain-JAX embedding glue + single fused pallas_call
# ---------------------------------------------------------------------------
def sasrec_with_gating_forward(params, input_seq, input_seq_len, *,
                               n_heads, n_layers,
                               compute_dtype=jnp.bfloat16, batch_tile=None):
    B, S = input_seq.shape
    H = params["item_embedding"].shape[1]
    inner = params["w1"].shape[-1]
    G = params["gating"]["w2"].shape[-1]

    # Embedding gathers stay in plain JAX (data-dependent gather).
    x = params["item_embedding"][input_seq] + params["position_embedding"][None, :S]
    pad = (input_seq != 0).astype(jnp.float32).reshape(B, 1, S)       # lane-dense (B,1,S)
    last = input_seq_len.astype(jnp.int32) - 1
    sel_last = (jnp.arange(S, dtype=jnp.int32)[None, :] == last[:, None]).astype(jnp.float32)
    sel_last = sel_last.reshape(B, 1, S)                              # one-hot of last pos
    # TODO(synk): a zero-length sequence yields a zero hidden vector here instead
    # of erroring like torch.gather.

    vmem_limit, two_tc = _tpu_vmem_and_cores()
    TB = batch_tile if batch_tile is not None else _pick_batch_tile(
        B, S, H, inner, n_layers, vmem_limit, two_tc)
    steps = -(-B // TB)
    if two_tc and steps > 1 and steps % 2 == 1:
        steps += 1                          # even step count: both v7x TCs stay busy
    Bp = steps * TB
    if Bp != B:                             # pad batch (masked rows, sliced off below)
        n = Bp - B
        x = jnp.pad(x, ((0, n), (0, 0), (0, 0)))
        pad = jnp.pad(pad, ((0, n), (0, 0), (0, 0)))
        sel_last = jnp.pad(sel_last, ((0, n), (0, 0), (0, 0)))

    gp = params["gating"]
    weights = [params["ln_in_g"], params["ln_in_b"],
               params["wqkv"], params["bqkv"], params["wo"], params["bo"],
               params["ln1_g"], params["ln1_b"],
               params["w1"], params["b1"], params["w2"], params["b2"],
               params["ln2_g"], params["ln2_b"],
               gp["w1"], gp["b1"], gp["w2"], gp["b2"], gp["sel"]]

    # Advisory cost estimate so XLA schedules the surrounding gathers sensibly.
    flops = Bp * S * n_layers * (8 * H * H + 4 * S * H + 4 * H * inner) \
        + Bp * (2 * H * 32 + 2 * 32 * G + 2 * G * H)
    trans = Bp * S * n_layers * (inner + n_heads * S)
    wbytes = sum(int(w.size) * w.dtype.itemsize for w in weights)
    bytes_accessed = int(x.size * 4 + pad.size * 4 + sel_last.size * 4 + Bp * H * 4 + wbytes)

    def build(single_buffer_weights):
        if single_buffer_weights:
            # Weight index_maps are grid-invariant -> single-buffer them
            # (halves the weight VMEM footprint vs default double-buffering).
            w_specs = [pl.BlockSpec(w.shape, (lambda b, nd=w.ndim: (0,) * nd),
                                    pipeline_mode=pl.Buffered(1)) for w in weights]
        else:
            w_specs = [pl.BlockSpec(w.shape, (lambda b, nd=w.ndim: (0,) * nd))
                       for w in weights]
        return pl.pallas_call(
            functools.partial(fused_kernel, n_heads=n_heads, n_layers=n_layers,
                              compute_dtype=compute_dtype),
            out_shape=jax.ShapeDtypeStruct((Bp, 1, H), jnp.float32),
            grid=(Bp // TB,),
            in_specs=[pl.BlockSpec((TB, S, H), lambda b: (b, 0, 0)),
                      pl.BlockSpec((TB, 1, S), lambda b: (b, 0, 0)),
                      pl.BlockSpec((TB, 1, S), lambda b: (b, 0, 0))] + w_specs,
            out_specs=pl.BlockSpec((TB, 1, H), lambda b: (b, 0, 0)),
            compiler_params=pltpu.CompilerParams(
                dimension_semantics=("parallel",),
                vmem_limit_bytes=int(vmem_limit)),
            cost_estimate=pl.CostEstimate(flops=int(flops),
                                          transcendentals=int(trans),
                                          bytes_accessed=bytes_accessed),
        )

    try:
        out = build(True)(x, pad, sel_last, *weights)
    except Exception:
        # Fallback for jax versions without BlockSpec pipeline_mode support.
        out = build(False)(x, pad, sel_last, *weights)
    return out.reshape(Bp, H)[:B]


# ---------------------------------------------------------------------------
# Deterministic parameter init (synthetic — no checkpoint loading)
# ---------------------------------------------------------------------------
def init_params(key, n_items, max_len, H, inner, n_layers, gate_indices,
                w_dtype=jnp.bfloat16):
    L, G = n_layers, len(gate_indices)
    keys = iter(jax.random.split(key, 16))

    def nrm(shape, scale=0.02):
        return jax.random.normal(next(keys), shape, jnp.float32) * scale

    def ones(shape):
        return jnp.ones(shape, jnp.float32)

    def zeros(shape):
        return jnp.zeros(shape, jnp.float32)

    # one-hot selection matrix reproducing gated_hidden[:, idx_i] += gate[:, i]
    sel = jnp.zeros((G, H), jnp.float32).at[
        jnp.arange(G), jnp.asarray(gate_indices, jnp.int32)].add(1.0)

    return {
        "item_embedding": nrm((n_items, H)).at[0].set(0.0),   # padding_idx=0
        "position_embedding": nrm((max_len, H)),
        "ln_in_g": ones((1, H)), "ln_in_b": zeros((1, H)),
        # stacked per-layer weights (leading layer dim); matmul weights in bf16
        "wqkv": nrm((L, H, 3 * H)).astype(w_dtype), "bqkv": zeros((L, 1, 3 * H)),
        "wo": nrm((L, H, H)).astype(w_dtype), "bo": zeros((L, 1, H)),
        "ln1_g": ones((L, 1, H)), "ln1_b": zeros((L, 1, H)),
        "w1": nrm((L, H, inner)).astype(w_dtype), "b1": zeros((L, 1, inner)),
        "w2": nrm((L, inner, H)).astype(w_dtype), "b2": zeros((L, 1, H)),
        "ln2_g": ones((L, 1, H)), "ln2_b": zeros((L, 1, H)),
        "gating": {
            "w1": nrm((H, 32)).astype(w_dtype), "b1": zeros((1, 32)),
            "w2": nrm((32, G)).astype(w_dtype), "b2": zeros((1, G)),
            "sel": sel.astype(w_dtype),
        },
    }


if __name__ == "__main__":
    B, S, H = 4, 8, 32
    n_items, n_layers, n_heads, inner = 50, 2, 2, 64
    gate_indices = [1, 5, 7, 30]

    key = jax.random.PRNGKey(0)
    pkey, skey = jax.random.split(key)
    params = init_params(pkey, n_items, S, H, inner, n_layers, gate_indices)

    input_seq_len = jnp.array([5, 8, 3, 6], jnp.int32)
    input_seq = jax.random.randint(skey, (B, S), 1, n_items, jnp.int32)
    input_seq = jnp.where(jnp.arange(S)[None, :] < input_seq_len[:, None], input_seq, 0)

    gated_hidden = sasrec_with_gating_forward(params, input_seq, input_seq_len,
                                              n_heads=n_heads, n_layers=n_layers)
    jax.block_until_ready(gated_hidden)
    assert gated_hidden.shape == (B, H)
    print("KERNEL_OK")
</pallas_src>

<mosaic_0001>
module attributes {stable_mosaic.version = 11 : i64} {
  func.func @fused_kernel(%arg0: i32, %arg1: memref<2x8x32xf32, #tpu.memory_space<vmem>>, %arg2: memref<2x1x8xf32, #tpu.memory_space<vmem>>, %arg3: memref<2x1x8xf32, #tpu.memory_space<vmem>>, %arg4: memref<1x32xf32, #tpu.memory_space<vmem>>, %arg5: memref<1x32xf32, #tpu.memory_space<vmem>>, %arg6: memref<2x32x96xbf16, #tpu.memory_space<vmem>>, %arg7: memref<2x1x96xf32, #tpu.memory_space<vmem>>, %arg8: memref<2x32x32xbf16, #tpu.memory_space<vmem>>, %arg9: memref<2x1x32xf32, #tpu.memory_space<vmem>>, %arg10: memref<2x1x32xf32, #tpu.memory_space<vmem>>, %arg11: memref<2x1x32xf32, #tpu.memory_space<vmem>>, %arg12: memref<2x32x64xbf16, #tpu.memory_space<vmem>>, %arg13: memref<2x1x64xf32, #tpu.memory_space<vmem>>, %arg14: memref<2x64x32xbf16, #tpu.memory_space<vmem>>, %arg15: memref<2x1x32xf32, #tpu.memory_space<vmem>>, %arg16: memref<2x1x32xf32, #tpu.memory_space<vmem>>, %arg17: memref<2x1x32xf32, #tpu.memory_space<vmem>>, %arg18: memref<32x32xbf16, #tpu.memory_space<vmem>>, %arg19: memref<1x32xf32, #tpu.memory_space<vmem>>, %arg20: memref<32x4xbf16, #tpu.memory_space<vmem>>, %arg21: memref<1x4xf32, #tpu.memory_space<vmem>>, %arg22: memref<4x32xbf16, #tpu.memory_space<vmem>>, %arg23: memref<2x1x32xf32, #tpu.memory_space<vmem>>) attributes {dimension_semantics = [#tpu.dimension_semantics<parallel>], iteration_bounds = array<i64: 2>, scalar_prefetch = 0 : i64, scratch_operands = 0 : i64, tpu.core_type = #tpu.core_type<tc>, window_params = [{transform_indices = @transform_0, window_bounds = array<i64: 2, 8, 32>}, {transform_indices = @transform_1, window_bounds = array<i64: 2, 1, 8>}, {transform_indices = @transform_2, window_bounds = array<i64: 2, 1, 8>}, {pipeline_mode = #tpu.pipeline_mode<synchronous>, transform_indices = @transform_3, window_bounds = array<i64: 1, 32>}, {pipeline_mode = #tpu.pipeline_mode<synchronous>, transform_indices = @transform_4, window_bounds = array<i64: 1, 32>}, {pipeline_mode = #tpu.pipeline_mode<synchronous>, transform_indices = @transform_5, window_bounds = array<i64: 2, 32, 96>}, {pipeline_mode = #tpu.pipeline_mode<synchronous>, transform_indices = @transform_6, window_bounds = array<i64: 2, 1, 96>}, {pipeline_mode = #tpu.pipeline_mode<synchronous>, transform_indices = @transform_7, window_bounds = array<i64: 2, 32, 32>}, {pipeline_mode = #tpu.pipeline_mode<synchronous>, transform_indices = @transform_8, window_bounds = array<i64: 2, 1, 32>}, {pipeline_mode = #tpu.pipeline_mode<synchronous>, transform_indices = @transform_9, window_bounds = array<i64: 2, 1, 32>}, {pipeline_mode = #tpu.pipeline_mode<synchronous>, transform_indices = @transform_10, window_bounds = array<i64: 2, 1, 32>}, {pipeline_mode = #tpu.pipeline_mode<synchronous>, transform_indices = @transform_11, window_bounds = array<i64: 2, 32, 64>}, {pipeline_mode = #tpu.pipeline_mode<synchronous>, transform_indices = @transform_12, window_bounds = array<i64: 2, 1, 64>}, {pipeline_mode = #tpu.pipeline_mode<synchronous>, transform_indices = @transform_13, window_bounds = array<i64: 2, 64, 32>}, {pipeline_mode = #tpu.pipeline_mode<synchronous>, transform_indices = @transform_14, window_bounds = array<i64: 2, 1, 32>}, {pipeline_mode = #tpu.pipeline_mode<synchronous>, transform_indices = @transform_15, window_bounds = array<i64: 2, 1, 32>}, {pipeline_mode = #tpu.pipeline_mode<synchronous>, transform_indices = @transform_16, window_bounds = array<i64: 2, 1, 32>}, {pipeline_mode = #tpu.pipeline_mode<synchronous>, transform_indices = @transform_17, window_bounds = array<i64: 32, 32>}, {pipeline_mode = #tpu.pipeline_mode<synchronous>, transform_indices = @transform_18, window_bounds = array<i64: 1, 32>}, {pipeline_mode = #tpu.pipeline_mode<synchronous>, transform_indices = @transform_19, window_bounds = array<i64: 32, 4>}, {pipeline_mode = #tpu.pipeline_mode<synchronous>, transform_indices = @transform_20, window_bounds = array<i64: 1, 4>}, {pipeline_mode = #tpu.pipeline_mode<synchronous>, transform_indices = @transform_21, window_bounds = array<i64: 4, 32>}, {transform_indices = @transform_22, window_bounds = array<i64: 2, 1, 32>}]} {
    %0 = tpu.iota {dimensions = array<i32: 0>} : vector<8x8xi32>
    %1 = tpu.iota {dimensions = array<i32: 1>} : vector<8x8xi32>
    %2 = arith.cmpi sle, %1, %0 : vector<8x8xi32>
    %cst = arith.constant 0.000000e+00 : f32
    %cst_0 = arith.constant -1.000000e+04 : f32
    %3 = vector.broadcast %cst : f32 to vector<8x8xf32>
    %4 = vector.broadcast %cst_0 : f32 to vector<8x8xf32>
    %5 = arith.select %2, %3, %4 : vector<8x8xi1>, vector<8x8xf32>
    %c0 = arith.constant 0 : index
    %c0_1 = arith.constant 0 : index
    %c0_2 = arith.constant 0 : index
    %6 = vector.load %arg2[%c0, %c0_1, %c0_2] : memref<2x1x8xf32, #tpu.memory_space<vmem>>, vector<2x1x8xf32>
    %7 = vector.shape_cast %6 : vector<2x1x8xf32> to vector<2x8xf32>
    %cst_3 = arith.constant 1.000000e+00 : f32
    %8 = vector.broadcast %cst_3 : f32 to vector<2x8xf32>
    %9 = arith.subf %8, %7 : vector<2x8xf32>
    %cst_4 = arith.constant -1.000000e+04 : f32
    %10 = vector.broadcast %cst_4 : f32 to vector<2x8xf32>
    %11 = arith.mulf %9, %10 : vector<2x8xf32>
    %c0_5 = arith.constant 0 : index
    %c0_6 = arith.constant 0 : index
    %c0_7 = arith.constant 0 : index
    %12 = vector.load %arg1[%c0_5, %c0_6, %c0_7] : memref<2x8x32xf32, #tpu.memory_space<vmem>>, vector<2x8x32xf32>
    %13 = vector.shape_cast %12 : vector<2x8x32xf32> to vector<16x32xf32>
    %c0_8 = arith.constant 0 : index
    %c0_9 = arith.constant 0 : index
    %14 = vector.load %arg4[%c0_8, %c0_9] : memref<1x32xf32, #tpu.memory_space<vmem>>, vector<1x32xf32>
    %c0_10 = arith.constant 0 : index
    %c0_11 = arith.constant 0 : index
    %15 = vector.load %arg5[%c0_10, %c0_11] : memref<1x32xf32, #tpu.memory_space<vmem>>, vector<1x32xf32>
    %cst_12 = arith.constant dense<0.000000e+00> : vector<16xf32>
    %16 = vector.multi_reduction <add>, %13, %cst_12 [1] : vector<16x32xf32> to vector<16xf32>
    %17 = vector.shape_cast %16 : vector<16xf32> to vector<16x1xf32>
    %cst_13 = arith.constant 3.200000e+01 : f32
    %18 = vector.broadcast %cst_13 : f32 to vector<16x1xf32>
    %19 = arith.divf %17, %18 : vector<16x1xf32>
    %20 = vector.broadcast %19 : vector<16x1xf32> to vector<16x32xf32>
    %21 = arith.subf %13, %20 : vector<16x32xf32>
    %22 = arith.mulf %21, %21 : vector<16x32xf32>
    %cst_14 = arith.constant dense<0.000000e+00> : vector<16xf32>
    %23 = vector.multi_reduction <add>, %22, %cst_14 [1] : vector<16x32xf32> to vector<16xf32>
    %24 = vector.shape_cast %23 : vector<16xf32> to vector<16x1xf32>
    %cst_15 = arith.constant 3.200000e+01 : f32
    %25 = vector.broadcast %cst_15 : f32 to vector<16x1xf32>
    %26 = arith.divf %24, %25 : vector<16x1xf32>
    %27 = vector.broadcast %19 : vector<16x1xf32> to vector<16x32xf32>
    %28 = arith.subf %13, %27 : vector<16x32xf32>
    %cst_16 = arith.constant 9.99999996E-13 : f32
    %29 = vector.broadcast %cst_16 : f32 to vector<16x1xf32>
    %30 = arith.addf %26, %29 : vector<16x1xf32>
    %31 = math.rsqrt %30 : vector<16x1xf32>
    %32 = vector.broadcast %31 : vector<16x1xf32> to vector<16x32xf32>
    %33 = arith.mulf %28, %32 : vector<16x32xf32>
    %34 = vector.broadcast %14 : vector<1x32xf32> to vector<16x32xf32>
    %35 = arith.mulf %33, %34 : vector<16x32xf32>
    %36 = vector.broadcast %15 : vector<1x32xf32> to vector<16x32xf32>
    %37 = arith.addf %35, %36 : vector<16x32xf32>
    %38 = arith.truncf %37 : vector<16x32xf32> to vector<16x32xbf16>
    %c0_17 = arith.constant 0 : index
    %c0_18 = arith.constant 0 : index
    %c0_19 = arith.constant 0 : index
    %39 = vector.load %arg6[%c0_17, %c0_18, %c0_19] : memref<2x32x96xbf16, #tpu.memory_space<vmem>>, vector<1x32x96xbf16>
    %40 = vector.shape_cast %39 : vector<1x32x96xbf16> to vector<32x96xbf16>
    %cst_20 = arith.constant dense<0.000000e+00> : vector<16x96xf32>
    %41 = tpu.matmul %38, %40, %cst_20 {dimension_numbers = #tpu.dot_dimension_numbers<[1], [0], [0], [1], [0, 0, 1, 1], [], []>} : vector<16x32xbf16>, vector<32x96xbf16>, vector<16x96xf32> -> vector<16x96xf32>
    %c0_21 = arith.constant 0 : index
    %c0_22 = arith.constant 0 : index
    %c0_23 = arith.constant 0 : index
    %42 = vector.load %arg7[%c0_21, %c0_22, %c0_23] : memref<2x1x96xf32, #tpu.memory_space<vmem>>, vector<1x1x96xf32>
    %43 = vector.shape_cast %42 : vector<1x1x96xf32> to vector<1x96xf32>
    %44 = vector.broadcast %43 : vector<1x96xf32> to vector<16x96xf32>
    %45 = arith.addf %41, %44 : vector<16x96xf32>
    %46 = vector.extract_strided_slice %45 {offsets = [0, 0], sizes = [16, 32], strides = [1, 1]} : vector<16x96xf32> to vector<16x32xf32>
    %cst_24 = arith.constant 2.500000e-01 : f32
    %47 = vector.broadcast %cst_24 : f32 to vector<16x32xf32>
    %48 = arith.mulf %46, %47 : vector<16x32xf32>
    %c0_25 = arith.constant 0 : index
    %c0_26 = arith.constant 0 : index
    %c0_27 = arith.constant 0 : index
    %49 = vector.load %arg8[%c0_25, %c0_26, %c0_27] : memref<2x32x32xbf16, #tpu.memory_space<vmem>>, vector<1x32x32xbf16>
    %50 = vector.shape_cast %49 : vector<1x32x32xbf16> to vector<32x32xbf16>
    %cst_28 = arith.constant 0.000000e+00 : f32
    %51 = vector.broadcast %cst_28 : f32 to vector<16x32xf32>
    %52 = vector.extract_strided_slice %48 {offsets = [0, 0], sizes = [16, 16], strides = [1, 1]} : vector<16x32xf32> to vector<16x16xf32>
    %53 = vector.shape_cast %52 : vector<16x16xf32> to vector<2x8x16xf32>
    %54 = arith.truncf %53 : vector<2x8x16xf32> to vector<2x8x16xbf16>
    %55 = vector.extract_strided_slice %45 {offsets = [0, 32], sizes = [16, 16], strides = [1, 1]} : vector<16x96xf32> to vector<16x16xf32>
    %56 = vector.shape_cast %55 : vector<16x16xf32> to vector<2x8x16xf32>
    %57 = arith.truncf %56 : vector<2x8x16xf32> to vector<2x8x16xbf16>
    %58 = vector.extract_strided_slice %45 {offsets = [0, 64], sizes = [16, 16], strides = [1, 1]} : vector<16x96xf32> to vector<16x16xf32>
    %59 = vector.shape_cast %58 : vector<16x16xf32> to vector<2x8x16xf32>
    %60 = arith.truncf %59 : vector<2x8x16xf32> to vector<2x8x16xbf16>
    "tpu.trace_start"() <{level = 10 : i32, message = "bqd,bkd->bqk"}> : () -> ()
    %cst_29 = arith.constant dense<0.000000e+00> : vector<2x8x8xf32>
    %61 = tpu.matmul %54, %57, %cst_29 {dimension_numbers = #tpu.dot_dimension_numbers<[2], [2], [1], [1], [0, 0, 0, 1, 1, 1], [0], [0]>} : vector<2x8x16xbf16>, vector<2x8x16xbf16>, vector<2x8x8xf32> -> vector<2x8x8xf32>
    "tpu.trace_stop"() : () -> ()
    %62 = vector.shape_cast %5 : vector<8x8xf32> to vector<1x8x8xf32>
    %63 = vector.broadcast %62 : vector<1x8x8xf32> to vector<2x8x8xf32>
    %64 = arith.addf %61, %63 : vector<2x8x8xf32>
    %65 = vector.shape_cast %11 : vector<2x8xf32> to vector<2x1x8xf32>
    %66 = vector.broadcast %65 : vector<2x1x8xf32> to vector<2x8x8xf32>
    %67 = arith.addf %64, %66 : vector<2x8x8xf32>
    %cst_30 = arith.constant dense<0xFF800000> : vector<2x8xf32>
    %68 = vector.multi_reduction <maximumf>, %67, %cst_30 [2] : vector<2x8x8xf32> to vector<2x8xf32>
    %69 = vector.shape_cast %68 : vector<2x8xf32> to vector<2x8x1xf32>
    %70 = vector.broadcast %69 : vector<2x8x1xf32> to vector<2x8x8xf32>
    %71 = arith.subf %67, %70 : vector<2x8x8xf32>
    %72 = math.exp %71 : vector<2x8x8xf32>
    %cst_31 = arith.constant dense<0.000000e+00> : vector<2x8xf32>
    %73 = vector.multi_reduction <add>, %72, %cst_31 [2] : vector<2x8x8xf32> to vector<2x8xf32>
    %74 = vector.shape_cast %73 : vector<2x8xf32> to vector<2x8x1xf32>
    %75 = tpu.reciprocal %74 {approx = true} : vector<2x8x1xf32> -> vector<2x8x1xf32>
    %76 = vector.broadcast %75 : vector<2x8x1xf32> to vector<2x8x8xf32>
    %77 = arith.mulf %72, %76 : vector<2x8x8xf32>
    %78 = arith.truncf %77 : vector<2x8x8xf32> to vector<2x8x8xbf16>
    "tpu.trace_start"() <{level = 10 : i32, message = "bqk,bkd->bqd"}> : () -> ()
    %cst_32 = arith.constant dense<0.000000e+00> : vector<2x8x16xf32>
    %79 = tpu.matmul %78, %60, %cst_32 {dimension_numbers = #tpu.dot_dimension_numbers<[2], [1], [1], [2], [0, 0, 0, 1, 1, 2], [0], [0]>} : vector<2x8x8xbf16>, vector<2x8x16xbf16>, vector<2x8x16xf32> -> vector<2x8x16xf32>
    "tpu.trace_stop"() : () -> ()
    %80 = vector.shape_cast %79 : vector<2x8x16xf32> to vector<16x16xf32>
    %81 = arith.truncf %80 : vector<16x16xf32> to vector<16x16xbf16>
    %82 = vector.extract_strided_slice %50 {offsets = [0, 0], sizes = [16, 32], strides = [1, 1]} : vector<32x32xbf16> to vector<16x32xbf16>
    %cst_33 = arith.constant dense<0.000000e+00> : vector<16x32xf32>
    %83 = tpu.matmul %81, %82, %cst_33 {dimension_numbers = #tpu.dot_dimension_numbers<[1], [0], [0], [1], [0, 0, 1, 1], [], []>} : vector<16x16xbf16>, vector<16x32xbf16>, vector<16x32xf32> -> vector<16x32xf32>
    %84 = arith.addf %51, %83 : vector<16x32xf32>
    %85 = vector.extract_strided_slice %48 {offsets = [0, 16], sizes = [16, 16], strides = [1, 1]} : vector<16x32xf32> to vector<16x16xf32>
    %86 = vector.shape_cast %85 : vector<16x16xf32> to vector<2x8x16xf32>
    %87 = arith.truncf %86 : vector<2x8x16xf32> to vector<2x8x16xbf16>
    %88 = vector.extract_strided_slice %45 {offsets = [0, 48], sizes = [16, 16], strides = [1, 1]} : vector<16x96xf32> to vector<16x16xf32>
    %89 = vector.shape_cast %88 : vector<16x16xf32> to vector<2x8x16xf32>
    %90 = arith.truncf %89 : vector<2x8x16xf32> to vector<2x8x16xbf16>
    %91 = vector.extract_strided_slice %45 {offsets = [0, 80], sizes = [16, 16], strides = [1, 1]} : vector<16x96xf32> to vector<16x16xf32>
    %92 = vector.shape_cast %91 : vector<16x16xf32> to vector<2x8x16xf32>
    %93 = arith.truncf %92 : vector<2x8x16xf32> to vector<2x8x16xbf16>
    "tpu.trace_start"() <{level = 10 : i32, message = "bqd,bkd->bqk"}> : () -> ()
    %cst_34 = arith.constant dense<0.000000e+00> : vector<2x8x8xf32>
    %94 = tpu.matmul %87, %90, %cst_34 {dimension_numbers = #tpu.dot_dimension_numbers<[2], [2], [1], [1], [0, 0, 0, 1, 1, 1], [0], [0]>} : vector<2x8x16xbf16>, vector<2x8x16xbf16>, vector<2x8x8xf32> -> vector<2x8x8xf32>
    "tpu.trace_stop"() : () -> ()
    %95 = vector.shape_cast %5 : vector<8x8xf32> to vector<1x8x8xf32>
    %96 = vector.broadcast %95 : vector<1x8x8xf32> to vector<2x8x8xf32>
    %97 = arith.addf %94, %96 : vector<2x8x8xf32>
    %98 = vector.shape_cast %11 : vector<2x8xf32> to vector<2x1x8xf32>
    %99 = vector.broadcast %98 : vector<2x1x8xf32> to vector<2x8x8xf32>
    %100 = arith.addf %97, %99 : vector<2x8x8xf32>
    %cst_35 = arith.constant dense<0xFF800000> : vector<2x8xf32>
    %101 = vector.multi_reduction <maximumf>, %100, %cst_35 [2] : vector<2x8x8xf32> to vector<2x8xf32>
    %102 = vector.shape_cast %101 : vector<2x8xf32> to vector<2x8x1xf32>
    %103 = vector.broadcast %102 : vector<2x8x1xf32> to vector<2x8x8xf32>
    %104 = arith.subf %100, %103 : vector<2x8x8xf32>
    %105 = math.exp %104 : vector<2x8x8xf32>
    %cst_36 = arith.constant dense<0.000000e+00> : vector<2x8xf32>
    %106 = vector.multi_reduction <add>, %105, %cst_36 [2] : vector<2x8x8xf32> to vector<2x8xf32>
    %107 = vector.shape_cast %106 : vector<2x8xf32> to vector<2x8x1xf32>
    %108 = tpu.reciprocal %107 {approx = true} : vector<2x8x1xf32> -> vector<2x8x1xf32>
    %109 = vector.broadcast %108 : vector<2x8x1xf32> to vector<2x8x8xf32>
    %110 = arith.mulf %105, %109 : vector<2x8x8xf32>
    %111 = arith.truncf %110 : vector<2x8x8xf32> to vector<2x8x8xbf16>
    "tpu.trace_start"() <{level = 10 : i32, message = "bqk,bkd->bqd"}> : () -> ()
    %cst_37 = arith.constant dense<0.000000e+00> : vector<2x8x16xf32>
    %112 = tpu.matmul %111, %93, %cst_37 {dimension_numbers = #tpu.dot_dimension_numbers<[2], [1], [1], [2], [0, 0, 0, 1, 1, 2], [0], [0]>} : vector<2x8x8xbf16>, vector<2x8x16xbf16>, vector<2x8x16xf32> -> vector<2x8x16xf32>
    "tpu.trace_stop"() : () -> ()
    %113 = vector.shape_cast %112 : vector<2x8x16xf32> to vector<16x16xf32>
    %114 = arith.truncf %113 : vector<16x16xf32> to vector<16x16xbf16>
    %115 = vector.extract_strided_slice %50 {offsets = [16, 0], sizes = [16, 32], strides = [1, 1]} : vector<32x32xbf16> to vector<16x32xbf16>
    %cst_38 = arith.constant dense<0.000000e+00> : vector<16x32xf32>
    %116 = tpu.matmul %114, %115, %cst_38 {dimension_numbers = #tpu.dot_dimension_numbers<[1], [0], [0], [1], [0, 0, 1, 1], [], []>} : vector<16x16xbf16>, vector<16x32xbf16>, vector<16x32xf32> -> vector<16x32xf32>
    %117 = arith.addf %84, %116 : vector<16x32xf32>
    %c0_39 = arith.constant 0 : index
    %c0_40 = arith.constant 0 : index
    %c0_41 = arith.constant 0 : index
    %118 = vector.load %arg9[%c0_39, %c0_40, %c0_41] : memref<2x1x32xf32, #tpu.memory_space<vmem>>, vector<1x1x32xf32>
    %119 = vector.shape_cast %118 : vector<1x1x32xf32> to vector<1x32xf32>
    %120 = vector.broadcast %119 : vector<1x32xf32> to vector<16x32xf32>
    %121 = arith.addf %117, %120 : vector<16x32xf32>
    %122 = arith.addf %121, %37 : vector<16x32xf32>
    %c0_42 = arith.constant 0 : index
    %c0_43 = arith.constant 0 : index
    %c0_44 = arith.constant 0 : index
    %123 = vector.load %arg10[%c0_42, %c0_43, %c0_44] : memref<2x1x32xf32, #tpu.memory_space<vmem>>, vector<1x1x32xf32>
    %124 = vector.shape_cast %123 : vector<1x1x32xf32> to vector<1x32xf32>
    %c0_45 = arith.constant 0 : index
    %c0_46 = arith.constant 0 : index
    %c0_47 = arith.constant 0 : index
    %125 = vector.load %arg11[%c0_45, %c0_46, %c0_47] : memref<2x1x32xf32, #tpu.memory_space<vmem>>, vector<1x1x32xf32>
    %126 = vector.shape_cast %125 : vector<1x1x32xf32> to vector<1x32xf32>
    %cst_48 = arith.constant dense<0.000000e+00> : vector<16xf32>
    %127 = vector.multi_reduction <add>, %122, %cst_48 [1] : vector<16x32xf32> to vector<16xf32>
    %128 = vector.shape_cast %127 : vector<16xf32> to vector<16x1xf32>
    %cst_49 = arith.constant 3.200000e+01 : f32
    %129 = vector.broadcast %cst_49 : f32 to vector<16x1xf32>
    %130 = arith.divf %128, %129 : vector<16x1xf32>
    %131 = vector.broadcast %130 : vector<16x1xf32> to vector<16x32xf32>
    %132 = arith.subf %122, %131 : vector<16x32xf32>
    %133 = arith.mulf %132, %132 : vector<16x32xf32>
    %cst_50 = arith.constant dense<0.000000e+00> : vector<16xf32>
    %134 = vector.multi_reduction <add>, %133, %cst_50 [1] : vector<16x32xf32> to vector<16xf32>
    %135 = vector.shape_cast %134 : vector<16xf32> to vector<16x1xf32>
    %cst_51 = arith.constant 3.200000e+01 : f32
    %136 = vector.broadcast %cst_51 : f32 to vector<16x1xf32>
    %137 = arith.divf %135, %136 : vector<16x1xf32>
    %138 = vector.broadcast %130 : vector<16x1xf32> to vector<16x32xf32>
    %139 = arith.subf %122, %138 : vector<16x32xf32>
    %cst_52 = arith.constant 9.99999996E-13 : f32
    %140 = vector.broadcast %cst_52 : f32 to vector<16x1xf32>
    %141 = arith.addf %137, %140 : vector<16x1xf32>
    %142 = math.rsqrt %141 : vector<16x1xf32>
    %143 = vector.broadcast %142 : vector<16x1xf32> to vector<16x32xf32>
    %144 = arith.mulf %139, %143 : vector<16x32xf32>
    %145 = vector.broadcast %124 : vector<1x32xf32> to vector<16x32xf32>
    %146 = arith.mulf %144, %145 : vector<16x32xf32>
    %147 = vector.broadcast %126 : vector<1x32xf32> to vector<16x32xf32>
    %148 = arith.addf %146, %147 : vector<16x32xf32>
    %149 = arith.truncf %148 : vector<16x32xf32> to vector<16x32xbf16>
    %c0_53 = arith.constant 0 : index
    %c0_54 = arith.constant 0 : index
    %c0_55 = arith.constant 0 : index
    %150 = vector.load %arg12[%c0_53, %c0_54, %c0_55] : memref<2x32x64xbf16, #tpu.memory_space<vmem>>, vector<1x32x64xbf16>
    %151 = vector.shape_cast %150 : vector<1x32x64xbf16> to vector<32x64xbf16>
    %cst_56 = arith.constant dense<0.000000e+00> : vector<16x64xf32>
    %152 = tpu.matmul %149, %151, %cst_56 {dimension_numbers = #tpu.dot_dimension_numbers<[1], [0], [0], [1], [0, 0, 1, 1], [], []>} : vector<16x32xbf16>, vector<32x64xbf16>, vector<16x64xf32> -> vector<16x64xf32>
    %c0_57 = arith.constant 0 : index
    %c0_58 = arith.constant 0 : index
    %c0_59 = arith.constant 0 : index
    %153 = vector.load %arg13[%c0_57, %c0_58, %c0_59] : memref<2x1x64xf32, #tpu.memory_space<vmem>>, vector<1x1x64xf32>
    %154 = vector.shape_cast %153 : vector<1x1x64xf32> to vector<1x64xf32>
    %155 = vector.broadcast %154 : vector<1x64xf32> to vector<16x64xf32>
    %156 = arith.addf %152, %155 : vector<16x64xf32>
    %cst_60 = arith.constant 0.707106769 : f32
    %157 = vector.broadcast %cst_60 : f32 to vector<16x64xf32>
    %158 = arith.mulf %156, %157 : vector<16x64xf32>
    %159 = math.absf %158 : vector<16x64xf32>
    %cst_61 = arith.constant 0.327591091 : f32
    %160 = vector.broadcast %cst_61 : f32 to vector<16x64xf32>
    %161 = arith.mulf %160, %159 : vector<16x64xf32>
    %cst_62 = arith.constant 1.000000e+00 : f32
    %162 = vector.broadcast %cst_62 : f32 to vector<16x64xf32>
    %163 = arith.addf %162, %161 : vector<16x64xf32>
    %164 = tpu.reciprocal %163 {approx = true} : vector<16x64xf32> -> vector<16x64xf32>
    %cst_63 = arith.constant 1.06140542 : f32
    %165 = vector.broadcast %cst_63 : f32 to vector<16x64xf32>
    %166 = arith.mulf %165, %164 : vector<16x64xf32>
    %cst_64 = arith.constant -1.45315206 : f32
    %167 = vector.broadcast %cst_64 : f32 to vector<16x64xf32>
    %168 = arith.addf %166, %167 : vector<16x64xf32>
    %169 = arith.mulf %168, %164 : vector<16x64xf32>
    %cst_65 = arith.constant 1.42141378 : f32
    %170 = vector.broadcast %cst_65 : f32 to vector<16x64xf32>
    %171 = arith.addf %169, %170 : vector<16x64xf32>
    %172 = arith.mulf %171, %164 : vector<16x64xf32>
    %cst_66 = arith.constant -0.284496725 : f32
    %173 = vector.broadcast %cst_66 : f32 to vector<16x64xf32>
    %174 = arith.addf %172, %173 : vector<16x64xf32>
    %175 = arith.mulf %174, %164 : vector<16x64xf32>
    %cst_67 = arith.constant 0.254829586 : f32
    %176 = vector.broadcast %cst_67 : f32 to vector<16x64xf32>
    %177 = arith.addf %175, %176 : vector<16x64xf32>
    %178 = arith.mulf %177, %164 : vector<16x64xf32>
    %cst_68 = arith.constant 0.000000e+00 : f32
    %179 = vector.broadcast %cst_68 : f32 to vector<16x64xf32>
    %180 = arith.subf %179, %159 : vector<16x64xf32>
    %181 = arith.mulf %180, %159 : vector<16x64xf32>
    %182 = math.exp %181 : vector<16x64xf32>
    %183 = arith.mulf %178, %182 : vector<16x64xf32>
    %cst_69 = arith.constant 1.000000e+00 : f32
    %184 = vector.broadcast %cst_69 : f32 to vector<16x64xf32>
    %185 = arith.subf %184, %183 : vector<16x64xf32>
    %cst_70 = arith.constant 0.000000e+00 : f32
    %186 = vector.broadcast %cst_70 : f32 to vector<16x64xf32>
    %187 = arith.cmpf oge, %158, %186 : vector<16x64xf32>
    %cst_71 = arith.constant 1.000000e+00 : f32
    %cst_72 = arith.constant -1.000000e+00 : f32
    %188 = vector.broadcast %cst_71 : f32 to vector<16x64xf32>
    %189 = vector.broadcast %cst_72 : f32 to vector<16x64xf32>
    %190 = arith.select %187, %188, %189 : vector<16x64xi1>, vector<16x64xf32>
    %191 = arith.mulf %190, %185 : vector<16x64xf32>
    %cst_73 = arith.constant 5.000000e-01 : f32
    %192 = vector.broadcast %cst_73 : f32 to vector<16x64xf32>
    %193 = arith.mulf %192, %156 : vector<16x64xf32>
    %cst_74 = arith.constant 1.000000e+00 : f32
    %194 = vector.broadcast %cst_74 : f32 to vector<16x64xf32>
    %195 = arith.addf %194, %191 : vector<16x64xf32>
    %196 = arith.mulf %193, %195 : vector<16x64xf32>
    %197 = arith.truncf %196 : vector<16x64xf32> to vector<16x64xbf16>
    %c0_75 = arith.constant 0 : index
    %c0_76 = arith.constant 0 : index
    %c0_77 = arith.constant 0 : index
    %198 = vector.load %arg14[%c0_75, %c0_76, %c0_77] : memref<2x64x32xbf16, #tpu.memory_space<vmem>>, vector<1x64x32xbf16>
    %199 = vector.shape_cast %198 : vector<1x64x32xbf16> to vector<64x32xbf16>
    %cst_78 = arith.constant dense<0.000000e+00> : vector<16x32xf32>
    %200 = tpu.matmul %197, %199, %cst_78 {dimension_numbers = #tpu.dot_dimension_numbers<[1], [0], [0], [1], [0, 0, 1, 1], [], []>} : vector<16x64xbf16>, vector<64x32xbf16>, vector<16x32xf32> -> vector<16x32xf32>
    %c0_79 = arith.constant 0 : index
    %c0_80 = arith.constant 0 : index
    %c0_81 = arith.constant 0 : index
    %201 = vector.load %arg15[%c0_79, %c0_80, %c0_81] : memref<2x1x32xf32, #tpu.memory_space<vmem>>, vector<1x1x32xf32>
    %202 = vector.shape_cast %201 : vector<1x1x32xf32> to vector<1x32xf32>
    %203 = vector.broadcast %202 : vector<1x32xf32> to vector<16x32xf32>
    %204 = arith.addf %200, %203 : vector<16x32xf32>
    %205 = arith.addf %204, %148 : vector<16x32xf32>
    %c0_82 = arith.constant 0 : index
    %c0_83 = arith.constant 0 : index
    %c0_84 = arith.constant 0 : index
    %206 = vector.load %arg16[%c0_82, %c0_83, %c0_84] : memref<2x1x32xf32, #tpu.memory_space<vmem>>, vector<1x1x32xf32>
    %207 = vector.shape_cast %206 : vector<1x1x32xf32> to vector<1x32xf32>
    %c0_85 = arith.constant 0 : index
    %c0_86 = arith.constant 0 : index
    %c0_87 = arith.constant 0 : index
    %208 = vector.load %arg17[%c0_85, %c0_86, %c0_87] : memref<2x1x32xf32, #tpu.memory_space<vmem>>, vector<1x1x32xf32>
    %209 = vector.shape_cast %208 : vector<1x1x32xf32> to vector<1x32xf32>
    %cst_88 = arith.constant dense<0.000000e+00> : vector<16xf32>
    %210 = vector.multi_reduction <add>, %205, %cst_88 [1] : vector<16x32xf32> to vector<16xf32>
    %211 = vector.shape_cast %210 : vector<16xf32> to vector<16x1xf32>
    %cst_89 = arith.constant 3.200000e+01 : f32
    %212 = vector.broadcast %cst_89 : f32 to vector<16x1xf32>
    %213 = arith.divf %211, %212 : vector<16x1xf32>
    %214 = vector.broadcast %213 : vector<16x1xf32> to vector<16x32xf32>
    %215 = arith.subf %205, %214 : vector<16x32xf32>
    %216 = arith.mulf %215, %215 : vector<16x32xf32>
    %cst_90 = arith.constant dense<0.000000e+00> : vector<16xf32>
    %217 = vector.multi_reduction <add>, %216, %cst_90 [1] : vector<16x32xf32> to vector<16xf32>
    %218 = vector.shape_cast %217 : vector<16xf32> to vector<16x1xf32>
    %cst_91 = arith.constant 3.200000e+01 : f32
    %219 = vector.broadcast %cst_91 : f32 to vector<16x1xf32>
    %220 = arith.divf %218, %219 : vector<16x1xf32>
    %221 = vector.broadcast %213 : vector<16x1xf32> to vector<16x32xf32>
    %222 = arith.subf %205, %221 : vector<16x32xf32>
    %cst_92 = arith.constant 9.99999996E-13 : f32
    %223 = vector.broadcast %cst_92 : f32 to vector<16x1xf32>
    %224 = arith.addf %220, %223 : vector<16x1xf32>
    %225 = math.rsqrt %224 : vector<16x1xf32>
    %226 = vector.broadcast %225 : vector<16x1xf32> to vector<16x32xf32>
    %227 = arith.mulf %222, %226 : vector<16x32xf32>
    %228 = vector.broadcast %207 : vector<1x32xf32> to vector<16x32xf32>
    %229 = arith.mulf %227, %228 : vector<16x32xf32>
    %230 = vector.broadcast %209 : vector<1x32xf32> to vector<16x32xf32>
    %231 = arith.addf %229, %230 : vector<16x32xf32>
    %232 = arith.truncf %231 : vector<16x32xf32> to vector<16x32xbf16>
    %c1 = arith.constant 1 : index
    %c0_93 = arith.constant 0 : index
    %c0_94 = arith.constant 0 : index
    %233 = vector.load %arg6[%c1, %c0_93, %c0_94] : memref<2x32x96xbf16, #tpu.memory_space<vmem>>, vector<1x32x96xbf16>
    %234 = vector.shape_cast %233 : vector<1x32x96xbf16> to vector<32x96xbf16>
    %cst_95 = arith.constant dense<0.000000e+00> : vector<16x96xf32>
    %235 = tpu.matmul %232, %234, %cst_95 {dimension_numbers = #tpu.dot_dimension_numbers<[1], [0], [0], [1], [0, 0, 1, 1], [], []>} : vector<16x32xbf16>, vector<32x96xbf16>, vector<16x96xf32> -> vector<16x96xf32>
    %c1_96 = arith.constant 1 : index
    %c0_97 = arith.constant 0 : index
    %c0_98 = arith.constant 0 : index
    %236 = vector.load %arg7[%c1_96, %c0_97, %c0_98] : memref<2x1x96xf32, #tpu.memory_space<vmem>>, vector<1x1x96xf32>
    %237 = vector.shape_cast %236 : vector<1x1x96xf32> to vector<1x96xf32>
    %238 = vector.broadcast %237 : vector<1x96xf32> to vector<16x96xf32>
    %239 = arith.addf %235, %238 : vector<16x96xf32>
    %240 = vector.extract_strided_slice %239 {offsets = [0, 0], sizes = [16, 32], strides = [1, 1]} : vector<16x96xf32> to vector<16x32xf32>
    %cst_99 = arith.constant 2.500000e-01 : f32
    %241 = vector.broadcast %cst_99 : f32 to vector<16x32xf32>
    %242 = arith.mulf %240, %241 : vector<16x32xf32>
    %c1_100 = arith.constant 1 : index
    %c0_101 = arith.constant 0 : index
    %c0_102 = arith.constant 0 : index
    %243 = vector.load %arg8[%c1_100, %c0_101, %c0_102] : memref<2x32x32xbf16, #tpu.memory_space<vmem>>, vector<1x32x32xbf16>
    %244 = vector.shape_cast %243 : vector<1x32x32xbf16> to vector<32x32xbf16>
    %cst_103 = arith.constant 0.000000e+00 : f32
    %245 = vector.broadcast %cst_103 : f32 to vector<16x32xf32>
    %246 = vector.extract_strided_slice %242 {offsets = [0, 0], sizes = [16, 16], strides = [1, 1]} : vector<16x32xf32> to vector<16x16xf32>
    %247 = vector.shape_cast %246 : vector<16x16xf32> to vector<2x8x16xf32>
    %248 = arith.truncf %247 : vector<2x8x16xf32> to vector<2x8x16xbf16>
    %249 = vector.extract_strided_slice %239 {offsets = [0, 32], sizes = [16, 16], strides = [1, 1]} : vector<16x96xf32> to vector<16x16xf32>
    %250 = vector.shape_cast %249 : vector<16x16xf32> to vector<2x8x16xf32>
    %251 = arith.truncf %250 : vector<2x8x16xf32> to vector<2x8x16xbf16>
    %252 = vector.extract_strided_slice %239 {offsets = [0, 64], sizes = [16, 16], strides = [1, 1]} : vector<16x96xf32> to vector<16x16xf32>
    %253 = vector.shape_cast %252 : vector<16x16xf32> to vector<2x8x16xf32>
    %254 = arith.truncf %253 : vector<2x8x16xf32> to vector<2x8x16xbf16>
    "tpu.trace_start"() <{level = 10 : i32, message = "bqd,bkd->bqk"}> : () -> ()
    %cst_104 = arith.constant dense<0.000000e+00> : vector<2x8x8xf32>
    %255 = tpu.matmul %248, %251, %cst_104 {dimension_numbers = #tpu.dot_dimension_numbers<[2], [2], [1], [1], [0, 0, 0, 1, 1, 1], [0], [0]>} : vector<2x8x16xbf16>, vector<2x8x16xbf16>, vector<2x8x8xf32> -> vector<2x8x8xf32>
    "tpu.trace_stop"() : () -> ()
    %256 = vector.shape_cast %5 : vector<8x8xf32> to vector<1x8x8xf32>
    %257 = vector.broadcast %256 : vector<1x8x8xf32> to vector<2x8x8xf32>
    %258 = arith.addf %255, %257 : vector<2x8x8xf32>
    %259 = vector.shape_cast %11 : vector<2x8xf32> to vector<2x1x8xf32>
    %260 = vector.broadcast %259 : vector<2x1x8xf32> to vector<2x8x8xf32>
    %261 = arith.addf %258, %260 : vector<2x8x8xf32>
    %cst_105 = arith.constant dense<0xFF800000> : vector<2x8xf32>
    %262 = vector.multi_reduction <maximumf>, %261, %cst_105 [2] : vector<2x8x8xf32> to vector<2x8xf32>
    %263 = vector.shape_cast %262 : vector<2x8xf32> to vector<2x8x1xf32>
    %264 = vector.broadcast %263 : vector<2x8x1xf32> to vector<2x8x8xf32>
    %265 = arith.subf %261, %264 : vector<2x8x8xf32>
    %266 = math.exp %265 : vector<2x8x8xf32>
    %cst_106 = arith.constant dense<0.000000e+00> : vector<2x8xf32>
    %267 = vector.multi_reduction <add>, %266, %cst_106 [2] : vector<2x8x8xf32> to vector<2x8xf32>
    %268 = vector.shape_cast %267 : vector<2x8xf32> to vector<2x8x1xf32>
    %269 = tpu.reciprocal %268 {approx = true} : vector<2x8x1xf32> -> vector<2x8x1xf32>
    %270 = vector.broadcast %269 : vector<2x8x1xf32> to vector<2x8x8xf32>
    %271 = arith.mulf %266, %270 : vector<2x8x8xf32>
    %272 = arith.truncf %271 : vector<2x8x8xf32> to vector<2x8x8xbf16>
    "tpu.trace_start"() <{level = 10 : i32, message = "bqk,bkd->bqd"}> : () -> ()
    %cst_107 = arith.constant dense<0.000000e+00> : vector<2x8x16xf32>
    %273 = tpu.matmul %272, %254, %cst_107 {dimension_numbers = #tpu.dot_dimension_numbers<[2], [1], [1], [2], [0, 0, 0, 1, 1, 2], [0], [0]>} : vector<2x8x8xbf16>, vector<2x8x16xbf16>, vector<2x8x16xf32> -> vector<2x8x16xf32>
    "tpu.trace_stop"() : () -> ()
    %274 = vector.shape_cast %273 : vector<2x8x16xf32> to vector<16x16xf32>
    %275 = arith.truncf %274 : vector<16x16xf32> to vector<16x16xbf16>
    %276 = vector.extract_strided_slice %244 {offsets = [0, 0], sizes = [16, 32], strides = [1, 1]} : vector<32x32xbf16> to vector<16x32xbf16>
    %cst_108 = arith.constant dense<0.000000e+00> : vector<16x32xf32>
    %277 = tpu.matmul %275, %276, %cst_108 {dimension_numbers = #tpu.dot_dimension_numbers<[1], [0], [0], [1], [0, 0, 1, 1], [], []>} : vector<16x16xbf16>, vector<16x32xbf16>, vector<16x32xf32> -> vector<16x32xf32>
    %278 = arith.addf %245, %277 : vector<16x32xf32>
    %279 = vector.extract_strided_slice %242 {offsets = [0, 16], sizes = [16, 16], strides = [1, 1]} : vector<16x32xf32> to vector<16x16xf32>
    %280 = vector.shape_cast %279 : vector<16x16xf32> to vector<2x8x16xf32>
    %281 = arith.truncf %280 : vector<2x8x16xf32> to vector<2x8x16xbf16>
    %282 = vector.extract_strided_slice %239 {offsets = [0, 48], sizes = [16, 16], strides = [1, 1]} : vector<16x96xf32> to vector<16x16xf32>
    %283 = vector.shape_cast %282 : vector<16x16xf32> to vector<2x8x16xf32>
    %284 = arith.truncf %283 : vector<2x8x16xf32> to vector<2x8x16xbf16>
    %285 = vector.extract_strided_slice %239 {offsets = [0, 80], sizes = [16, 16], strides = [1, 1]} : vector<16x96xf32> to vector<16x16xf32>
    %286 = vector.shape_cast %285 : vector<16x16xf32> to vector<2x8x16xf32>
    %287 = arith.truncf %286 : vector<2x8x16xf32> to vector<2x8x16xbf16>
    "tpu.trace_start"() <{level = 10 : i32, message = "bqd,bkd->bqk"}> : () -> ()
    %cst_109 = arith.constant dense<0.000000e+00> : vector<2x8x8xf32>
    %288 = tpu.matmul %281, %284, %cst_109 {dimension_numbers = #tpu.dot_dimension_numbers<[2], [2], [1], [1], [0, 0, 0, 1, 1, 1], [0], [0]>} : vector<2x8x16xbf16>, vector<2x8x16xbf16>, vector<2x8x8xf32> -> vector<2x8x8xf32>
    "tpu.trace_stop"() : () -> ()
    %289 = vector.shape_cast %5 : vector<8x8xf32> to vector<1x8x8xf32>
    %290 = vector.broadcast %289 : vector<1x8x8xf32> to vector<2x8x8xf32>
    %291 = arith.addf %288, %290 : vector<2x8x8xf32>
    %292 = vector.shape_cast %11 : vector<2x8xf32> to vector<2x1x8xf32>
    %293 = vector.broadcast %292 : vector<2x1x8xf32> to vector<2x8x8xf32>
    %294 = arith.addf %291, %293 : vector<2x8x8xf32>
    %cst_110 = arith.constant dense<0xFF800000> : vector<2x8xf32>
    %295 = vector.multi_reduction <maximumf>, %294, %cst_110 [2] : vector<2x8x8xf32> to vector<2x8xf32>
    %296 = vector.shape_cast %295 : vector<2x8xf32> to vector<2x8x1xf32>
    %297 = vector.broadcast %296 : vector<2x8x1xf32> to vector<2x8x8xf32>
    %298 = arith.subf %294, %297 : vector<2x8x8xf32>
    %299 = math.exp %298 : vector<2x8x8xf32>
    %cst_111 = arith.constant dense<0.000000e+00> : vector<2x8xf32>
    %300 = vector.multi_reduction <add>, %299, %cst_111 [2] : vector<2x8x8xf32> to vector<2x8xf32>
    %301 = vector.shape_cast %300 : vector<2x8xf32> to vector<2x8x1xf32>
    %302 = tpu.reciprocal %301 {approx = true} : vector<2x8x1xf32> -> vector<2x8x1xf32>
    %303 = vector.broadcast %302 : vector<2x8x1xf32> to vector<2x8x8xf32>
    %304 = arith.mulf %299, %303 : vector<2x8x8xf32>
    %305 = arith.truncf %304 : vector<2x8x8xf32> to vector<2x8x8xbf16>
    "tpu.trace_start"() <{level = 10 : i32, message = "bqk,bkd->bqd"}> : () -> ()
    %cst_112 = arith.constant dense<0.000000e+00> : vector<2x8x16xf32>
    %306 = tpu.matmul %305, %287, %cst_112 {dimension_numbers = #tpu.dot_dimension_numbers<[2], [1], [1], [2], [0, 0, 0, 1, 1, 2], [0], [0]>} : vector<2x8x8xbf16>, vector<2x8x16xbf16>, vector<2x8x16xf32> -> vector<2x8x16xf32>
    "tpu.trace_stop"() : () -> ()
    %307 = vector.shape_cast %306 : vector<2x8x16xf32> to vector<16x16xf32>
    %308 = arith.truncf %307 : vector<16x16xf32> to vector<16x16xbf16>
    %309 = vector.extract_strided_slice %244 {offsets = [16, 0], sizes = [16, 32], strides = [1, 1]} : vector<32x32xbf16> to vector<16x32xbf16>
    %cst_113 = arith.constant dense<0.000000e+00> : vector<16x32xf32>
    %310 = tpu.matmul %308, %309, %cst_113 {dimension_numbers = #tpu.dot_dimension_numbers<[1], [0], [0], [1], [0, 0, 1, 1], [], []>} : vector<16x16xbf16>, vector<16x32xbf16>, vector<16x32xf32> -> vector<16x32xf32>
    %311 = arith.addf %278, %310 : vector<16x32xf32>
    %c1_114 = arith.constant 1 : index
    %c0_115 = arith.constant 0 : index
    %c0_116 = arith.constant 0 : index
    %312 = vector.load %arg9[%c1_114, %c0_115, %c0_116] : memref<2x1x32xf32, #tpu.memory_space<vmem>>, vector<1x1x32xf32>
    %313 = vector.shape_cast %312 : vector<1x1x32xf32> to vector<1x32xf32>
    %314 = vector.broadcast %313 : vector<1x32xf32> to vector<16x32xf32>
    %315 = arith.addf %311, %314 : vector<16x32xf32>
    %316 = arith.addf %315, %231 : vector<16x32xf32>
    %c1_117 = arith.constant 1 : index
    %c0_118 = arith.constant 0 : index
    %c0_119 = arith.constant 0 : index
    %317 = vector.load %arg10[%c1_117, %c0_118, %c0_119] : memref<2x1x32xf32, #tpu.memory_space<vmem>>, vector<1x1x32xf32>
    %318 = vector.shape_cast %317 : vector<1x1x32xf32> to vector<1x32xf32>
    %c1_120 = arith.constant 1 : index
    %c0_121 = arith.constant 0 : index
    %c0_122 = arith.constant 0 : index
    %319 = vector.load %arg11[%c1_120, %c0_121, %c0_122] : memref<2x1x32xf32, #tpu.memory_space<vmem>>, vector<1x1x32xf32>
    %320 = vector.shape_cast %319 : vector<1x1x32xf32> to vector<1x32xf32>
    %cst_123 = arith.constant dense<0.000000e+00> : vector<16xf32>
    %321 = vector.multi_reduction <add>, %316, %cst_123 [1] : vector<16x32xf32> to vector<16xf32>
    %322 = vector.shape_cast %321 : vector<16xf32> to vector<16x1xf32>
    %cst_124 = arith.constant 3.200000e+01 : f32
    %323 = vector.broadcast %cst_124 : f32 to vector<16x1xf32>
    %324 = arith.divf %322, %323 : vector<16x1xf32>
    %325 = vector.broadcast %324 : vector<16x1xf32> to vector<16x32xf32>
    %326 = arith.subf %316, %325 : vector<16x32xf32>
    %327 = arith.mulf %326, %326 : vector<16x32xf32>
    %cst_125 = arith.constant dense<0.000000e+00> : vector<16xf32>
    %328 = vector.multi_reduction <add>, %327, %cst_125 [1] : vector<16x32xf32> to vector<16xf32>
    %329 = vector.shape_cast %328 : vector<16xf32> to vector<16x1xf32>
    %cst_126 = arith.constant 3.200000e+01 : f32
    %330 = vector.broadcast %cst_126 : f32 to vector<16x1xf32>
    %331 = arith.divf %329, %330 : vector<16x1xf32>
    %332 = vector.broadcast %324 : vector<16x1xf32> to vector<16x32xf32>
    %333 = arith.subf %316, %332 : vector<16x32xf32>
    %cst_127 = arith.constant 9.99999996E-13 : f32
    %334 = vector.broadcast %cst_127 : f32 to vector<16x1xf32>
    %335 = arith.addf %331, %334 : vector<16x1xf32>
    %336 = math.rsqrt %335 : vector<16x1xf32>
    %337 = vector.broadcast %336 : vector<16x1xf32> to vector<16x32xf32>
    %338 = arith.mulf %333, %337 : vector<16x32xf32>
    %339 = vector.broadcast %318 : vector<1x32xf32> to vector<16x32xf32>
    %340 = arith.mulf %338, %339 : vector<16x32xf32>
    %341 = vector.broadcast %320 : vector<1x32xf32> to vector<16x32xf32>
    %342 = arith.addf %340, %341 : vector<16x32xf32>
    %343 = arith.truncf %342 : vector<16x32xf32> to vector<16x32xbf16>
    %c1_128 = arith.constant 1 : index
    %c0_129 = arith.constant 0 : index
    %c0_130 = arith.constant 0 : index
    %344 = vector.load %arg12[%c1_128, %c0_129, %c0_130] : memref<2x32x64xbf16, #tpu.memory_space<vmem>>, vector<1x32x64xbf16>
    %345 = vector.shape_cast %344 : vector<1x32x64xbf16> to vector<32x64xbf16>
    %cst_131 = arith.constant dense<0.000000e+00> : vector<16x64xf32>
    %346 = tpu.matmul %343, %345, %cst_131 {dimension_numbers = #tpu.dot_dimension_numbers<[1], [0], [0], [1], [0, 0, 1, 1], [], []>} : vector<16x32xbf16>, vector<32x64xbf16>, vector<16x64xf32> -> vector<16x64xf32>
    %c1_132 = arith.constant 1 : index
    %c0_133 = arith.constant 0 : index
    %c0_134 = arith.constant 0 : index
    %347 = vector.load %arg13[%c1_132, %c0_133, %c0_134] : memref<2x1x64xf32, #tpu.memory_space<vmem>>, vector<1x1x64xf32>
    %348 = vector.shape_cast %347 : vector<1x1x64xf32> to vector<1x64xf32>
    %349 = vector.broadcast %348 : vector<1x64xf32> to vector<16x64xf32>
    %350 = arith.addf %346, %349 : vector<16x64xf32>
    %cst_135 = arith.constant 0.707106769 : f32
    %351 = vector.broadcast %cst_135 : f32 to vector<16x64xf32>
    %352 = arith.mulf %350, %351 : vector<16x64xf32>
    %353 = math.absf %352 : vector<16x64xf32>
    %cst_136 = arith.constant 0.327591091 : f32
    %354 = vector.broadcast %cst_136 : f32 to vector<16x64xf32>
    %355 = arith.mulf %354, %353 : vector<16x64xf32>
    %cst_137 = arith.constant 1.000000e+00 : f32
    %356 = vector.broadcast %cst_137 : f32 to vector<16x64xf32>
    %357 = arith.addf %356, %355 : vector<16x64xf32>
    %358 = tpu.reciprocal %357 {approx = true} : vector<16x64xf32> -> vector<16x64xf32>
    %cst_138 = arith.constant 1.06140542 : f32
    %359 = vector.broadcast %cst_138 : f32 to vector<16x64xf32>
    %360 = arith.mulf %359, %358 : vector<16x64xf32>
    %cst_139 = arith.constant -1.45315206 : f32
    %361 = vector.broadcast %cst_139 : f32 to vector<16x64xf32>
    %362 = arith.addf %360, %361 : vector<16x64xf32>
    %363 = arith.mulf %362, %358 : vector<16x64xf32>
    %cst_140 = arith.constant 1.42141378 : f32
    %364 = vector.broadcast %cst_140 : f32 to vector<16x64xf32>
    %365 = arith.addf %363, %364 : vector<16x64xf32>
    %366 = arith.mulf %365, %358 : vector<16x64xf32>
    %cst_141 = arith.constant -0.284496725 : f32
    %367 = vector.broadcast %cst_141 : f32 to vector<16x64xf32>
    %368 = arith.addf %366, %367 : vector<16x64xf32>
    %369 = arith.mulf %368, %358 : vector<16x64xf32>
    %cst_142 = arith.constant 0.254829586 : f32
    %370 = vector.broadcast %cst_142 : f32 to vector<16x64xf32>
    %371 = arith.addf %369, %370 : vector<16x64xf32>
    %372 = arith.mulf %371, %358 : vector<16x64xf32>
    %cst_143 = arith.constant 0.000000e+00 : f32
    %373 = vector.broadcast %cst_143 : f32 to vector<16x64xf32>
    %374 = arith.subf %373, %353 : vector<16x64xf32>
    %375 = arith.mulf %374, %353 : vector<16x64xf32>
    %376 = math.exp %375 : vector<16x64xf32>
    %377 = arith.mulf %372, %376 : vector<16x64xf32>
    %cst_144 = arith.constant 1.000000e+00 : f32
    %378 = vector.broadcast %cst_144 : f32 to vector<16x64xf32>
    %379 = arith.subf %378, %377 : vector<16x64xf32>
    %cst_145 = arith.constant 0.000000e+00 : f32
    %380 = vector.broadcast %cst_145 : f32 to vector<16x64xf32>
    %381 = arith.cmpf oge, %352, %380 : vector<16x64xf32>
    %cst_146 = arith.constant 1.000000e+00 : f32
    %cst_147 = arith.constant -1.000000e+00 : f32
    %382 = vector.broadcast %cst_146 : f32 to vector<16x64xf32>
    %383 = vector.broadcast %cst_147 : f32 to vector<16x64xf32>
    %384 = arith.select %381, %382, %383 : vector<16x64xi1>, vector<16x64xf32>
    %385 = arith.mulf %384, %379 : vector<16x64xf32>
    %cst_148 = arith.constant 5.000000e-01 : f32
    %386 = vector.broadcast %cst_148 : f32 to vector<16x64xf32>
    %387 = arith.mulf %386, %350 : vector<16x64xf32>
    %cst_149 = arith.constant 1.000000e+00 : f32
    %388 = vector.broadcast %cst_149 : f32 to vector<16x64xf32>
    %389 = arith.addf %388, %385 : vector<16x64xf32>
    %390 = arith.mulf %387, %389 : vector<16x64xf32>
    %391 = arith.truncf %390 : vector<16x64xf32> to vector<16x64xbf16>
    %c1_150 = arith.constant 1 : index
    %c0_151 = arith.constant 0 : index
    %c0_152 = arith.constant 0 : index
    %392 = vector.load %arg14[%c1_150, %c0_151, %c0_152] : memref<2x64x32xbf16, #tpu.memory_space<vmem>>, vector<1x64x32xbf16>
    %393 = vector.shape_cast %392 : vector<1x64x32xbf16> to vector<64x32xbf16>
    %cst_153 = arith.constant dense<0.000000e+00> : vector<16x32xf32>
    %394 = tpu.matmul %391, %393, %cst_153 {dimension_numbers = #tpu.dot_dimension_numbers<[1], [0], [0], [1], [0, 0, 1, 1], [], []>} : vector<16x64xbf16>, vector<64x32xbf16>, vector<16x32xf32> -> vector<16x32xf32>
    %c1_154 = arith.constant 1 : index
    %c0_155 = arith.constant 0 : index
    %c0_156 = arith.constant 0 : index
    %395 = vector.load %arg15[%c1_154, %c0_155, %c0_156] : memref<2x1x32xf32, #tpu.memory_space<vmem>>, vector<1x1x32xf32>
    %396 = vector.shape_cast %395 : vector<1x1x32xf32> to vector<1x32xf32>
    %397 = vector.broadcast %396 : vector<1x32xf32> to vector<16x32xf32>
    %398 = arith.addf %394, %397 : vector<16x32xf32>
    %399 = arith.addf %398, %342 : vector<16x32xf32>
    %c1_157 = arith.constant 1 : index
    %c0_158 = arith.constant 0 : index
    %c0_159 = arith.constant 0 : index
    %400 = vector.load %arg16[%c1_157, %c0_158, %c0_159] : memref<2x1x32xf32, #tpu.memory_space<vmem>>, vector<1x1x32xf32>
    %401 = vector.shape_cast %400 : vector<1x1x32xf32> to vector<1x32xf32>
    %c1_160 = arith.constant 1 : index
    %c0_161 = arith.constant 0 : index
    %c0_162 = arith.constant 0 : index
    %402 = vector.load %arg17[%c1_160, %c0_161, %c0_162] : memref<2x1x32xf32, #tpu.memory_space<vmem>>, vector<1x1x32xf32>
    %403 = vector.shape_cast %402 : vector<1x1x32xf32> to vector<1x32xf32>
    %cst_163 = arith.constant dense<0.000000e+00> : vector<16xf32>
    %404 = vector.multi_reduction <add>, %399, %cst_163 [1] : vector<16x32xf32> to vector<16xf32>
    %405 = vector.shape_cast %404 : vector<16xf32> to vector<16x1xf32>
    %cst_164 = arith.constant 3.200000e+01 : f32
    %406 = vector.broadcast %cst_164 : f32 to vector<16x1xf32>
    %407 = arith.divf %405, %406 : vector<16x1xf32>
    %408 = vector.broadcast %407 : vector<16x1xf32> to vector<16x32xf32>
    %409 = arith.subf %399, %408 : vector<16x32xf32>
    %410 = arith.mulf %409, %409 : vector<16x32xf32>
    %cst_165 = arith.constant dense<0.000000e+00> : vector<16xf32>
    %411 = vector.multi_reduction <add>, %410, %cst_165 [1] : vector<16x32xf32> to vector<16xf32>
    %412 = vector.shape_cast %411 : vector<16xf32> to vector<16x1xf32>
    %cst_166 = arith.constant 3.200000e+01 : f32
    %413 = vector.broadcast %cst_166 : f32 to vector<16x1xf32>
    %414 = arith.divf %412, %413 : vector<16x1xf32>
    %415 = vector.broadcast %407 : vector<16x1xf32> to vector<16x32xf32>
    %416 = arith.subf %399, %415 : vector<16x32xf32>
    %cst_167 = arith.constant 9.99999996E-13 : f32
    %417 = vector.broadcast %cst_167 : f32 to vector<16x1xf32>
    %418 = arith.addf %414, %417 : vector<16x1xf32>
    %419 = math.rsqrt %418 : vector<16x1xf32>
    %420 = vector.broadcast %419 : vector<16x1xf32> to vector<16x32xf32>
    %421 = arith.mulf %416, %420 : vector<16x32xf32>
    %422 = vector.broadcast %401 : vector<1x32xf32> to vector<16x32xf32>
    %423 = arith.mulf %421, %422 : vector<16x32xf32>
    %424 = vector.broadcast %403 : vector<1x32xf32> to vector<16x32xf32>
    %425 = arith.addf %423, %424 : vector<16x32xf32>
    %426 = vector.shape_cast %425 : vector<16x32xf32> to vector<2x8x32xf32>
    %c0_168 = arith.constant 0 : index
    %c0_169 = arith.constant 0 : index
    %c0_170 = arith.constant 0 : index
    %427 = vector.load %arg3[%c0_168, %c0_169, %c0_170] : memref<2x1x8xf32, #tpu.memory_space<vmem>>, vector<2x1x8xf32>
    %428 = vector.shape_cast %427 : vector<2x1x8xf32> to vector<2x8xf32>
    %429 = vector.shape_cast %428 : vector<2x8xf32> to vector<2x8x1xf32>
    %430 = vector.broadcast %429 : vector<2x8x1xf32> to vector<2x8x32xf32>
    %431 = arith.mulf %426, %430 : vector<2x8x32xf32>
    %cst_171 = arith.constant dense<0.000000e+00> : vector<2x32xf32>
    %432 = vector.multi_reduction <add>, %431, %cst_171 [1] : vector<2x8x32xf32> to vector<2x32xf32>
    %433 = arith.truncf %432 : vector<2x32xf32> to vector<2x32xbf16>
    %c0_172 = arith.constant 0 : index
    %c0_173 = arith.constant 0 : index
    %434 = vector.load %arg18[%c0_172, %c0_173] : memref<32x32xbf16, #tpu.memory_space<vmem>>, vector<32x32xbf16>
    %cst_174 = arith.constant dense<0.000000e+00> : vector<2x32xf32>
    %435 = tpu.matmul %433, %434, %cst_174 {dimension_numbers = #tpu.dot_dimension_numbers<[1], [0], [0], [1], [0, 0, 1, 1], [], []>} : vector<2x32xbf16>, vector<32x32xbf16>, vector<2x32xf32> -> vector<2x32xf32>
    %c0_175 = arith.constant 0 : index
    %c0_176 = arith.constant 0 : index
    %436 = vector.load %arg19[%c0_175, %c0_176] : memref<1x32xf32, #tpu.memory_space<vmem>>, vector<1x32xf32>
    %437 = vector.broadcast %436 : vector<1x32xf32> to vector<2x32xf32>
    %438 = arith.addf %435, %437 : vector<2x32xf32>
    %cst_177 = arith.constant 0.000000e+00 : f32
    %439 = vector.broadcast %cst_177 : f32 to vector<2x32xf32>
    %440 = arith.maximumf %438, %439 : vector<2x32xf32>
    %441 = arith.truncf %440 : vector<2x32xf32> to vector<2x32xbf16>
    %c0_178 = arith.constant 0 : index
    %c0_179 = arith.constant 0 : index
    %442 = vector.load %arg20[%c0_178, %c0_179] : memref<32x4xbf16, #tpu.memory_space<vmem>>, vector<32x4xbf16>
    %cst_180 = arith.constant dense<0.000000e+00> : vector<2x4xf32>
    %443 = tpu.matmul %441, %442, %cst_180 {dimension_numbers = #tpu.dot_dimension_numbers<[1], [0], [0], [1], [0, 0, 1, 1], [], []>} : vector<2x32xbf16>, vector<32x4xbf16>, vector<2x4xf32> -> vector<2x4xf32>
    %c0_181 = arith.constant 0 : index
    %c0_182 = arith.constant 0 : index
    %444 = vector.load %arg21[%c0_181, %c0_182] : memref<1x4xf32, #tpu.memory_space<vmem>>, vector<1x4xf32>
    %445 = vector.broadcast %444 : vector<1x4xf32> to vector<2x4xf32>
    %446 = arith.addf %443, %445 : vector<2x4xf32>
    %447 = arith.truncf %446 : vector<2x4xf32> to vector<2x4xbf16>
    %c0_183 = arith.constant 0 : index
    %c0_184 = arith.constant 0 : index
    %448 = vector.load %arg22[%c0_183, %c0_184] : memref<4x32xbf16, #tpu.memory_space<vmem>>, vector<4x32xbf16>
    %cst_185 = arith.constant dense<0.000000e+00> : vector<2x32xf32>
    %449 = tpu.matmul %447, %448, %cst_185 {dimension_numbers = #tpu.dot_dimension_numbers<[1], [0], [0], [1], [0, 0, 1, 1], [], []>} : vector<2x4xbf16>, vector<4x32xbf16>, vector<2x32xf32> -> vector<2x32xf32>
    %450 = arith.addf %432, %449 : vector<2x32xf32>
    %451 = vector.shape_cast %450 : vector<2x32xf32> to vector<2x1x32xf32>
    %c0_186 = arith.constant 0 : index
    %c0_187 = arith.constant 0 : index
    %c0_188 = arith.constant 0 : index
    %452 = vector.load %arg23[%c0_186, %c0_187, %c0_188] : memref<2x1x32xf32, #tpu.memory_space<vmem>>, vector<2x1x32xf32>
    tpu.vector_store %arg23[%c0_186, %c0_187, %c0_188], %451 {strides = array<i32>} : memref<2x1x32xf32, #tpu.memory_space<vmem>>, vector<2x1x32xf32>,
    return
  }
  func.func @transform_0(%arg0: i32) -> (i32, i32, i32) {
    %c0_i32 = arith.constant 0 : i32
    %c0_i32_0 = arith.constant 0 : i32
    %c0_i32_1 = arith.constant 0 : i32
    return %arg0, %c0_i32, %c0_i32_0 : i32, i32, i32
  }
  func.func @transform_1(%arg0: i32) -> (i32, i32, i32) {
    %c0_i32 = arith.constant 0 : i32
    %c0_i32_0 = arith.constant 0 : i32
    %c0_i32_1 = arith.constant 0 : i32
    return %arg0, %c0_i32, %c0_i32_0 : i32, i32, i32
  }
  func.func @transform_2(%arg0: i32) -> (i32, i32, i32) {
    %c0_i32 = arith.constant 0 : i32
    %c0_i32_0 = arith.constant 0 : i32
    %c0_i32_1 = arith.constant 0 : i32
    return %arg0, %c0_i32, %c0_i32_0 : i32, i32, i32
  }
  func.func @transform_3(%arg0: i32) -> (i32, i32) {
    %c0_i32 = arith.constant 0 : i32
    %c0_i32_0 = arith.constant 0 : i32
    %c0_i32_1 = arith.constant 0 : i32
    return %c0_i32, %c0_i32_0 : i32, i32
  }
  func.func @transform_4(%arg0: i32) -> (i32, i32) {
    %c0_i32 = arith.constant 0 : i32
    %c0_i32_0 = arith.constant 0 : i32
    %c0_i32_1 = arith.constant 0 : i32
    return %c0_i32, %c0_i32_0 : i32, i32
  }
  func.func @transform_5(%arg0: i32) -> (i32, i32, i32) {
    %c0_i32 = arith.constant 0 : i32
    %c0_i32_0 = arith.constant 0 : i32
    %c0_i32_1 = arith.constant 0 : i32
    %c0_i32_2 = arith.constant 0 : i32
    return %c0_i32, %c0_i32_0, %c0_i32_1 : i32, i32, i32
  }
  func.func @transform_6(%arg0: i32) -> (i32, i32, i32) {
    %c0_i32 = arith.constant 0 : i32
    %c0_i32_0 = arith.constant 0 : i32
    %c0_i32_1 = arith.constant 0 : i32
    %c0_i32_2 = arith.constant 0 : i32
    return %c0_i32, %c0_i32_0, %c0_i32_1 : i32, i32, i32
  }
  func.func @transform_7(%arg0: i32) -> (i32, i32, i32) {
    %c0_i32 = arith.constant 0 : i32
    %c0_i32_0 = arith.constant 0 : i32
    %c0_i32_1 = arith.constant 0 : i32
    %c0_i32_2 = arith.constant 0 : i32
    return %c0_i32, %c0_i32_0, %c0_i32_1 : i32, i32, i32
  }
  func.func @transform_8(%arg0: i32) -> (i32, i32, i32) {
    %c0_i32 = arith.constant 0 : i32
    %c0_i32_0 = arith.constant 0 : i32
    %c0_i32_1 = arith.constant 0 : i32
    %c0_i32_2 = arith.constant 0 : i32
    return %c0_i32, %c0_i32_0, %c0_i32_1 : i32, i32, i32
  }
  func.func @transform_9(%arg0: i32) -> (i32, i32, i32) {
    %c0_i32 = arith.constant 0 : i32
    %c0_i32_0 = arith.constant 0 : i32
    %c0_i32_1 = arith.constant 0 : i32
    %c0_i32_2 = arith.constant 0 : i32
    return %c0_i32, %c0_i32_0, %c0_i32_1 : i32, i32, i32
  }
  func.func @transform_10(%arg0: i32) -> (i32, i32, i32) {
    %c0_i32 = arith.constant 0 : i32
    %c0_i32_0 = arith.constant 0 : i32
    %c0_i32_1 = arith.constant 0 : i32
    %c0_i32_2 = arith.constant 0 : i32
    return %c0_i32, %c0_i32_0, %c0_i32_1 : i32, i32, i32
  }
  func.func @transform_11(%arg0: i32) -> (i32, i32, i32) {
    %c0_i32 = arith.constant 0 : i32
    %c0_i32_0 = arith.constant 0 : i32
    %c0_i32_1 = arith.constant 0 : i32
    %c0_i32_2 = arith.constant 0 : i32
    return %c0_i32, %c0_i32_0, %c0_i32_1 : i32, i32, i32
  }
  func.func @transform_12(%arg0: i32) -> (i32, i32, i32) {
    %c0_i32 = arith.constant 0 : i32
    %c0_i32_0 = arith.constant 0 : i32
    %c0_i32_1 = arith.constant 0 : i32
    %c0_i32_2 = arith.constant 0 : i32
    return %c0_i32, %c0_i32_0, %c0_i32_1 : i32, i32, i32
  }
  func.func @transform_13(%arg0: i32) -> (i32, i32, i32) {
    %c0_i32 = arith.constant 0 : i32
    %c0_i32_0 = arith.constant 0 : i32
    %c0_i32_1 = arith.constant 0 : i32
    %c0_i32_2 = arith.constant 0 : i32
    return %c0_i32, %c0_i32_0, %c0_i32_1 : i32, i32, i32
  }
  func.func @transform_14(%arg0: i32) -> (i32, i32, i32) {
    %c0_i32 = arith.constant 0 : i32
    %c0_i32_0 = arith.constant 0 : i32
    %c0_i32_1 = arith.constant 0 : i32
    %c0_i32_2 = arith.constant 0 : i32
    return %c0_i32, %c0_i32_0, %c0_i32_1 : i32, i32, i32
  }
  func.func @transform_15(%arg0: i32) -> (i32, i32, i32) {
    %c0_i32 = arith.constant 0 : i32
    %c0_i32_0 = arith.constant 0 : i32
    %c0_i32_1 = arith.constant 0 : i32
    %c0_i32_2 = arith.constant 0 : i32
    return %c0_i32, %c0_i32_0, %c0_i32_1 : i32, i32, i32
  }
  func.func @transform_16(%arg0: i32) -> (i32, i32, i32) {
    %c0_i32 = arith.constant 0 : i32
    %c0_i32_0 = arith.constant 0 : i32
    %c0_i32_1 = arith.constant 0 : i32
    %c0_i32_2 = arith.constant 0 : i32
    return %c0_i32, %c0_i32_0, %c0_i32_1 : i32, i32, i32
  }
  func.func @transform_17(%arg0: i32) -> (i32, i32) {
    %c0_i32 = arith.constant 0 : i32
    %c0_i32_0 = arith.constant 0 : i32
    %c0_i32_1 = arith.constant 0 : i32
    return %c0_i32, %c0_i32_0 : i32, i32
  }
  func.func @transform_18(%arg0: i32) -> (i32, i32) {
    %c0_i32 = arith.constant 0 : i32
    %c0_i32_0 = arith.constant 0 : i32
    %c0_i32_1 = arith.constant 0 : i32
    return %c0_i32, %c0_i32_0 : i32, i32
  }
  func.func @transform_19(%arg0: i32) -> (i32, i32) {
    %c0_i32 = arith.constant 0 : i32
    %c0_i32_0 = arith.constant 0 : i32
    %c0_i32_1 = arith.constant 0 : i32
    return %c0_i32, %c0_i32_0 : i32, i32
  }
  func.func @transform_20(%arg0: i32) -> (i32, i32) {
    %c0_i32 = arith.constant 0 : i32
    %c0_i32_0 = arith.constant 0 : i32
    %c0_i32_1 = arith.constant 0 : i32
    return %c0_i32, %c0_i32_0 : i32, i32
  }
  func.func @transform_21(%arg0: i32) -> (i32, i32) {
    %c0_i32 = arith.constant 0 : i32
    %c0_i32_0 = arith.constant 0 : i32
    %c0_i32_1 = arith.constant 0 : i32
    return %c0_i32, %c0_i32_0 : i32, i32
  }
  func.func @transform_22(%arg0: i32) -> (i32, i32, i32) {
    %c0_i32 = arith.constant 0 : i32
    %c0_i32_0 = arith.constant 0 : i32
    %c0_i32_1 = arith.constant 0 : i32
    return %arg0, %c0_i32, %c0_i32_0 : i32, i32, i32
  }
}

module attributes {stable_mosaic.version = 11 : i64} {
  func.func @fused_kernel(%arg0: i32, %arg1: memref<2x8x32xf32, #tpu.memory_space<vmem>>, %arg2: memref<2x1x8xf32, #tpu.memory_space<vmem>>, %arg3: memref<2x1x8xf32, #tpu.memory_space<vmem>>, %arg4: memref<1x32xf32, #tpu.memory_space<vmem>>, %arg5: memref<1x32xf32, #tpu.memory_space<vmem>>, %arg6: memref<2x32x96xbf16, #tpu.memory_space<vmem>>, %arg7: memref<2x1x96xf32, #tpu.memory_space<vmem>>, %arg8: memref<2x32x32xbf16, #tpu.memory_space<vmem>>, %arg9: memref<2x1x32xf32, #tpu.memory_space<vmem>>, %arg10: memref<2x1x32xf32, #tpu.memory_space<vmem>>, %arg11: memref<2x1x32xf32, #tpu.memory_space<vmem>>, %arg12: memref<2x32x64xbf16, #tpu.memory_space<vmem>>, %arg13: memref<2x1x64xf32, #tpu.memory_space<vmem>>, %arg14: memref<2x64x32xbf16, #tpu.memory_space<vmem>>, %arg15: memref<2x1x32xf32, #tpu.memory_space<vmem>>, %arg16: memref<2x1x32xf32, #tpu.memory_space<vmem>>, %arg17: memref<2x1x32xf32, #tpu.memory_space<vmem>>, %arg18: memref<32x32xbf16, #tpu.memory_space<vmem>>, %arg19: memref<1x32xf32, #tpu.memory_space<vmem>>, %arg20: memref<32x4xbf16, #tpu.memory_space<vmem>>, %arg21: memref<1x4xf32, #tpu.memory_space<vmem>>, %arg22: memref<4x32xbf16, #tpu.memory_space<vmem>>, %arg23: memref<2x1x32xf32, #tpu.memory_space<vmem>>) attributes {dimension_semantics = [#tpu.dimension_semantics<parallel>], iteration_bounds = array<i64: 2>, scalar_prefetch = 0 : i64, scratch_operands = 0 : i64, tpu.core_type = #tpu.core_type<tc>, window_params = [{transform_indices = @transform_0, window_bounds = array<i64: 2, 8, 32>}, {transform_indices = @transform_1, window_bounds = array<i64: 2, 1, 8>}, {transform_indices = @transform_2, window_bounds = array<i64: 2, 1, 8>}, {pipeline_mode = #tpu.pipeline_mode<synchronous>, transform_indices = @transform_3, window_bounds = array<i64: 1, 32>}, {pipeline_mode = #tpu.pipeline_mode<synchronous>, transform_indices = @transform_4, window_bounds = array<i64: 1, 32>}, {pipeline_mode = #tpu.pipeline_mode<synchronous>, transform_indices = @transform_5, window_bounds = array<i64: 2, 32, 96>}, {pipeline_mode = #tpu.pipeline_mode<synchronous>, transform_indices = @transform_6, window_bounds = array<i64: 2, 1, 96>}, {pipeline_mode = #tpu.pipeline_mode<synchronous>, transform_indices = @transform_7, window_bounds = array<i64: 2, 32, 32>}, {pipeline_mode = #tpu.pipeline_mode<synchronous>, transform_indices = @transform_8, window_bounds = array<i64: 2, 1, 32>}, {pipeline_mode = #tpu.pipeline_mode<synchronous>, transform_indices = @transform_9, window_bounds = array<i64: 2, 1, 32>}, {pipeline_mode = #tpu.pipeline_mode<synchronous>, transform_indices = @transform_10, window_bounds = array<i64: 2, 1, 32>}, {pipeline_mode = #tpu.pipeline_mode<synchronous>, transform_indices = @transform_11, window_bounds = array<i64: 2, 32, 64>}, {pipeline_mode = #tpu.pipeline_mode<synchronous>, transform_indices = @transform_12, window_bounds = array<i64: 2, 1, 64>}, {pipeline_mode = #tpu.pipeline_mode<synchronous>, transform_indices = @transform_13, window_bounds = array<i64: 2, 64, 32>}, {pipeline_mode = #tpu.pipeline_mode<synchronous>, transform_indices = @transform_14, window_bounds = array<i64: 2, 1, 32>}, {pipeline_mode = #tpu.pipeline_mode<synchronous>, transform_indices = @transform_15, window_bounds = array<i64: 2, 1, 32>}, {pipeline_mode = #tpu.pipeline_mode<synchronous>, transform_indices = @transform_16, window_bounds = array<i64: 2, 1, 32>}, {pipeline_mode = #tpu.pipeline_mode<synchronous>, transform_indices = @transform_17, window_bounds = array<i64: 32, 32>}, {pipeline_mode = #tpu.pipeline_mode<synchronous>, transform_indices = @transform_18, window_bounds = array<i64: 1, 32>}, {pipeline_mode = #tpu.pipeline_mode<synchronous>, transform_indices = @transform_19, window_bounds = array<i64: 32, 4>}, {pipeline_mode = #tpu.pipeline_mode<synchronous>, transform_indices = @transform_20, window_bounds = array<i64: 1, 4>}, {pipeline_mode = #tpu.pipeline_mode<synchronous>, transform_indices = @transform_21, window_bounds = array<i64: 4, 32>}, {transform_indices = @transform_22, window_bounds = array<i64: 2, 1, 32>}]} {
    %0 = tpu.iota {dimensions = array<i32: 0>} : vector<8x8xi32>
    %1 = tpu.iota {dimensions = array<i32: 1>} : vector<8x8xi32>
    %2 = arith.cmpi sle, %1, %0 : vector<8x8xi32>
    %cst = arith.constant 0.000000e+00 : f32
    %cst_0 = arith.constant -1.000000e+04 : f32
    %3 = vector.broadcast %cst : f32 to vector<8x8xf32>
    %4 = vector.broadcast %cst_0 : f32 to vector<8x8xf32>
    %5 = arith.select %2, %3, %4 : vector<8x8xi1>, vector<8x8xf32>
    %c0 = arith.constant 0 : index
    %c0_1 = arith.constant 0 : index
    %c0_2 = arith.constant 0 : index
    %6 = vector.load %arg2[%c0, %c0_1, %c0_2] : memref<2x1x8xf32, #tpu.memory_space<vmem>>, vector<2x1x8xf32>
    %7 = vector.shape_cast %6 : vector<2x1x8xf32> to vector<2x8xf32>
    %cst_3 = arith.constant 1.000000e+00 : f32
    %8 = vector.broadcast %cst_3 : f32 to vector<2x8xf32>
    %9 = arith.subf %8, %7 : vector<2x8xf32>
    %cst_4 = arith.constant -1.000000e+04 : f32
    %10 = vector.broadcast %cst_4 : f32 to vector<2x8xf32>
    %11 = arith.mulf %9, %10 : vector<2x8xf32>
    %c0_5 = arith.constant 0 : index
    %c0_6 = arith.constant 0 : index
    %c0_7 = arith.constant 0 : index
    %12 = vector.load %arg1[%c0_5, %c0_6, %c0_7] : memref<2x8x32xf32, #tpu.memory_space<vmem>>, vector<2x8x32xf32>
    %13 = vector.shape_cast %12 : vector<2x8x32xf32> to vector<16x32xf32>
    %c0_8 = arith.constant 0 : index
    %c0_9 = arith.constant 0 : index
    %14 = vector.load %arg4[%c0_8, %c0_9] : memref<1x32xf32, #tpu.memory_space<vmem>>, vector<1x32xf32>
    %c0_10 = arith.constant 0 : index
    %c0_11 = arith.constant 0 : index
    %15 = vector.load %arg5[%c0_10, %c0_11] : memref<1x32xf32, #tpu.memory_space<vmem>>, vector<1x32xf32>
    %cst_12 = arith.constant dense<0.000000e+00> : vector<16xf32>
    %16 = vector.multi_reduction <add>, %13, %cst_12 [1] : vector<16x32xf32> to vector<16xf32>
    %17 = vector.shape_cast %16 : vector<16xf32> to vector<16x1xf32>
    %cst_13 = arith.constant 3.200000e+01 : f32
    %18 = vector.broadcast %cst_13 : f32 to vector<16x1xf32>
    %19 = arith.divf %17, %18 : vector<16x1xf32>
    %20 = vector.broadcast %19 : vector<16x1xf32> to vector<16x32xf32>
    %21 = arith.subf %13, %20 : vector<16x32xf32>
    %22 = arith.mulf %21, %21 : vector<16x32xf32>
    %cst_14 = arith.constant dense<0.000000e+00> : vector<16xf32>
    %23 = vector.multi_reduction <add>, %22, %cst_14 [1] : vector<16x32xf32> to vector<16xf32>
    %24 = vector.shape_cast %23 : vector<16xf32> to vector<16x1xf32>
    %cst_15 = arith.constant 3.200000e+01 : f32
    %25 = vector.broadcast %cst_15 : f32 to vector<16x1xf32>
    %26 = arith.divf %24, %25 : vector<16x1xf32>
    %27 = vector.broadcast %19 : vector<16x1xf32> to vector<16x32xf32>
    %28 = arith.subf %13, %27 : vector<16x32xf32>
    %cst_16 = arith.constant 9.99999996E-13 : f32
    %29 = vector.broadcast %cst_16 : f32 to vector<16x1xf32>
    %30 = arith.addf %26, %29 : vector<16x1xf32>
    %31 = math.rsqrt %30 : vector<16x1xf32>
    %32 = vector.broadcast %31 : vector<16x1xf32> to vector<16x32xf32>
    %33 = arith.mulf %28, %32 : vector<16x32xf32>
    %34 = vector.broadcast %14 : vector<1x32xf32> to vector<16x32xf32>
    %35 = arith.mulf %33, %34 : vector<16x32xf32>
    %36 = vector.broadcast %15 : vector<1x32xf32> to vector<16x32xf32>
    %37 = arith.addf %35, %36 : vector<16x32xf32>
    %38 = arith.truncf %37 : vector<16x32xf32> to vector<16x32xbf16>
    %c0_17 = arith.constant 0 : index
    %c0_18 = arith.constant 0 : index
    %c0_19 = arith.constant 0 : index
    %39 = vector.load %arg6[%c0_17, %c0_18, %c0_19] : memref<2x32x96xbf16, #tpu.memory_space<vmem>>, vector<1x32x96xbf16>
    %40 = vector.shape_cast %39 : vector<1x32x96xbf16> to vector<32x96xbf16>
    %cst_20 = arith.constant dense<0.000000e+00> : vector<16x96xf32>
    %41 = tpu.matmul %38, %40, %cst_20 {dimension_numbers = #tpu.dot_dimension_numbers<[1], [0], [0], [1], [0, 0, 1, 1], [], []>} : vector<16x32xbf16>, vector<32x96xbf16>, vector<16x96xf32> -> vector<16x96xf32>
    %c0_21 = arith.constant 0 : index
    %c0_22 = arith.constant 0 : index
    %c0_23 = arith.constant 0 : index
    %42 = vector.load %arg7[%c0_21, %c0_22, %c0_23] : memref<2x1x96xf32, #tpu.memory_space<vmem>>, vector<1x1x96xf32>
    %43 = vector.shape_cast %42 : vector<1x1x96xf32> to vector<1x96xf32>
    %44 = vector.broadcast %43 : vector<1x96xf32> to vector<16x96xf32>
    %45 = arith.addf %41, %44 : vector<16x96xf32>
    %46 = vector.extract_strided_slice %45 {offsets = [0, 0], sizes = [16, 32], strides = [1, 1]} : vector<16x96xf32> to vector<16x32xf32>
    %cst_24 = arith.constant 2.500000e-01 : f32
    %47 = vector.broadcast %cst_24 : f32 to vector<16x32xf32>
    %48 = arith.mulf %46, %47 : vector<16x32xf32>
    %c0_25 = arith.constant 0 : index
    %c0_26 = arith.constant 0 : index
    %c0_27 = arith.constant 0 : index
    %49 = vector.load %arg8[%c0_25, %c0_26, %c0_27] : memref<2x32x32xbf16, #tpu.memory_space<vmem>>, vector<1x32x32xbf16>
    %50 = vector.shape_cast %49 : vector<1x32x32xbf16> to vector<32x32xbf16>
    %cst_28 = arith.constant 0.000000e+00 : f32
    %51 = vector.broadcast %cst_28 : f32 to vector<16x32xf32>
    %52 = vector.extract_strided_slice %48 {offsets = [0, 0], sizes = [16, 16], strides = [1, 1]} : vector<16x32xf32> to vector<16x16xf32>
    %53 = vector.shape_cast %52 : vector<16x16xf32> to vector<2x8x16xf32>
    %54 = arith.truncf %53 : vector<2x8x16xf32> to vector<2x8x16xbf16>
    %55 = vector.extract_strided_slice %45 {offsets = [0, 32], sizes = [16, 16], strides = [1, 1]} : vector<16x96xf32> to vector<16x16xf32>
    %56 = vector.shape_cast %55 : vector<16x16xf32> to vector<2x8x16xf32>
    %57 = arith.truncf %56 : vector<2x8x16xf32> to vector<2x8x16xbf16>
    %58 = vector.extract_strided_slice %45 {offsets = [0, 64], sizes = [16, 16], strides = [1, 1]} : vector<16x96xf32> to vector<16x16xf32>
    %59 = vector.shape_cast %58 : vector<16x16xf32> to vector<2x8x16xf32>
    %60 = arith.truncf %59 : vector<2x8x16xf32> to vector<2x8x16xbf16>
    "tpu.trace_start"() <{level = 10 : i32, message = "bqd,bkd->bqk"}> : () -> ()
    %cst_29 = arith.constant dense<0.000000e+00> : vector<2x8x8xf32>
    %61 = tpu.matmul %54, %57, %cst_29 {dimension_numbers = #tpu.dot_dimension_numbers<[2], [2], [1], [1], [0, 0, 0, 1, 1, 1], [0], [0]>} : vector<2x8x16xbf16>, vector<2x8x16xbf16>, vector<2x8x8xf32> -> vector<2x8x8xf32>
    "tpu.trace_stop"() : () -> ()
    %62 = vector.shape_cast %5 : vector<8x8xf32> to vector<1x8x8xf32>
    %63 = vector.broadcast %62 : vector<1x8x8xf32> to vector<2x8x8xf32>
    %64 = arith.addf %61, %63 : vector<2x8x8xf32>
    %65 = vector.shape_cast %11 : vector<2x8xf32> to vector<2x1x8xf32>
    %66 = vector.broadcast %65 : vector<2x1x8xf32> to vector<2x8x8xf32>
    %67 = arith.addf %64, %66 : vector<2x8x8xf32>
    %cst_30 = arith.constant dense<0xFF800000> : vector<2x8xf32>
    %68 = vector.multi_reduction <maximumf>, %67, %cst_30 [2] : vector<2x8x8xf32> to vector<2x8xf32>
    %69 = vector.shape_cast %68 : vector<2x8xf32> to vector<2x8x1xf32>
    %70 = vector.broadcast %69 : vector<2x8x1xf32> to vector<2x8x8xf32>
    %71 = arith.subf %67, %70 : vector<2x8x8xf32>
    %72 = math.exp %71 : vector<2x8x8xf32>
    %cst_31 = arith.constant dense<0.000000e+00> : vector<2x8xf32>
    %73 = vector.multi_reduction <add>, %72, %cst_31 [2] : vector<2x8x8xf32> to vector<2x8xf32>
    %74 = vector.shape_cast %73 : vector<2x8xf32> to vector<2x8x1xf32>
    %75 = tpu.reciprocal %74 {approx = true} : vector<2x8x1xf32> -> vector<2x8x1xf32>
    %76 = vector.broadcast %75 : vector<2x8x1xf32> to vector<2x8x8xf32>
    %77 = arith.mulf %72, %76 : vector<2x8x8xf32>
    %78 = arith.truncf %77 : vector<2x8x8xf32> to vector<2x8x8xbf16>
    "tpu.trace_start"() <{level = 10 : i32, message = "bqk,bkd->bqd"}> : () -> ()
    %cst_32 = arith.constant dense<0.000000e+00> : vector<2x8x16xf32>
    %79 = tpu.matmul %78, %60, %cst_32 {dimension_numbers = #tpu.dot_dimension_numbers<[2], [1], [1], [2], [0, 0, 0, 1, 1, 2], [0], [0]>} : vector<2x8x8xbf16>, vector<2x8x16xbf16>, vector<2x8x16xf32> -> vector<2x8x16xf32>
    "tpu.trace_stop"() : () -> ()
    %80 = vector.shape_cast %79 : vector<2x8x16xf32> to vector<16x16xf32>
    %81 = arith.truncf %80 : vector<16x16xf32> to vector<16x16xbf16>
    %82 = vector.extract_strided_slice %50 {offsets = [0, 0], sizes = [16, 32], strides = [1, 1]} : vector<32x32xbf16> to vector<16x32xbf16>
    %cst_33 = arith.constant dense<0.000000e+00> : vector<16x32xf32>
    %83 = tpu.matmul %81, %82, %cst_33 {dimension_numbers = #tpu.dot_dimension_numbers<[1], [0], [0], [1], [0, 0, 1, 1], [], []>} : vector<16x16xbf16>, vector<16x32xbf16>, vector<16x32xf32> -> vector<16x32xf32>
    %84 = arith.addf %51, %83 : vector<16x32xf32>
    %85 = vector.extract_strided_slice %48 {offsets = [0, 16], sizes = [16, 16], strides = [1, 1]} : vector<16x32xf32> to vector<16x16xf32>
    %86 = vector.shape_cast %85 : vector<16x16xf32> to vector<2x8x16xf32>
    %87 = arith.truncf %86 : vector<2x8x16xf32> to vector<2x8x16xbf16>
    %88 = vector.extract_strided_slice %45 {offsets = [0, 48], sizes = [16, 16], strides = [1, 1]} : vector<16x96xf32> to vector<16x16xf32>
    %89 = vector.shape_cast %88 : vector<16x16xf32> to vector<2x8x16xf32>
    %90 = arith.truncf %89 : vector<2x8x16xf32> to vector<2x8x16xbf16>
    %91 = vector.extract_strided_slice %45 {offsets = [0, 80], sizes = [16, 16], strides = [1, 1]} : vector<16x96xf32> to vector<16x16xf32>
    %92 = vector.shape_cast %91 : vector<16x16xf32> to vector<2x8x16xf32>
    %93 = arith.truncf %92 : vector<2x8x16xf32> to vector<2x8x16xbf16>
    "tpu.trace_start"() <{level = 10 : i32, message = "bqd,bkd->bqk"}> : () -> ()
    %cst_34 = arith.constant dense<0.000000e+00> : vector<2x8x8xf32>
    %94 = tpu.matmul %87, %90, %cst_34 {dimension_numbers = #tpu.dot_dimension_numbers<[2], [2], [1], [1], [0, 0, 0, 1, 1, 1], [0], [0]>} : vector<2x8x16xbf16>, vector<2x8x16xbf16>, vector<2x8x8xf32> -> vector<2x8x8xf32>
    "tpu.trace_stop"() : () -> ()
    %95 = vector.shape_cast %5 : vector<8x8xf32> to vector<1x8x8xf32>
    %96 = vector.broadcast %95 : vector<1x8x8xf32> to vector<2x8x8xf32>
    %97 = arith.addf %94, %96 : vector<2x8x8xf32>
    %98 = vector.shape_cast %11 : vector<2x8xf32> to vector<2x1x8xf32>
    %99 = vector.broadcast %98 : vector<2x1x8xf32> to vector<2x8x8xf32>
    %100 = arith.addf %97, %99 : vector<2x8x8xf32>
    %cst_35 = arith.constant dense<0xFF800000> : vector<2x8xf32>
    %101 = vector.multi_reduction <maximumf>, %100, %cst_35 [2] : vector<2x8x8xf32> to vector<2x8xf32>
    %102 = vector.shape_cast %101 : vector<2x8xf32> to vector<2x8x1xf32>
    %103 = vector.broadcast %102 : vector<2x8x1xf32> to vector<2x8x8xf32>
    %104 = arith.subf %100, %103 : vector<2x8x8xf32>
    %105 = math.exp %104 : vector<2x8x8xf32>
    %cst_36 = arith.constant dense<0.000000e+00> : vector<2x8xf32>
    %106 = vector.multi_reduction <add>, %105, %cst_36 [2] : vector<2x8x8xf32> to vector<2x8xf32>
    %107 = vector.shape_cast %106 : vector<2x8xf32> to vector<2x8x1xf32>
    %108 = tpu.reciprocal %107 {approx = true} : vector<2x8x1xf32> -> vector<2x8x1xf32>
    %109 = vector.broadcast %108 : vector<2x8x1xf32> to vector<2x8x8xf32>
    %110 = arith.mulf %105, %109 : vector<2x8x8xf32>
    %111 = arith.truncf %110 : vector<2x8x8xf32> to vector<2x8x8xbf16>
    "tpu.trace_start"() <{level = 10 : i32, message = "bqk,bkd->bqd"}> : () -> ()
    %cst_37 = arith.constant dense<0.000000e+00> : vector<2x8x16xf32>
    %112 = tpu.matmul %111, %93, %cst_37 {dimension_numbers = #tpu.dot_dimension_numbers<[2], [1], [1], [2], [0, 0, 0, 1, 1, 2], [0], [0]>} : vector<2x8x8xbf16>, vector<2x8x16xbf16>, vector<2x8x16xf32> -> vector<2x8x16xf32>
    "tpu.trace_stop"() : () -> ()
    %113 = vector.shape_cast %112 : vector<2x8x16xf32> to vector<16x16xf32>
    %114 = arith.truncf %113 : vector<16x16xf32> to vector<16x16xbf16>
    %115 = vector.extract_strided_slice %50 {offsets = [16, 0], sizes = [16, 32], strides = [1, 1]} : vector<32x32xbf16> to vector<16x32xbf16>
    %cst_38 = arith.constant dense<0.000000e+00> : vector<16x32xf32>
    %116 = tpu.matmul %114, %115, %cst_38 {dimension_numbers = #tpu.dot_dimension_numbers<[1], [0], [0], [1], [0, 0, 1, 1], [], []>} : vector<16x16xbf16>, vector<16x32xbf16>, vector<16x32xf32> -> vector<16x32xf32>
    %117 = arith.addf %84, %116 : vector<16x32xf32>
    %c0_39 = arith.constant 0 : index
    %c0_40 = arith.constant 0 : index
    %c0_41 = arith.constant 0 : index
    %118 = vector.load %arg9[%c0_39, %c0_40, %c0_41] : memref<2x1x32xf32, #tpu.memory_space<vmem>>, vector<1x1x32xf32>
    %119 = vector.shape_cast %118 : vector<1x1x32xf32> to vector<1x32xf32>
    %120 = vector.broadcast %119 : vector<1x32xf32> to vector<16x32xf32>
    %121 = arith.addf %117, %120 : vector<16x32xf32>
    %122 = arith.addf %121, %37 : vector<16x32xf32>
    %c0_42 = arith.constant 0 : index
    %c0_43 = arith.constant 0 : index
    %c0_44 = arith.constant 0 : index
    %123 = vector.load %arg10[%c0_42, %c0_43, %c0_44] : memref<2x1x32xf32, #tpu.memory_space<vmem>>, vector<1x1x32xf32>
    %124 = vector.shape_cast %123 : vector<1x1x32xf32> to vector<1x32xf32>
    %c0_45 = arith.constant 0 : index
    %c0_46 = arith.constant 0 : index
    %c0_47 = arith.constant 0 : index
    %125 = vector.load %arg11[%c0_45, %c0_46, %c0_47] : memref<2x1x32xf32, #tpu.memory_space<vmem>>, vector<1x1x32xf32>
    %126 = vector.shape_cast %125 : vector<1x1x32xf32> to vector<1x32xf32>
    %cst_48 = arith.constant dense<0.000000e+00> : vector<16xf32>
    %127 = vector.multi_reduction <add>, %122, %cst_48 [1] : vector<16x32xf32> to vector<16xf32>
    %128 = vector.shape_cast %127 : vector<16xf32> to vector<16x1xf32>
    %cst_49 = arith.constant 3.200000e+01 : f32
    %129 = vector.broadcast %cst_49 : f32 to vector<16x1xf32>
    %130 = arith.divf %128, %129 : vector<16x1xf32>
    %131 = vector.broadcast %130 : vector<16x1xf32> to vector<16x32xf32>
    %132 = arith.subf %122, %131 : vector<16x32xf32>
    %133 = arith.mulf %132, %132 : vector<16x32xf32>
    %cst_50 = arith.constant dense<0.000000e+00> : vector<16xf32>
    %134 = vector.multi_reduction <add>, %133, %cst_50 [1] : vector<16x32xf32> to vector<16xf32>
    %135 = vector.shape_cast %134 : vector<16xf32> to vector<16x1xf32>
    %cst_51 = arith.constant 3.200000e+01 : f32
    %136 = vector.broadcast %cst_51 : f32 to vector<16x1xf32>
    %137 = arith.divf %135, %136 : vector<16x1xf32>
    %138 = vector.broadcast %130 : vector<16x1xf32> to vector<16x32xf32>
    %139 = arith.subf %122, %138 : vector<16x32xf32>
    %cst_52 = arith.constant 9.99999996E-13 : f32
    %140 = vector.broadcast %cst_52 : f32 to vector<16x1xf32>
    %141 = arith.addf %137, %140 : vector<16x1xf32>
    %142 = math.rsqrt %141 : vector<16x1xf32>
    %143 = vector.broadcast %142 : vector<16x1xf32> to vector<16x32xf32>
    %144 = arith.mulf %139, %143 : vector<16x32xf32>
    %145 = vector.broadcast %124 : vector<1x32xf32> to vector<16x32xf32>
    %146 = arith.mulf %144, %145 : vector<16x32xf32>
    %147 = vector.broadcast %126 : vector<1x32xf32> to vector<16x32xf32>
    %148 = arith.addf %146, %147 : vector<16x32xf32>
    %149 = arith.truncf %148 : vector<16x32xf32> to vector<16x32xbf16>
    %c0_53 = arith.constant 0 : index
    %c0_54 = arith.constant 0 : index
    %c0_55 = arith.constant 0 : index
    %150 = vector.load %arg12[%c0_53, %c0_54, %c0_55] : memref<2x32x64xbf16, #tpu.memory_space<vmem>>, vector<1x32x64xbf16>
    %151 = vector.shape_cast %150 : vector<1x32x64xbf16> to vector<32x64xbf16>
    %cst_56 = arith.constant dense<0.000000e+00> : vector<16x64xf32>
    %152 = tpu.matmul %149, %151, %cst_56 {dimension_numbers = #tpu.dot_dimension_numbers<[1], [0], [0], [1], [0, 0, 1, 1], [], []>} : vector<16x32xbf16>, vector<32x64xbf16>, vector<16x64xf32> -> vector<16x64xf32>
    %c0_57 = arith.constant 0 : index
    %c0_58 = arith.constant 0 : index
    %c0_59 = arith.constant 0 : index
    %153 = vector.load %arg13[%c0_57, %c0_58, %c0_59] : memref<2x1x64xf32, #tpu.memory_space<vmem>>, vector<1x1x64xf32>
    %154 = vector.shape_cast %153 : vector<1x1x64xf32> to vector<1x64xf32>
    %155 = vector.broadcast %154 : vector<1x64xf32> to vector<16x64xf32>
    %156 = arith.addf %152, %155 : vector<16x64xf32>
    %cst_60 = arith.constant 0.707106769 : f32
    %157 = vector.broadcast %cst_60 : f32 to vector<16x64xf32>
    %158 = arith.mulf %156, %157 : vector<16x64xf32>
    %159 = math.absf %158 : vector<16x64xf32>
    %cst_61 = arith.constant 0.327591091 : f32
    %160 = vector.broadcast %cst_61 : f32 to vector<16x64xf32>
    %161 = arith.mulf %160, %159 : vector<16x64xf32>
    %cst_62 = arith.constant 1.000000e+00 : f32
    %162 = vector.broadcast %cst_62 : f32 to vector<16x64xf32>
    %163 = arith.addf %162, %161 : vector<16x64xf32>
    %164 = tpu.reciprocal %163 {approx = true} : vector<16x64xf32> -> vector<16x64xf32>
    %cst_63 = arith.constant 1.06140542 : f32
    %165 = vector.broadcast %cst_63 : f32 to vector<16x64xf32>
    %166 = arith.mulf %165, %164 : vector<16x64xf32>
    %cst_64 = arith.constant -1.45315206 : f32
    %167 = vector.broadcast %cst_64 : f32 to vector<16x64xf32>
    %168 = arith.addf %166, %167 : vector<16x64xf32>
    %169 = arith.mulf %168, %164 : vector<16x64xf32>
    %cst_65 = arith.constant 1.42141378 : f32
    %170 = vector.broadcast %cst_65 : f32 to vector<16x64xf32>
    %171 = arith.addf %169, %170 : vector<16x64xf32>
    %172 = arith.mulf %171, %164 : vector<16x64xf32>
    %cst_66 = arith.constant -0.284496725 : f32
    %173 = vector.broadcast %cst_66 : f32 to vector<16x64xf32>
    %174 = arith.addf %172, %173 : vector<16x64xf32>
    %175 = arith.mulf %174, %164 : vector<16x64xf32>
    %cst_67 = arith.constant 0.254829586 : f32
    %176 = vector.broadcast %cst_67 : f32 to vector<16x64xf32>
    %177 = arith.addf %175, %176 : vector<16x64xf32>
    %178 = arith.mulf %177, %164 : vector<16x64xf32>
    %cst_68 = arith.constant 0.000000e+00 : f32
    %179 = vector.broadcast %cst_68 : f32 to vector<16x64xf32>
    %180 = arith.subf %179, %159 : vector<16x64xf32>
    %181 = arith.mulf %180, %159 : vector<16x64xf32>
    %182 = math.exp %181 : vector<16x64xf32>
    %183 = arith.mulf %178, %182 : vector<16x64xf32>
    %cst_69 = arith.constant 1.000000e+00 : f32
    %184 = vector.broadcast %cst_69 : f32 to vector<16x64xf32>
    %185 = arith.subf %184, %183 : vector<16x64xf32>
    %cst_70 = arith.constant 0.000000e+00 : f32
    %186 = vector.broadcast %cst_70 : f32 to vector<16x64xf32>
    %187 = arith.cmpf oge, %158, %186 : vector<16x64xf32>
    %cst_71 = arith.constant 1.000000e+00 : f32
    %cst_72 = arith.constant -1.000000e+00 : f32
    %188 = vector.broadcast %cst_71 : f32 to vector<16x64xf32>
    %189 = vector.broadcast %cst_72 : f32 to vector<16x64xf32>
    %190 = arith.select %187, %188, %189 : vector<16x64xi1>, vector<16x64xf32>
    %191 = arith.mulf %190, %185 : vector<16x64xf32>
    %cst_73 = arith.constant 5.000000e-01 : f32
    %192 = vector.broadcast %cst_73 : f32 to vector<16x64xf32>
    %193 = arith.mulf %192, %156 : vector<16x64xf32>
    %cst_74 = arith.constant 1.000000e+00 : f32
    %194 = vector.broadcast %cst_74 : f32 to vector<16x64xf32>
    %195 = arith.addf %194, %191 : vector<16x64xf32>
    %196 = arith.mulf %193, %195 : vector<16x64xf32>
    %197 = arith.truncf %196 : vector<16x64xf32> to vector<16x64xbf16>
    %c0_75 = arith.constant 0 : index
    %c0_76 = arith.constant 0 : index
    %c0_77 = arith.constant 0 : index
    %198 = vector.load %arg14[%c0_75, %c0_76, %c0_77] : memref<2x64x32xbf16, #tpu.memory_space<vmem>>, vector<1x64x32xbf16>
    %199 = vector.shape_cast %198 : vector<1x64x32xbf16> to vector<64x32xbf16>
    %cst_78 = arith.constant dense<0.000000e+00> : vector<16x32xf32>
    %200 = tpu.matmul %197, %199, %cst_78 {dimension_numbers = #tpu.dot_dimension_numbers<[1], [0], [0], [1], [0, 0, 1, 1], [], []>} : vector<16x64xbf16>, vector<64x32xbf16>, vector<16x32xf32> -> vector<16x32xf32>
    %c0_79 = arith.constant 0 : index
    %c0_80 = arith.constant 0 : index
    %c0_81 = arith.constant 0 : index
    %201 = vector.load %arg15[%c0_79, %c0_80, %c0_81] : memref<2x1x32xf32, #tpu.memory_space<vmem>>, vector<1x1x32xf32>
    %202 = vector.shape_cast %201 : vector<1x1x32xf32> to vector<1x32xf32>
    %203 = vector.broadcast %202 : vector<1x32xf32> to vector<16x32xf32>
    %204 = arith.addf %200, %203 : vector<16x32xf32>
    %205 = arith.addf %204, %148 : vector<16x32xf32>
    %c0_82 = arith.constant 0 : index
    %c0_83 = arith.constant 0 : index
    %c0_84 = arith.constant 0 : index
    %206 = vector.load %arg16[%c0_82, %c0_83, %c0_84] : memref<2x1x32xf32, #tpu.memory_space<vmem>>, vector<1x1x32xf32>
    %207 = vector.shape_cast %206 : vector<1x1x32xf32> to vector<1x32xf32>
    %c0_85 = arith.constant 0 : index
    %c0_86 = arith.constant 0 : index
    %c0_87 = arith.constant 0 : index
    %208 = vector.load %arg17[%c0_85, %c0_86, %c0_87] : memref<2x1x32xf32, #tpu.memory_space<vmem>>, vector<1x1x32xf32>
    %209 = vector.shape_cast %208 : vector<1x1x32xf32> to vector<1x32xf32>
    %cst_88 = arith.constant dense<0.000000e+00> : vector<16xf32>
    %210 = vector.multi_reduction <add>, %205, %cst_88 [1] : vector<16x32xf32> to vector<16xf32>
    %211 = vector.shape_cast %210 : vector<16xf32> to vector<16x1xf32>
    %cst_89 = arith.constant 3.200000e+01 : f32
    %212 = vector.broadcast %cst_89 : f32 to vector<16x1xf32>
    %213 = arith.divf %211, %212 : vector<16x1xf32>
    %214 = vector.broadcast %213 : vector<16x1xf32> to vector<16x32xf32>
    %215 = arith.subf %205, %214 : vector<16x32xf32>
    %216 = arith.mulf %215, %215 : vector<16x32xf32>
    %cst_90 = arith.constant dense<0.000000e+00> : vector<16xf32>
    %217 = vector.multi_reduction <add>, %216, %cst_90 [1] : vector<16x32xf32> to vector<16xf32>
    %218 = vector.shape_cast %217 : vector<16xf32> to vector<16x1xf32>
    %cst_91 = arith.constant 3.200000e+01 : f32
    %219 = vector.broadcast %cst_91 : f32 to vector<16x1xf32>
    %220 = arith.divf %218, %219 : vector<16x1xf32>
    %221 = vector.broadcast %213 : vector<16x1xf32> to vector<16x32xf32>
    %222 = arith.subf %205, %221 : vector<16x32xf32>
    %cst_92 = arith.constant 9.99999996E-13 : f32
    %223 = vector.broadcast %cst_92 : f32 to vector<16x1xf32>
    %224 = arith.addf %220, %223 : vector<16x1xf32>
    %225 = math.rsqrt %224 : vector<16x1xf32>
    %226 = vector.broadcast %225 : vector<16x1xf32> to vector<16x32xf32>
    %227 = arith.mulf %222, %226 : vector<16x32xf32>
    %228 = vector.broadcast %207 : vector<1x32xf32> to vector<16x32xf32>
    %229 = arith.mulf %227, %228 : vector<16x32xf32>
    %230 = vector.broadcast %209 : vector<1x32xf32> to vector<16x32xf32>
    %231 = arith.addf %229, %230 : vector<16x32xf32>
    %232 = arith.truncf %231 : vector<16x32xf32> to vector<16x32xbf16>
    %c1 = arith.constant 1 : index
    %c0_93 = arith.constant 0 : index
    %c0_94 = arith.constant 0 : index
    %233 = vector.load %arg6[%c1, %c0_93, %c0_94] : memref<2x32x96xbf16, #tpu.memory_space<vmem>>, vector<1x32x96xbf16>
    %234 = vector.shape_cast %233 : vector<1x32x96xbf16> to vector<32x96xbf16>
    %cst_95 = arith.constant dense<0.000000e+00> : vector<16x96xf32>
    %235 = tpu.matmul %232, %234, %cst_95 {dimension_numbers = #tpu.dot_dimension_numbers<[1], [0], [0], [1], [0, 0, 1, 1], [], []>} : vector<16x32xbf16>, vector<32x96xbf16>, vector<16x96xf32> -> vector<16x96xf32>
    %c1_96 = arith.constant 1 : index
    %c0_97 = arith.constant 0 : index
    %c0_98 = arith.constant 0 : index
    %236 = vector.load %arg7[%c1_96, %c0_97, %c0_98] : memref<2x1x96xf32, #tpu.memory_space<vmem>>, vector<1x1x96xf32>
    %237 = vector.shape_cast %236 : vector<1x1x96xf32> to vector<1x96xf32>
    %238 = vector.broadcast %237 : vector<1x96xf32> to vector<16x96xf32>
    %239 = arith.addf %235, %238 : vector<16x96xf32>
    %240 = vector.extract_strided_slice %239 {offsets = [0, 0], sizes = [16, 32], strides = [1, 1]} : vector<16x96xf32> to vector<16x32xf32>
    %cst_99 = arith.constant 2.500000e-01 : f32
    %241 = vector.broadcast %cst_99 : f32 to vector<16x32xf32>
    %242 = arith.mulf %240, %241 : vector<16x32xf32>
    %c1_100 = arith.constant 1 : index
    %c0_101 = arith.constant 0 : index
    %c0_102 = arith.constant 0 : index
    %243 = vector.load %arg8[%c1_100, %c0_101, %c0_102] : memref<2x32x32xbf16, #tpu.memory_space<vmem>>, vector<1x32x32xbf16>
    %244 = vector.shape_cast %243 : vector<1x32x32xbf16> to vector<32x32xbf16>
    %cst_103 = arith.constant 0.000000e+00 : f32
    %245 = vector.broadcast %cst_103 : f32 to vector<16x32xf32>
    %246 = vector.extract_strided_slice %242 {offsets = [0, 0], sizes = [16, 16], strides = [1, 1]} : vector<16x32xf32> to vector<16x16xf32>
    %247 = vector.shape_cast %246 : vector<16x16xf32> to vector<2x8x16xf32>
    %248 = arith.truncf %247 : vector<2x8x16xf32> to vector<2x8x16xbf16>
    %249 = vector.extract_strided_slice %239 {offsets = [0, 32], sizes = [16, 16], strides = [1, 1]} : vector<16x96xf32> to vector<16x16xf32>
    %250 = vector.shape_cast %249 : vector<16x16xf32> to vector<2x8x16xf32>
    %251 = arith.truncf %250 : vector<2x8x16xf32> to vector<2x8x16xbf16>
    %252 = vector.extract_strided_slice %239 {offsets = [0, 64], sizes = [16, 16], strides = [1, 1]} : vector<16x96xf32> to vector<16x16xf32>
    %253 = vector.shape_cast %252 : vector<16x16xf32> to vector<2x8x16xf32>
    %254 = arith.truncf %253 : vector<2x8x16xf32> to vector<2x8x16xbf16>
    "tpu.trace_start"() <{level = 10 : i32, message = "bqd,bkd->bqk"}> : () -> ()
    %cst_104 = arith.constant dense<0.000000e+00> : vector<2x8x8xf32>
    %255 = tpu.matmul %248, %251, %cst_104 {dimension_numbers = #tpu.dot_dimension_numbers<[2], [2], [1], [1], [0, 0, 0, 1, 1, 1], [0], [0]>} : vector<2x8x16xbf16>, vector<2x8x16xbf16>, vector<2x8x8xf32> -> vector<2x8x8xf32>
    "tpu.trace_stop"() : () -> ()
    %256 = vector.shape_cast %5 : vector<8x8xf32> to vector<1x8x8xf32>
    %257 = vector.broadcast %256 : vector<1x8x8xf32> to vector<2x8x8xf32>
    %258 = arith.addf %255, %257 : vector<2x8x8xf32>
    %259 = vector.shape_cast %11 : vector<2x8xf32> to vector<2x1x8xf32>
    %260 = vector.broadcast %259 : vector<2x1x8xf32> to vector<2x8x8xf32>
    %261 = arith.addf %258, %260 : vector<2x8x8xf32>
    %cst_105 = arith.constant dense<0xFF800000> : vector<2x8xf32>
    %262 = vector.multi_reduction <maximumf>, %261, %cst_105 [2] : vector<2x8x8xf32> to vector<2x8xf32>
    %263 = vector.shape_cast %262 : vector<2x8xf32> to vector<2x8x1xf32>
    %264 = vector.broadcast %263 : vector<2x8x1xf32> to vector<2x8x8xf32>
    %265 = arith.subf %261, %264 : vector<2x8x8xf32>
    %266 = math.exp %265 : vector<2x8x8xf32>
    %cst_106 = arith.constant dense<0.000000e+00> : vector<2x8xf32>
    %267 = vector.multi_reduction <add>, %266, %cst_106 [2] : vector<2x8x8xf32> to vector<2x8xf32>
    %268 = vector.shape_cast %267 : vector<2x8xf32> to vector<2x8x1xf32>
    %269 = tpu.reciprocal %268 {approx = true} : vector<2x8x1xf32> -> vector<2x8x1xf32>
    %270 = vector.broadcast %269 : vector<2x8x1xf32> to vector<2x8x8xf32>
    %271 = arith.mulf %266, %270 : vector<2x8x8xf32>
    %272 = arith.truncf %271 : vector<2x8x8xf32> to vector<2x8x8xbf16>
    "tpu.trace_start"() <{level = 10 : i32, message = "bqk,bkd->bqd"}> : () -> ()
    %cst_107 = arith.constant dense<0.000000e+00> : vector<2x8x16xf32>
    %273 = tpu.matmul %272, %254, %cst_107 {dimension_numbers = #tpu.dot_dimension_numbers<[2], [1], [1], [2], [0, 0, 0, 1, 1, 2], [0], [0]>} : vector<2x8x8xbf16>, vector<2x8x16xbf16>, vector<2x8x16xf32> -> vector<2x8x16xf32>
    "tpu.trace_stop"() : () -> ()
    %274 = vector.shape_cast %273 : vector<2x8x16xf32> to vector<16x16xf32>
    %275 = arith.truncf %274 : vector<16x16xf32> to vector<16x16xbf16>
    %276 = vector.extract_strided_slice %244 {offsets = [0, 0], sizes = [16, 32], strides = [1, 1]} : vector<32x32xbf16> to vector<16x32xbf16>
    %cst_108 = arith.constant dense<0.000000e+00> : vector<16x32xf32>
    %277 = tpu.matmul %275, %276, %cst_108 {dimension_numbers = #tpu.dot_dimension_numbers<[1], [0], [0], [1], [0, 0, 1, 1], [], []>} : vector<16x16xbf16>, vector<16x32xbf16>, vector<16x32xf32> -> vector<16x32xf32>
    %278 = arith.addf %245, %277 : vector<16x32xf32>
    %279 = vector.extract_strided_slice %242 {offsets = [0, 16], sizes = [16, 16], strides = [1, 1]} : vector<16x32xf32> to vector<16x16xf32>
    %280 = vector.shape_cast %279 : vector<16x16xf32> to vector<2x8x16xf32>
    %281 = arith.truncf %280 : vector<2x8x16xf32> to vector<2x8x16xbf16>
    %282 = vector.extract_strided_slice %239 {offsets = [0, 48], sizes = [16, 16], strides = [1, 1]} : vector<16x96xf32> to vector<16x16xf32>
    %283 = vector.shape_cast %282 : vector<16x16xf32> to vector<2x8x16xf32>
    %284 = arith.truncf %283 : vector<2x8x16xf32> to vector<2x8x16xbf16>
    %285 = vector.extract_strided_slice %239 {offsets = [0, 80], sizes = [16, 16], strides = [1, 1]} : vector<16x96xf32> to vector<16x16xf32>
    %286 = vector.shape_cast %285 : vector<16x16xf32> to vector<2x8x16xf32>
    %287 = arith.truncf %286 : vector<2x8x16xf32> to vector<2x8x16xbf16>
    "tpu.trace_start"() <{level = 10 : i32, message = "bqd,bkd->bqk"}> : () -> ()
    %cst_109 = arith.constant dense<0.000000e+00> : vector<2x8x8xf32>
    %288 = tpu.matmul %281, %284, %cst_109 {dimension_numbers = #tpu.dot_dimension_numbers<[2], [2], [1], [1], [0, 0, 0, 1, 1, 1], [0], [0]>} : vector<2x8x16xbf16>, vector<2x8x16xbf16>, vector<2x8x8xf32> -> vector<2x8x8xf32>
    "tpu.trace_stop"() : () -> ()
    %289 = vector.shape_cast %5 : vector<8x8xf32> to vector<1x8x8xf32>
    %290 = vector.broadcast %289 : vector<1x8x8xf32> to vector<2x8x8xf32>
    %291 = arith.addf %288, %290 : vector<2x8x8xf32>
    %292 = vector.shape_cast %11 : vector<2x8xf32> to vector<2x1x8xf32>
    %293 = vector.broadcast %292 : vector<2x1x8xf32> to vector<2x8x8xf32>
    %294 = arith.addf %291, %293 : vector<2x8x8xf32>
    %cst_110 = arith.constant dense<0xFF800000> : vector<2x8xf32>
    %295 = vector.multi_reduction <maximumf>, %294, %cst_110 [2] : vector<2x8x8xf32> to vector<2x8xf32>
    %296 = vector.shape_cast %295 : vector<2x8xf32> to vector<2x8x1xf32>
    %297 = vector.broadcast %296 : vector<2x8x1xf32> to vector<2x8x8xf32>
    %298 = arith.subf %294, %297 : vector<2x8x8xf32>
    %299 = math.exp %298 : vector<2x8x8xf32>
    %cst_111 = arith.constant dense<0.000000e+00> : vector<2x8xf32>
    %300 = vector.multi_reduction <add>, %299, %cst_111 [2] : vector<2x8x8xf32> to vector<2x8xf32>
    %301 = vector.shape_cast %300 : vector<2x8xf32> to vector<2x8x1xf32>
    %302 = tpu.reciprocal %301 {approx = true} : vector<2x8x1xf32> -> vector<2x8x1xf32>
    %303 = vector.broadcast %302 : vector<2x8x1xf32> to vector<2x8x8xf32>
    %304 = arith.mulf %299, %303 : vector<2x8x8xf32>
    %305 = arith.truncf %304 : vector<2x8x8xf32> to vector<2x8x8xbf16>
    "tpu.trace_start"() <{level = 10 : i32, message = "bqk,bkd->bqd"}> : () -> ()
    %cst_112 = arith.constant dense<0.000000e+00> : vector<2x8x16xf32>
    %306 = tpu.matmul %305, %287, %cst_112 {dimension_numbers = #tpu.dot_dimension_numbers<[2], [1], [1], [2], [0, 0, 0, 1, 1, 2], [0], [0]>} : vector<2x8x8xbf16>, vector<2x8x16xbf16>, vector<2x8x16xf32> -> vector<2x8x16xf32>
    "tpu.trace_stop"() : () -> ()
    %307 = vector.shape_cast %306 : vector<2x8x16xf32> to vector<16x16xf32>
    %308 = arith.truncf %307 : vector<16x16xf32> to vector<16x16xbf16>
    %309 = vector.extract_strided_slice %244 {offsets = [16, 0], sizes = [16, 32], strides = [1, 1]} : vector<32x32xbf16> to vector<16x32xbf16>
    %cst_113 = arith.constant dense<0.000000e+00> : vector<16x32xf32>
    %310 = tpu.matmul %308, %309, %cst_113 {dimension_numbers = #tpu.dot_dimension_numbers<[1], [0], [0], [1], [0, 0, 1, 1], [], []>} : vector<16x16xbf16>, vector<16x32xbf16>, vector<16x32xf32> -> vector<16x32xf32>
    %311 = arith.addf %278, %310 : vector<16x32xf32>
    %c1_114 = arith.constant 1 : index
    %c0_115 = arith.constant 0 : index
    %c0_116 = arith.constant 0 : index
    %312 = vector.load %arg9[%c1_114, %c0_115, %c0_116] : memref<2x1x32xf32, #tpu.memory_space<vmem>>, vector<1x1x32xf32>
    %313 = vector.shape_cast %312 : vector<1x1x32xf32> to vector<1x32xf32>
    %314 = vector.broadcast %313 : vector<1x32xf32> to vector<16x32xf32>
    %315 = arith.addf %311, %314 : vector<16x32xf32>
    %316 = arith.addf %315, %231 : vector<16x32xf32>
    %c1_117 = arith.constant 1 : index
    %c0_118 = arith.constant 0 : index
    %c0_119 = arith.constant 0 : index
    %317 = vector.load %arg10[%c1_117, %c0_118, %c0_119] : memref<2x1x32xf32, #tpu.memory_space<vmem>>, vector<1x1x32xf32>
    %318 = vector.shape_cast %317 : vector<1x1x32xf32> to vector<1x32xf32>
    %c1_120 = arith.constant 1 : index
    %c0_121 = arith.constant 0 : index
    %c0_122 = arith.constant 0 : index
    %319 = vector.load %arg11[%c1_120, %c0_121, %c0_122] : memref<2x1x32xf32, #tpu.memory_space<vmem>>, vector<1x1x32xf32>
    %320 = vector.shape_cast %319 : vector<1x1x32xf32> to vector<1x32xf32>
    %cst_123 = arith.constant dense<0.000000e+00> : vector<16xf32>
    %321 = vector.multi_reduction <add>, %316, %cst_123 [1] : vector<16x32xf32> to vector<16xf32>
    %322 = vector.shape_cast %321 : vector<16xf32> to vector<16x1xf32>
    %cst_124 = arith.constant 3.200000e+01 : f32
    %323 = vector.broadcast %cst_124 : f32 to vector<16x1xf32>
    %324 = arith.divf %322, %323 : vector<16x1xf32>
    %325 = vector.broadcast %324 : vector<16x1xf32> to vector<16x32xf32>
    %326 = arith.subf %316, %325 : vector<16x32xf32>
    %327 = arith.mulf %326, %326 : vector<16x32xf32>
    %cst_125 = arith.constant dense<0.000000e+00> : vector<16xf32>
    %328 = vector.multi_reduction <add>, %327, %cst_125 [1] : vector<16x32xf32> to vector<16xf32>
    %329 = vector.shape_cast %328 : vector<16xf32> to vector<16x1xf32>
    %cst_126 = arith.constant 3.200000e+01 : f32
    %330 = vector.broadcast %cst_126 : f32 to vector<16x1xf32>
    %331 = arith.divf %329, %330 : vector<16x1xf32>
    %332 = vector.broadcast %324 : vector<16x1xf32> to vector<16x32xf32>
    %333 = arith.subf %316, %332 : vector<16x32xf32>
    %cst_127 = arith.constant 9.99999996E-13 : f32
    %334 = vector.broadcast %cst_127 : f32 to vector<16x1xf32>
    %335 = arith.addf %331, %334 : vector<16x1xf32>
    %336 = math.rsqrt %335 : vector<16x1xf32>
    %337 = vector.broadcast %336 : vector<16x1xf32> to vector<16x32xf32>
    %338 = arith.mulf %333, %337 : vector<16x32xf32>
    %339 = vector.broadcast %318 : vector<1x32xf32> to vector<16x32xf32>
    %340 = arith.mulf %338, %339 : vector<16x32xf32>
    %341 = vector.broadcast %320 : vector<1x32xf32> to vector<16x32xf32>
    %342 = arith.addf %340, %341 : vector<16x32xf32>
    %343 = arith.truncf %342 : vector<16x32xf32> to vector<16x32xbf16>
    %c1_128 = arith.constant 1 : index
    %c0_129 = arith.constant 0 : index
    %c0_130 = arith.constant 0 : index
    %344 = vector.load %arg12[%c1_128, %c0_129, %c0_130] : memref<2x32x64xbf16, #tpu.memory_space<vmem>>, vector<1x32x64xbf16>
    %345 = vector.shape_cast %344 : vector<1x32x64xbf16> to vector<32x64xbf16>
    %cst_131 = arith.constant dense<0.000000e+00> : vector<16x64xf32>
    %346 = tpu.matmul %343, %345, %cst_131 {dimension_numbers = #tpu.dot_dimension_numbers<[1], [0], [0], [1], [0, 0, 1, 1], [], []>} : vector<16x32xbf16>, vector<32x64xbf16>, vector<16x64xf32> -> vector<16x64xf32>
    %c1_132 = arith.constant 1 : index
    %c0_133 = arith.constant 0 : index
    %c0_134 = arith.constant 0 : index
    %347 = vector.load %arg13[%c1_132, %c0_133, %c0_134] : memref<2x1x64xf32, #tpu.memory_space<vmem>>, vector<1x1x64xf32>
    %348 = vector.shape_cast %347 : vector<1x1x64xf32> to vector<1x64xf32>
    %349 = vector.broadcast %348 : vector<1x64xf32> to vector<16x64xf32>
    %350 = arith.addf %346, %349 : vector<16x64xf32>
    %cst_135 = arith.constant 0.707106769 : f32
    %351 = vector.broadcast %cst_135 : f32 to vector<16x64xf32>
    %352 = arith.mulf %350, %351 : vector<16x64xf32>
    %353 = math.absf %352 : vector<16x64xf32>
    %cst_136 = arith.constant 0.327591091 : f32
    %354 = vector.broadcast %cst_136 : f32 to vector<16x64xf32>
    %355 = arith.mulf %354, %353 : vector<16x64xf32>
    %cst_137 = arith.constant 1.000000e+00 : f32
    %356 = vector.broadcast %cst_137 : f32 to vector<16x64xf32>
    %357 = arith.addf %356, %355 : vector<16x64xf32>
    %358 = tpu.reciprocal %357 {approx = true} : vector<16x64xf32> -> vector<16x64xf32>
    %cst_138 = arith.constant 1.06140542 : f32
    %359 = vector.broadcast %cst_138 : f32 to vector<16x64xf32>
    %360 = arith.mulf %359, %358 : vector<16x64xf32>
    %cst_139 = arith.constant -1.45315206 : f32
    %361 = vector.broadcast %cst_139 : f32 to vector<16x64xf32>
    %362 = arith.addf %360, %361 : vector<16x64xf32>
    %363 = arith.mulf %362, %358 : vector<16x64xf32>
    %cst_140 = arith.constant 1.42141378 : f32
    %364 = vector.broadcast %cst_140 : f32 to vector<16x64xf32>
    %365 = arith.addf %363, %364 : vector<16x64xf32>
    %366 = arith.mulf %365, %358 : vector<16x64xf32>
    %cst_141 = arith.constant -0.284496725 : f32
    %367 = vector.broadcast %cst_141 : f32 to vector<16x64xf32>
    %368 = arith.addf %366, %367 : vector<16x64xf32>
    %369 = arith.mulf %368, %358 : vector<16x64xf32>
    %cst_142 = arith.constant 0.254829586 : f32
    %370 = vector.broadcast %cst_142 : f32 to vector<16x64xf32>
    %371 = arith.addf %369, %370 : vector<16x64xf32>
    %372 = arith.mulf %371, %358 : vector<16x64xf32>
    %cst_143 = arith.constant 0.000000e+00 : f32
    %373 = vector.broadcast %cst_143 : f32 to vector<16x64xf32>
    %374 = arith.subf %373, %353 : vector<16x64xf32>
    %375 = arith.mulf %374, %353 : vector<16x64xf32>
    %376 = math.exp %375 : vector<16x64xf32>
    %377 = arith.mulf %372, %376 : vector<16x64xf32>
    %cst_144 = arith.constant 1.000000e+00 : f32
    %378 = vector.broadcast %cst_144 : f32 to vector<16x64xf32>
    %379 = arith.subf %378, %377 : vector<16x64xf32>
    %cst_145 = arith.constant 0.000000e+00 : f32
    %380 = vector.broadcast %cst_145 : f32 to vector<16x64xf32>
    %381 = arith.cmpf oge, %352, %380 : vector<16x64xf32>
    %cst_146 = arith.constant 1.000000e+00 : f32
    %cst_147 = arith.constant -1.000000e+00 : f32
    %382 = vector.broadcast %cst_146 : f32 to vector<16x64xf32>
    %383 = vector.broadcast %cst_147 : f32 to vector<16x64xf32>
    %384 = arith.select %381, %382, %383 : vector<16x64xi1>, vector<16x64xf32>
    %385 = arith.mulf %384, %379 : vector<16x64xf32>
    %cst_148 = arith.constant 5.000000e-01 : f32
    %386 = vector.broadcast %cst_148 : f32 to vector<16x64xf32>
    %387 = arith.mulf %386, %350 : vector<16x64xf32>
    %cst_149 = arith.constant 1.000000e+00 : f32
    %388 = vector.broadcast %cst_149 : f32 to vector<16x64xf32>
    %389 = arith.addf %388, %385 : vector<16x64xf32>
    %390 = arith.mulf %387, %389 : vector<16x64xf32>
    %391 = arith.truncf %390 : vector<16x64xf32> to vector<16x64xbf16>
    %c1_150 = arith.constant 1 : index
    %c0_151 = arith.constant 0 : index
    %c0_152 = arith.constant 0 : index
    %392 = vector.load %arg14[%c1_150, %c0_151, %c0_152] : memref<2x64x32xbf16, #tpu.memory_space<vmem>>, vector<1x64x32xbf16>
    %393 = vector.shape_cast %392 : vector<1x64x32xbf16> to vector<64x32xbf16>
    %cst_153 = arith.constant dense<0.000000e+00> : vector<16x32xf32>
    %394 = tpu.matmul %391, %393, %cst_153 {dimension_numbers = #tpu.dot_dimension_numbers<[1], [0], [0], [1], [0, 0, 1, 1], [], []>} : vector<16x64xbf16>, vector<64x32xbf16>, vector<16x32xf32> -> vector<16x32xf32>
    %c1_154 = arith.constant 1 : index
    %c0_155 = arith.constant 0 : index
    %c0_156 = arith.constant 0 : index
    %395 = vector.load %arg15[%c1_154, %c0_155, %c0_156] : memref<2x1x32xf32, #tpu.memory_space<vmem>>, vector<1x1x32xf32>
    %396 = vector.shape_cast %395 : vector<1x1x32xf32> to vector<1x32xf32>
    %397 = vector.broadcast %396 : vector<1x32xf32> to vector<16x32xf32>
    %398 = arith.addf %394, %397 : vector<16x32xf32>
    %399 = arith.addf %398, %342 : vector<16x32xf32>
    %c1_157 = arith.constant 1 : index
    %c0_158 = arith.constant 0 : index
    %c0_159 = arith.constant 0 : index
    %400 = vector.load %arg16[%c1_157, %c0_158, %c0_159] : memref<2x1x32xf32, #tpu.memory_space<vmem>>, vector<1x1x32xf32>
    %401 = vector.shape_cast %400 : vector<1x1x32xf32> to vector<1x32xf32>
    %c1_160 = arith.constant 1 : index
    %c0_161 = arith.constant 0 : index
    %c0_162 = arith.constant 0 : index
    %402 = vector.load %arg17[%c1_160, %c0_161, %c0_162] : memref<2x1x32xf32, #tpu.memory_space<vmem>>, vector<1x1x32xf32>
    %403 = vector.shape_cast %402 : vector<1x1x32xf32> to vector<1x32xf32>
    %cst_163 = arith.constant dense<0.000000e+00> : vector<16xf32>
    %404 = vector.multi_reduction <add>, %399, %cst_163 [1] : vector<16x32xf32> to vector<16xf32>
    %405 = vector.shape_cast %404 : vector<16xf32> to vector<16x1xf32>
    %cst_164 = arith.constant 3.200000e+01 : f32
    %406 = vector.broadcast %cst_164 : f32 to vector<16x1xf32>
    %407 = arith.divf %405, %406 : vector<16x1xf32>
    %408 = vector.broadcast %407 : vector<16x1xf32> to vector<16x32xf32>
    %409 = arith.subf %399, %408 : vector<16x32xf32>
    %410 = arith.mulf %409, %409 : vector<16x32xf32>
    %cst_165 = arith.constant dense<0.000000e+00> : vector<16xf32>
    %411 = vector.multi_reduction <add>, %410, %cst_165 [1] : vector<16x32xf32> to vector<16xf32>
    %412 = vector.shape_cast %411 : vector<16xf32> to vector<16x1xf32>
    %cst_166 = arith.constant 3.200000e+01 : f32
    %413 = vector.broadcast %cst_166 : f32 to vector<16x1xf32>
    %414 = arith.divf %412, %413 : vector<16x1xf32>
    %415 = vector.broadcast %407 : vector<16x1xf32> to vector<16x32xf32>
    %416 = arith.subf %399, %415 : vector<16x32xf32>
    %cst_167 = arith.constant 9.99999996E-13 : f32
    %417 = vector.broadcast %cst_167 : f32 to vector<16x1xf32>
    %418 = arith.addf %414, %417 : vector<16x1xf32>
    %419 = math.rsqrt %418 : vector<16x1xf32>
    %420 = vector.broadcast %419 : vector<16x1xf32> to vector<16x32xf32>
    %421 = arith.mulf %416, %420 : vector<16x32xf32>
    %422 = vector.broadcast %401 : vector<1x32xf32> to vector<16x32xf32>
    %423 = arith.mulf %421, %422 : vector<16x32xf32>
    %424 = vector.broadcast %403 : vector<1x32xf32> to vector<16x32xf32>
    %425 = arith.addf %423, %424 : vector<16x32xf32>
    %426 = vector.shape_cast %425 : vector<16x32xf32> to vector<2x8x32xf32>
    %c0_168 = arith.constant 0 : index
    %c0_169 = arith.constant 0 : index
    %c0_170 = arith.constant 0 : index
    %427 = vector.load %arg3[%c0_168, %c0_169, %c0_170] : memref<2x1x8xf32, #tpu.memory_space<vmem>>, vector<2x1x8xf32>
    %428 = vector.shape_cast %427 : vector<2x1x8xf32> to vector<2x8xf32>
    %429 = vector.shape_cast %428 : vector<2x8xf32> to vector<2x8x1xf32>
    %430 = vector.broadcast %429 : vector<2x8x1xf32> to vector<2x8x32xf32>
    %431 = arith.mulf %426, %430 : vector<2x8x32xf32>
    %cst_171 = arith.constant dense<0.000000e+00> : vector<2x32xf32>
    %432 = vector.multi_reduction <add>, %431, %cst_171 [1] : vector<2x8x32xf32> to vector<2x32xf32>
    %433 = arith.truncf %432 : vector<2x32xf32> to vector<2x32xbf16>
    %c0_172 = arith.constant 0 : index
    %c0_173 = arith.constant 0 : index
    %434 = vector.load %arg18[%c0_172, %c0_173] : memref<32x32xbf16, #tpu.memory_space<vmem>>, vector<32x32xbf16>
    %cst_174 = arith.constant dense<0.000000e+00> : vector<2x32xf32>
    %435 = tpu.matmul %433, %434, %cst_174 {dimension_numbers = #tpu.dot_dimension_numbers<[1], [0], [0], [1], [0, 0, 1, 1], [], []>} : vector<2x32xbf16>, vector<32x32xbf16>, vector<2x32xf32> -> vector<2x32xf32>
    %c0_175 = arith.constant 0 : index
    %c0_176 = arith.constant 0 : index
    %436 = vector.load %arg19[%c0_175, %c0_176] : memref<1x32xf32, #tpu.memory_space<vmem>>, vector<1x32xf32>
    %437 = vector.broadcast %436 : vector<1x32xf32> to vector<2x32xf32>
    %438 = arith.addf %435, %437 : vector<2x32xf32>
    %cst_177 = arith.constant 0.000000e+00 : f32
    %439 = vector.broadcast %cst_177 : f32 to vector<2x32xf32>
    %440 = arith.maximumf %438, %439 : vector<2x32xf32>
    %441 = arith.truncf %440 : vector<2x32xf32> to vector<2x32xbf16>
    %c0_178 = arith.constant 0 : index
    %c0_179 = arith.constant 0 : index
    %442 = vector.load %arg20[%c0_178, %c0_179] : memref<32x4xbf16, #tpu.memory_space<vmem>>, vector<32x4xbf16>
    %cst_180 = arith.constant dense<0.000000e+00> : vector<2x4xf32>
    %443 = tpu.matmul %441, %442, %cst_180 {dimension_numbers = #tpu.dot_dimension_numbers<[1], [0], [0], [1], [0, 0, 1, 1], [], []>} : vector<2x32xbf16>, vector<32x4xbf16>, vector<2x4xf32> -> vector<2x4xf32>
    %c0_181 = arith.constant 0 : index
    %c0_182 = arith.constant 0 : index
    %444 = vector.load %arg21[%c0_181, %c0_182] : memref<1x4xf32, #tpu.memory_space<vmem>>, vector<1x4xf32>
    %445 = vector.broadcast %444 : vector<1x4xf32> to vector<2x4xf32>
    %446 = arith.addf %443, %445 : vector<2x4xf32>
    %447 = arith.truncf %446 : vector<2x4xf32> to vector<2x4xbf16>
    %c0_183 = arith.constant 0 : index
    %c0_184 = arith.constant 0 : index
    %448 = vector.load %arg22[%c0_183, %c0_184] : memref<4x32xbf16, #tpu.memory_space<vmem>>, vector<4x32xbf16>
    %cst_185 = arith.constant dense<0.000000e+00> : vector<2x32xf32>
    %449 = tpu.matmul %447, %448, %cst_185 {dimension_numbers = #tpu.dot_dimension_numbers<[1], [0], [0], [1], [0, 0, 1, 1], [], []>} : vector<2x4xbf16>, vector<4x32xbf16>, vector<2x32xf32> -> vector<2x32xf32>
    %450 = arith.addf %432, %449 : vector<2x32xf32>
    %451 = vector.shape_cast %450 : vector<2x32xf32> to vector<2x1x32xf32>
    %c0_186 = arith.constant 0 : index
    %c0_187 = arith.constant 0 : index
    %c0_188 = arith.constant 0 : index
    %452 = vector.load %arg23[%c0_186, %c0_187, %c0_188] : memref<2x1x32xf32, #tpu.memory_space<vmem>>, vector<2x1x32xf32>
    tpu.vector_store %arg23[%c0_186, %c0_187, %c0_188], %451 {strides = array<i32>} : memref<2x1x32xf32, #tpu.memory_space<vmem>>, vector<2x1x32xf32>,
    return
  }
  func.func @transform_0(%arg0: i32) -> (i32, i32, i32) {
    %c0_i32 = arith.constant 0 : i32
    %c0_i32_0 = arith.constant 0 : i32
    %c0_i32_1 = arith.constant 0 : i32
    return %arg0, %c0_i32, %c0_i32_0 : i32, i32, i32
  }
  func.func @transform_1(%arg0: i32) -> (i32, i32, i32) {
    %c0_i32 = arith.constant 0 : i32
    %c0_i32_0 = arith.constant 0 : i32
    %c0_i32_1 = arith.constant 0 : i32
    return %arg0, %c0_i32, %c0_i32_0 : i32, i32, i32
  }
  func.func @transform_2(%arg0: i32) -> (i32, i32, i32) {
    %c0_i32 = arith.constant 0 : i32
    %c0_i32_0 = arith.constant 0 : i32
    %c0_i32_1 = arith.constant 0 : i32
    return %arg0, %c0_i32, %c0_i32_0 : i32, i32, i32
  }
  func.func @transform_3(%arg0: i32) -> (i32, i32) {
    %c0_i32 = arith.constant 0 : i32
    %c0_i32_0 = arith.constant 0 : i32
    %c0_i32_1 = arith.constant 0 : i32
    return %c0_i32, %c0_i32_0 : i32, i32
  }
  func.func @transform_4(%arg0: i32) -> (i32, i32) {
    %c0_i32 = arith.constant 0 : i32
    %c0_i32_0 = arith.constant 0 : i32
    %c0_i32_1 = arith.constant 0 : i32
    return %c0_i32, %c0_i32_0 : i32, i32
  }
  func.func @transform_5(%arg0: i32) -> (i32, i32, i32) {
    %c0_i32 = arith.constant 0 : i32
    %c0_i32_0 = arith.constant 0 : i32
    %c0_i32_1 = arith.constant 0 : i32
    %c0_i32_2 = arith.constant 0 : i32
    return %c0_i32, %c0_i32_0, %c0_i32_1 : i32, i32, i32
  }
  func.func @transform_6(%arg0: i32) -> (i32, i32, i32) {
    %c0_i32 = arith.constant 0 : i32
    %c0_i32_0 = arith.constant 0 : i32
    %c0_i32_1 = arith.constant 0 : i32
    %c0_i32_2 = arith.constant 0 : i32
    return %c0_i32, %c0_i32_0, %c0_i32_1 : i32, i32, i32
  }
  func.func @transform_7(%arg0: i32) -> (i32, i32, i32) {
    %c0_i32 = arith.constant 0 : i32
    %c0_i32_0 = arith.constant 0 : i32
    %c0_i32_1 = arith.constant 0 : i32
    %c0_i32_2 = arith.constant 0 : i32
    return %c0_i32, %c0_i32_0, %c0_i32_1 : i32, i32, i32
  }
  func.func @transform_8(%arg0: i32) -> (i32, i32, i32) {
    %c0_i32 = arith.constant 0 : i32
    %c0_i32_0 = arith.constant 0 : i32
    %c0_i32_1 = arith.constant 0 : i32
    %c0_i32_2 = arith.constant 0 : i32
    return %c0_i32, %c0_i32_0, %c0_i32_1 : i32, i32, i32
  }
  func.func @transform_9(%arg0: i32) -> (i32, i32, i32) {
    %c0_i32 = arith.constant 0 : i32
    %c0_i32_0 = arith.constant 0 : i32
    %c0_i32_1 = arith.constant 0 : i32
    %c0_i32_2 = arith.constant 0 : i32
    return %c0_i32, %c0_i32_0, %c0_i32_1 : i32, i32, i32
  }
  func.func @transform_10(%arg0: i32) -> (i32, i32, i32) {
    %c0_i32 = arith.constant 0 : i32
    %c0_i32_0 = arith.constant 0 : i32
    %c0_i32_1 = arith.constant 0 : i32
    %c0_i32_2 = arith.constant 0 : i32
    return %c0_i32, %c0_i32_0, %c0_i32_1 : i32, i32, i32
  }
  func.func @transform_11(%arg0: i32) -> (i32, i32, i32) {
    %c0_i32 = arith.constant 0 : i32
    %c0_i32_0 = arith.constant 0 : i32
    %c0_i32_1 = arith.constant 0 : i32
    %c0_i32_2 = arith.constant 0 : i32
    return %c0_i32, %c0_i32_0, %c0_i32_1 : i32, i32, i32
  }
  func.func @transform_12(%arg0: i32) -> (i32, i32, i32) {
    %c0_i32 = arith.constant 0 : i32
    %c0_i32_0 = arith.constant 0 : i32
    %c0_i32_1 = arith.constant 0 : i32
    %c0_i32_2 = arith.constant 0 : i32
    return %c0_i32, %c0_i32_0, %c0_i32_1 : i32, i32, i32
  }
  func.func @transform_13(%arg0: i32) -> (i32, i32, i32) {
    %c0_i32 = arith.constant 0 : i32
    %c0_i32_0 = arith.constant 0 : i32
    %c0_i32_1 = arith.constant 0 : i32
    %c0_i32_2 = arith.constant 0 : i32
    return %c0_i32, %c0_i32_0, %c0_i32_1 : i32, i32, i32
  }
  func.func @transform_14(%arg0: i32) -> (i32, i32, i32) {
    %c0_i32 = arith.constant 0 : i32
    %c0_i32_0 = arith.constant 0 : i32
    %c0_i32_1 = arith.constant 0 : i32
    %c0_i32_2 = arith.constant 0 : i32
    return %c0_i32, %c0_i32_0, %c0_i32_1 : i32, i32, i32
  }
  func.func @transform_15(%arg0: i32) -> (i32, i32, i32) {
    %c0_i32 = arith.constant 0 : i32
    %c0_i32_0 = arith.constant 0 : i32
    %c0_i32_1 = arith.constant 0 : i32
    %c0_i32_2 = arith.constant 0 : i32
    return %c0_i32, %c0_i32_0, %c0_i32_1 : i32, i32, i32
  }
  func.func @transform_16(%arg0: i32) -> (i32, i32, i32) {
    %c0_i32 = arith.constant 0 : i32
    %c0_i32_0 = arith.constant 0 : i32
    %c0_i32_1 = arith.constant 0 : i32
    %c0_i32_2 = arith.constant 0 : i32
    return %c0_i32, %c0_i32_0, %c0_i32_1 : i32, i32, i32
  }
  func.func @transform_17(%arg0: i32) -> (i32, i32) {
    %c0_i32 = arith.constant 0 : i32
    %c0_i32_0 = arith.constant 0 : i32
    %c0_i32_1 = arith.constant 0 : i32
    return %c0_i32, %c0_i32_0 : i32, i32
  }
  func.func @transform_18(%arg0: i32) -> (i32, i32) {
    %c0_i32 = arith.constant 0 : i32
    %c0_i32_0 = arith.constant 0 : i32
    %c0_i32_1 = arith.constant 0 : i32
    return %c0_i32, %c0_i32_0 : i32, i32
  }
  func.func @transform_19(%arg0: i32) -> (i32, i32) {
    %c0_i32 = arith.constant 0 : i32
    %c0_i32_0 = arith.constant 0 : i32
    %c0_i32_1 = arith.constant 0 : i32
    return %c0_i32, %c0_i32_0 : i32, i32
  }
  func.func @transform_20(%arg0: i32) -> (i32, i32) {
    %c0_i32 = arith.constant 0 : i32
    %c0_i32_0 = arith.constant 0 : i32
    %c0_i32_1 = arith.constant 0 : i32
    return %c0_i32, %c0_i32_0 : i32, i32
  }
  func.func @transform_21(%arg0: i32) -> (i32, i32) {
    %c0_i32 = arith.constant 0 : i32
    %c0_i32_0 = arith.constant 0 : i32
    %c0_i32_1 = arith.constant 0 : i32
    return %c0_i32, %c0_i32_0 : i32, i32
  }
  func.func @transform_22(%arg0: i32) -> (i32, i32, i32) {
    %c0_i32 = arith.constant 0 : i32
    %c0_i32_0 = arith.constant 0 : i32
    %c0_i32_1 = arith.constant 0 : i32
    return %arg0, %c0_i32, %c0_i32_0 : i32, i32, i32
  }
}

</mosaic_0001>

<llo_original>
// kernel: tpu_custom_call.1
$region0: #{tpu_custom_call.1}
  #allocation0 [shape = 'u32[]', space=smem, size = 0x4, offset = 0x4, fixed_abs, tag = 'smem constant byte address 0x4 - core index']
  #allocation1 [shape = 'u32[144,128]{1,0:T(1,128)}', space=vmem, size = 0x12000, scoped, tag = 'internal scratch']
  %s0 = inlined_call_operand.vmem [shape: f32[4,8,32], index: 0, kind: input, shape index: {}]
  %s1 = inlined_call_operand.vmem [shape: f32[4,1,8], index: 1, kind: input, shape index: {}]
  %s2 = inlined_call_operand.vmem [shape: f32[4,1,8], index: 2, kind: input, shape index: {}]
  %s3 = inlined_call_operand.vmem [shape: f32[1,32], index: 3, kind: input, shape index: {}]
  %s4 = inlined_call_operand.hbm [shape: f32[1,32], index: 4, kind: input, shape index: {}]
  %s5 = inlined_call_operand.vmem [shape: bf16[2,32,96], index: 5, kind: input, shape index: {}]
  %s6 = inlined_call_operand.vmem [shape: f32[2,1,96], index: 6, kind: input, shape index: {}]
  %s7 = inlined_call_operand.vmem [shape: bf16[2,32,32], index: 7, kind: input, shape index: {}]
  %s8 = inlined_call_operand.vmem [shape: f32[2,1,32], index: 8, kind: input, shape index: {}]
  %s9 = inlined_call_operand.vmem [shape: f32[2,1,32], index: 9, kind: input, shape index: {}]
  %s10 = inlined_call_operand.hbm [shape: f32[2,1,32], index: 10, kind: input, shape index: {}]
  %s11 = inlined_call_operand.hbm [shape: bf16[2,32,64], index: 11, kind: input, shape index: {}]
  %s12 = inlined_call_operand.hbm [shape: f32[2,1,64], index: 12, kind: input, shape index: {}]
  %s13 = inlined_call_operand.vmem [shape: bf16[2,64,32], index: 13, kind: input, shape index: {}]
  %s14 = inlined_call_operand.vmem [shape: f32[2,1,32], index: 14, kind: input, shape index: {}]
  %s15 = inlined_call_operand.vmem [shape: f32[2,1,32], index: 15, kind: input, shape index: {}]
  %s16 = inlined_call_operand.vmem [shape: f32[2,1,32], index: 16, kind: input, shape index: {}]
  %s17 = inlined_call_operand.vmem [shape: bf16[32,32], index: 17, kind: input, shape index: {}]
  %s18 = inlined_call_operand.vmem [shape: f32[1,32], index: 18, kind: input, shape index: {}]
  %s19 = inlined_call_operand.vmem [shape: bf16[32,4], index: 19, kind: input, shape index: {}]
  %s20 = inlined_call_operand.vmem [shape: f32[1,4], index: 20, kind: input, shape index: {}]
  %s21 = inlined_call_operand.vmem [shape: bf16[4,32], index: 21, kind: input, shape index: {}]
  %s22 = inlined_call_operand.hbm [shape: f32[4,1,32], index: 22, kind: output, shape index: {}]
  %s23 = sld [smem:[#allocation0]]
  $region137: #{tpu_custom_call.1} parent=0
    _
  %s25 = ssub.s32 1, %s23
  %s26 = scalar_select 0, %s25, %s23
  $region1: #{tpu_custom_call.1} parent=0
    #allocation2 [shape = 'u8[512]{0}', space=vmem, size = 0x400, scoped, tag = 'input window, operand 4, single buffered']
    #allocation3 [shape = 's32[2]{0}', space=sflag, size = 0x8, scoped, tag = 'scoped memory for tpu_custom_call.1']
    #allocation4 [shape = 's32[2]{0}', space=sflag, size = 0x8, scoped, tag = 'scoped memory for tpu_custom_call.1']
    #allocation5 [shape = 'u8[1024]{0}', space=vmem, size = 0x400, scoped, tag = 'input window, operand 10, single buffered']
    #allocation6 [shape = 's32[1]{0}', space=sflag, size = 0x4, scoped, tag = 'scoped memory for tpu_custom_call.1']
    #allocation7 [shape = 'u8[16384]{0}', space=vmem, size = 0x4000, scoped, tag = 'input window, operand 11, single buffered']
    #allocation8 [shape = 'u8[1024]{0}', space=vmem, size = 0x400, scoped, tag = 'input window, operand 12, single buffered']
    #allocation9 [shape = 's32[1]{0}', space=sflag, size = 0x4, scoped, tag = 'scoped memory for tpu_custom_call.1']
    #allocation10 [shape = 'u8[2048]{0}', space=vmem, size = 0x800, scoped, tag = 'output window, operand 0']
    %27 = vsyncpa [#allocation3], 0
    %28 = vsyncpa [#allocation6], 0
    %29 = vsyncpa [#allocation9], 0
    %30 = vsyncpa [#allocation4], 0
    %s31 = scalar_lea.sflag [#allocation4], 1
    %32 = vsyncpa %s31, 0
    loop: start=0, step=1, limit=4
    $region2: #{tpu_custom_call.1} parent=1 // loop_pre_header
      _
    $region3: #{tpu_custom_call.1} parent=1 // loop_header
      %s34 = sphi 0, %s38
      %p35 = scmp.ge.s32.totalorder %s34, 4
      %s44 = sphi 0, %s46
      %s47 = sphi 0, %s44
      %s48 = sphi 0, %s47
      %s64 = sphi 0, %s48
      %s70 = sphi 0, %s72
      %s73 = sphi 0, %s70
      %s74 = sphi 0, %s73
      %s90 = sphi 0, %s74
      %s96 = sphi 0, %s98
      %s99 = sphi 0, %s96
      %s100 = sphi 0, %s99
      %s116 = sphi 0, %s100
      %s120 = sphi 0, %s120
      %s122 = sphi 0, %s120
      %s123 = sphi 0, %s122
      %s137 = sphi 0, %s123
      %s141 = sphi 0, %s141
      %s143 = sphi 0, %s141
      %s144 = sphi 0, %s143
      %s158 = sphi 0, %s144
      %s162 = sphi 0, %s162
      %s164 = sphi 0, %s162
      %s165 = sphi 0, %s164
      %s179 = sphi 0, %s165
      %s183 = sphi 0, %s183
      %s185 = sphi 0, %s183
      %s186 = sphi 0, %s185
      %s200 = sphi 0, %s186
      %s204 = sphi 0, %s204
      %s206 = sphi 0, %s204
      %s207 = sphi 0, %s206
      %s221 = sphi 0, %s207
      %s225 = sphi 0, %s225
      %s227 = sphi 0, %s225
      %s228 = sphi 0, %s227
      %s242 = sphi 0, %s228
      %s246 = sphi 0, %s246
      %s248 = sphi 0, %s246
      %s249 = sphi 0, %s248
      %s263 = sphi 0, %s249
      %s267 = sphi 0, %s267
      %s269 = sphi 0, %s267
      %s270 = sphi 0, %s269
      %s284 = sphi 0, %s270
      %s288 = sphi 0, %s288
      %s290 = sphi 0, %s288
      %s291 = sphi 0, %s290
      %s305 = sphi 0, %s291
      %s309 = sphi 0, %s309
      %s311 = sphi 0, %s309
      %s312 = sphi 0, %s311
      %s326 = sphi 0, %s312
      %s330 = sphi 0, %s330
      %s332 = sphi 0, %s330
      %s333 = sphi 0, %s332
      %s347 = sphi 0, %s333
      %s351 = sphi 0, %s351
      %s353 = sphi 0, %s351
      %s354 = sphi 0, %s353
      %s368 = sphi 0, %s354
      %s372 = sphi 0, %s372
      %s374 = sphi 0, %s372
      %s375 = sphi 0, %s374
      %s389 = sphi 0, %s375
      %s393 = sphi 0, %s393
      %s395 = sphi 0, %s393
      %s396 = sphi 0, %s395
      %s410 = sphi 0, %s396
      %s414 = sphi 0, %s414
      %s416 = sphi 0, %s414
      %s417 = sphi 0, %s416
      %s431 = sphi 0, %s417
      %s435 = sphi 0, %s435
      %s437 = sphi 0, %s435
      %s438 = sphi 0, %s437
      %s452 = sphi 0, %s438
      %s456 = sphi 0, %s456
      %s458 = sphi 0, %s456
      %s459 = sphi 0, %s458
      %s473 = sphi 0, %s459
      %s477 = sphi 0, %s477
      %s479 = sphi 0, %s477
      %s480 = sphi 0, %s479
      %s494 = sphi 0, %s480
      %s498 = sphi 0, %s498
      %s500 = sphi 0, %s498
      %s501 = sphi 0, %s500
      %s515 = sphi 0, %s501
      %s521 = sphi 0, %s523
      %s524 = sphi 0, %s521
      %s525 = sphi 0, %s524
      %s541 = sphi 0, %s525
    $region4: #{tpu_custom_call.1} parent=1 // loop_header_branch
      %37 = sbr.rel (%p35) target = $region8
    $region5: #{tpu_custom_call.1} parent=1 // loop_body
      %s39 = ssub.s32 %s34, 1
      %s40 = ssub.s32 %s34, 2
      %s41 = sadd.s32 %s34, 1
      %s42 = ssub.s32 %s34, %s41
      %p43 = scmp.eq.s32.totalorder %s42, 0
      %s45 = sadd.s32 %s44, 1
      %s46 = scalar_select %p43, %s44, %s45
      %p49 = pneg %p43
      %p50 = scmp.eq.s32.totalorder %s34, 1
      %p51 = por %p49, %p50
      %p52 = scmp.ne.s32.totalorder %s44, %s47
      %p53 = scmp.eq.s32.totalorder %s34, 0
      %p54 = por %p52, %p53
      %p55 = scmp.ne.s32.totalorder %s44, %s47
      %p56 = scmp.eq.s32.totalorder %s39, 1
      %p57 = por %p55, %p56
      %p58 = scmp.ne.s32.totalorder %s47, %s48
      %p59 = scmp.eq.s32.totalorder %s39, 0
      %p60 = por %p58, %p59
      %p61 = scmp.ne.s32.totalorder %s47, %s48
      %p62 = scmp.eq.s32.totalorder %s40, 1
      %p63 = por %p61, %p62
      %p65 = scmp.ne.s32.totalorder %s48, %s64
      %p66 = scmp.eq.s32.totalorder %s40, 0
      %p67 = por %p65, %p66
      %s68 = ssub.s32 %s34, %s41
      %p69 = scmp.eq.s32.totalorder %s68, 0
      %s71 = sadd.s32 %s70, 1
      %s72 = scalar_select %p69, %s70, %s71
      %p75 = pneg %p69
      %p76 = scmp.eq.s32.totalorder %s34, 1
      %p77 = por %p75, %p76
      %p78 = scmp.ne.s32.totalorder %s70, %s73
      %p79 = scmp.eq.s32.totalorder %s34, 0
      %p80 = por %p78, %p79
      %p81 = scmp.ne.s32.totalorder %s70, %s73
      %p82 = scmp.eq.s32.totalorder %s39, 1
      %p83 = por %p81, %p82
      %p84 = scmp.ne.s32.totalorder %s73, %s74
      %p85 = scmp.eq.s32.totalorder %s39, 0
      %p86 = por %p84, %p85
      %p87 = scmp.ne.s32.totalorder %s73, %s74
      %p88 = scmp.eq.s32.totalorder %s40, 1
      %p89 = por %p87, %p88
      %p91 = scmp.ne.s32.totalorder %s74, %s90
      %p92 = scmp.eq.s32.totalorder %s40, 0
      %p93 = por %p91, %p92
      %s94 = ssub.s32 %s34, %s41
      %p95 = scmp.eq.s32.totalorder %s94, 0
      %s97 = sadd.s32 %s96, 1
      %s98 = scalar_select %p95, %s96, %s97
      %p101 = pneg %p95
      %p102 = scmp.eq.s32.totalorder %s34, 1
      %p103 = por %p101, %p102
      %p104 = scmp.ne.s32.totalorder %s96, %s99
      %p105 = scmp.eq.s32.totalorder %s34, 0
      %p106 = por %p104, %p105
      %p107 = scmp.ne.s32.totalorder %s96, %s99
      %p108 = scmp.eq.s32.totalorder %s39, 1
      %p109 = por %p107, %p108
      %p110 = scmp.ne.s32.totalorder %s99, %s100
      %p111 = scmp.eq.s32.totalorder %s39, 0
      %p112 = por %p110, %p111
      %p113 = scmp.ne.s32.totalorder %s99, %s100
      %p114 = scmp.eq.s32.totalorder %s40, 1
      %p115 = por %p113, %p114
      %p117 = scmp.ne.s32.totalorder %s100, %s116
      %p118 = scmp.eq.s32.totalorder %s40, 0
      %p119 = por %p117, %p118
      %s121 = sadd.s32 %s120, 1
      %p124 = scmp.eq.s32.totalorder %s34, 1
      %p125 = scmp.ne.s32.totalorder %s120, %s122
      %p126 = scmp.eq.s32.totalorder %s34, 0
      %p127 = por %p125, %p126
      %p128 = scmp.ne.s32.totalorder %s120, %s122
      %p129 = scmp.eq.s32.totalorder %s39, 1
      %p130 = por %p128, %p129
      %p131 = scmp.ne.s32.totalorder %s122, %s123
      %p132 = scmp.eq.s32.totalorder %s39, 0
      %p133 = por %p131, %p132
      %p134 = scmp.ne.s32.totalorder %s122, %s123
      %p135 = scmp.eq.s32.totalorder %s40, 1
      %p136 = por %p134, %p135
      %p138 = scmp.ne.s32.totalorder %s123, %s137
      %p139 = scmp.eq.s32.totalorder %s40, 0
      %p140 = por %p138, %p139
      %s142 = sadd.s32 %s141, 1
      %p145 = scmp.eq.s32.totalorder %s34, 1
      %p146 = scmp.ne.s32.totalorder %s141, %s143
      %p147 = scmp.eq.s32.totalorder %s34, 0
      %p148 = por %p146, %p147
      %p149 = scmp.ne.s32.totalorder %s141, %s143
      %p150 = scmp.eq.s32.totalorder %s39, 1
      %p151 = por %p149, %p150
      %p152 = scmp.ne.s32.totalorder %s143, %s144
      %p153 = scmp.eq.s32.totalorder %s39, 0
      %p154 = por %p152, %p153
      %p155 = scmp.ne.s32.totalorder %s143, %s144
      %p156 = scmp.eq.s32.totalorder %s40, 1
      %p157 = por %p155, %p156
      %p159 = scmp.ne.s32.totalorder %s144, %s158
      %p160 = scmp.eq.s32.totalorder %s40, 0
      %p161 = por %p159, %p160
      %s163 = sadd.s32 %s162, 1
      %p166 = scmp.eq.s32.totalorder %s34, 1
      %p167 = scmp.ne.s32.totalorder %s162, %s164
      %p168 = scmp.eq.s32.totalorder %s34, 0
      %p169 = por %p167, %p168
      %p170 = scmp.ne.s32.totalorder %s162, %s164
      %p171 = scmp.eq.s32.totalorder %s39, 1
      %p172 = por %p170, %p171
      %p173 = scmp.ne.s32.totalorder %s164, %s165
      %p174 = scmp.eq.s32.totalorder %s39, 0
      %p175 = por %p173, %p174
      %p176 = scmp.ne.s32.totalorder %s164, %s165
      %p177 = scmp.eq.s32.totalorder %s40, 1
      %p178 = por %p176, %p177
      %p180 = scmp.ne.s32.totalorder %s165, %s179
      %p181 = scmp.eq.s32.totalorder %s40, 0
      %p182 = por %p180, %p181
      %s184 = sadd.s32 %s183, 1
      %p187 = scmp.eq.s32.totalorder %s34, 1
      %p188 = scmp.ne.s32.totalorder %s183, %s185
      %p189 = scmp.eq.s32.totalorder %s34, 0
      %p190 = por %p188, %p189
      %p191 = scmp.ne.s32.totalorder %s183, %s185
      %p192 = scmp.eq.s32.totalorder %s39, 1
      %p193 = por %p191, %p192
      %p194 = scmp.ne.s32.totalorder %s185, %s186
      %p195 = scmp.eq.s32.totalorder %s39, 0
      %p196 = por %p194, %p195
      %p197 = scmp.ne.s32.totalorder %s185, %s186
      %p198 = scmp.eq.s32.totalorder %s40, 1
      %p199 = por %p197, %p198
      %p201 = scmp.ne.s32.totalorder %s186, %s200
      %p202 = scmp.eq.s32.totalorder %s40, 0
      %p203 = por %p201, %p202
      %s205 = sadd.s32 %s204, 1
      %p208 = scmp.eq.s32.totalorder %s34, 1
      %p209 = scmp.ne.s32.totalorder %s204, %s206
      %p210 = scmp.eq.s32.totalorder %s34, 0
      %p211 = por %p209, %p210
      %p212 = scmp.ne.s32.totalorder %s204, %s206
      %p213 = scmp.eq.s32.totalorder %s39, 1
      %p214 = por %p212, %p213
      %p215 = scmp.ne.s32.totalorder %s206, %s207
      %p216 = scmp.eq.s32.totalorder %s39, 0
      %p217 = por %p215, %p216
      %p218 = scmp.ne.s32.totalorder %s206, %s207
      %p219 = scmp.eq.s32.totalorder %s40, 1
      %p220 = por %p218, %p219
      %p222 = scmp.ne.s32.totalorder %s207, %s221
      %p223 = scmp.eq.s32.totalorder %s40, 0
      %p224 = por %p222, %p223
      %s226 = sadd.s32 %s225, 1
      %p229 = scmp.eq.s32.totalorder %s34, 1
      %p230 = scmp.ne.s32.totalorder %s225, %s227
      %p231 = scmp.eq.s32.totalorder %s34, 0
      %p232 = por %p230, %p231
      %p233 = scmp.ne.s32.totalorder %s225, %s227
      %p234 = scmp.eq.s32.totalorder %s39, 1
      %p235 = por %p233, %p234
      %p236 = scmp.ne.s32.totalorder %s227, %s228
      %p237 = scmp.eq.s32.totalorder %s39, 0
      %p238 = por %p236, %p237
      %p239 = scmp.ne.s32.totalorder %s227, %s228
      %p240 = scmp.eq.s32.totalorder %s40, 1
      %p241 = por %p239, %p240
      %p243 = scmp.ne.s32.totalorder %s228, %s242
      %p244 = scmp.eq.s32.totalorder %s40, 0
      %p245 = por %p243, %p244
      %s247 = sadd.s32 %s246, 1
      %p250 = scmp.eq.s32.totalorder %s34, 1
      %p251 = scmp.ne.s32.totalorder %s246, %s248
      %p252 = scmp.eq.s32.totalorder %s34, 0
      %p253 = por %p251, %p252
      %p254 = scmp.ne.s32.totalorder %s246, %s248
      %p255 = scmp.eq.s32.totalorder %s39, 1
      %p256 = por %p254, %p255
      %p257 = scmp.ne.s32.totalorder %s248, %s249
      %p258 = scmp.eq.s32.totalorder %s39, 0
      %p259 = por %p257, %p258
      %p260 = scmp.ne.s32.totalorder %s248, %s249
      %p261 = scmp.eq.s32.totalorder %s40, 1
      %p262 = por %p260, %p261
      %p264 = scmp.ne.s32.totalorder %s249, %s263
      %p265 = scmp.eq.s32.totalorder %s40, 0
      %p266 = por %p264, %p265
      %s268 = sadd.s32 %s267, 1
      %p271 = scmp.eq.s32.totalorder %s34, 1
      %p272 = scmp.ne.s32.totalorder %s267, %s269
      %p273 = scmp.eq.s32.totalorder %s34, 0
      %p274 = por %p272, %p273
      %p275 = scmp.ne.s32.totalorder %s267, %s269
      %p276 = scmp.eq.s32.totalorder %s39, 1
      %p277 = por %p275, %p276
      %p278 = scmp.ne.s32.totalorder %s269, %s270
      %p279 = scmp.eq.s32.totalorder %s39, 0
      %p280 = por %p278, %p279
      %p281 = scmp.ne.s32.totalorder %s269, %s270
      %p282 = scmp.eq.s32.totalorder %s40, 1
      %p283 = por %p281, %p282
      %p285 = scmp.ne.s32.totalorder %s270, %s284
      %p286 = scmp.eq.s32.totalorder %s40, 0
      %p287 = por %p285, %p286
      %s289 = sadd.s32 %s288, 1
      %p292 = scmp.eq.s32.totalorder %s34, 1
      %p293 = scmp.ne.s32.totalorder %s288, %s290
      %p294 = scmp.eq.s32.totalorder %s34, 0
      %p295 = por %p293, %p294
      %p296 = scmp.ne.s32.totalorder %s288, %s290
      %p297 = scmp.eq.s32.totalorder %s39, 1
      %p298 = por %p296, %p297
      %p299 = scmp.ne.s32.totalorder %s290, %s291
      %p300 = scmp.eq.s32.totalorder %s39, 0
      %p301 = por %p299, %p300
      %p302 = scmp.ne.s32.totalorder %s290, %s291
      %p303 = scmp.eq.s32.totalorder %s40, 1
      %p304 = por %p302, %p303
      %p306 = scmp.ne.s32.totalorder %s291, %s305
      %p307 = scmp.eq.s32.totalorder %s40, 0
      %p308 = por %p306, %p307
      %s310 = sadd.s32 %s309, 1
      %p313 = scmp.eq.s32.totalorder %s34, 1
      %p314 = scmp.ne.s32.totalorder %s309, %s311
      %p315 = scmp.eq.s32.totalorder %s34, 0
      %p316 = por %p314, %p315
      %p317 = scmp.ne.s32.totalorder %s309, %s311
      %p318 = scmp.eq.s32.totalorder %s39, 1
      %p319 = por %p317, %p318
      %p320 = scmp.ne.s32.totalorder %s311, %s312
      %p321 = scmp.eq.s32.totalorder %s39, 0
      %p322 = por %p320, %p321
      %p323 = scmp.ne.s32.totalorder %s311, %s312
      %p324 = scmp.eq.s32.totalorder %s40, 1
      %p325 = por %p323, %p324
      %p327 = scmp.ne.s32.totalorder %s312, %s326
      %p328 = scmp.eq.s32.totalorder %s40, 0
      %p329 = por %p327, %p328
      %s331 = sadd.s32 %s330, 1
      %p334 = scmp.eq.s32.totalorder %s34, 1
      %p335 = scmp.ne.s32.totalorder %s330, %s332
      %p336 = scmp.eq.s32.totalorder %s34, 0
      %p337 = por %p335, %p336
      %p338 = scmp.ne.s32.totalorder %s330, %s332
      %p339 = scmp.eq.s32.totalorder %s39, 1
      %p340 = por %p338, %p339
      %p341 = scmp.ne.s32.totalorder %s332, %s333
      %p342 = scmp.eq.s32.totalorder %s39, 0
      %p343 = por %p341, %p342
      %p344 = scmp.ne.s32.totalorder %s332, %s333
      %p345 = scmp.eq.s32.totalorder %s40, 1
      %p346 = por %p344, %p345
      %p348 = scmp.ne.s32.totalorder %s333, %s347
      %p349 = scmp.eq.s32.totalorder %s40, 0
      %p350 = por %p348, %p349
      %s352 = sadd.s32 %s351, 1
      %p355 = scmp.eq.s32.totalorder %s34, 1
      %p356 = scmp.ne.s32.totalorder %s351, %s353
      %p357 = scmp.eq.s32.totalorder %s34, 0
      %p358 = por %p356, %p357
      %p359 = scmp.ne.s32.totalorder %s351, %s353
      %p360 = scmp.eq.s32.totalorder %s39, 1
      %p361 = por %p359, %p360
      %p362 = scmp.ne.s32.totalorder %s353, %s354
      %p363 = scmp.eq.s32.totalorder %s39, 0
      %p364 = por %p362, %p363
      %p365 = scmp.ne.s32.totalorder %s353, %s354
      %p366 = scmp.eq.s32.totalorder %s40, 1
      %p367 = por %p365, %p366
      %p369 = scmp.ne.s32.totalorder %s354, %s368
      %p370 = scmp.eq.s32.totalorder %s40, 0
      %p371 = por %p369, %p370
      %s373 = sadd.s32 %s372, 1
      %p376 = scmp.eq.s32.totalorder %s34, 1
      %p377 = scmp.ne.s32.totalorder %s372, %s374
      %p378 = scmp.eq.s32.totalorder %s34, 0
      %p379 = por %p377, %p378
      %p380 = scmp.ne.s32.totalorder %s372, %s374
      %p381 = scmp.eq.s32.totalorder %s39, 1
      %p382 = por %p380, %p381
      %p383 = scmp.ne.s32.totalorder %s374, %s375
      %p384 = scmp.eq.s32.totalorder %s39, 0
      %p385 = por %p383, %p384
      %p386 = scmp.ne.s32.totalorder %s374, %s375
      %p387 = scmp.eq.s32.totalorder %s40, 1
      %p388 = por %p386, %p387
      %p390 = scmp.ne.s32.totalorder %s375, %s389
      %p391 = scmp.eq.s32.totalorder %s40, 0
      %p392 = por %p390, %p391
      %s394 = sadd.s32 %s393, 1
      %p397 = scmp.eq.s32.totalorder %s34, 1
      %p398 = scmp.ne.s32.totalorder %s393, %s395
      %p399 = scmp.eq.s32.totalorder %s34, 0
      %p400 = por %p398, %p399
      %p401 = scmp.ne.s32.totalorder %s393, %s395
      %p402 = scmp.eq.s32.totalorder %s39, 1
      %p403 = por %p401, %p402
      %p404 = scmp.ne.s32.totalorder %s395, %s396
      %p405 = scmp.eq.s32.totalorder %s39, 0
      %p406 = por %p404, %p405
      %p407 = scmp.ne.s32.totalorder %s395, %s396
      %p408 = scmp.eq.s32.totalorder %s40, 1
      %p409 = por %p407, %p408
      %p411 = scmp.ne.s32.totalorder %s396, %s410
      %p412 = scmp.eq.s32.totalorder %s40, 0
      %p413 = por %p411, %p412
      %s415 = sadd.s32 %s414, 1
      %p418 = scmp.eq.s32.totalorder %s34, 1
      %p419 = scmp.ne.s32.totalorder %s414, %s416
      %p420 = scmp.eq.s32.totalorder %s34, 0
      %p421 = por %p419, %p420
      %p422 = scmp.ne.s32.totalorder %s414, %s416
      %p423 = scmp.eq.s32.totalorder %s39, 1
      %p424 = por %p422, %p423
      %p425 = scmp.ne.s32.totalorder %s416, %s417
      %p426 = scmp.eq.s32.totalorder %s39, 0
      %p427 = por %p425, %p426
      %p428 = scmp.ne.s32.totalorder %s416, %s417
      %p429 = scmp.eq.s32.totalorder %s40, 1
      %p430 = por %p428, %p429
      %p432 = scmp.ne.s32.totalorder %s417, %s431
      %p433 = scmp.eq.s32.totalorder %s40, 0
      %p434 = por %p432, %p433
      %s436 = sadd.s32 %s435, 1
      %p439 = scmp.eq.s32.totalorder %s34, 1
      %p440 = scmp.ne.s32.totalorder %s435, %s437
      %p441 = scmp.eq.s32.totalorder %s34, 0
      %p442 = por %p440, %p441
      %p443 = scmp.ne.s32.totalorder %s435, %s437
      %p444 = scmp.eq.s32.totalorder %s39, 1
      %p445 = por %p443, %p444
      %p446 = scmp.ne.s32.totalorder %s437, %s438
      %p447 = scmp.eq.s32.totalorder %s39, 0
      %p448 = por %p446, %p447
      %p449 = scmp.ne.s32.totalorder %s437, %s438
      %p450 = scmp.eq.s32.totalorder %s40, 1
      %p451 = por %p449, %p450
      %p453 = scmp.ne.s32.totalorder %s438, %s452
      %p454 = scmp.eq.s32.totalorder %s40, 0
      %p455 = por %p453, %p454
      %s457 = sadd.s32 %s456, 1
      %p460 = scmp.eq.s32.totalorder %s34, 1
      %p461 = scmp.ne.s32.totalorder %s456, %s458
      %p462 = scmp.eq.s32.totalorder %s34, 0
      %p463 = por %p461, %p462
      %p464 = scmp.ne.s32.totalorder %s456, %s458
      %p465 = scmp.eq.s32.totalorder %s39, 1
      %p466 = por %p464, %p465
      %p467 = scmp.ne.s32.totalorder %s458, %s459
      %p468 = scmp.eq.s32.totalorder %s39, 0
      %p469 = por %p467, %p468
      %p470 = scmp.ne.s32.totalorder %s458, %s459
      %p471 = scmp.eq.s32.totalorder %s40, 1
      %p472 = por %p470, %p471
      %p474 = scmp.ne.s32.totalorder %s459, %s473
      %p475 = scmp.eq.s32.totalorder %s40, 0
      %p476 = por %p474, %p475
      %s478 = sadd.s32 %s477, 1
      %p481 = scmp.eq.s32.totalorder %s34, 1
      %p482 = scmp.ne.s32.totalorder %s477, %s479
      %p483 = scmp.eq.s32.totalorder %s34, 0
      %p484 = por %p482, %p483
      %p485 = scmp.ne.s32.totalorder %s477, %s479
      %p486 = scmp.eq.s32.totalorder %s39, 1
      %p487 = por %p485, %p486
      %p488 = scmp.ne.s32.totalorder %s479, %s480
      %p489 = scmp.eq.s32.totalorder %s39, 0
      %p490 = por %p488, %p489
      %p491 = scmp.ne.s32.totalorder %s479, %s480
      %p492 = scmp.eq.s32.totalorder %s40, 1
      %p493 = por %p491, %p492
      %p495 = scmp.ne.s32.totalorder %s480, %s494
      %p496 = scmp.eq.s32.totalorder %s40, 0
      %p497 = por %p495, %p496
      %s499 = sadd.s32 %s498, 1
      %p502 = scmp.eq.s32.totalorder %s34, 1
      %p503 = scmp.ne.s32.totalorder %s498, %s500
      %p504 = scmp.eq.s32.totalorder %s34, 0
      %p505 = por %p503, %p504
      %p506 = scmp.ne.s32.totalorder %s498, %s500
      %p507 = scmp.eq.s32.totalorder %s39, 1
      %p508 = por %p506, %p507
      %p509 = scmp.ne.s32.totalorder %s500, %s501
      %p510 = scmp.eq.s32.totalorder %s39, 0
      %p511 = por %p509, %p510
      %p512 = scmp.ne.s32.totalorder %s500, %s501
      %p513 = scmp.eq.s32.totalorder %s40, 1
      %p514 = por %p512, %p513
      %p516 = scmp.ne.s32.totalorder %s501, %s515
      %p517 = scmp.eq.s32.totalorder %s40, 0
      %p518 = por %p516, %p517
      %s519 = ssub.s32 %s34, %s41
      %p520 = scmp.eq.s32.totalorder %s519, 0
      %s522 = sadd.s32 %s521, 1
      %s523 = scalar_select %p520, %s521, %s522
      %p526 = pneg %p520
      %p527 = scmp.eq.s32.totalorder %s34, 1
      %p528 = por %p526, %p527
      %p529 = scmp.ne.s32.totalorder %s521, %s524
      %p530 = scmp.eq.s32.totalorder %s34, 0
      %p531 = por %p529, %p530
      %p532 = scmp.ne.s32.totalorder %s521, %s524
      %p533 = scmp.eq.s32.totalorder %s39, 1
      %p534 = por %p532, %p533
      %p535 = scmp.ne.s32.totalorder %s524, %s525
      %p536 = scmp.eq.s32.totalorder %s39, 0
      %p537 = por %p535, %p536
      %p538 = scmp.ne.s32.totalorder %s524, %s525
      %p539 = scmp.eq.s32.totalorder %s40, 1
      %p540 = por %p538, %p539
      %p542 = scmp.ne.s32.totalorder %s525, %s541
      %p543 = scmp.eq.s32.totalorder %s40, 0
      %p544 = por %p542, %p543
      %p545 = scmp.le.s32.totalorder 1, %s34
      %p546 = scmp.lt.s32.totalorder %s34, 3
      %p547 = pnand %p545, %p546
      %p548 = pneg %p547
      // Predicated region
      $region9: #{tpu_custom_call.1} parent=5 // pred_check
        _
      $region10: #{tpu_custom_call.1} parent=5 // pred_check_branch
        %550 = sbr.rel (%p547) target = $region12
      $region11: #{tpu_custom_call.1} parent=5 // pred_region
        %s551 = ssub.s32 %s34, 1
        // Predicated region
        $region13: #{tpu_custom_call.1} parent=11 // pred_check
          %p552 = pneg %p133
        $region14: #{tpu_custom_call.1} parent=11 // pred_check_branch
          %554 = sbr.rel (%p552) target = $region16
        $region15: #{tpu_custom_call.1} parent=11 // pred_region
          _
        $region16: #{tpu_custom_call.1} parent=11 // pred_fallthru
          _
        // Predicated region
        $region17: #{tpu_custom_call.1} parent=11 // pred_check
          %p555 = pneg %p154
        $region18: #{tpu_custom_call.1} parent=11 // pred_check_branch
          %557 = sbr.rel (%p555) target = $region20
        $region19: #{tpu_custom_call.1} parent=11 // pred_region
          %s559 = ssub.s32 16, 16
          %560 = vsyncadd [#allocation3], %s559
          %s562 = sshll.u32 [#allocation2], 4
          %s563 = int_to_ptr.vmem [resolvable:$true] %s562
          %565 = dma.hbm_to_vmem [thread:$0]  %s4, 16, %s563, [#allocation3]
        $region20: #{tpu_custom_call.1} parent=11 // pred_fallthru
          _
        // Predicated region
        $region21: #{tpu_custom_call.1} parent=11 // pred_check
          %p566 = pneg %p175
        $region22: #{tpu_custom_call.1} parent=11 // pred_check_branch
          %568 = sbr.rel (%p566) target = $region24
        $region23: #{tpu_custom_call.1} parent=11 // pred_region
          _
        $region24: #{tpu_custom_call.1} parent=11 // pred_fallthru
          _
        // Predicated region
        $region25: #{tpu_custom_call.1} parent=11 // pred_check
          %p569 = pneg %p196
        $region26: #{tpu_custom_call.1} parent=11 // pred_check_branch
          %571 = sbr.rel (%p569) target = $region28
        $region27: #{tpu_custom_call.1} parent=11 // pred_region
          _
        $region28: #{tpu_custom_call.1} parent=11 // pred_fallthru
          _
        // Predicated region
        $region29: #{tpu_custom_call.1} parent=11 // pred_check
          %p572 = pneg %p217
        $region30: #{tpu_custom_call.1} parent=11 // pred_check_branch
          %574 = sbr.rel (%p572) target = $region32
        $region31: #{tpu_custom_call.1} parent=11 // pred_region
          _
        $region32: #{tpu_custom_call.1} parent=11 // pred_fallthru
          _
        // Predicated region
        $region33: #{tpu_custom_call.1} parent=11 // pred_check
          %p575 = pneg %p238
        $region34: #{tpu_custom_call.1} parent=11 // pred_check_branch
          %577 = sbr.rel (%p575) target = $region36
        $region35: #{tpu_custom_call.1} parent=11 // pred_region
          _
        $region36: #{tpu_custom_call.1} parent=11 // pred_fallthru
          _
        // Predicated region
        $region37: #{tpu_custom_call.1} parent=11 // pred_check
          %p578 = pneg %p259
        $region38: #{tpu_custom_call.1} parent=11 // pred_check_branch
          %580 = sbr.rel (%p578) target = $region40
        $region39: #{tpu_custom_call.1} parent=11 // pred_region
          _
        $region40: #{tpu_custom_call.1} parent=11 // pred_fallthru
          _
        // Predicated region
        $region41: #{tpu_custom_call.1} parent=11 // pred_check
          %p581 = pneg %p280
        $region42: #{tpu_custom_call.1} parent=11 // pred_check_branch
          %583 = sbr.rel (%p581) target = $region44
        $region43: #{tpu_custom_call.1} parent=11 // pred_region
          %s585 = ssub.s32 32, 32
          %586 = vsyncadd [#allocation6], %s585
          %s587 = sshll.u32 [#allocation5], 4
          %s588 = int_to_ptr.vmem [resolvable:$true] %s587
          %593 = dma.hbm_to_vmem [thread:$0]  %s10, 32, %s588, [#allocation6], 16, 16, 1
        $region44: #{tpu_custom_call.1} parent=11 // pred_fallthru
          _
        // Predicated region
        $region45: #{tpu_custom_call.1} parent=11 // pred_check
          %p594 = pneg %p301
        $region46: #{tpu_custom_call.1} parent=11 // pred_check_branch
          %596 = sbr.rel (%p594) target = $region48
        $region47: #{tpu_custom_call.1} parent=11 // pred_region
          %s598 = ssub.s32 512, 512
          %599 = vsyncadd [#allocation6], %s598
          %s600 = sshll.u32 [#allocation7], 4
          %s601 = int_to_ptr.vmem [resolvable:$true] %s600
          %606 = dma.hbm_to_vmem [thread:$0]  %s11, 512, %s601, [#allocation6], 64, 64, 4
        $region48: #{tpu_custom_call.1} parent=11 // pred_fallthru
          _
        // Predicated region
        $region49: #{tpu_custom_call.1} parent=11 // pred_check
          %p607 = pneg %p322
        $region50: #{tpu_custom_call.1} parent=11 // pred_check_branch
          %609 = sbr.rel (%p607) target = $region52
        $region51: #{tpu_custom_call.1} parent=11 // pred_region
          %s611 = ssub.s32 32, 32
          %612 = vsyncadd [#allocation9], %s611
          %s613 = sshll.u32 [#allocation8], 4
          %s614 = int_to_ptr.vmem [resolvable:$true] %s613
          %619 = dma.hbm_to_vmem [thread:$0]  %s12, 32, %s614, [#allocation9], 16, 16, 1
        $region52: #{tpu_custom_call.1} parent=11 // pred_fallthru
          _
        // Predicated region
        $region53: #{tpu_custom_call.1} parent=11 // pred_check
          %p620 = pneg %p343
        $region54: #{tpu_custom_call.1} parent=11 // pred_check_branch
          %622 = sbr.rel (%p620) target = $region56
        $region55: #{tpu_custom_call.1} parent=11 // pred_region
          _
        $region56: #{tpu_custom_call.1} parent=11 // pred_fallthru
          _
        // Predicated region
        $region57: #{tpu_custom_call.1} parent=11 // pred_check
          %p623 = pneg %p364
        $region58: #{tpu_custom_call.1} parent=11 // pred_check_branch
          %625 = sbr.rel (%p623) target = $region60
        $region59: #{tpu_custom_call.1} parent=11 // pred_region
          _
        $region60: #{tpu_custom_call.1} parent=11 // pred_fallthru
          _
        // Predicated region
        $region61: #{tpu_custom_call.1} parent=11 // pred_check
          %p626 = pneg %p385
        $region62: #{tpu_custom_call.1} parent=11 // pred_check_branch
          %628 = sbr.rel (%p626) target = $region64
        $region63: #{tpu_custom_call.1} parent=11 // pred_region
          _
        $region64: #{tpu_custom_call.1} parent=11 // pred_fallthru
          _
        // Predicated region
        $region65: #{tpu_custom_call.1} parent=11 // pred_check
          %p629 = pneg %p406
        $region66: #{tpu_custom_call.1} parent=11 // pred_check_branch
          %631 = sbr.rel (%p629) target = $region68
        $region67: #{tpu_custom_call.1} parent=11 // pred_region
          _
        $region68: #{tpu_custom_call.1} parent=11 // pred_fallthru
          _
        // Predicated region
        $region69: #{tpu_custom_call.1} parent=11 // pred_check
          %p632 = pneg %p427
        $region70: #{tpu_custom_call.1} parent=11 // pred_check_branch
          %634 = sbr.rel (%p632) target = $region72
        $region71: #{tpu_custom_call.1} parent=11 // pred_region
          _
        $region72: #{tpu_custom_call.1} parent=11 // pred_fallthru
          _
        // Predicated region
        $region73: #{tpu_custom_call.1} parent=11 // pred_check
          %p635 = pneg %p448
        $region74: #{tpu_custom_call.1} parent=11 // pred_check_branch
          %637 = sbr.rel (%p635) target = $region76
        $region75: #{tpu_custom_call.1} parent=11 // pred_region
          _
        $region76: #{tpu_custom_call.1} parent=11 // pred_fallthru
          _
        // Predicated region
        $region77: #{tpu_custom_call.1} parent=11 // pred_check
          %p638 = pneg %p469
        $region78: #{tpu_custom_call.1} parent=11 // pred_check_branch
          %640 = sbr.rel (%p638) target = $region80
        $region79: #{tpu_custom_call.1} parent=11 // pred_region
          _
        $region80: #{tpu_custom_call.1} parent=11 // pred_fallthru
          _
        // Predicated region
        $region81: #{tpu_custom_call.1} parent=11 // pred_check
          %p641 = pneg %p490
        $region82: #{tpu_custom_call.1} parent=11 // pred_check_branch
          %643 = sbr.rel (%p641) target = $region84
        $region83: #{tpu_custom_call.1} parent=11 // pred_region
          _
        $region84: #{tpu_custom_call.1} parent=11 // pred_fallthru
          _
        // Predicated region
        $region85: #{tpu_custom_call.1} parent=11 // pred_check
          %p644 = pneg %p511
        $region86: #{tpu_custom_call.1} parent=11 // pred_check_branch
          %646 = sbr.rel (%p644) target = $region88
        $region87: #{tpu_custom_call.1} parent=11 // pred_region
          _
        $region88: #{tpu_custom_call.1} parent=11 // pred_fallthru
          _
      $region12: #{tpu_custom_call.1} parent=5 // pred_fallthru
        _
      %p647 = scmp.lt.s32.totalorder %s34, 2
      // Predicated region
      $region89: #{tpu_custom_call.1} parent=5 // pred_check
        %p648 = pneg %p647
      $region90: #{tpu_custom_call.1} parent=5 // pred_check_branch
        %650 = sbr.rel (%p648) target = $region92
      $region91: #{tpu_custom_call.1} parent=5 // pred_region
        // Predicated region
        $region93: #{tpu_custom_call.1} parent=91 // pred_check
          %p651 = pneg %p54
        $region94: #{tpu_custom_call.1} parent=91 // pred_check_branch
          %653 = sbr.rel (%p651) target = $region96
        $region95: #{tpu_custom_call.1} parent=91 // pred_region
          %s654 = smul.u32 2, %s34
          %p655 = scmp.lt.s32.totalorder %s654, 3
          %s656 = scalar_select %p655, %s654, 3
          %s657 = smul.addr %s656, 8
          %s658 = scalar_lea.vmem %s0, %s657
          %s659 = smul.u32 2, %s34
        $region96: #{tpu_custom_call.1} parent=91 // pred_fallthru
          _
        // Predicated region
        $region97: #{tpu_custom_call.1} parent=91 // pred_check
          %p660 = pneg %p80
        $region98: #{tpu_custom_call.1} parent=91 // pred_check_branch
          %662 = sbr.rel (%p660) target = $region100
        $region99: #{tpu_custom_call.1} parent=91 // pred_region
          %s663 = smul.u32 2, %s34
          %p664 = scmp.lt.s32.totalorder %s663, 3
          %s665 = scalar_select %p664, %s663, 3
          %s666 = scalar_lea.vmem %s1, %s665
          %s667 = smul.u32 2, %s34
        $region100: #{tpu_custom_call.1} parent=91 // pred_fallthru
          _
        // Predicated region
        $region101: #{tpu_custom_call.1} parent=91 // pred_check
          %p668 = pneg %p106
        $region102: #{tpu_custom_call.1} parent=91 // pred_check_branch
          %670 = sbr.rel (%p668) target = $region104
        $region103: #{tpu_custom_call.1} parent=91 // pred_region
          %s671 = smul.u32 2, %s34
          %p672 = scmp.lt.s32.totalorder %s671, 3
          %s673 = scalar_select %p672, %s671, 3
          %s674 = scalar_lea.vmem %s2, %s673
          %s675 = smul.u32 2, %s34
        $region104: #{tpu_custom_call.1} parent=91 // pred_fallthru
          _
      $region92: #{tpu_custom_call.1} parent=5 // pred_fallthru
        _
      %p676 = scmp.le.s32.totalorder 1, %s34
      %p677 = scmp.lt.s32.totalorder %s34, 3
      %p678 = pnand %p676, %p677
      %p679 = pneg %p678
      // Predicated region
      $region105: #{tpu_custom_call.1} parent=5 // pred_check
        _
      $region106: #{tpu_custom_call.1} parent=5 // pred_check_branch
        %681 = sbr.rel (%p678) target = $region108
      $region107: #{tpu_custom_call.1} parent=5 // pred_region
        %s682 = ssub.s32 %s34, 1
        // Predicated region
        $region109: #{tpu_custom_call.1} parent=107 // pred_check
          %p683 = pneg %p154
        $region110: #{tpu_custom_call.1} parent=107 // pred_check_branch
          %685 = sbr.rel (%p683) target = $region112
        $region111: #{tpu_custom_call.1} parent=107 // pred_region
          %686 = dma.done [#allocation3], 16
        $region112: #{tpu_custom_call.1} parent=107 // pred_fallthru
          _
        // Predicated region
        $region113: #{tpu_custom_call.1} parent=107 // pred_check
          %p687 = pneg %p280
        $region114: #{tpu_custom_call.1} parent=107 // pred_check_branch
          %689 = sbr.rel (%p687) target = $region116
        $region115: #{tpu_custom_call.1} parent=107 // pred_region
          %690 = dma.done [#allocation6], 32
        $region116: #{tpu_custom_call.1} parent=107 // pred_fallthru
          _
        // Predicated region
        $region117: #{tpu_custom_call.1} parent=107 // pred_check
          %p691 = pneg %p301
        $region118: #{tpu_custom_call.1} parent=107 // pred_check_branch
          %693 = sbr.rel (%p691) target = $region120
        $region119: #{tpu_custom_call.1} parent=107 // pred_region
          %694 = dma.done [#allocation6], 512
        $region120: #{tpu_custom_call.1} parent=107 // pred_fallthru
          _
        // Predicated region
        $region121: #{tpu_custom_call.1} parent=107 // pred_check
          %p695 = pneg %p322
        $region122: #{tpu_custom_call.1} parent=107 // pred_check_branch
          %697 = sbr.rel (%p695) target = $region124
        $region123: #{tpu_custom_call.1} parent=107 // pred_region
          %698 = dma.done [#allocation9], 32
        $region124: #{tpu_custom_call.1} parent=107 // pred_fallthru
          _
        %s699 = smul.u32 2, %s39
        %p700 = scmp.lt.s32.totalorder %s699, 3
        %s701 = scalar_select %p700, %s699, 3
        %s702 = smul.addr %s701, 8
        %s703 = scalar_lea.vmem %s0, %s702
        %p704 = pneg %p60
        %p705 = pneg %p57
        %s706 = smul.u32 2, %s39
        %p707 = scmp.lt.s32.totalorder %s706, 3
        %s708 = scalar_select %p707, %s706, 3
        %s709 = scalar_lea.vmem %s1, %s708
        %p710 = pneg %p86
        %p711 = pneg %p83
        %s712 = smul.u32 2, %s39
        %p713 = scmp.lt.s32.totalorder %s712, 3
        %s714 = scalar_select %p713, %s712, 3
        %s715 = scalar_lea.vmem %s2, %s714
        %p716 = pneg %p112
        %p717 = pneg %p109
        %p718 = pneg %p133
        %p719 = pneg %p130
        %p720 = pneg %p154
        %p721 = pneg %p151
        %p722 = pneg %p175
        %p723 = pneg %p172
        %p724 = pneg %p196
        %p725 = pneg %p193
        %p726 = pneg %p217
        %p727 = pneg %p214
        %p728 = pneg %p238
        %p729 = pneg %p235
        %p730 = pneg %p259
        %p731 = pneg %p256
        %p732 = pneg %p280
        %p733 = pneg %p277
        %p734 = pneg %p301
        %p735 = pneg %p298
        %p736 = pneg %p322
        %p737 = pneg %p319
        %p738 = pneg %p343
        %p739 = pneg %p340
        %p740 = pneg %p364
        %p741 = pneg %p361
        %p742 = pneg %p385
        %p743 = pneg %p382
        %p744 = pneg %p406
        %p745 = pneg %p403
        %p746 = pneg %p427
        %p747 = pneg %p424
        %p748 = pneg %p448
        %p749 = pneg %p445
        %p750 = pneg %p469
        %p751 = pneg %p466
        %p752 = pneg %p490
        %p753 = pneg %p487
        %p754 = pneg %p511
        %p755 = pneg %p508
        %p756 = pneg %p537
        %p757 = pneg %p534
        %s758 = sand.u32 %s524, 1
        %s759 = scalar_lea.sflag [#allocation4], %s758
        %s760 = sand.u32 %s524, 1
        %s761 = smul.addr %s760, 2
        %s762 = scalar_lea.vmem [#allocation10], %s761
        %s763 = smul.u32 2, %s39
        %p764 = scmp.lt.s32.totalorder %s763, 3
        %s765 = scalar_select %p764, %s763, 3
        %s766 = smul.addr %s765, 8
        %s767 = scalar_lea.vmem %s0, %s766
        %s768 = smul.u32 2, %s39
        %s769 = smul.u32 2, %s39
        %p770 = scmp.lt.s32.totalorder %s769, 3
        %s771 = scalar_select %p770, %s769, 3
        %s772 = scalar_lea.vmem %s1, %s771
        %s773 = smul.u32 2, %s39
        %s774 = smul.u32 2, %s39
        %p775 = scmp.lt.s32.totalorder %s774, 3
        %s776 = scalar_select %p775, %s774, 3
        %s777 = scalar_lea.vmem %s2, %s776
        %s778 = smul.u32 2, %s39
        %s779 = smul.u32 2, %s39
        %v781 = vlaneseq
        %v782 = vshrl.u32 %v781, 7
        %v783 = vlaneseq
        %v784 = vand.u32 %v783, 127
        %vm785 = vcmp.le.s32.totalorder %v784, %v782
        %v786 = vsel %vm785, 0.0, -10000.0
        %v787 = vld [vmem:[%s772] sm:$0x1]
        %v788 = vld [vmem:[%s772 + $0x1] sm:$0x1]
        %v789 = vsub.f32 1.0, %v787
        %v790 = vsub.f32 1.0, %v788
        %v791 = vmul.f32 %v789, -10000.0
        %v792 = vmul.f32 %v790, -10000.0
        %v793 = vld [vmem:[%s767] sm:$0xff]
        %v794 = vld [vmem:[%s767 + $0x8] sm:$0xff]
        %v795 = vld [vmem:[%s3] sm:$0x1]
        %v796 = vld [vmem:[#allocation2] sm:$0x1]
        %vm797 = vcmask 261120
        %v798 = vsel %vm797, %v793, 0.0
        %799 = vadd.xlane.f32.xlu0 %v798
        %v800 = vpop.xlane.xlu0 %799
        %v801 = vsel %vm797, %v794, 0.0
        %802 = vadd.xlane.f32.xlu0 %v801
        %v803 = vpop.xlane.xlu0 %802
        %v804 = vrcp.pop 32.0
        %v805 = vmul.f32 %v800, %v804
        %v806 = vmul.f32 %v803, %v804
        %v807 = vsub.f32 %v793, %v805
        %v808 = vsub.f32 %v794, %v806
        %v809 = vmul.f32 %v807, %v807
        %v810 = vmul.f32 %v808, %v808
        %v811 = vsel %vm797, %v809, 0.0
        %812 = vadd.xlane.f32.xlu0 %v811
        %v813 = vpop.xlane.xlu0 %812
        %v814 = vsel %vm797, %v810, 0.0
        %815 = vadd.xlane.f32.xlu0 %v814
        %v816 = vpop.xlane.xlu0 %815
        %v817 = vmul.f32 %v813, %v804
        %v818 = vmul.f32 %v816, %v804
        %v819 = vadd.f32 %v817, 1e-12
        %v820 = vadd.f32 %v818, 1e-12
        %v821 = vrsqrt.pop %v819
        %v822 = vrsqrt.pop %v820
        %v823 = vmul.f32 %v807, %v821
        %v824 = vmul.f32 %v808, %v822
        %v826 = vlaneseq
        %v827 = vshrl.u32 %v826, 7
        %v828 = vsub.s32 0, %v827
        %v829 = vrot.slane %v795, %v828
        %v831 = vmul.f32 %v823, %v829
        %v832 = vmul.f32 %v824, %v829
        %v834 = vlaneseq
        %v835 = vshrl.u32 %v834, 7
        %v836 = vsub.s32 0, %v835
        %v837 = vrot.slane %v796, %v836
        %v839 = vadd.f32 %v831, %v837
        %v840 = vadd.f32 %v832, %v837
        %v841 = vpack.c.bf16 %v840, %v839
        %v842 = vld [vmem:[%s5] sm:$0xf]
        %v843 = vld [vmem:[%s5 + $0x4] sm:$0xf]
        %v844 = vld [vmem:[%s5 + $0x8] sm:$0xf]
        %v845 = vld [vmem:[%s5 + $0xc] sm:$0xf]
        %v846 = vld [vmem:[%s6] sm:$0x1]
        %v848 = vlaneseq
        %v849 = vshrl.u32 %v848, 7
        %v850 = vsub.s32 0, %v849
        %v851 = vrot.slane %v846, %v850
        %v857 = vunpack.c.l.b16 %v842
        %v858 = vunpack.c.l.b16 %v843
        %v859 = vunpack.c.l.b16 %v844
        %v860 = vunpack.c.l.b16 %v845
        %v861 = vpack.c.b16 %v858, %v857
        %v862 = vpack.c.b16 %v860, %v859
        %v866 = vsel %vm797, %v841, 0
        %868 = vmatprep.subr.bf16.mxu0 0
        %869 = vmatpush1.bf16.msra.mxu0 %v861
        %870 = vmatprep.subr.bf16.mxu0 0
        %871 = vmatpush1.bf16.msra.mxu0 %v862
        %872 = vmatprep.subr.bf16.mxu0 0
        %873 = vmatpush1.bf16.msra.mxu0 0
        %874 = vmatprep.subr.bf16.mxu0 0
        %875 = vmatpush1.bf16.msra.mxu0 0
        %876 = vmatprep.subr.bf16.mxu0 0
        %877 = vmatpush1.bf16.msra.mxu0 0
        %878 = vmatprep.subr.bf16.mxu0 0
        %879 = vmatpush1.bf16.msra.mxu0 0
        %880 = vmatprep.subr.bf16.mxu0 0
        %881 = vmatpush1.bf16.msra.mxu0 0
        %882 = vmatprep.subr.bf16.mxu0 0
        %883 = vmatpush1.bf16.msra.mxu0 0
        %884 = vmatprep.subr.bf16.mxu0 0
        %885 = vmatpush1.bf16.msra.mxu0 0
        %886 = vmatprep.subr.bf16.mxu0 0
        %887 = vmatpush1.bf16.msra.mxu0 0
        %888 = vmatprep.subr.bf16.mxu0 0
        %889 = vmatpush1.bf16.msra.mxu0 0
        %890 = vmatprep.subr.bf16.mxu0 0
        %891 = vmatpush1.bf16.msra.mxu0 0
        %892 = vmatprep.subr.bf16.mxu0 0
        %893 = vmatpush1.bf16.msra.mxu0 0
        %894 = vmatprep.subr.bf16.mxu0 0
        %895 = vmatpush1.bf16.msra.mxu0 0
        %896 = vmatprep.subr.bf16.mxu0 0
        %897 = vmatpush1.bf16.msra.mxu0 0
        %898 = vmatprep.subr.bf16.mxu0 0
        %899 = vmatpush1.bf16.msra.mxu0 0
        %900 = vmatprep.mubr.bf16.mxu0 0
        %901 = vmatmul.mubr.bf16.gmra.mrb[0].mxu0 %v866
        %v902 = vpop.f32.mrb[0].mxu0
        %v903 = vadd.f32 %v851, %v902
        %v904 = vpop.f32.mrb[0].mxu0
        %v905 = vpop.f32.mrb[0].mxu0
        %v906 = vadd.f32 %v851, %v905
        %v907 = vpop.f32.mrb[0].mxu0
        %908 = vdwg.mxu0
        %v909 = vmul.f32 %v903, 0.25
        %v910 = vmul.f32 %v906, 0.25
        %v911 = vld [vmem:[%s7] sm:$0xf]
        %v912 = vld [vmem:[%s7 + $0x4] sm:$0xf]
        %v913 = vld [vmem:[%s7 + $0x8] sm:$0xf]
        %v914 = vld [vmem:[%s7 + $0xc] sm:$0xf]
        %v915 = vpack.c.bf16 %v909, %v909
        %v916 = vpack.c.bf16 %v910, %v910
        %v917 = vpack.c.bf16 %v903, %v903
        %v918 = vpack.c.bf16 %v906, %v906
        %920 = vrot.lane.b32.xlu0 %v917, 96
        %v921 = vpop.permute.xlu0 %920
        %vm922 = vcmask 130048
        %v924 = vsel %vm922, %v915, 0
        %v927 = vsel %vm922, %v921, 0
        %929 = vmatprep.subr.bf16.mxu0 0
        %930 = vmatpush1.bf16.xpose.msra.mxu0 %v927
        %931 = vmatprep.subr.bf16.mxu0 0
        %932 = vmatpush1.bf16.xpose.msra.mxu0 0
        %933 = vmatprep.subr.bf16.mxu0 0
        %934 = vmatpush1.bf16.xpose.msra.mxu0 0
        %935 = vmatprep.subr.bf16.mxu0 0
        %936 = vmatpush1.bf16.xpose.msra.mxu0 0
        %937 = vmatprep.subr.bf16.mxu0 0
        %938 = vmatpush1.bf16.xpose.msra.mxu0 0
        %939 = vmatprep.subr.bf16.mxu0 0
        %940 = vmatpush1.bf16.xpose.msra.mxu0 0
        %941 = vmatprep.subr.bf16.mxu0 0
        %942 = vmatpush1.bf16.xpose.msra.mxu0 0
        %943 = vmatprep.subr.bf16.mxu0 0
        %944 = vmatpush1.bf16.xpose.msra.mxu0 0
        %945 = vmatprep.subr.bf16.mxu0 0
        %946 = vmatpush1.bf16.xpose.msra.mxu0 0
        %947 = vmatprep.subr.bf16.mxu0 0
        %948 = vmatpush1.bf16.xpose.msra.mxu0 0
        %949 = vmatprep.subr.bf16.mxu0 0
        %950 = vmatpush1.bf16.xpose.msra.mxu0 0
        %951 = vmatprep.subr.bf16.mxu0 0
        %952 = vmatpush1.bf16.xpose.msra.mxu0 0
        %953 = vmatprep.subr.bf16.mxu0 0
        %954 = vmatpush1.bf16.xpose.msra.mxu0 0
        %955 = vmatprep.subr.bf16.mxu0 0
        %956 = vmatpush1.bf16.xpose.msra.mxu0 0
        %957 = vmatprep.subr.bf16.mxu0 0
        %958 = vmatpush1.bf16.xpose.msra.mxu0 0
        %959 = vmatprep.subr.bf16.mxu0 0
        %960 = vmatpush1.bf16.xpose.msra.mxu0 0
        %961 = vmatprep.mubr.bf16.mxu0 0
        %962 = vmatmul.mubr.bf16.gmra.mrb[0].mxu0 %v924
        %v963 = vpop.f32.mrb[0].mxu0
        %v964 = vadd.f32 %v786, %v963
        %v965 = vpop.f32.mrb[0].mxu0
        %v966 = vpop.f32.mrb[0].mxu0
        %v967 = vpop.f32.mrb[0].mxu0
        %968 = vdwg.mxu0
        %970 = vrot.lane.b32.xlu0 %v918, 96
        %v971 = vpop.permute.xlu0 %970
        %v973 = vsel %vm922, %v916, 0
        %v976 = vsel %vm922, %v971, 0
        %978 = vmatprep.subr.bf16.mxu0 0
        %979 = vmatpush1.bf16.xpose.msra.mxu0 %v976
        %980 = vmatprep.subr.bf16.mxu0 0
        %981 = vmatpush1.bf16.xpose.msra.mxu0 0
        %982 = vmatprep.subr.bf16.mxu0 0
        %983 = vmatpush1.bf16.xpose.msra.mxu0 0
        %984 = vmatprep.subr.bf16.mxu0 0
        %985 = vmatpush1.bf16.xpose.msra.mxu0 0
        %986 = vmatprep.subr.bf16.mxu0 0
        %987 = vmatpush1.bf16.xpose.msra.mxu0 0
        %988 = vmatprep.subr.bf16.mxu0 0
        %989 = vmatpush1.bf16.xpose.msra.mxu0 0
        %990 = vmatprep.subr.bf16.mxu0 0
        %991 = vmatpush1.bf16.xpose.msra.mxu0 0
        %992 = vmatprep.subr.bf16.mxu0 0
        %993 = vmatpush1.bf16.xpose.msra.mxu0 0
        %994 = vmatprep.subr.bf16.mxu0 0
        %995 = vmatpush1.bf16.xpose.msra.mxu0 0
        %996 = vmatprep.subr.bf16.mxu0 0
        %997 = vmatpush1.bf16.xpose.msra.mxu0 0
        %998 = vmatprep.subr.bf16.mxu0 0
        %999 = vmatpush1.bf16.xpose.msra.mxu0 0
        %1000 = vmatprep.subr.bf16.mxu0 0
        %1001 = vmatpush1.bf16.xpose.msra.mxu0 0
        %1002 = vmatprep.subr.bf16.mxu0 0
        %1003 = vmatpush1.bf16.xpose.msra.mxu0 0
        %1004 = vmatprep.subr.bf16.mxu0 0
        %1005 = vmatpush1.bf16.xpose.msra.mxu0 0
        %1006 = vmatprep.subr.bf16.mxu0 0
        %1007 = vmatpush1.bf16.xpose.msra.mxu0 0
        %1008 = vmatprep.subr.bf16.mxu0 0
        %1009 = vmatpush1.bf16.xpose.msra.mxu0 0
        %1010 = vmatprep.mubr.bf16.mxu0 0
        %1011 = vmatmul.mubr.bf16.gmra.mrb[0].mxu0 %v973
        %v1012 = vpop.f32.mrb[0].mxu0
        %v1013 = vadd.f32 %v786, %v1012
        %v1014 = vpop.f32.mrb[0].mxu0
        %v1015 = vpop.f32.mrb[0].mxu0
        %v1016 = vpop.f32.mrb[0].mxu0
        %1017 = vdwg.mxu0
        %v1020 = vlaneseq
        %v1021 = vshrl.u32 %v1020, 7
        %v1022 = vsub.s32 0, %v1021
        %v1023 = vrot.slane %v791, %v1022
        %v1024 = vlaneseq
        %v1025 = vshrl.u32 %v1024, 7
        %v1026 = vsub.s32 0, %v1025
        %v1027 = vrot.slane %v792, %v1026
        %v1030 = vadd.f32 %v964, %v1023
        %v1031 = vadd.f32 %v1013, %v1027
        %vm1032 = vcmask 64512
        %v1033 = vsel %vm1032, %v1030, -inf
        %1034 = vmax.xlane.f32.xlu0 %v1033
        %v1035 = vpop.xlane.xlu0 %1034
        %v1036 = vsel %vm1032, %v1031, -inf
        %1037 = vmax.xlane.f32.xlu0 %v1036
        %v1038 = vpop.xlane.xlu0 %1037
        %v1039 = vsub.f32 %v1030, %v1035
        %v1040 = vsub.f32 %v1031, %v1038
        %v1041 = vmul.f32 %v1039, 1.442695
        %v1042 = vpow.pop %v1041
        %v1043 = vmul.f32 %v1040, 1.442695
        %v1044 = vpow.pop %v1043
        %v1045 = vsel %vm1032, %v1042, 0.0
        %1046 = vadd.xlane.f32.xlu0 %v1045
        %v1047 = vpop.xlane.xlu0 %1046
        %v1048 = vsel %vm1032, %v1044, 0.0
        %1049 = vadd.xlane.f32.xlu0 %v1048
        %v1050 = vpop.xlane.xlu0 %1049
        %v1051 = vrcp.pop %v1047
        %v1052 = vrcp.pop %v1050
        %v1053 = vmul.f32 %v1042, %v1051
        %v1054 = vmul.f32 %v1044, %v1052
        %v1055 = vpack.c.bf16 %v1053, %v1053
        %v1056 = vpack.c.bf16 %v1054, %v1054
        %1057 = vrot.lane.b32.xlu0 %v917, 64
        %v1058 = vpop.permute.xlu0 %1057
        %v1060 = vsel %vm1032, %v1055, 0
        %vm1062 = vcmask 1043456
        %v1064 = vsel %vm1062, %v1058, 0
        %1066 = vmatprep.subr.bf16.mxu0 0
        %1067 = vmatpush1.bf16.msra.mxu0 %v1064
        %1068 = vmatprep.subr.bf16.mxu0 0
        %1069 = vmatpush1.bf16.msra.mxu0 0
        %1070 = vmatprep.subr.bf16.mxu0 0
        %1071 = vmatpush1.bf16.msra.mxu0 0
        %1072 = vmatprep.subr.bf16.mxu0 0
        %1073 = vmatpush1.bf16.msra.mxu0 0
        %1074 = vmatprep.subr.bf16.mxu0 0
        %1075 = vmatpush1.bf16.msra.mxu0 0
        %1076 = vmatprep.subr.bf16.mxu0 0
        %1077 = vmatpush1.bf16.msra.mxu0 0
        %1078 = vmatprep.subr.bf16.mxu0 0
        %1079 = vmatpush1.bf16.msra.mxu0 0
        %1080 = vmatprep.subr.bf16.mxu0 0
        %1081 = vmatpush1.bf16.msra.mxu0 0
        %1082 = vmatprep.subr.bf16.mxu0 0
        %1083 = vmatpush1.bf16.msra.mxu0 0
        %1084 = vmatprep.subr.bf16.mxu0 0
        %1085 = vmatpush1.bf16.msra.mxu0 0
        %1086 = vmatprep.subr.bf16.mxu0 0
        %1087 = vmatpush1.bf16.msra.mxu0 0
        %1088 = vmatprep.subr.bf16.mxu0 0
        %1089 = vmatpush1.bf16.msra.mxu0 0
        %1090 = vmatprep.subr.bf16.mxu0 0
        %1091 = vmatpush1.bf16.msra.mxu0 0
        %1092 = vmatprep.subr.bf16.mxu0 0
        %1093 = vmatpush1.bf16.msra.mxu0 0
        %1094 = vmatprep.subr.bf16.mxu0 0
        %1095 = vmatpush1.bf16.msra.mxu0 0
        %1096 = vmatprep.subr.bf16.mxu0 0
        %1097 = vmatpush1.bf16.msra.mxu0 0
        %1098 = vmatprep.mubr.bf16.mxu0 0
        %1099 = vmatmul.mubr.bf16.gmra.mrb[0].mxu0 %v1060
        %v1100 = vpop.f32.mrb[0].mxu0
        %v1101 = vadd.f32 0.0, %v1100
        %v1102 = vpop.f32.mrb[0].mxu0
        %v1103 = vpop.f32.mrb[0].mxu0
        %v1104 = vpop.f32.mrb[0].mxu0
        %1105 = vdwg.mxu0
        %1106 = vrot.lane.b32.xlu0 %v918, 64
        %v1107 = vpop.permute.xlu0 %1106
        %v1109 = vsel %vm1032, %v1056, 0
        %v1112 = vsel %vm1062, %v1107, 0
        %1114 = vmatprep.subr.bf16.mxu0 0
        %1115 = vmatpush1.bf16.msra.mxu0 %v1112
        %1116 = vmatprep.subr.bf16.mxu0 0
        %1117 = vmatpush1.bf16.msra.mxu0 0
        %1118 = vmatprep.subr.bf16.mxu0 0
        %1119 = vmatpush1.bf16.msra.mxu0 0
        %1120 = vmatprep.subr.bf16.mxu0 0
        %1121 = vmatpush1.bf16.msra.mxu0 0
        %1122 = vmatprep.subr.bf16.mxu0 0
        %1123 = vmatpush1.bf16.msra.mxu0 0
        %1124 = vmatprep.subr.bf16.mxu0 0
        %1125 = vmatpush1.bf16.msra.mxu0 0
        %1126 = vmatprep.subr.bf16.mxu0 0
        %1127 = vmatpush1.bf16.msra.mxu0 0
        %1128 = vmatprep.subr.bf16.mxu0 0
        %1129 = vmatpush1.bf16.msra.mxu0 0
        %1130 = vmatprep.subr.bf16.mxu0 0
        %1131 = vmatpush1.bf16.msra.mxu0 0
        %1132 = vmatprep.subr.bf16.mxu0 0
        %1133 = vmatpush1.bf16.msra.mxu0 0
        %1134 = vmatprep.subr.bf16.mxu0 0
        %1135 = vmatpush1.bf16.msra.mxu0 0
        %1136 = vmatprep.subr.bf16.mxu0 0
        %1137 = vmatpush1.bf16.msra.mxu0 0
        %1138 = vmatprep.subr.bf16.mxu0 0
        %1139 = vmatpush1.bf16.msra.mxu0 0
        %1140 = vmatprep.subr.bf16.mxu0 0
        %1141 = vmatpush1.bf16.msra.mxu0 0
        %1142 = vmatprep.subr.bf16.mxu0 0
        %1143 = vmatpush1.bf16.msra.mxu0 0
        %1144 = vmatprep.subr.bf16.mxu0 0
        %1145 = vmatpush1.bf16.msra.mxu0 0
        %1146 = vmatprep.mubr.bf16.mxu0 0
        %1147 = vmatmul.mubr.bf16.gmra.mrb[0].mxu0 %v1109
        %v1148 = vpop.f32.mrb[0].mxu0
        %v1149 = vadd.f32 0.0, %v1148
        %v1150 = vpop.f32.mrb[0].mxu0
        %v1151 = vpop.f32.mrb[0].mxu0
        %v1152 = vpop.f32.mrb[0].mxu0
        %1153 = vdwg.mxu0
        %v1154 = vpack.c.bf16 %v1149, %v1101
        %1156 = vrot.lane.b32.xlu0 %v915, 112
        %v1157 = vpop.permute.xlu0 %1156
        %1158 = vrot.lane.b32.xlu0 %v917, 80
        %v1159 = vpop.permute.xlu0 %1158
        %v1161 = vsel %vm922, %v1157, 0
        %v1164 = vsel %vm922, %v1159, 0
        %1166 = vmatprep.subr.bf16.mxu0 0
        %1167 = vmatpush1.bf16.xpose.msra.mxu0 %v1164
        %1168 = vmatprep.subr.bf16.mxu0 0
        %1169 = vmatpush1.bf16.xpose.msra.mxu0 0
        %1170 = vmatprep.subr.bf16.mxu0 0
        %1171 = vmatpush1.bf16.xpose.msra.mxu0 0
        %1172 = vmatprep.subr.bf16.mxu0 0
        %1173 = vmatpush1.bf16.xpose.msra.mxu0 0
        %1174 = vmatprep.subr.bf16.mxu0 0
        %1175 = vmatpush1.bf16.xpose.msra.mxu0 0
        %1176 = vmatprep.subr.bf16.mxu0 0
        %1177 = vmatpush1.bf16.xpose.msra.mxu0 0
        %1178 = vmatprep.subr.bf16.mxu0 0
        %1179 = vmatpush1.bf16.xpose.msra.mxu0 0
        %1180 = vmatprep.subr.bf16.mxu0 0
        %1181 = vmatpush1.bf16.xpose.msra.mxu0 0
        %1182 = vmatprep.subr.bf16.mxu0 0
        %1183 = vmatpush1.bf16.xpose.msra.mxu0 0
        %1184 = vmatprep.subr.bf16.mxu0 0
        %1185 = vmatpush1.bf16.xpose.msra.mxu0 0
        %1186 = vmatprep.subr.bf16.mxu0 0
        %1187 = vmatpush1.bf16.xpose.msra.mxu0 0
        %1188 = vmatprep.subr.bf16.mxu0 0
        %1189 = vmatpush1.bf16.xpose.msra.mxu0 0
        %1190 = vmatprep.subr.bf16.mxu0 0
        %1191 = vmatpush1.bf16.xpose.msra.mxu0 0
        %1192 = vmatprep.subr.bf16.mxu0 0
        %1193 = vmatpush1.bf16.xpose.msra.mxu0 0
        %1194 = vmatprep.subr.bf16.mxu0 0
        %1195 = vmatpush1.bf16.xpose.msra.mxu0 0
        %1196 = vmatprep.subr.bf16.mxu0 0
        %1197 = vmatpush1.bf16.xpose.msra.mxu0 0
        %1198 = vmatprep.mubr.bf16.mxu0 0
        %1199 = vmatmul.mubr.bf16.gmra.mrb[0].mxu0 %v1161
        %v1200 = vpop.f32.mrb[0].mxu0
        %v1201 = vadd.f32 %v786, %v1200
        %v1202 = vpop.f32.mrb[0].mxu0
        %v1203 = vpop.f32.mrb[0].mxu0
        %v1204 = vpop.f32.mrb[0].mxu0
        %1205 = vdwg.mxu0
        %1207 = vrot.lane.b32.xlu0 %v916, 112
        %v1208 = vpop.permute.xlu0 %1207
        %1209 = vrot.lane.b32.xlu0 %v918, 80
        %v1210 = vpop.permute.xlu0 %1209
        %v1212 = vsel %vm922, %v1208, 0
        %v1215 = vsel %vm922, %v1210, 0
        %1217 = vmatprep.subr.bf16.mxu0 0
        %1218 = vmatpush1.bf16.xpose.msra.mxu0 %v1215
        %1219 = vmatprep.subr.bf16.mxu0 0
        %1220 = vmatpush1.bf16.xpose.msra.mxu0 0
        %1221 = vmatprep.subr.bf16.mxu0 0
        %1222 = vmatpush1.bf16.xpose.msra.mxu0 0
        %1223 = vmatprep.subr.bf16.mxu0 0
        %1224 = vmatpush1.bf16.xpose.msra.mxu0 0
        %1225 = vmatprep.subr.bf16.mxu0 0
        %1226 = vmatpush1.bf16.xpose.msra.mxu0 0
        %1227 = vmatprep.subr.bf16.mxu0 0
        %1228 = vmatpush1.bf16.xpose.msra.mxu0 0
        %1229 = vmatprep.subr.bf16.mxu0 0
        %1230 = vmatpush1.bf16.xpose.msra.mxu0 0
        %1231 = vmatprep.subr.bf16.mxu0 0
        %1232 = vmatpush1.bf16.xpose.msra.mxu0 0
        %1233 = vmatprep.subr.bf16.mxu0 0
        %1234 = vmatpush1.bf16.xpose.msra.mxu0 0
        %1235 = vmatprep.subr.bf16.mxu0 0
        %1236 = vmatpush1.bf16.xpose.msra.mxu0 0
        %1237 = vmatprep.subr.bf16.mxu0 0
        %1238 = vmatpush1.bf16.xpose.msra.mxu0 0
        %1239 = vmatprep.subr.bf16.mxu0 0
        %1240 = vmatpush1.bf16.xpose.msra.mxu0 0
        %1241 = vmatprep.subr.bf16.mxu0 0
        %1242 = vmatpush1.bf16.xpose.msra.mxu0 0
        %1243 = vmatprep.subr.bf16.mxu0 0
        %1244 = vmatpush1.bf16.xpose.msra.mxu0 0
        %1245 = vmatprep.subr.bf16.mxu0 0
        %1246 = vmatpush1.bf16.xpose.msra.mxu0 0
        %1247 = vmatprep.subr.bf16.mxu0 0
        %1248 = vmatpush1.bf16.xpose.msra.mxu0 0
        %1249 = vmatprep.mubr.bf16.mxu0 0
        %1250 = vmatmul.mubr.bf16.gmra.mrb[0].mxu0 %v1212
        %v1251 = vpop.f32.mrb[0].mxu0
        %v1252 = vadd.f32 %v786, %v1251
        %v1253 = vpop.f32.mrb[0].mxu0
        %v1254 = vpop.f32.mrb[0].mxu0
        %v1255 = vpop.f32.mrb[0].mxu0
        %1256 = vdwg.mxu0
        %v1257 = vadd.f32 %v1201, %v1023
        %v1258 = vadd.f32 %v1252, %v1027
        %v1259 = vsel %vm1032, %v1257, -inf
        %1260 = vmax.xlane.f32.xlu0 %v1259
        %v1261 = vpop.xlane.xlu0 %1260
        %v1262 = vsel %vm1032, %v1258, -inf
        %1263 = vmax.xlane.f32.xlu0 %v1262
        %v1264 = vpop.xlane.xlu0 %1263
        %v1265 = vsub.f32 %v1257, %v1261
        %v1266 = vsub.f32 %v1258, %v1264
        %v1267 = vmul.f32 %v1265, 1.442695
        %v1268 = vpow.pop %v1267
        %v1269 = vmul.f32 %v1266, 1.442695
        %v1270 = vpow.pop %v1269
        %v1271 = vsel %vm1032, %v1268, 0.0
        %1272 = vadd.xlane.f32.xlu0 %v1271
        %v1273 = vpop.xlane.xlu0 %1272
        %v1274 = vsel %vm1032, %v1270, 0.0
        %1275 = vadd.xlane.f32.xlu0 %v1274
        %v1276 = vpop.xlane.xlu0 %1275
        %v1277 = vrcp.pop %v1273
        %v1278 = vrcp.pop %v1276
        %v1279 = vmul.f32 %v1268, %v1277
        %v1280 = vmul.f32 %v1270, %v1278
        %v1281 = vpack.c.bf16 %v1279, %v1279
        %v1282 = vpack.c.bf16 %v1280, %v1280
        %1283 = vrot.lane.b32.xlu0 %v917, 48
        %v1284 = vpop.permute.xlu0 %1283
        %v1286 = vsel %vm1032, %v1281, 0
        %v1289 = vsel %vm1062, %v1284, 0
        %1291 = vmatprep.subr.bf16.mxu0 0
        %1292 = vmatpush1.bf16.msra.mxu0 %v1289
        %1293 = vmatprep.subr.bf16.mxu0 0
        %1294 = vmatpush1.bf16.msra.mxu0 0
        %1295 = vmatprep.subr.bf16.mxu0 0
        %1296 = vmatpush1.bf16.msra.mxu0 0
        %1297 = vmatprep.subr.bf16.mxu0 0
        %1298 = vmatpush1.bf16.msra.mxu0 0
        %1299 = vmatprep.subr.bf16.mxu0 0
        %1300 = vmatpush1.bf16.msra.mxu0 0
        %1301 = vmatprep.subr.bf16.mxu0 0
        %1302 = vmatpush1.bf16.msra.mxu0 0
        %1303 = vmatprep.subr.bf16.mxu0 0
        %1304 = vmatpush1.bf16.msra.mxu0 0
        %1305 = vmatprep.subr.bf16.mxu0 0
        %1306 = vmatpush1.bf16.msra.mxu0 0
        %1307 = vmatprep.subr.bf16.mxu0 0
        %1308 = vmatpush1.bf16.msra.mxu0 0
        %1309 = vmatprep.subr.bf16.mxu0 0
        %1310 = vmatpush1.bf16.msra.mxu0 0
        %1311 = vmatprep.subr.bf16.mxu0 0
        %1312 = vmatpush1.bf16.msra.mxu0 0
        %1313 = vmatprep.subr.bf16.mxu0 0
        %1314 = vmatpush1.bf16.msra.mxu0 0
        %1315 = vmatprep.subr.bf16.mxu0 0
        %1316 = vmatpush1.bf16.msra.mxu0 0
        %1317 = vmatprep.subr.bf16.mxu0 0
        %1318 = vmatpush1.bf16.msra.mxu0 0
        %1319 = vmatprep.subr.bf16.mxu0 0
        %1320 = vmatpush1.bf16.msra.mxu0 0
        %1321 = vmatprep.subr.bf16.mxu0 0
        %1322 = vmatpush1.bf16.msra.mxu0 0
        %1323 = vmatprep.mubr.bf16.mxu0 0
        %1324 = vmatmul.mubr.bf16.gmra.mrb[0].mxu0 %v1286
        %v1325 = vpop.f32.mrb[0].mxu0
        %v1326 = vadd.f32 0.0, %v1325
        %v1327 = vpop.f32.mrb[0].mxu0
        %v1328 = vpop.f32.mrb[0].mxu0
        %v1329 = vpop.f32.mrb[0].mxu0
        %1330 = vdwg.mxu0
        %1331 = vrot.lane.b32.xlu0 %v918, 48
        %v1332 = vpop.permute.xlu0 %1331
        %v1334 = vsel %vm1032, %v1282, 0
        %v1337 = vsel %vm1062, %v1332, 0
        %1339 = vmatprep.subr.bf16.mxu0 0
        %1340 = vmatpush1.bf16.msra.mxu0 %v1337
        %1341 = vmatprep.subr.bf16.mxu0 0
        %1342 = vmatpush1.bf16.msra.mxu0 0
        %1343 = vmatprep.subr.bf16.mxu0 0
        %1344 = vmatpush1.bf16.msra.mxu0 0
        %1345 = vmatprep.subr.bf16.mxu0 0
        %1346 = vmatpush1.bf16.msra.mxu0 0
        %1347 = vmatprep.subr.bf16.mxu0 0
        %1348 = vmatpush1.bf16.msra.mxu0 0
        %1349 = vmatprep.subr.bf16.mxu0 0
        %1350 = vmatpush1.bf16.msra.mxu0 0
        %1351 = vmatprep.subr.bf16.mxu0 0
        %1352 = vmatpush1.bf16.msra.mxu0 0
        %1353 = vmatprep.subr.bf16.mxu0 0
        %1354 = vmatpush1.bf16.msra.mxu0 0
        %1355 = vmatprep.subr.bf16.mxu0 0
        %1356 = vmatpush1.bf16.msra.mxu0 0
        %1357 = vmatprep.subr.bf16.mxu0 0
        %1358 = vmatpush1.bf16.msra.mxu0 0
        %1359 = vmatprep.subr.bf16.mxu0 0
        %1360 = vmatpush1.bf16.msra.mxu0 0
        %1361 = vmatprep.subr.bf16.mxu0 0
        %1362 = vmatpush1.bf16.msra.mxu0 0
        %1363 = vmatprep.subr.bf16.mxu0 0
        %1364 = vmatpush1.bf16.msra.mxu0 0
        %1365 = vmatprep.subr.bf16.mxu0 0
        %1366 = vmatpush1.bf16.msra.mxu0 0
        %1367 = vmatprep.subr.bf16.mxu0 0
        %1368 = vmatpush1.bf16.msra.mxu0 0
        %1369 = vmatprep.subr.bf16.mxu0 0
        %1370 = vmatpush1.bf16.msra.mxu0 0
        %1371 = vmatprep.mubr.bf16.mxu0 0
        %1372 = vmatmul.mubr.bf16.gmra.mrb[0].mxu0 %v1334
        %v1373 = vpop.f32.mrb[0].mxu0
        %v1374 = vadd.f32 0.0, %v1373
        %v1375 = vpop.f32.mrb[0].mxu0
        %v1376 = vpop.f32.mrb[0].mxu0
        %v1377 = vpop.f32.mrb[0].mxu0
        %1378 = vdwg.mxu0
        %v1379 = vpack.c.bf16 %v1374, %v1326
        %v1382 = vunpack.c.l.b16 %v913
        %v1383 = vunpack.c.l.b16 %v914
        %v1384 = vpack.c.b16 %v1383, %v1382
        %v1387 = vsel %vm922, %v1379, 0
        %1389 = vmatprep.subr.bf16.mxu0 0
        %1390 = vmatpush1.bf16.msra.mxu0 %v1384
        %1391 = vmatprep.subr.bf16.mxu0 0
        %1392 = vmatpush1.bf16.msra.mxu0 0
        %1393 = vmatprep.subr.bf16.mxu0 0
        %1394 = vmatpush1.bf16.msra.mxu0 0
        %1395 = vmatprep.subr.bf16.mxu0 0
        %1396 = vmatpush1.bf16.msra.mxu0 0
        %1397 = vmatprep.subr.bf16.mxu0 0
        %1398 = vmatpush1.bf16.msra.mxu0 0
        %1399 = vmatprep.subr.bf16.mxu0 0
        %1400 = vmatpush1.bf16.msra.mxu0 0
        %1401 = vmatprep.subr.bf16.mxu0 0
        %1402 = vmatpush1.bf16.msra.mxu0 0
        %1403 = vmatprep.subr.bf16.mxu0 0
        %1404 = vmatpush1.bf16.msra.mxu0 0
        %1405 = vmatprep.subr.bf16.mxu0 0
        %1406 = vmatpush1.bf16.msra.mxu0 0
        %1407 = vmatprep.subr.bf16.mxu0 0
        %1408 = vmatpush1.bf16.msra.mxu0 0
        %1409 = vmatprep.subr.bf16.mxu0 0
        %1410 = vmatpush1.bf16.msra.mxu0 0
        %1411 = vmatprep.subr.bf16.mxu0 0
        %1412 = vmatpush1.bf16.msra.mxu0 0
        %1413 = vmatprep.subr.bf16.mxu0 0
        %1414 = vmatpush1.bf16.msra.mxu0 0
        %1415 = vmatprep.subr.bf16.mxu0 0
        %1416 = vmatpush1.bf16.msra.mxu0 0
        %1417 = vmatprep.subr.bf16.mxu0 0
        %1418 = vmatpush1.bf16.msra.mxu0 0
        %1419 = vmatprep.subr.bf16.mxu0 0
        %1420 = vmatpush1.bf16.msra.mxu0 0
        %1421 = vmatprep.mubr.bf16.mxu0 0
        %1422 = vmatmul.mubr.bf16.gmra.mrb[0].mxu0 %v1387
        %v1423 = vpop.f32.mrb[0].mxu0
        %v1424 = vadd.f32 0.0, %v1423
        %v1425 = vpop.f32.mrb[0].mxu0
        %v1426 = vpop.f32.mrb[0].mxu0
        %v1427 = vadd.f32 0.0, %v1426
        %v1428 = vpop.f32.mrb[0].mxu0
        %1429 = vdwg.mxu0
        %v1432 = vunpack.c.l.b16 %v911
        %v1433 = vunpack.c.l.b16 %v912
        %v1434 = vpack.c.b16 %v1433, %v1432
        %v1437 = vsel %vm922, %v1154, 0
        %1439 = vmatprep.subr.bf16.mxu0 0
        %1440 = vmatpush1.bf16.msra.mxu0 %v1434
        %1441 = vmatprep.subr.bf16.mxu0 0
        %1442 = vmatpush1.bf16.msra.mxu0 0
        %1443 = vmatprep.subr.bf16.mxu0 0
        %1444 = vmatpush1.bf16.msra.mxu0 0
        %1445 = vmatprep.subr.bf16.mxu0 0
        %1446 = vmatpush1.bf16.msra.mxu0 0
        %1447 = vmatprep.subr.bf16.mxu0 0
        %1448 = vmatpush1.bf16.msra.mxu0 0
        %1449 = vmatprep.subr.bf16.mxu0 0
        %1450 = vmatpush1.bf16.msra.mxu0 0
        %1451 = vmatprep.subr.bf16.mxu0 0
        %1452 = vmatpush1.bf16.msra.mxu0 0
        %1453 = vmatprep.subr.bf16.mxu0 0
        %1454 = vmatpush1.bf16.msra.mxu0 0
        %1455 = vmatprep.subr.bf16.mxu0 0
        %1456 = vmatpush1.bf16.msra.mxu0 0
        %1457 = vmatprep.subr.bf16.mxu0 0
        %1458 = vmatpush1.bf16.msra.mxu0 0
        %1459 = vmatprep.subr.bf16.mxu0 0
        %1460 = vmatpush1.bf16.msra.mxu0 0
        %1461 = vmatprep.subr.bf16.mxu0 0
        %1462 = vmatpush1.bf16.msra.mxu0 0
        %1463 = vmatprep.subr.bf16.mxu0 0
        %1464 = vmatpush1.bf16.msra.mxu0 0
        %1465 = vmatprep.subr.bf16.mxu0 0
        %1466 = vmatpush1.bf16.msra.mxu0 0
        %1467 = vmatprep.subr.bf16.mxu0 0
        %1468 = vmatpush1.bf16.msra.mxu0 0
        %1469 = vmatprep.subr.bf16.mxu0 0
        %1470 = vmatpush1.bf16.msra.mxu0 0
        %1471 = vmatprep.mubr.bf16.mxu0 0
        %1472 = vmatmul.mubr.bf16.gmra.mrb[0].mxu0 %v1437
        %v1473 = vpop.f32.mrb[0].mxu0
        %v1474 = vadd.f32 %v1424, %v1473
        %v1475 = vpop.f32.mrb[0].mxu0
        %v1476 = vpop.f32.mrb[0].mxu0
        %v1477 = vadd.f32 %v1427, %v1476
        %v1478 = vpop.f32.mrb[0].mxu0
        %1479 = vdwg.mxu0
        %v1480 = vld [vmem:[%s8] sm:$0x1]
        %v1482 = vlaneseq
        %v1483 = vshrl.u32 %v1482, 7
        %v1484 = vsub.s32 0, %v1483
        %v1485 = vrot.slane %v1480, %v1484
        %v1487 = vadd.f32 %v1474, %v1485
        %v1488 = vadd.f32 %v1477, %v1485
        %v1489 = vadd.f32 %v1487, %v839
        %v1490 = vadd.f32 %v1488, %v840
        %v1491 = vld [vmem:[%s9] sm:$0x1]
        %v1492 = vld [vmem:[#allocation5] sm:$0x1]
        %v1493 = vsel %vm797, %v1489, 0.0
        %1494 = vadd.xlane.f32.xlu0 %v1493
        %v1495 = vpop.xlane.xlu0 %1494
        %v1496 = vsel %vm797, %v1490, 0.0
        %1497 = vadd.xlane.f32.xlu0 %v1496
        %v1498 = vpop.xlane.xlu0 %1497
        %v1499 = vmul.f32 %v1495, %v804
        %v1500 = vmul.f32 %v1498, %v804
        %v1501 = vsub.f32 %v1489, %v1499
        %v1502 = vsub.f32 %v1490, %v1500
        %v1503 = vmul.f32 %v1501, %v1501
        %v1504 = vmul.f32 %v1502, %v1502
        %v1505 = vsel %vm797, %v1503, 0.0
        %1506 = vadd.xlane.f32.xlu0 %v1505
        %v1507 = vpop.xlane.xlu0 %1506
        %v1508 = vsel %vm797, %v1504, 0.0
        %1509 = vadd.xlane.f32.xlu0 %v1508
        %v1510 = vpop.xlane.xlu0 %1509
        %v1511 = vmul.f32 %v1507, %v804
        %v1512 = vmul.f32 %v1510, %v804
        %v1513 = vadd.f32 %v1511, 1e-12
        %v1514 = vadd.f32 %v1512, 1e-12
        %v1515 = vrsqrt.pop %v1513
        %v1516 = vrsqrt.pop %v1514
        %v1517 = vmul.f32 %v1501, %v1515
        %v1518 = vmul.f32 %v1502, %v1516
        %v1520 = vlaneseq
        %v1521 = vshrl.u32 %v1520, 7
        %v1522 = vsub.s32 0, %v1521
        %v1523 = vrot.slane %v1491, %v1522
        %v1525 = vmul.f32 %v1517, %v1523
        %v1526 = vmul.f32 %v1518, %v1523
        %v1528 = vlaneseq
        %v1529 = vshrl.u32 %v1528, 7
        %v1530 = vsub.s32 0, %v1529
        %v1531 = vrot.slane %v1492, %v1530
        %v1533 = vadd.f32 %v1525, %v1531
        %v1534 = vadd.f32 %v1526, %v1531
        %v1535 = vpack.c.bf16 %v1534, %v1533
        %v1536 = vld [vmem:[#allocation7] sm:$0xf]
        %v1537 = vld [vmem:[#allocation7 + $0x4] sm:$0xf]
        %v1538 = vld [vmem:[#allocation7 + $0x8] sm:$0xf]
        %v1539 = vld [vmem:[#allocation7 + $0xc] sm:$0xf]
        %v1540 = vld [vmem:[#allocation8] sm:$0x1]
        %v1542 = vlaneseq
        %v1543 = vshrl.u32 %v1542, 7
        %v1544 = vsub.s32 0, %v1543
        %v1545 = vrot.slane %v1540, %v1544
        %v1551 = vunpack.c.l.b16 %v1536
        %v1552 = vunpack.c.l.b16 %v1537
        %v1553 = vunpack.c.l.b16 %v1538
        %v1554 = vunpack.c.l.b16 %v1539
        %v1555 = vpack.c.b16 %v1552, %v1551
        %v1556 = vpack.c.b16 %v1554, %v1553
        %v1560 = vsel %vm797, %v1535, 0
        %1562 = vmatprep.subr.bf16.mxu0 0
        %1563 = vmatpush1.bf16.msra.mxu0 %v1555
        %1564 = vmatprep.subr.bf16.mxu0 0
        %1565 = vmatpush1.bf16.msra.mxu0 %v1556
        %1566 = vmatprep.subr.bf16.mxu0 0
        %1567 = vmatpush1.bf16.msra.mxu0 0
        %1568 = vmatprep.subr.bf16.mxu0 0
        %1569 = vmatpush1.bf16.msra.mxu0 0
        %1570 = vmatprep.subr.bf16.mxu0 0
        %1571 = vmatpush1.bf16.msra.mxu0 0
        %1572 = vmatprep.subr.bf16.mxu0 0
        %1573 = vmatpush1.bf16.msra.mxu0 0
        %1574 = vmatprep.subr.bf16.mxu0 0
        %1575 = vmatpush1.bf16.msra.mxu0 0
        %1576 = vmatprep.subr.bf16.mxu0 0
        %1577 = vmatpush1.bf16.msra.mxu0 0
        %1578 = vmatprep.subr.bf16.mxu0 0
        %1579 = vmatpush1.bf16.msra.mxu0 0
        %1580 = vmatprep.subr.bf16.mxu0 0
        %1581 = vmatpush1.bf16.msra.mxu0 0
        %1582 = vmatprep.subr.bf16.mxu0 0
        %1583 = vmatpush1.bf16.msra.mxu0 0
        %1584 = vmatprep.subr.bf16.mxu0 0
        %1585 = vmatpush1.bf16.msra.mxu0 0
        %1586 = vmatprep.subr.bf16.mxu0 0
        %1587 = vmatpush1.bf16.msra.mxu0 0
        %1588 = vmatprep.subr.bf16.mxu0 0
        %1589 = vmatpush1.bf16.msra.mxu0 0
        %1590 = vmatprep.subr.bf16.mxu0 0
        %1591 = vmatpush1.bf16.msra.mxu0 0
        %1592 = vmatprep.subr.bf16.mxu0 0
        %1593 = vmatpush1.bf16.msra.mxu0 0
        %1594 = vmatprep.mubr.bf16.mxu0 0
        %1595 = vmatmul.mubr.bf16.gmra.mrb[0].mxu0 %v1560
        %v1596 = vpop.f32.mrb[0].mxu0
        %v1597 = vadd.f32 %v1545, %v1596
        %v1598 = vpop.f32.mrb[0].mxu0
        %v1599 = vpop.f32.mrb[0].mxu0
        %v1600 = vadd.f32 %v1545, %v1599
        %v1601 = vpop.f32.mrb[0].mxu0
        %1602 = vdwg.mxu0
        %v1603 = vmul.f32 %v1597, 0.70710677
        %v1604 = vmul.f32 %v1600, 0.70710677
        %v1605 = vand.u32 2147483647, %v1603
        %v1606 = vand.u32 2147483647, %v1604
        %v1607 = vmul.f32 %v1605, 0.3275911
        %v1608 = vmul.f32 %v1606, 0.3275911
        %v1609 = vadd.f32 %v1607, 1.0
        %v1610 = vadd.f32 %v1608, 1.0
        %v1611 = vrcp.pop %v1609
        %v1612 = vrcp.pop %v1610
        %v1613 = vmul.f32 %v1611, 1.0614054
        %v1614 = vmul.f32 %v1612, 1.0614054
        %v1615 = vadd.f32 %v1613, -1.4531521
        %v1616 = vadd.f32 %v1614, -1.4531521
        %v1617 = vmul.f32 %v1615, %v1611
        %v1618 = vmul.f32 %v1616, %v1612
        %v1619 = vadd.f32 %v1617, 1.4214138
        %v1620 = vadd.f32 %v1618, 1.4214138
        %v1621 = vmul.f32 %v1619, %v1611
        %v1622 = vmul.f32 %v1620, %v1612
        %v1623 = vadd.f32 %v1621, -0.28449672
        %v1624 = vadd.f32 %v1622, -0.28449672
        %v1625 = vmul.f32 %v1623, %v1611
        %v1626 = vmul.f32 %v1624, %v1612
        %v1627 = vadd.f32 %v1625, 0.2548296
        %v1628 = vadd.f32 %v1626, 0.2548296
        %v1629 = vmul.f32 %v1627, %v1611
        %v1630 = vmul.f32 %v1628, %v1612
        %v1631 = vsub.f32 0.0, %v1605
        %v1632 = vsub.f32 0.0, %v1606
        %v1633 = vmul.f32 %v1631, %v1605
        %v1634 = vmul.f32 %v1632, %v1606
        %v1635 = vmul.f32 %v1633, 1.442695
        %v1636 = vpow.pop %v1635
        %v1637 = vmul.f32 %v1634, 1.442695
        %v1638 = vpow.pop %v1637
        %v1639 = vmul.f32 %v1629, %v1636
        %v1640 = vmul.f32 %v1630, %v1638
        %v1641 = vsub.f32 1.0, %v1639
        %v1642 = vsub.f32 1.0, %v1640
        %vm1643 = vcmp.ge.f32.partialorder %v1603, 0.0
        %vm1644 = vcmp.ge.f32.partialorder %v1604, 0.0
        %v1645 = vsel %vm1643, 1.0, -1.0
        %v1646 = vsel %vm1644, 1.0, -1.0
        %v1647 = vmul.f32 %v1645, %v1641
        %v1648 = vmul.f32 %v1646, %v1642
        %v1649 = vmul.f32 %v1597, 0.5
        %v1650 = vmul.f32 %v1600, 0.5
        %v1651 = vadd.f32 %v1647, 1.0
        %v1652 = vadd.f32 %v1648, 1.0
        %v1653 = vmul.f32 %v1649, %v1651
        %v1654 = vmul.f32 %v1650, %v1652
        %v1655 = vpack.c.bf16 %v1654, %v1653
        %v1656 = vld [vmem:[%s13] sm:$0xf]
        %v1657 = vld [vmem:[%s13 + $0x4] sm:$0xf]
        %v1658 = vld [vmem:[%s13 + $0x8] sm:$0xf]
        %v1659 = vld [vmem:[%s13 + $0xc] sm:$0xf]
        %v1660 = vld [vmem:[%s13 + $0x10] sm:$0xf]
        %v1661 = vld [vmem:[%s13 + $0x14] sm:$0xf]
        %v1662 = vld [vmem:[%s13 + $0x18] sm:$0xf]
        %v1663 = vld [vmem:[%s13 + $0x1c] sm:$0xf]
        %v1664 = vld [vmem:[%s14] sm:$0x1]
        %v1666 = vlaneseq
        %v1667 = vshrl.u32 %v1666, 7
        %v1668 = vsub.s32 0, %v1667
        %v1669 = vrot.slane %v1664, %v1668
        %v1679 = vunpack.c.l.b16 %v1656
        %v1680 = vunpack.c.l.b16 %v1657
        %v1681 = vunpack.c.l.b16 %v1658
        %v1682 = vunpack.c.l.b16 %v1659
        %v1683 = vunpack.c.l.b16 %v1660
        %v1684 = vunpack.c.l.b16 %v1661
        %v1685 = vunpack.c.l.b16 %v1662
        %v1686 = vunpack.c.l.b16 %v1663
        %v1687 = vpack.c.b16 %v1680, %v1679
        %v1688 = vpack.c.b16 %v1682, %v1681
        %v1689 = vpack.c.b16 %v1684, %v1683
        %v1690 = vpack.c.b16 %v1686, %v1685
        %vm1695 = vcmask 523264
        %v1697 = vsel %vm1695, %v1655, 0
        %1699 = vmatprep.subr.bf16.mxu0 0
        %1700 = vmatpush1.bf16.msra.mxu0 %v1687
        %1701 = vmatprep.subr.bf16.mxu0 0
        %1702 = vmatpush1.bf16.msra.mxu0 %v1688
        %1703 = vmatprep.subr.bf16.mxu0 0
        %1704 = vmatpush1.bf16.msra.mxu0 %v1689
        %1705 = vmatprep.subr.bf16.mxu0 0
        %1706 = vmatpush1.bf16.msra.mxu0 %v1690
        %1707 = vmatprep.subr.bf16.mxu0 0
        %1708 = vmatpush1.bf16.msra.mxu0 0
        %1709 = vmatprep.subr.bf16.mxu0 0
        %1710 = vmatpush1.bf16.msra.mxu0 0
        %1711 = vmatprep.subr.bf16.mxu0 0
        %1712 = vmatpush1.bf16.msra.mxu0 0
        %1713 = vmatprep.subr.bf16.mxu0 0
        %1714 = vmatpush1.bf16.msra.mxu0 0
        %1715 = vmatprep.subr.bf16.mxu0 0
        %1716 = vmatpush1.bf16.msra.mxu0 0
        %1717 = vmatprep.subr.bf16.mxu0 0
        %1718 = vmatpush1.bf16.msra.mxu0 0
        %1719 = vmatprep.subr.bf16.mxu0 0
        %1720 = vmatpush1.bf16.msra.mxu0 0
        %1721 = vmatprep.subr.bf16.mxu0 0
        %1722 = vmatpush1.bf16.msra.mxu0 0
        %1723 = vmatprep.subr.bf16.mxu0 0
        %1724 = vmatpush1.bf16.msra.mxu0 0
        %1725 = vmatprep.subr.bf16.mxu0 0
        %1726 = vmatpush1.bf16.msra.mxu0 0
        %1727 = vmatprep.subr.bf16.mxu0 0
        %1728 = vmatpush1.bf16.msra.mxu0 0
        %1729 = vmatprep.subr.bf16.mxu0 0
        %1730 = vmatpush1.bf16.msra.mxu0 0
        %1731 = vmatprep.mubr.bf16.mxu0 0
        %1732 = vmatmul.mubr.bf16.gmra.mrb[0].mxu0 %v1697
        %v1733 = vpop.f32.mrb[0].mxu0
        %v1734 = vadd.f32 %v1669, %v1733
        %v1735 = vpop.f32.mrb[0].mxu0
        %v1736 = vpop.f32.mrb[0].mxu0
        %v1737 = vadd.f32 %v1669, %v1736
        %v1738 = vpop.f32.mrb[0].mxu0
        %1739 = vdwg.mxu0
        %v1740 = vadd.f32 %v1734, %v1533
        %v1741 = vadd.f32 %v1737, %v1534
        %v1742 = vld [vmem:[%s15] sm:$0x1]
        %v1743 = vld [vmem:[%s16] sm:$0x1]
        %v1744 = vsel %vm797, %v1740, 0.0
        %1745 = vadd.xlane.f32.xlu0 %v1744
        %v1746 = vpop.xlane.xlu0 %1745
        %v1747 = vsel %vm797, %v1741, 0.0
        %1748 = vadd.xlane.f32.xlu0 %v1747
        %v1749 = vpop.xlane.xlu0 %1748
        %v1750 = vmul.f32 %v1746, %v804
        %v1751 = vmul.f32 %v1749, %v804
        %v1752 = vsub.f32 %v1740, %v1750
        %v1753 = vsub.f32 %v1741, %v1751
        %v1754 = vmul.f32 %v1752, %v1752
        %v1755 = vmul.f32 %v1753, %v1753
        %v1756 = vsel %vm797, %v1754, 0.0
        %1757 = vadd.xlane.f32.xlu0 %v1756
        %v1758 = vpop.xlane.xlu0 %1757
        %v1759 = vsel %vm797, %v1755, 0.0
        %1760 = vadd.xlane.f32.xlu0 %v1759
        %v1761 = vpop.xlane.xlu0 %1760
        %v1762 = vmul.f32 %v1758, %v804
        %v1763 = vmul.f32 %v1761, %v804
        %v1764 = vadd.f32 %v1762, 1e-12
        %v1765 = vadd.f32 %v1763, 1e-12
        %v1766 = vrsqrt.pop %v1764
        %v1767 = vrsqrt.pop %v1765
        %v1768 = vmul.f32 %v1752, %v1766
        %v1769 = vmul.f32 %v1753, %v1767
        %v1771 = vlaneseq
        %v1772 = vshrl.u32 %v1771, 7
        %v1773 = vsub.s32 0, %v1772
        %v1774 = vrot.slane %v1742, %v1773
        %v1776 = vmul.f32 %v1768, %v1774
        %v1777 = vmul.f32 %v1769, %v1774
        %v1779 = vlaneseq
        %v1780 = vshrl.u32 %v1779, 7
        %v1781 = vsub.s32 0, %v1780
        %v1782 = vrot.slane %v1743, %v1781
        %v1784 = vadd.f32 %v1776, %v1782
        %v1785 = vadd.f32 %v1777, %v1782
        %v1786 = vpack.c.bf16 %v1785, %v1784
        %s1787 = scalar_lea.vmem %s5, 16
        %v1788 = vld [vmem:[%s1787] sm:$0xf]
        %v1789 = vld [vmem:[%s1787 + $0x4] sm:$0xf]
        %v1790 = vld [vmem:[%s1787 + $0x8] sm:$0xf]
        %v1791 = vld [vmem:[%s1787 + $0xc] sm:$0xf]
        %s1792 = scalar_lea.vmem %s6, 1
        %v1793 = vld [vmem:[%s1792] sm:$0x1]
        %v1795 = vlaneseq
        %v1796 = vshrl.u32 %v1795, 7
        %v1797 = vsub.s32 0, %v1796
        %v1798 = vrot.slane %v1793, %v1797
        %v1804 = vunpack.c.l.b16 %v1788
        %v1805 = vunpack.c.l.b16 %v1789
        %v1806 = vunpack.c.l.b16 %v1790
        %v1807 = vunpack.c.l.b16 %v1791
        %v1808 = vpack.c.b16 %v1805, %v1804
        %v1809 = vpack.c.b16 %v1807, %v1806
        %v1813 = vsel %vm797, %v1786, 0
        %1815 = vmatprep.subr.bf16.mxu0 0
        %1816 = vmatpush1.bf16.msra.mxu0 %v1808
        %1817 = vmatprep.subr.bf16.mxu0 0
        %1818 = vmatpush1.bf16.msra.mxu0 %v1809
        %1819 = vmatprep.subr.bf16.mxu0 0
        %1820 = vmatpush1.bf16.msra.mxu0 0
        %1821 = vmatprep.subr.bf16.mxu0 0
        %1822 = vmatpush1.bf16.msra.mxu0 0
        %1823 = vmatprep.subr.bf16.mxu0 0
        %1824 = vmatpush1.bf16.msra.mxu0 0
        %1825 = vmatprep.subr.bf16.mxu0 0
        %1826 = vmatpush1.bf16.msra.mxu0 0
        %1827 = vmatprep.subr.bf16.mxu0 0
        %1828 = vmatpush1.bf16.msra.mxu0 0
        %1829 = vmatprep.subr.bf16.mxu0 0
        %1830 = vmatpush1.bf16.msra.mxu0 0
        %1831 = vmatprep.subr.bf16.mxu0 0
        %1832 = vmatpush1.bf16.msra.mxu0 0
        %1833 = vmatprep.subr.bf16.mxu0 0
        %1834 = vmatpush1.bf16.msra.mxu0 0
        %1835 = vmatprep.subr.bf16.mxu0 0
        %1836 = vmatpush1.bf16.msra.mxu0 0
        %1837 = vmatprep.subr.bf16.mxu0 0
        %1838 = vmatpush1.bf16.msra.mxu0 0
        %1839 = vmatprep.subr.bf16.mxu0 0
        %1840 = vmatpush1.bf16.msra.mxu0 0
        %1841 = vmatprep.subr.bf16.mxu0 0
        %1842 = vmatpush1.bf16.msra.mxu0 0
        %1843 = vmatprep.subr.bf16.mxu0 0
        %1844 = vmatpush1.bf16.msra.mxu0 0
        %1845 = vmatprep.subr.bf16.mxu0 0
        %1846 = vmatpush1.bf16.msra.mxu0 0
        %1847 = vmatprep.mubr.bf16.mxu0 0
        %1848 = vmatmul.mubr.bf16.gmra.mrb[0].mxu0 %v1813
        %v1849 = vpop.f32.mrb[0].mxu0
        %v1850 = vadd.f32 %v1798, %v1849
        %v1851 = vpop.f32.mrb[0].mxu0
        %v1852 = vpop.f32.mrb[0].mxu0
        %v1853 = vadd.f32 %v1798, %v1852
        %v1854 = vpop.f32.mrb[0].mxu0
        %1855 = vdwg.mxu0
        %v1856 = vmul.f32 %v1850, 0.25
        %v1857 = vmul.f32 %v1853, 0.25
        %s1858 = scalar_lea.vmem %s7, 16
        %v1859 = vld [vmem:[%s1858] sm:$0xf]
        %v1860 = vld [vmem:[%s1858 + $0x4] sm:$0xf]
        %v1861 = vld [vmem:[%s1858 + $0x8] sm:$0xf]
        %v1862 = vld [vmem:[%s1858 + $0xc] sm:$0xf]
        %v1863 = vpack.c.bf16 %v1856, %v1856
        %v1864 = vpack.c.bf16 %v1857, %v1857
        %v1865 = vpack.c.bf16 %v1850, %v1850
        %v1866 = vpack.c.bf16 %v1853, %v1853
        %1868 = vrot.lane.b32.xlu0 %v1865, 96
        %v1869 = vpop.permute.xlu0 %1868
        %v1871 = vsel %vm922, %v1863, 0
        %v1874 = vsel %vm922, %v1869, 0
        %1876 = vmatprep.subr.bf16.mxu0 0
        %1877 = vmatpush1.bf16.xpose.msra.mxu0 %v1874
        %1878 = vmatprep.subr.bf16.mxu0 0
        %1879 = vmatpush1.bf16.xpose.msra.mxu0 0
        %1880 = vmatprep.subr.bf16.mxu0 0
        %1881 = vmatpush1.bf16.xpose.msra.mxu0 0
        %1882 = vmatprep.subr.bf16.mxu0 0
        %1883 = vmatpush1.bf16.xpose.msra.mxu0 0
        %1884 = vmatprep.subr.bf16.mxu0 0
        %1885 = vmatpush1.bf16.xpose.msra.mxu0 0
        %1886 = vmatprep.subr.bf16.mxu0 0
        %1887 = vmatpush1.bf16.xpose.msra.mxu0 0
        %1888 = vmatprep.subr.bf16.mxu0 0
        %1889 = vmatpush1.bf16.xpose.msra.mxu0 0
        %1890 = vmatprep.subr.bf16.mxu0 0
        %1891 = vmatpush1.bf16.xpose.msra.mxu0 0
        %1892 = vmatprep.subr.bf16.mxu0 0
        %1893 = vmatpush1.bf16.xpose.msra.mxu0 0
        %1894 = vmatprep.subr.bf16.mxu0 0
        %1895 = vmatpush1.bf16.xpose.msra.mxu0 0
        %1896 = vmatprep.subr.bf16.mxu0 0
        %1897 = vmatpush1.bf16.xpose.msra.mxu0 0
        %1898 = vmatprep.subr.bf16.mxu0 0
        %1899 = vmatpush1.bf16.xpose.msra.mxu0 0
        %1900 = vmatprep.subr.bf16.mxu0 0
        %1901 = vmatpush1.bf16.xpose.msra.mxu0 0
        %1902 = vmatprep.subr.bf16.mxu0 0
        %1903 = vmatpush1.bf16.xpose.msra.mxu0 0
        %1904 = vmatprep.subr.bf16.mxu0 0
        %1905 = vmatpush1.bf16.xpose.msra.mxu0 0
        %1906 = vmatprep.subr.bf16.mxu0 0
        %1907 = vmatpush1.bf16.xpose.msra.mxu0 0
        %1908 = vmatprep.mubr.bf16.mxu0 0
        %1909 = vmatmul.mubr.bf16.gmra.mrb[0].mxu0 %v1871
        %v1910 = vpop.f32.mrb[0].mxu0
        %v1911 = vadd.f32 %v786, %v1910
        %v1912 = vpop.f32.mrb[0].mxu0
        %v1913 = vpop.f32.mrb[0].mxu0
        %v1914 = vpop.f32.mrb[0].mxu0
        %1915 = vdwg.mxu0
        %1917 = vrot.lane.b32.xlu0 %v1866, 96
        %v1918 = vpop.permute.xlu0 %1917
        %v1920 = vsel %vm922, %v1864, 0
        %v1923 = vsel %vm922, %v1918, 0
        %1925 = vmatprep.subr.bf16.mxu0 0
        %1926 = vmatpush1.bf16.xpose.msra.mxu0 %v1923
        %1927 = vmatprep.subr.bf16.mxu0 0
        %1928 = vmatpush1.bf16.xpose.msra.mxu0 0
        %1929 = vmatprep.subr.bf16.mxu0 0
        %1930 = vmatpush1.bf16.xpose.msra.mxu0 0
        %1931 = vmatprep.subr.bf16.mxu0 0
        %1932 = vmatpush1.bf16.xpose.msra.mxu0 0
        %1933 = vmatprep.subr.bf16.mxu0 0
        %1934 = vmatpush1.bf16.xpose.msra.mxu0 0
        %1935 = vmatprep.subr.bf16.mxu0 0
        %1936 = vmatpush1.bf16.xpose.msra.mxu0 0
        %1937 = vmatprep.subr.bf16.mxu0 0
        %1938 = vmatpush1.bf16.xpose.msra.mxu0 0
        %1939 = vmatprep.subr.bf16.mxu0 0
        %1940 = vmatpush1.bf16.xpose.msra.mxu0 0
        %1941 = vmatprep.subr.bf16.mxu0 0
        %1942 = vmatpush1.bf16.xpose.msra.mxu0 0
        %1943 = vmatprep.subr.bf16.mxu0 0
        %1944 = vmatpush1.bf16.xpose.msra.mxu0 0
        %1945 = vmatprep.subr.bf16.mxu0 0
        %1946 = vmatpush1.bf16.xpose.msra.mxu0 0
        %1947 = vmatprep.subr.bf16.mxu0 0
        %1948 = vmatpush1.bf16.xpose.msra.mxu0 0
        %1949 = vmatprep.subr.bf16.mxu0 0
        %1950 = vmatpush1.bf16.xpose.msra.mxu0 0
        %1951 = vmatprep.subr.bf16.mxu0 0
        %1952 = vmatpush1.bf16.xpose.msra.mxu0 0
        %1953 = vmatprep.subr.bf16.mxu0 0
        %1954 = vmatpush1.bf16.xpose.msra.mxu0 0
        %1955 = vmatprep.subr.bf16.mxu0 0
        %1956 = vmatpush1.bf16.xpose.msra.mxu0 0
        %1957 = vmatprep.mubr.bf16.mxu0 0
        %1958 = vmatmul.mubr.bf16.gmra.mrb[0].mxu0 %v1920
        %v1959 = vpop.f32.mrb[0].mxu0
        %v1960 = vadd.f32 %v786, %v1959
        %v1961 = vpop.f32.mrb[0].mxu0
        %v1962 = vpop.f32.mrb[0].mxu0
        %v1963 = vpop.f32.mrb[0].mxu0
        %1964 = vdwg.mxu0
        %v1965 = vadd.f32 %v1911, %v1023
        %v1966 = vadd.f32 %v1960, %v1027
        %v1967 = vsel %vm1032, %v1965, -inf
        %1968 = vmax.xlane.f32.xlu0 %v1967
        %v1969 = vpop.xlane.xlu0 %1968
        %v1970 = vsel %vm1032, %v1966, -inf
        %1971 = vmax.xlane.f32.xlu0 %v1970
        %v1972 = vpop.xlane.xlu0 %1971
        %v1973 = vsub.f32 %v1965, %v1969
        %v1974 = vsub.f32 %v1966, %v1972
        %v1975 = vmul.f32 %v1973, 1.442695
        %v1976 = vpow.pop %v1975
        %v1977 = vmul.f32 %v1974, 1.442695
        %v1978 = vpow.pop %v1977
        %v1979 = vsel %vm1032, %v1976, 0.0
        %1980 = vadd.xlane.f32.xlu0 %v1979
        %v1981 = vpop.xlane.xlu0 %1980
        %v1982 = vsel %vm1032, %v1978, 0.0
        %1983 = vadd.xlane.f32.xlu0 %v1982
        %v1984 = vpop.xlane.xlu0 %1983
        %v1985 = vrcp.pop %v1981
        %v1986 = vrcp.pop %v1984
        %v1987 = vmul.f32 %v1976, %v1985
        %v1988 = vmul.f32 %v1978, %v1986
        %v1989 = vpack.c.bf16 %v1987, %v1987
        %v1990 = vpack.c.bf16 %v1988, %v1988
        %1991 = vrot.lane.b32.xlu0 %v1865, 64
        %v1992 = vpop.permute.xlu0 %1991
        %v1994 = vsel %vm1032, %v1989, 0
        %v1997 = vsel %vm1062, %v1992, 0
        %1999 = vmatprep.subr.bf16.mxu0 0
        %2000 = vmatpush1.bf16.msra.mxu0 %v1997
        %2001 = vmatprep.subr.bf16.mxu0 0
        %2002 = vmatpush1.bf16.msra.mxu0 0
        %2003 = vmatprep.subr.bf16.mxu0 0
        %2004 = vmatpush1.bf16.msra.mxu0 0
        %2005 = vmatprep.subr.bf16.mxu0 0
        %2006 = vmatpush1.bf16.msra.mxu0 0
        %2007 = vmatprep.subr.bf16.mxu0 0
        %2008 = vmatpush1.bf16.msra.mxu0 0
        %2009 = vmatprep.subr.bf16.mxu0 0
        %2010 = vmatpush1.bf16.msra.mxu0 0
        %2011 = vmatprep.subr.bf16.mxu0 0
        %2012 = vmatpush1.bf16.msra.mxu0 0
        %2013 = vmatprep.subr.bf16.mxu0 0
        %2014 = vmatpush1.bf16.msra.mxu0 0
        %2015 = vmatprep.subr.bf16.mxu0 0
        %2016 = vmatpush1.bf16.msra.mxu0 0
        %2017 = vmatprep.subr.bf16.mxu0 0
        %2018 = vmatpush1.bf16.msra.mxu0 0
        %2019 = vmatprep.subr.bf16.mxu0 0
        %2020 = vmatpush1.bf16.msra.mxu0 0
        %2021 = vmatprep.subr.bf16.mxu0 0
        %2022 = vmatpush1.bf16.msra.mxu0 0
        %2023 = vmatprep.subr.bf16.mxu0 0
        %2024 = vmatpush1.bf16.msra.mxu0 0
        %2025 = vmatprep.subr.bf16.mxu0 0
        %2026 = vmatpush1.bf16.msra.mxu0 0
        %2027 = vmatprep.subr.bf16.mxu0 0
        %2028 = vmatpush1.bf16.msra.mxu0 0
        %2029 = vmatprep.subr.bf16.mxu0 0
        %2030 = vmatpush1.bf16.msra.mxu0 0
        %2031 = vmatprep.mubr.bf16.mxu0 0
        %2032 = vmatmul.mubr.bf16.gmra.mrb[0].mxu0 %v1994
        %v2033 = vpop.f32.mrb[0].mxu0
        %v2034 = vadd.f32 0.0, %v2033
        %v2035 = vpop.f32.mrb[0].mxu0
        %v2036 = vpop.f32.mrb[0].mxu0
        %v2037 = vpop.f32.mrb[0].mxu0
        %2038 = vdwg.mxu0
        %2039 = vrot.lane.b32.xlu0 %v1866, 64
        %v2040 = vpop.permute.xlu0 %2039
        %v2042 = vsel %vm1032, %v1990, 0
        %v2045 = vsel %vm1062, %v2040, 0
        %2047 = vmatprep.subr.bf16.mxu0 0
        %2048 = vmatpush1.bf16.msra.mxu0 %v2045
        %2049 = vmatprep.subr.bf16.mxu0 0
        %2050 = vmatpush1.bf16.msra.mxu0 0
        %2051 = vmatprep.subr.bf16.mxu0 0
        %2052 = vmatpush1.bf16.msra.mxu0 0
        %2053 = vmatprep.subr.bf16.mxu0 0
        %2054 = vmatpush1.bf16.msra.mxu0 0
        %2055 = vmatprep.subr.bf16.mxu0 0
        %2056 = vmatpush1.bf16.msra.mxu0 0
        %2057 = vmatprep.subr.bf16.mxu0 0
        %2058 = vmatpush1.bf16.msra.mxu0 0
        %2059 = vmatprep.subr.bf16.mxu0 0
        %2060 = vmatpush1.bf16.msra.mxu0 0
        %2061 = vmatprep.subr.bf16.mxu0 0
        %2062 = vmatpush1.bf16.msra.mxu0 0
        %2063 = vmatprep.subr.bf16.mxu0 0
        %2064 = vmatpush1.bf16.msra.mxu0 0
        %2065 = vmatprep.subr.bf16.mxu0 0
        %2066 = vmatpush1.bf16.msra.mxu0 0
        %2067 = vmatprep.subr.bf16.mxu0 0
        %2068 = vmatpush1.bf16.msra.mxu0 0
        %2069 = vmatprep.subr.bf16.mxu0 0
        %2070 = vmatpush1.bf16.msra.mxu0 0
        %2071 = vmatprep.subr.bf16.mxu0 0
        %2072 = vmatpush1.bf16.msra.mxu0 0
        %2073 = vmatprep.subr.bf16.mxu0 0
        %2074 = vmatpush1.bf16.msra.mxu0 0
        %2075 = vmatprep.subr.bf16.mxu0 0
        %2076 = vmatpush1.bf16.msra.mxu0 0
        %2077 = vmatprep.subr.bf16.mxu0 0
        %2078 = vmatpush1.bf16.msra.mxu0 0
        %2079 = vmatprep.mubr.bf16.mxu0 0
        %2080 = vmatmul.mubr.bf16.gmra.mrb[0].mxu0 %v2042
        %v2081 = vpop.f32.mrb[0].mxu0
        %v2082 = vadd.f32 0.0, %v2081
        %v2083 = vpop.f32.mrb[0].mxu0
        %v2084 = vpop.f32.mrb[0].mxu0
        %v2085 = vpop.f32.mrb[0].mxu0
        %2086 = vdwg.mxu0
        %v2087 = vpack.c.bf16 %v2082, %v2034
        %2089 = vrot.lane.b32.xlu0 %v1863, 112
        %v2090 = vpop.permute.xlu0 %2089
        %2091 = vrot.lane.b32.xlu0 %v1865, 80
        %v2092 = vpop.permute.xlu0 %2091
        %v2094 = vsel %vm922, %v2090, 0
        %v2097 = vsel %vm922, %v2092, 0
        %2099 = vmatprep.subr.bf16.mxu0 0
        %2100 = vmatpush1.bf16.xpose.msra.mxu0 %v2097
        %2101 = vmatprep.subr.bf16.mxu0 0
        %2102 = vmatpush1.bf16.xpose.msra.mxu0 0
        %2103 = vmatprep.subr.bf16.mxu0 0
        %2104 = vmatpush1.bf16.xpose.msra.mxu0 0
        %2105 = vmatprep.subr.bf16.mxu0 0
        %2106 = vmatpush1.bf16.xpose.msra.mxu0 0
        %2107 = vmatprep.subr.bf16.mxu0 0
        %2108 = vmatpush1.bf16.xpose.msra.mxu0 0
        %2109 = vmatprep.subr.bf16.mxu0 0
        %2110 = vmatpush1.bf16.xpose.msra.mxu0 0
        %2111 = vmatprep.subr.bf16.mxu0 0
        %2112 = vmatpush1.bf16.xpose.msra.mxu0 0
        %2113 = vmatprep.subr.bf16.mxu0 0
        %2114 = vmatpush1.bf16.xpose.msra.mxu0 0
        %2115 = vmatprep.subr.bf16.mxu0 0
        %2116 = vmatpush1.bf16.xpose.msra.mxu0 0
        %2117 = vmatprep.subr.bf16.mxu0 0
        %2118 = vmatpush1.bf16.xpose.msra.mxu0 0
        %2119 = vmatprep.subr.bf16.mxu0 0
        %2120 = vmatpush1.bf16.xpose.msra.mxu0 0
        %2121 = vmatprep.subr.bf16.mxu0 0
        %2122 = vmatpush1.bf16.xpose.msra.mxu0 0
        %2123 = vmatprep.subr.bf16.mxu0 0
        %2124 = vmatpush1.bf16.xpose.msra.mxu0 0
        %2125 = vmatprep.subr.bf16.mxu0 0
        %2126 = vmatpush1.bf16.xpose.msra.mxu0 0
        %2127 = vmatprep.subr.bf16.mxu0 0
        %2128 = vmatpush1.bf16.xpose.msra.mxu0 0
        %2129 = vmatprep.subr.bf16.mxu0 0
        %2130 = vmatpush1.bf16.xpose.msra.mxu0 0
        %2131 = vmatprep.mubr.bf16.mxu0 0
        %2132 = vmatmul.mubr.bf16.gmra.mrb[0].mxu0 %v2094
        %v2133 = vpop.f32.mrb[0].mxu0
        %v2134 = vadd.f32 %v786, %v2133
        %v2135 = vpop.f32.mrb[0].mxu0
        %v2136 = vpop.f32.mrb[0].mxu0
        %v2137 = vpop.f32.mrb[0].mxu0
        %2138 = vdwg.mxu0
        %2140 = vrot.lane.b32.xlu0 %v1864, 112
        %v2141 = vpop.permute.xlu0 %2140
        %2142 = vrot.lane.b32.xlu0 %v1866, 80
        %v2143 = vpop.permute.xlu0 %2142
        %v2145 = vsel %vm922, %v2141, 0
        %v2148 = vsel %vm922, %v2143, 0
        %2150 = vmatprep.subr.bf16.mxu0 0
        %2151 = vmatpush1.bf16.xpose.msra.mxu0 %v2148
        %2152 = vmatprep.subr.bf16.mxu0 0
        %2153 = vmatpush1.bf16.xpose.msra.mxu0 0
        %2154 = vmatprep.subr.bf16.mxu0 0
        %2155 = vmatpush1.bf16.xpose.msra.mxu0 0
        %2156 = vmatprep.subr.bf16.mxu0 0
        %2157 = vmatpush1.bf16.xpose.msra.mxu0 0
        %2158 = vmatprep.subr.bf16.mxu0 0
        %2159 = vmatpush1.bf16.xpose.msra.mxu0 0
        %2160 = vmatprep.subr.bf16.mxu0 0
        %2161 = vmatpush1.bf16.xpose.msra.mxu0 0
        %2162 = vmatprep.subr.bf16.mxu0 0
        %2163 = vmatpush1.bf16.xpose.msra.mxu0 0
        %2164 = vmatprep.subr.bf16.mxu0 0
        %2165 = vmatpush1.bf16.xpose.msra.mxu0 0
        %2166 = vmatprep.subr.bf16.mxu0 0
        %2167 = vmatpush1.bf16.xpose.msra.mxu0 0
        %2168 = vmatprep.subr.bf16.mxu0 0
        %2169 = vmatpush1.bf16.xpose.msra.mxu0 0
        %2170 = vmatprep.subr.bf16.mxu0 0
        %2171 = vmatpush1.bf16.xpose.msra.mxu0 0
        %2172 = vmatprep.subr.bf16.mxu0 0
        %2173 = vmatpush1.bf16.xpose.msra.mxu0 0
        %2174 = vmatprep.subr.bf16.mxu0 0
        %2175 = vmatpush1.bf16.xpose.msra.mxu0 0
        %2176 = vmatprep.subr.bf16.mxu0 0
        %2177 = vmatpush1.bf16.xpose.msra.mxu0 0
        %2178 = vmatprep.subr.bf16.mxu0 0
        %2179 = vmatpush1.bf16.xpose.msra.mxu0 0
        %2180 = vmatprep.subr.bf16.mxu0 0
        %2181 = vmatpush1.bf16.xpose.msra.mxu0 0
        %2182 = vmatprep.mubr.bf16.mxu0 0
        %2183 = vmatmul.mubr.bf16.gmra.mrb[0].mxu0 %v2145
        %v2184 = vpop.f32.mrb[0].mxu0
        %v2185 = vadd.f32 %v786, %v2184
        %v2186 = vpop.f32.mrb[0].mxu0
        %v2187 = vpop.f32.mrb[0].mxu0
        %v2188 = vpop.f32.mrb[0].mxu0
        %2189 = vdwg.mxu0
        %v2190 = vadd.f32 %v2134, %v1023
        %v2191 = vadd.f32 %v2185, %v1027
        %v2192 = vsel %vm1032, %v2190, -inf
        %2193 = vmax.xlane.f32.xlu0 %v2192
        %v2194 = vpop.xlane.xlu0 %2193
        %v2195 = vsel %vm1032, %v2191, -inf
        %2196 = vmax.xlane.f32.xlu0 %v2195
        %v2197 = vpop.xlane.xlu0 %2196
        %v2198 = vsub.f32 %v2190, %v2194
        %v2199 = vsub.f32 %v2191, %v2197
        %v2200 = vmul.f32 %v2198, 1.442695
        %v2201 = vpow.pop %v2200
        %v2202 = vmul.f32 %v2199, 1.442695
        %v2203 = vpow.pop %v2202
        %v2204 = vsel %vm1032, %v2201, 0.0
        %2205 = vadd.xlane.f32.xlu0 %v2204
        %v2206 = vpop.xlane.xlu0 %2205
        %v2207 = vsel %vm1032, %v2203, 0.0
        %2208 = vadd.xlane.f32.xlu0 %v2207
        %v2209 = vpop.xlane.xlu0 %2208
        %v2210 = vrcp.pop %v2206
        %v2211 = vrcp.pop %v2209
        %v2212 = vmul.f32 %v2201, %v2210
        %v2213 = vmul.f32 %v2203, %v2211
        %v2214 = vpack.c.bf16 %v2212, %v2212
        %v2215 = vpack.c.bf16 %v2213, %v2213
        %2216 = vrot.lane.b32.xlu0 %v1865, 48
        %v2217 = vpop.permute.xlu0 %2216
        %v2219 = vsel %vm1032, %v2214, 0
        %v2222 = vsel %vm1062, %v2217, 0
        %2224 = vmatprep.subr.bf16.mxu0 0
        %2225 = vmatpush1.bf16.msra.mxu0 %v2222
        %2226 = vmatprep.subr.bf16.mxu0 0
        %2227 = vmatpush1.bf16.msra.mxu0 0
        %2228 = vmatprep.subr.bf16.mxu0 0
        %2229 = vmatpush1.bf16.msra.mxu0 0
        %2230 = vmatprep.subr.bf16.mxu0 0
        %2231 = vmatpush1.bf16.msra.mxu0 0
        %2232 = vmatprep.subr.bf16.mxu0 0
        %2233 = vmatpush1.bf16.msra.mxu0 0
        %2234 = vmatprep.subr.bf16.mxu0 0
        %2235 = vmatpush1.bf16.msra.mxu0 0
        %2236 = vmatprep.subr.bf16.mxu0 0
        %2237 = vmatpush1.bf16.msra.mxu0 0
        %2238 = vmatprep.subr.bf16.mxu0 0
        %2239 = vmatpush1.bf16.msra.mxu0 0
        %2240 = vmatprep.subr.bf16.mxu0 0
        %2241 = vmatpush1.bf16.msra.mxu0 0
        %2242 = vmatprep.subr.bf16.mxu0 0
        %2243 = vmatpush1.bf16.msra.mxu0 0
        %2244 = vmatprep.subr.bf16.mxu0 0
        %2245 = vmatpush1.bf16.msra.mxu0 0
        %2246 = vmatprep.subr.bf16.mxu0 0
        %2247 = vmatpush1.bf16.msra.mxu0 0
        %2248 = vmatprep.subr.bf16.mxu0 0
        %2249 = vmatpush1.bf16.msra.mxu0 0
        %2250 = vmatprep.subr.bf16.mxu0 0
        %2251 = vmatpush1.bf16.msra.mxu0 0
        %2252 = vmatprep.subr.bf16.mxu0 0
        %2253 = vmatpush1.bf16.msra.mxu0 0
        %2254 = vmatprep.subr.bf16.mxu0 0
        %2255 = vmatpush1.bf16.msra.mxu0 0
        %2256 = vmatprep.mubr.bf16.mxu0 0
        %2257 = vmatmul.mubr.bf16.gmra.mrb[0].mxu0 %v2219
        %v2258 = vpop.f32.mrb[0].mxu0
        %v2259 = vadd.f32 0.0, %v2258
        %v2260 = vpop.f32.mrb[0].mxu0
        %v2261 = vpop.f32.mrb[0].mxu0
        %v2262 = vpop.f32.mrb[0].mxu0
        %2263 = vdwg.mxu0
        %2264 = vrot.lane.b32.xlu0 %v1866, 48
        %v2265 = vpop.permute.xlu0 %2264
        %v2267 = vsel %vm1032, %v2215, 0
        %v2270 = vsel %vm1062, %v2265, 0
        %2272 = vmatprep.subr.bf16.mxu0 0
        %2273 = vmatpush1.bf16.msra.mxu0 %v2270
        %2274 = vmatprep.subr.bf16.mxu0 0
        %2275 = vmatpush1.bf16.msra.mxu0 0
        %2276 = vmatprep.subr.bf16.mxu0 0
        %2277 = vmatpush1.bf16.msra.mxu0 0
        %2278 = vmatprep.subr.bf16.mxu0 0
        %2279 = vmatpush1.bf16.msra.mxu0 0
        %2280 = vmatprep.subr.bf16.mxu0 0
        %2281 = vmatpush1.bf16.msra.mxu0 0
        %2282 = vmatprep.subr.bf16.mxu0 0
        %2283 = vmatpush1.bf16.msra.mxu0 0
        %2284 = vmatprep.subr.bf16.mxu0 0
        %2285 = vmatpush1.bf16.msra.mxu0 0
        %2286 = vmatprep.subr.bf16.mxu0 0
        %2287 = vmatpush1.bf16.msra.mxu0 0
        %2288 = vmatprep.subr.bf16.mxu0 0
        %2289 = vmatpush1.bf16.msra.mxu0 0
        %2290 = vmatprep.subr.bf16.mxu0 0
        %2291 = vmatpush1.bf16.msra.mxu0 0
        %2292 = vmatprep.subr.bf16.mxu0 0
        %2293 = vmatpush1.bf16.msra.mxu0 0
        %2294 = vmatprep.subr.bf16.mxu0 0
        %2295 = vmatpush1.bf16.msra.mxu0 0
        %2296 = vmatprep.subr.bf16.mxu0 0
        %2297 = vmatpush1.bf16.msra.mxu0 0
        %2298 = vmatprep.subr.bf16.mxu0 0
        %2299 = vmatpush1.bf16.msra.mxu0 0
        %2300 = vmatprep.subr.bf16.mxu0 0
        %2301 = vmatpush1.bf16.msra.mxu0 0
        %2302 = vmatprep.subr.bf16.mxu0 0
        %2303 = vmatpush1.bf16.msra.mxu0 0
        %2304 = vmatprep.mubr.bf16.mxu0 0
        %2305 = vmatmul.mubr.bf16.gmra.mrb[0].mxu0 %v2267
        %v2306 = vpop.f32.mrb[0].mxu0
        %v2307 = vadd.f32 0.0, %v2306
        %v2308 = vpop.f32.mrb[0].mxu0
        %v2309 = vpop.f32.mrb[0].mxu0
        %v2310 = vpop.f32.mrb[0].mxu0
        %2311 = vdwg.mxu0
        %v2312 = vpack.c.bf16 %v2307, %v2259
        %v2315 = vunpack.c.l.b16 %v1861
        %v2316 = vunpack.c.l.b16 %v1862
        %v2317 = vpack.c.b16 %v2316, %v2315
        %v2320 = vsel %vm922, %v2312, 0
        %2322 = vmatprep.subr.bf16.mxu0 0
        %2323 = vmatpush1.bf16.msra.mxu0 %v2317
        %2324 = vmatprep.subr.bf16.mxu0 0
        %2325 = vmatpush1.bf16.msra.mxu0 0
        %2326 = vmatprep.subr.bf16.mxu0 0
        %2327 = vmatpush1.bf16.msra.mxu0 0
        %2328 = vmatprep.subr.bf16.mxu0 0
        %2329 = vmatpush1.bf16.msra.mxu0 0
        %2330 = vmatprep.subr.bf16.mxu0 0
        %2331 = vmatpush1.bf16.msra.mxu0 0
        %2332 = vmatprep.subr.bf16.mxu0 0
        %2333 = vmatpush1.bf16.msra.mxu0 0
        %2334 = vmatprep.subr.bf16.mxu0 0
        %2335 = vmatpush1.bf16.msra.mxu0 0
        %2336 = vmatprep.subr.bf16.mxu0 0
        %2337 = vmatpush1.bf16.msra.mxu0 0
        %2338 = vmatprep.subr.bf16.mxu0 0
        %2339 = vmatpush1.bf16.msra.mxu0 0
        %2340 = vmatprep.subr.bf16.mxu0 0
        %2341 = vmatpush1.bf16.msra.mxu0 0
        %2342 = vmatprep.subr.bf16.mxu0 0
        %2343 = vmatpush1.bf16.msra.mxu0 0
        %2344 = vmatprep.subr.bf16.mxu0 0
        %2345 = vmatpush1.bf16.msra.mxu0 0
        %2346 = vmatprep.subr.bf16.mxu0 0
        %2347 = vmatpush1.bf16.msra.mxu0 0
        %2348 = vmatprep.subr.bf16.mxu0 0
        %2349 = vmatpush1.bf16.msra.mxu0 0
        %2350 = vmatprep.subr.bf16.mxu0 0
        %2351 = vmatpush1.bf16.msra.mxu0 0
        %2352 = vmatprep.subr.bf16.mxu0 0
        %2353 = vmatpush1.bf16.msra.mxu0 0
        %2354 = vmatprep.mubr.bf16.mxu0 0
        %2355 = vmatmul.mubr.bf16.gmra.mrb[0].mxu0 %v2320
        %v2356 = vpop.f32.mrb[0].mxu0
        %v2357 = vadd.f32 0.0, %v2356
        %v2358 = vpop.f32.mrb[0].mxu0
        %v2359 = vpop.f32.mrb[0].mxu0
        %v2360 = vadd.f32 0.0, %v2359
        %v2361 = vpop.f32.mrb[0].mxu0
        %2362 = vdwg.mxu0
        %v2365 = vunpack.c.l.b16 %v1859
        %v2366 = vunpack.c.l.b16 %v1860
        %v2367 = vpack.c.b16 %v2366, %v2365
        %v2370 = vsel %vm922, %v2087, 0
        %2372 = vmatprep.subr.bf16.mxu0 0
        %2373 = vmatpush1.bf16.msra.mxu0 %v2367
        %2374 = vmatprep.subr.bf16.mxu0 0
        %2375 = vmatpush1.bf16.msra.mxu0 0
        %2376 = vmatprep.subr.bf16.mxu0 0
        %2377 = vmatpush1.bf16.msra.mxu0 0
        %2378 = vmatprep.subr.bf16.mxu0 0
        %2379 = vmatpush1.bf16.msra.mxu0 0
        %2380 = vmatprep.subr.bf16.mxu0 0
        %2381 = vmatpush1.bf16.msra.mxu0 0
        %2382 = vmatprep.subr.bf16.mxu0 0
        %2383 = vmatpush1.bf16.msra.mxu0 0
        %2384 = vmatprep.subr.bf16.mxu0 0
        %2385 = vmatpush1.bf16.msra.mxu0 0
        %2386 = vmatprep.subr.bf16.mxu0 0
        %2387 = vmatpush1.bf16.msra.mxu0 0
        %2388 = vmatprep.subr.bf16.mxu0 0
        %2389 = vmatpush1.bf16.msra.mxu0 0
        %2390 = vmatprep.subr.bf16.mxu0 0
        %2391 = vmatpush1.bf16.msra.mxu0 0
        %2392 = vmatprep.subr.bf16.mxu0 0
        %2393 = vmatpush1.bf16.msra.mxu0 0
        %2394 = vmatprep.subr.bf16.mxu0 0
        %2395 = vmatpush1.bf16.msra.mxu0 0
        %2396 = vmatprep.subr.bf16.mxu0 0
        %2397 = vmatpush1.bf16.msra.mxu0 0
        %2398 = vmatprep.subr.bf16.mxu0 0
        %2399 = vmatpush1.bf16.msra.mxu0 0
        %2400 = vmatprep.subr.bf16.mxu0 0
        %2401 = vmatpush1.bf16.msra.mxu0 0
        %2402 = vmatprep.subr.bf16.mxu0 0
        %2403 = vmatpush1.bf16.msra.mxu0 0
        %2404 = vmatprep.mubr.bf16.mxu0 0
        %2405 = vmatmul.mubr.bf16.gmra.mrb[0].mxu0 %v2370
        %v2406 = vpop.f32.mrb[0].mxu0
        %v2407 = vadd.f32 %v2357, %v2406
        %v2408 = vpop.f32.mrb[0].mxu0
        %v2409 = vpop.f32.mrb[0].mxu0
        %v2410 = vadd.f32 %v2360, %v2409
        %v2411 = vpop.f32.mrb[0].mxu0
        %2412 = vdwg.mxu0
        %s2413 = scalar_lea.vmem %s8, 1
        %v2414 = vld [vmem:[%s2413] sm:$0x1]
        %v2416 = vlaneseq
        %v2417 = vshrl.u32 %v2416, 7
        %v2418 = vsub.s32 0, %v2417
        %v2419 = vrot.slane %v2414, %v2418
        %v2421 = vadd.f32 %v2407, %v2419
        %v2422 = vadd.f32 %v2410, %v2419
        %v2423 = vadd.f32 %v2421, %v1784
        %v2424 = vadd.f32 %v2422, %v1785
        %s2425 = scalar_lea.vmem %s9, 1
        %v2426 = vld [vmem:[%s2425] sm:$0x1]
        %s2427 = scalar_lea.vmem [#allocation5], 1
        %v2428 = vld [vmem:[%s2427] sm:$0x1]
        %v2429 = vsel %vm797, %v2423, 0.0
        %2430 = vadd.xlane.f32.xlu0 %v2429
        %v2431 = vpop.xlane.xlu0 %2430
        %v2432 = vsel %vm797, %v2424, 0.0
        %2433 = vadd.xlane.f32.xlu0 %v2432
        %v2434 = vpop.xlane.xlu0 %2433
        %v2435 = vmul.f32 %v2431, %v804
        %v2436 = vmul.f32 %v2434, %v804
        %v2437 = vsub.f32 %v2423, %v2435
        %v2438 = vsub.f32 %v2424, %v2436
        %v2439 = vmul.f32 %v2437, %v2437
        %v2440 = vmul.f32 %v2438, %v2438
        %v2441 = vsel %vm797, %v2439, 0.0
        %2442 = vadd.xlane.f32.xlu0 %v2441
        %v2443 = vpop.xlane.xlu0 %2442
        %v2444 = vsel %vm797, %v2440, 0.0
        %2445 = vadd.xlane.f32.xlu0 %v2444
        %v2446 = vpop.xlane.xlu0 %2445
        %v2447 = vmul.f32 %v2443, %v804
        %v2448 = vmul.f32 %v2446, %v804
        %v2449 = vadd.f32 %v2447, 1e-12
        %v2450 = vadd.f32 %v2448, 1e-12
        %v2451 = vrsqrt.pop %v2449
        %v2452 = vrsqrt.pop %v2450
        %v2453 = vmul.f32 %v2437, %v2451
        %v2454 = vmul.f32 %v2438, %v2452
        %v2456 = vlaneseq
        %v2457 = vshrl.u32 %v2456, 7
        %v2458 = vsub.s32 0, %v2457
        %v2459 = vrot.slane %v2426, %v2458
        %v2461 = vmul.f32 %v2453, %v2459
        %v2462 = vmul.f32 %v2454, %v2459
        %v2464 = vlaneseq
        %v2465 = vshrl.u32 %v2464, 7
        %v2466 = vsub.s32 0, %v2465
        %v2467 = vrot.slane %v2428, %v2466
        %v2469 = vadd.f32 %v2461, %v2467
        %v2470 = vadd.f32 %v2462, %v2467
        %v2471 = vpack.c.bf16 %v2470, %v2469
        %s2472 = scalar_lea.vmem [#allocation7], 16
        %v2473 = vld [vmem:[%s2472] sm:$0xf]
        %v2474 = vld [vmem:[%s2472 + $0x4] sm:$0xf]
        %v2475 = vld [vmem:[%s2472 + $0x8] sm:$0xf]
        %v2476 = vld [vmem:[%s2472 + $0xc] sm:$0xf]
        %s2477 = scalar_lea.vmem [#allocation8], 1
        %v2478 = vld [vmem:[%s2477] sm:$0x1]
        %v2480 = vlaneseq
        %v2481 = vshrl.u32 %v2480, 7
        %v2482 = vsub.s32 0, %v2481
        %v2483 = vrot.slane %v2478, %v2482
        %v2489 = vunpack.c.l.b16 %v2473
        %v2490 = vunpack.c.l.b16 %v2474
        %v2491 = vunpack.c.l.b16 %v2475
        %v2492 = vunpack.c.l.b16 %v2476
        %v2493 = vpack.c.b16 %v2490, %v2489
        %v2494 = vpack.c.b16 %v2492, %v2491
        %v2498 = vsel %vm797, %v2471, 0
        %2500 = vmatprep.subr.bf16.mxu0 0
        %2501 = vmatpush1.bf16.msra.mxu0 %v2493
        %2502 = vmatprep.subr.bf16.mxu0 0
        %2503 = vmatpush1.bf16.msra.mxu0 %v2494
        %2504 = vmatprep.subr.bf16.mxu0 0
        %2505 = vmatpush1.bf16.msra.mxu0 0
        %2506 = vmatprep.subr.bf16.mxu0 0
        %2507 = vmatpush1.bf16.msra.mxu0 0
        %2508 = vmatprep.subr.bf16.mxu0 0
        %2509 = vmatpush1.bf16.msra.mxu0 0
        %2510 = vmatprep.subr.bf16.mxu0 0
        %2511 = vmatpush1.bf16.msra.mxu0 0
        %2512 = vmatprep.subr.bf16.mxu0 0
        %2513 = vmatpush1.bf16.msra.mxu0 0
        %2514 = vmatprep.subr.bf16.mxu0 0
        %2515 = vmatpush1.bf16.msra.mxu0 0
        %2516 = vmatprep.subr.bf16.mxu0 0
        %2517 = vmatpush1.bf16.msra.mxu0 0
        %2518 = vmatprep.subr.bf16.mxu0 0
        %2519 = vmatpush1.bf16.msra.mxu0 0
        %2520 = vmatprep.subr.bf16.mxu0 0
        %2521 = vmatpush1.bf16.msra.mxu0 0
        %2522 = vmatprep.subr.bf16.mxu0 0
        %2523 = vmatpush1.bf16.msra.mxu0 0
        %2524 = vmatprep.subr.bf16.mxu0 0
        %2525 = vmatpush1.bf16.msra.mxu0 0
        %2526 = vmatprep.subr.bf16.mxu0 0
        %2527 = vmatpush1.bf16.msra.mxu0 0
        %2528 = vmatprep.subr.bf16.mxu0 0
        %2529 = vmatpush1.bf16.msra.mxu0 0
        %2530 = vmatprep.subr.bf16.mxu0 0
        %2531 = vmatpush1.bf16.msra.mxu0 0
        %2532 = vmatprep.mubr.bf16.mxu0 0
        %2533 = vmatmul.mubr.bf16.gmra.mrb[0].mxu0 %v2498
        %v2534 = vpop.f32.mrb[0].mxu0
        %v2535 = vadd.f32 %v2483, %v2534
        %v2536 = vpop.f32.mrb[0].mxu0
        %v2537 = vpop.f32.mrb[0].mxu0
        %v2538 = vadd.f32 %v2483, %v2537
        %v2539 = vpop.f32.mrb[0].mxu0
        %2540 = vdwg.mxu0
        %v2541 = vmul.f32 %v2535, 0.70710677
        %v2542 = vmul.f32 %v2538, 0.70710677
        %v2543 = vand.u32 2147483647, %v2541
        %v2544 = vand.u32 2147483647, %v2542
        %v2545 = vmul.f32 %v2543, 0.3275911
        %v2546 = vmul.f32 %v2544, 0.3275911
        %v2547 = vadd.f32 %v2545, 1.0
        %v2548 = vadd.f32 %v2546, 1.0
        %v2549 = vrcp.pop %v2547
        %v2550 = vrcp.pop %v2548
        %v2551 = vmul.f32 %v2549, 1.0614054
        %v2552 = vmul.f32 %v2550, 1.0614054
        %v2553 = vadd.f32 %v2551, -1.4531521
        %v2554 = vadd.f32 %v2552, -1.4531521
        %v2555 = vmul.f32 %v2553, %v2549
        %v2556 = vmul.f32 %v2554, %v2550
        %v2557 = vadd.f32 %v2555, 1.4214138
        %v2558 = vadd.f32 %v2556, 1.4214138
        %v2559 = vmul.f32 %v2557, %v2549
        %v2560 = vmul.f32 %v2558, %v2550
        %v2561 = vadd.f32 %v2559, -0.28449672
        %v2562 = vadd.f32 %v2560, -0.28449672
        %v2563 = vmul.f32 %v2561, %v2549
        %v2564 = vmul.f32 %v2562, %v2550
        %v2565 = vadd.f32 %v2563, 0.2548296
        %v2566 = vadd.f32 %v2564, 0.2548296
        %v2567 = vmul.f32 %v2565, %v2549
        %v2568 = vmul.f32 %v2566, %v2550
        %v2569 = vsub.f32 0.0, %v2543
        %v2570 = vsub.f32 0.0, %v2544
        %v2571 = vmul.f32 %v2569, %v2543
        %v2572 = vmul.f32 %v2570, %v2544
        %v2573 = vmul.f32 %v2571, 1.442695
        %v2574 = vpow.pop %v2573
        %v2575 = vmul.f32 %v2572, 1.442695
        %v2576 = vpow.pop %v2575
        %v2577 = vmul.f32 %v2567, %v2574
        %v2578 = vmul.f32 %v2568, %v2576
        %v2579 = vsub.f32 1.0, %v2577
        %v2580 = vsub.f32 1.0, %v2578
        %vm2581 = vcmp.ge.f32.partialorder %v2541, 0.0
        %vm2582 = vcmp.ge.f32.partialorder %v2542, 0.0
        %v2583 = vsel %vm2581, 1.0, -1.0
        %v2584 = vsel %vm2582, 1.0, -1.0
        %v2585 = vmul.f32 %v2583, %v2579
        %v2586 = vmul.f32 %v2584, %v2580
        %v2587 = vmul.f32 %v2535, 0.5
        %v2588 = vmul.f32 %v2538, 0.5
        %v2589 = vadd.f32 %v2585, 1.0
        %v2590 = vadd.f32 %v2586, 1.0
        %v2591 = vmul.f32 %v2587, %v2589
        %v2592 = vmul.f32 %v2588, %v2590
        %v2593 = vpack.c.bf16 %v2592, %v2591
        %s2594 = scalar_lea.vmem %s13, 32
        %v2595 = vld [vmem:[%s2594] sm:$0xf]
        %v2596 = vld [vmem:[%s2594 + $0x4] sm:$0xf]
        %v2597 = vld [vmem:[%s2594 + $0x8] sm:$0xf]
        %v2598 = vld [vmem:[%s2594 + $0xc] sm:$0xf]
        %v2599 = vld [vmem:[%s2594 + $0x10] sm:$0xf]
        %v2600 = vld [vmem:[%s2594 + $0x14] sm:$0xf]
        %v2601 = vld [vmem:[%s2594 + $0x18] sm:$0xf]
        %v2602 = vld [vmem:[%s2594 + $0x1c] sm:$0xf]
        %s2603 = scalar_lea.vmem %s14, 1
        %v2604 = vld [vmem:[%s2603] sm:$0x1]
        %v2606 = vlaneseq
        %v2607 = vshrl.u32 %v2606, 7
        %v2608 = vsub.s32 0, %v2607
        %v2609 = vrot.slane %v2604, %v2608
        %v2619 = vunpack.c.l.b16 %v2595
        %v2620 = vunpack.c.l.b16 %v2596
        %v2621 = vunpack.c.l.b16 %v2597
        %v2622 = vunpack.c.l.b16 %v2598
        %v2623 = vunpack.c.l.b16 %v2599
        %v2624 = vunpack.c.l.b16 %v2600
        %v2625 = vunpack.c.l.b16 %v2601
        %v2626 = vunpack.c.l.b16 %v2602
        %v2627 = vpack.c.b16 %v2620, %v2619
        %v2628 = vpack.c.b16 %v2622, %v2621
        %v2629 = vpack.c.b16 %v2624, %v2623
        %v2630 = vpack.c.b16 %v2626, %v2625
        %v2636 = vsel %vm1695, %v2593, 0
        %2638 = vmatprep.subr.bf16.mxu0 0
        %2639 = vmatpush1.bf16.msra.mxu0 %v2627
        %2640 = vmatprep.subr.bf16.mxu0 0
        %2641 = vmatpush1.bf16.msra.mxu0 %v2628
        %2642 = vmatprep.subr.bf16.mxu0 0
        %2643 = vmatpush1.bf16.msra.mxu0 %v2629
        %2644 = vmatprep.subr.bf16.mxu0 0
        %2645 = vmatpush1.bf16.msra.mxu0 %v2630
        %2646 = vmatprep.subr.bf16.mxu0 0
        %2647 = vmatpush1.bf16.msra.mxu0 0
        %2648 = vmatprep.subr.bf16.mxu0 0
        %2649 = vmatpush1.bf16.msra.mxu0 0
        %2650 = vmatprep.subr.bf16.mxu0 0
        %2651 = vmatpush1.bf16.msra.mxu0 0
        %2652 = vmatprep.subr.bf16.mxu0 0
        %2653 = vmatpush1.bf16.msra.mxu0 0
        %2654 = vmatprep.subr.bf16.mxu0 0
        %2655 = vmatpush1.bf16.msra.mxu0 0
        %2656 = vmatprep.subr.bf16.mxu0 0
        %2657 = vmatpush1.bf16.msra.mxu0 0
        %2658 = vmatprep.subr.bf16.mxu0 0
        %2659 = vmatpush1.bf16.msra.mxu0 0
        %2660 = vmatprep.subr.bf16.mxu0 0
        %2661 = vmatpush1.bf16.msra.mxu0 0
        %2662 = vmatprep.subr.bf16.mxu0 0
        %2663 = vmatpush1.bf16.msra.mxu0 0
        %2664 = vmatprep.subr.bf16.mxu0 0
        %2665 = vmatpush1.bf16.msra.mxu0 0
        %2666 = vmatprep.subr.bf16.mxu0 0
        %2667 = vmatpush1.bf16.msra.mxu0 0
        %2668 = vmatprep.subr.bf16.mxu0 0
        %2669 = vmatpush1.bf16.msra.mxu0 0
        %2670 = vmatprep.mubr.bf16.mxu0 0
        %2671 = vmatmul.mubr.bf16.gmra.mrb[0].mxu0 %v2636
        %v2672 = vpop.f32.mrb[0].mxu0
        %v2673 = vadd.f32 %v2609, %v2672
        %v2674 = vpop.f32.mrb[0].mxu0
        %v2675 = vpop.f32.mrb[0].mxu0
        %v2676 = vadd.f32 %v2609, %v2675
        %v2677 = vpop.f32.mrb[0].mxu0
        %2678 = vdwg.mxu0
        %v2679 = vadd.f32 %v2673, %v2469
        %v2680 = vadd.f32 %v2676, %v2470
        %s2681 = scalar_lea.vmem %s15, 1
        %v2682 = vld [vmem:[%s2681] sm:$0x1]
        %s2683 = scalar_lea.vmem %s16, 1
        %v2684 = vld [vmem:[%s2683] sm:$0x1]
        %v2685 = vsel %vm797, %v2679, 0.0
        %2686 = vadd.xlane.f32.xlu0 %v2685
        %v2687 = vpop.xlane.xlu0 %2686
        %v2688 = vsel %vm797, %v2680, 0.0
        %2689 = vadd.xlane.f32.xlu0 %v2688
        %v2690 = vpop.xlane.xlu0 %2689
        %v2691 = vmul.f32 %v2687, %v804
        %v2692 = vmul.f32 %v2690, %v804
        %v2693 = vsub.f32 %v2679, %v2691
        %v2694 = vsub.f32 %v2680, %v2692
        %v2695 = vmul.f32 %v2693, %v2693
        %v2696 = vmul.f32 %v2694, %v2694
        %v2697 = vsel %vm797, %v2695, 0.0
        %2698 = vadd.xlane.f32.xlu0 %v2697
        %v2699 = vpop.xlane.xlu0 %2698
        %v2700 = vsel %vm797, %v2696, 0.0
        %2701 = vadd.xlane.f32.xlu0 %v2700
        %v2702 = vpop.xlane.xlu0 %2701
        %v2703 = vmul.f32 %v2699, %v804
        %v2704 = vmul.f32 %v2702, %v804
        %v2705 = vadd.f32 %v2703, 1e-12
        %v2706 = vadd.f32 %v2704, 1e-12
        %v2707 = vrsqrt.pop %v2705
        %v2708 = vrsqrt.pop %v2706
        %v2709 = vmul.f32 %v2693, %v2707
        %v2710 = vmul.f32 %v2694, %v2708
        %v2712 = vlaneseq
        %v2713 = vshrl.u32 %v2712, 7
        %v2714 = vsub.s32 0, %v2713
        %v2715 = vrot.slane %v2682, %v2714
        %v2717 = vmul.f32 %v2709, %v2715
        %v2718 = vmul.f32 %v2710, %v2715
        %v2720 = vlaneseq
        %v2721 = vshrl.u32 %v2720, 7
        %v2722 = vsub.s32 0, %v2721
        %v2723 = vrot.slane %v2684, %v2722
        %v2725 = vadd.f32 %v2717, %v2723
        %v2726 = vadd.f32 %v2718, %v2723
        %v2727 = vld [vmem:[%s777] sm:$0x1]
        %v2728 = vld [vmem:[%s777 + $0x1] sm:$0x1]
        %v2729 = vlaneseq
        %v2730 = vshrl.u32 %v2729, 7
        %v2731 = vsub.s32 0, %v2730
        %v2732 = vrot.slane %v2727, %v2731
        %2734 = vbcast.lane.b32.xlu0 %v2732, 256
        %v2735 = vpop.permute.xlu0 %2734
        %v2736 = vlaneseq
        %v2737 = vshrl.u32 %v2736, 7
        %v2738 = vsub.s32 0, %v2737
        %v2739 = vrot.slane %v2728, %v2738
        %2741 = vbcast.lane.b32.xlu0 %v2739, 256
        %v2742 = vpop.permute.xlu0 %2741
        %v2743 = vmul.f32 %v2725, %v2735
        %v2744 = vmul.f32 %v2726, %v2742
        %v2745 = vsel %vm797, %v2743, 0.0
        %v2746 = vrot.slane %v2745, 4
        %v2747 = vadd.f32 %v2745, %v2746
        %v2748 = vrot.slane %v2747, 2
        %v2749 = vadd.f32 %v2747, %v2748
        %v2750 = vrot.slane %v2749, 1
        %v2751 = vadd.f32 %v2749, %v2750
        %v2752 = vsel %vm797, %v2744, 0.0
        %v2753 = vrot.slane %v2752, 4
        %v2754 = vadd.f32 %v2752, %v2753
        %v2755 = vrot.slane %v2754, 2
        %v2756 = vadd.f32 %v2754, %v2755
        %v2757 = vrot.slane %v2756, 1
        %v2758 = vadd.f32 %v2756, %v2757
        %v2759 = vpack.c.bf16 %v2751, %v2751
        %v2760 = vpack.c.bf16 %v2758, %v2758
        %v2761 = vld [vmem:[%s17] sm:$0xf]
        %v2762 = vld [vmem:[%s17 + $0x4] sm:$0xf]
        %v2763 = vld [vmem:[%s17 + $0x8] sm:$0xf]
        %v2764 = vld [vmem:[%s17 + $0xc] sm:$0xf]
        %v2765 = vld [vmem:[%s18] sm:$0x1]
        %v2767 = vlaneseq
        %v2768 = vshrl.u32 %v2767, 7
        %v2769 = vsub.s32 0, %v2768
        %v2770 = vrot.slane %v2765, %v2769
        %v2774 = vunpack.c.l.b16 %v2759
        %v2775 = vunpack.c.l.b16 %v2760
        %vm2776 = vcmask 1041409
        %v2777 = vsel %vm2776, %v2775, %v2774
        %v2778 = vpack.c.b16 %v2777, %v2777
        %v2783 = vunpack.c.l.b16 %v2761
        %v2784 = vunpack.c.l.b16 %v2762
        %v2785 = vunpack.c.l.b16 %v2763
        %v2786 = vunpack.c.l.b16 %v2764
        %v2787 = vpack.c.b16 %v2784, %v2783
        %v2788 = vpack.c.b16 %v2786, %v2785
        %v2792 = vsel %vm797, %v2778, 0
        %2794 = vmatprep.subr.bf16.mxu0 0
        %2795 = vmatpush1.bf16.msra.mxu0 %v2787
        %2796 = vmatprep.subr.bf16.mxu0 0
        %2797 = vmatpush1.bf16.msra.mxu0 %v2788
        %2798 = vmatprep.subr.bf16.mxu0 0
        %2799 = vmatpush1.bf16.msra.mxu0 0
        %2800 = vmatprep.subr.bf16.mxu0 0
        %2801 = vmatpush1.bf16.msra.mxu0 0
        %2802 = vmatprep.subr.bf16.mxu0 0
        %2803 = vmatpush1.bf16.msra.mxu0 0
        %2804 = vmatprep.subr.bf16.mxu0 0
        %2805 = vmatpush1.bf16.msra.mxu0 0
        %2806 = vmatprep.subr.bf16.mxu0 0
        %2807 = vmatpush1.bf16.msra.mxu0 0
        %2808 = vmatprep.subr.bf16.mxu0 0
        %2809 = vmatpush1.bf16.msra.mxu0 0
        %2810 = vmatprep.subr.bf16.mxu0 0
        %2811 = vmatpush1.bf16.msra.mxu0 0
        %2812 = vmatprep.subr.bf16.mxu0 0
        %2813 = vmatpush1.bf16.msra.mxu0 0
        %2814 = vmatprep.subr.bf16.mxu0 0
        %2815 = vmatpush1.bf16.msra.mxu0 0
        %2816 = vmatprep.subr.bf16.mxu0 0
        %2817 = vmatpush1.bf16.msra.mxu0 0
        %2818 = vmatprep.subr.bf16.mxu0 0
        %2819 = vmatpush1.bf16.msra.mxu0 0
        %2820 = vmatprep.subr.bf16.mxu0 0
        %2821 = vmatpush1.bf16.msra.mxu0 0
        %2822 = vmatprep.subr.bf16.mxu0 0
        %2823 = vmatpush1.bf16.msra.mxu0 0
        %2824 = vmatprep.subr.bf16.mxu0 0
        %2825 = vmatpush1.bf16.msra.mxu0 0
        %2826 = vmatprep.mubr.bf16.mxu0 0
        %2827 = vmatmul.mubr.bf16.gmra.mrb[0].mxu0 %v2792
        %v2828 = vpop.f32.mrb[0].mxu0
        %v2829 = vadd.f32 %v2770, %v2828
        %v2830 = vpop.f32.mrb[0].mxu0
        %v2831 = vpop.f32.mrb[0].mxu0
        %v2832 = vpop.f32.mrb[0].mxu0
        %2833 = vdwg.mxu0
        %v2834 = vmax.f32 %v2829, 0.0
        %v2835 = vpack.c.bf16 %v2834, %v2834
        %v2836 = vld [vmem:[%s19] sm:$0xf]
        %v2837 = vld [vmem:[%s19 + $0x4] sm:$0xf]
        %v2838 = vld [vmem:[%s19 + $0x8] sm:$0xf]
        %v2839 = vld [vmem:[%s19 + $0xc] sm:$0xf]
        %v2840 = vld [vmem:[%s20] sm:$0x1]
        %v2842 = vlaneseq
        %v2843 = vshrl.u32 %v2842, 7
        %v2844 = vsub.s32 0, %v2843
        %v2845 = vrot.slane %v2840, %v2844
        %v2851 = vunpack.c.l.b16 %v2836
        %v2852 = vunpack.c.l.b16 %v2837
        %v2853 = vunpack.c.l.b16 %v2838
        %v2854 = vunpack.c.l.b16 %v2839
        %v2855 = vpack.c.b16 %v2852, %v2851
        %v2856 = vpack.c.b16 %v2854, %v2853
        %v2860 = vsel %vm797, %v2835, 0
        %2862 = vmatprep.subr.bf16.mxu0 0
        %2863 = vmatpush1.bf16.msra.mxu0 %v2855
        %2864 = vmatprep.subr.bf16.mxu0 0
        %2865 = vmatpush1.bf16.msra.mxu0 %v2856
        %2866 = vmatprep.subr.bf16.mxu0 0
        %2867 = vmatpush1.bf16.msra.mxu0 0
        %2868 = vmatprep.subr.bf16.mxu0 0
        %2869 = vmatpush1.bf16.msra.mxu0 0
        %2870 = vmatprep.subr.bf16.mxu0 0
        %2871 = vmatpush1.bf16.msra.mxu0 0
        %2872 = vmatprep.subr.bf16.mxu0 0
        %2873 = vmatpush1.bf16.msra.mxu0 0
        %2874 = vmatprep.subr.bf16.mxu0 0
        %2875 = vmatpush1.bf16.msra.mxu0 0
        %2876 = vmatprep.subr.bf16.mxu0 0
        %2877 = vmatpush1.bf16.msra.mxu0 0
        %2878 = vmatprep.subr.bf16.mxu0 0
        %2879 = vmatpush1.bf16.msra.mxu0 0
        %2880 = vmatprep.subr.bf16.mxu0 0
        %2881 = vmatpush1.bf16.msra.mxu0 0
        %2882 = vmatprep.subr.bf16.mxu0 0
        %2883 = vmatpush1.bf16.msra.mxu0 0
        %2884 = vmatprep.subr.bf16.mxu0 0
        %2885 = vmatpush1.bf16.msra.mxu0 0
        %2886 = vmatprep.subr.bf16.mxu0 0
        %2887 = vmatpush1.bf16.msra.mxu0 0
        %2888 = vmatprep.subr.bf16.mxu0 0
        %2889 = vmatpush1.bf16.msra.mxu0 0
        %2890 = vmatprep.subr.bf16.mxu0 0
        %2891 = vmatpush1.bf16.msra.mxu0 0
        %2892 = vmatprep.subr.bf16.mxu0 0
        %2893 = vmatpush1.bf16.msra.mxu0 0
        %2894 = vmatprep.mubr.bf16.mxu0 0
        %2895 = vmatmul.mubr.bf16.gmra.mrb[0].mxu0 %v2860
        %v2896 = vpop.f32.mrb[0].mxu0
        %v2897 = vadd.f32 %v2845, %v2896
        %v2898 = vpop.f32.mrb[0].mxu0
        %v2899 = vpop.f32.mrb[0].mxu0
        %v2900 = vpop.f32.mrb[0].mxu0
        %2901 = vdwg.mxu0
        %v2902 = vpack.c.bf16 %v2897, %v2897
        %v2903 = vld [vmem:[%s21] sm:$0x3]
        %vm2904 = vcmask 31744
        %v2906 = vsel %vm2904, %v2902, 0
        %vm2908 = vcmask 1041408
        %v2910 = vsel %vm2908, %v2903, 0
        %2912 = vmatprep.subr.bf16.mxu0 0
        %2913 = vmatpush1.bf16.msra.mxu0 %v2910
        %2914 = vmatprep.subr.bf16.mxu0 0
        %2915 = vmatpush1.bf16.msra.mxu0 0
        %2916 = vmatprep.subr.bf16.mxu0 0
        %2917 = vmatpush1.bf16.msra.mxu0 0
        %2918 = vmatprep.subr.bf16.mxu0 0
        %2919 = vmatpush1.bf16.msra.mxu0 0
        %2920 = vmatprep.subr.bf16.mxu0 0
        %2921 = vmatpush1.bf16.msra.mxu0 0
        %2922 = vmatprep.subr.bf16.mxu0 0
        %2923 = vmatpush1.bf16.msra.mxu0 0
        %2924 = vmatprep.subr.bf16.mxu0 0
        %2925 = vmatpush1.bf16.msra.mxu0 0
        %2926 = vmatprep.subr.bf16.mxu0 0
        %2927 = vmatpush1.bf16.msra.mxu0 0
        %2928 = vmatprep.subr.bf16.mxu0 0
        %2929 = vmatpush1.bf16.msra.mxu0 0
        %2930 = vmatprep.subr.bf16.mxu0 0
        %2931 = vmatpush1.bf16.msra.mxu0 0
        %2932 = vmatprep.subr.bf16.mxu0 0
        %2933 = vmatpush1.bf16.msra.mxu0 0
        %2934 = vmatprep.subr.bf16.mxu0 0
        %2935 = vmatpush1.bf16.msra.mxu0 0
        %2936 = vmatprep.subr.bf16.mxu0 0
        %2937 = vmatpush1.bf16.msra.mxu0 0
        %2938 = vmatprep.subr.bf16.mxu0 0
        %2939 = vmatpush1.bf16.msra.mxu0 0
        %2940 = vmatprep.subr.bf16.mxu0 0
        %2941 = vmatpush1.bf16.msra.mxu0 0
        %2942 = vmatprep.subr.bf16.mxu0 0
        %2943 = vmatpush1.bf16.msra.mxu0 0
        %2944 = vmatprep.mubr.bf16.mxu0 0
        %2945 = vmatmul.mubr.bf16.gmra.mrb[0].mxu0 %v2906
        %v2946 = vpop.f32.mrb[0].mxu0
        %v2947 = vadd.f32 0.0, %v2946
        %v2948 = vpop.f32.mrb[0].mxu0
        %v2949 = vpop.f32.mrb[0].mxu0
        %v2950 = vpop.f32.mrb[0].mxu0
        %2951 = vdwg.mxu0
        %v2953 = vrot.slane %v2947, 1
        %v2956 = vadd.f32 %v2751, %v2947
        %v2957 = vadd.f32 %v2758, %v2953
        %vm2958 = vcmask 253952
        %2959 = vst.msk [vmem:[%s762] sm:$0x1] %vm2958, %v2956
        %2960 = vst.msk [vmem:[%s762 + $0x1] sm:$0x1] %vm2958, %v2957
        %s2961 = sand.u32 %s524, 1
        %s2962 = scalar_lea.sflag [#allocation4], %s2961
        %s2963 = sand.u32 %s524, 1
        %s2964 = smul.addr %s2963, 2
        %s2965 = scalar_lea.vmem [#allocation10], %s2964
        // Predicated region
        $region125: #{tpu_custom_call.1} parent=107 // pred_check
          %p2966 = pneg %p534
        $region126: #{tpu_custom_call.1} parent=107 // pred_check_branch
          %2968 = sbr.rel (%p2966) target = $region128
        $region127: #{tpu_custom_call.1} parent=107 // pred_region
          %s2969 = smul.u32 2, %s39
          %s2971 = ssub.s32 32, 32
          %2972 = vsyncadd %s2962, %s2971
          %s2973 = smul.addr %s2969, 16
          %s2974 = scalar_lea.hbm %s22, %s2973
          %s2975 = sshll.u32 %s2965, 4
          %s2976 = int_to_ptr.vmem [resolvable:$true] %s2975
          %2981 = dma.vmem_to_hbm [thread:$0]  %s2976, 32, %s2974, %s2962, 16, 16, 1
        $region128: #{tpu_custom_call.1} parent=107 // pred_fallthru
          _
      $region108: #{tpu_custom_call.1} parent=5 // pred_fallthru
        _
      %p2982 = scmp.le.s32.totalorder 2, %s34
      // Predicated region
      $region129: #{tpu_custom_call.1} parent=5 // pred_check
        %p2983 = pneg %p2982
      $region130: #{tpu_custom_call.1} parent=5 // pred_check_branch
        %2985 = sbr.rel (%p2983) target = $region132
      $region131: #{tpu_custom_call.1} parent=5 // pred_region
        %s2986 = ssub.s32 %s34, 2
        // Predicated region
        $region133: #{tpu_custom_call.1} parent=131 // pred_check
          %p2987 = pneg %p540
        $region134: #{tpu_custom_call.1} parent=131 // pred_check_branch
          %2989 = sbr.rel (%p2987) target = $region136
        $region135: #{tpu_custom_call.1} parent=131 // pred_region
          %s2990 = sand.u32 %s525, 1
          %s2991 = scalar_lea.sflag [#allocation4], %s2990
          %s2992 = sand.u32 %s525, 1
          %s2993 = smul.addr %s2992, 2
          %s2994 = scalar_lea.vmem [#allocation10], %s2993
          %2995 = dma.done %s2991, 32
        $region136: #{tpu_custom_call.1} parent=131 // pred_fallthru
          _
      $region132: #{tpu_custom_call.1} parent=5 // pred_fallthru
        _
    $region6: #{tpu_custom_call.1} parent=1 // loop_footer
      %s38 = sadd.s32 1, %s34
    $region7: #{tpu_custom_call.1} parent=1 // loop_footer_branch
      %33 = sbr.rel target = $region3
    $region8: #{tpu_custom_call.1} parent=1 // loop_exit
      _
    %2996 = vsyncpa [#allocation3], 1
    %s2997 = scalar_lea.sflag [#allocation3], 1
    %2998 = vsyncpa %s2997, 1
    %2999 = vsyncpa [#allocation6], 1
    %3000 = vsyncpa [#allocation9], 1
    %3001 = vsyncpa [#allocation4], 1
    %s3002 = scalar_lea.sflag [#allocation4], 1
    %3003 = vsyncpa %s3002, 1

// kernel: tpu_custom_call.1
$region0: #{tpu_custom_call.1}
  #allocation0 [shape = 'u32[]', space=smem, size = 0x4, offset = 0x4, fixed_abs, tag = 'smem constant byte address 0x4 - core index']
  #allocation1 [shape = 'u32[144,128]{1,0:T(1,128)}', space=vmem, size = 0x12000, scoped, tag = 'internal scratch']
  %s0 = inlined_call_operand.vmem [shape: f32[4,8,32], index: 0, kind: input, shape index: {}]
  %s1 = inlined_call_operand.vmem [shape: f32[4,1,8], index: 1, kind: input, shape index: {}]
  %s2 = inlined_call_operand.vmem [shape: f32[4,1,8], index: 2, kind: input, shape index: {}]
  %s3 = inlined_call_operand.vmem [shape: f32[1,32], index: 3, kind: input, shape index: {}]
  %s4 = inlined_call_operand.hbm [shape: f32[1,32], index: 4, kind: input, shape index: {}]
  %s5 = inlined_call_operand.vmem [shape: bf16[2,32,96], index: 5, kind: input, shape index: {}]
  %s6 = inlined_call_operand.vmem [shape: f32[2,1,96], index: 6, kind: input, shape index: {}]
  %s7 = inlined_call_operand.vmem [shape: bf16[2,32,32], index: 7, kind: input, shape index: {}]
  %s8 = inlined_call_operand.vmem [shape: f32[2,1,32], index: 8, kind: input, shape index: {}]
  %s9 = inlined_call_operand.vmem [shape: f32[2,1,32], index: 9, kind: input, shape index: {}]
  %s10 = inlined_call_operand.hbm [shape: f32[2,1,32], index: 10, kind: input, shape index: {}]
  %s11 = inlined_call_operand.hbm [shape: bf16[2,32,64], index: 11, kind: input, shape index: {}]
  %s12 = inlined_call_operand.hbm [shape: f32[2,1,64], index: 12, kind: input, shape index: {}]
  %s13 = inlined_call_operand.vmem [shape: bf16[2,64,32], index: 13, kind: input, shape index: {}]
  %s14 = inlined_call_operand.vmem [shape: f32[2,1,32], index: 14, kind: input, shape index: {}]
  %s15 = inlined_call_operand.vmem [shape: f32[2,1,32], index: 15, kind: input, shape index: {}]
  %s16 = inlined_call_operand.vmem [shape: f32[2,1,32], index: 16, kind: input, shape index: {}]
  %s17 = inlined_call_operand.vmem [shape: bf16[32,32], index: 17, kind: input, shape index: {}]
  %s18 = inlined_call_operand.vmem [shape: f32[1,32], index: 18, kind: input, shape index: {}]
  %s19 = inlined_call_operand.vmem [shape: bf16[32,4], index: 19, kind: input, shape index: {}]
  %s20 = inlined_call_operand.vmem [shape: f32[1,4], index: 20, kind: input, shape index: {}]
  %s21 = inlined_call_operand.vmem [shape: bf16[4,32], index: 21, kind: input, shape index: {}]
  %s22 = inlined_call_operand.hbm [shape: f32[4,1,32], index: 22, kind: output, shape index: {}]
  %s23 = sld [smem:[#allocation0]]
  $region137: #{tpu_custom_call.1} parent=0
    _
  %s25 = ssub.s32 1, %s23
  %s26 = scalar_select 0, %s25, %s23
  $region1: #{tpu_custom_call.1} parent=0
    #allocation2 [shape = 'u8[512]{0}', space=vmem, size = 0x400, scoped, tag = 'input window, operand 4, single buffered']
    #allocation3 [shape = 's32[2]{0}', space=sflag, size = 0x8, scoped, tag = 'scoped memory for tpu_custom_call.1']
    #allocation4 [shape = 's32[2]{0}', space=sflag, size = 0x8, scoped, tag = 'scoped memory for tpu_custom_call.1']
    #allocation5 [shape = 'u8[1024]{0}', space=vmem, size = 0x400, scoped, tag = 'input window, operand 10, single buffered']
    #allocation6 [shape = 's32[1]{0}', space=sflag, size = 0x4, scoped, tag = 'scoped memory for tpu_custom_call.1']
    #allocation7 [shape = 'u8[16384]{0}', space=vmem, size = 0x4000, scoped, tag = 'input window, operand 11, single buffered']
    #allocation8 [shape = 'u8[1024]{0}', space=vmem, size = 0x400, scoped, tag = 'input window, operand 12, single buffered']
    #allocation9 [shape = 's32[1]{0}', space=sflag, size = 0x4, scoped, tag = 'scoped memory for tpu_custom_call.1']
    #allocation10 [shape = 'u8[2048]{0}', space=vmem, size = 0x800, scoped, tag = 'output window, operand 0']
    %27 = vsyncpa [#allocation3], 0
    %28 = vsyncpa [#allocation6], 0
    %29 = vsyncpa [#allocation9], 0
    %30 = vsyncpa [#allocation4], 0
    %s31 = scalar_lea.sflag [#allocation4], 1
    %32 = vsyncpa %s31, 0
    loop: start=0, step=1, limit=4
    $region2: #{tpu_custom_call.1} parent=1 // loop_pre_header
      _
    $region3: #{tpu_custom_call.1} parent=1 // loop_header
      %s34 = sphi 0, %s38
      %p35 = scmp.ge.s32.totalorder %s34, 4
      %s44 = sphi 0, %s46
      %s47 = sphi 0, %s44
      %s48 = sphi 0, %s47
      %s64 = sphi 0, %s48
      %s70 = sphi 0, %s72
      %s73 = sphi 0, %s70
      %s74 = sphi 0, %s73
      %s90 = sphi 0, %s74
      %s96 = sphi 0, %s98
      %s99 = sphi 0, %s96
      %s100 = sphi 0, %s99
      %s116 = sphi 0, %s100
      %s120 = sphi 0, %s120
      %s122 = sphi 0, %s120
      %s123 = sphi 0, %s122
      %s137 = sphi 0, %s123
      %s141 = sphi 0, %s141
      %s143 = sphi 0, %s141
      %s144 = sphi 0, %s143
      %s158 = sphi 0, %s144
      %s162 = sphi 0, %s162
      %s164 = sphi 0, %s162
      %s165 = sphi 0, %s164
      %s179 = sphi 0, %s165
      %s183 = sphi 0, %s183
      %s185 = sphi 0, %s183
      %s186 = sphi 0, %s185
      %s200 = sphi 0, %s186
      %s204 = sphi 0, %s204
      %s206 = sphi 0, %s204
      %s207 = sphi 0, %s206
      %s221 = sphi 0, %s207
      %s225 = sphi 0, %s225
      %s227 = sphi 0, %s225
      %s228 = sphi 0, %s227
      %s242 = sphi 0, %s228
      %s246 = sphi 0, %s246
      %s248 = sphi 0, %s246
      %s249 = sphi 0, %s248
      %s263 = sphi 0, %s249
      %s267 = sphi 0, %s267
      %s269 = sphi 0, %s267
      %s270 = sphi 0, %s269
      %s284 = sphi 0, %s270
      %s288 = sphi 0, %s288
      %s290 = sphi 0, %s288
      %s291 = sphi 0, %s290
      %s305 = sphi 0, %s291
      %s309 = sphi 0, %s309
      %s311 = sphi 0, %s309
      %s312 = sphi 0, %s311
      %s326 = sphi 0, %s312
      %s330 = sphi 0, %s330
      %s332 = sphi 0, %s330
      %s333 = sphi 0, %s332
      %s347 = sphi 0, %s333
      %s351 = sphi 0, %s351
      %s353 = sphi 0, %s351
      %s354 = sphi 0, %s353
      %s368 = sphi 0, %s354
      %s372 = sphi 0, %s372
      %s374 = sphi 0, %s372
      %s375 = sphi 0, %s374
      %s389 = sphi 0, %s375
      %s393 = sphi 0, %s393
      %s395 = sphi 0, %s393
      %s396 = sphi 0, %s395
      %s410 = sphi 0, %s396
      %s414 = sphi 0, %s414
      %s416 = sphi 0, %s414
      %s417 = sphi 0, %s416
      %s431 = sphi 0, %s417
      %s435 = sphi 0, %s435
      %s437 = sphi 0, %s435
      %s438 = sphi 0, %s437
      %s452 = sphi 0, %s438
      %s456 = sphi 0, %s456
      %s458 = sphi 0, %s456
      %s459 = sphi 0, %s458
      %s473 = sphi 0, %s459
      %s477 = sphi 0, %s477
      %s479 = sphi 0, %s477
      %s480 = sphi 0, %s479
      %s494 = sphi 0, %s480
      %s498 = sphi 0, %s498
      %s500 = sphi 0, %s498
      %s501 = sphi 0, %s500
      %s515 = sphi 0, %s501
      %s521 = sphi 0, %s523
      %s524 = sphi 0, %s521
      %s525 = sphi 0, %s524
      %s541 = sphi 0, %s525
    $region4: #{tpu_custom_call.1} parent=1 // loop_header_branch
      %37 = sbr.rel (%p35) target = $region8
    $region5: #{tpu_custom_call.1} parent=1 // loop_body
      %s39 = ssub.s32 %s34, 1
      %s40 = ssub.s32 %s34, 2
      %s41 = sadd.s32 %s34, 1
      %s42 = ssub.s32 %s34, %s41
      %p43 = scmp.eq.s32.totalorder %s42, 0
      %s45 = sadd.s32 %s44, 1
      %s46 = scalar_select %p43, %s44, %s45
      %p49 = pneg %p43
      %p50 = scmp.eq.s32.totalorder %s34, 1
      %p51 = por %p49, %p50
      %p52 = scmp.ne.s32.totalorder %s44, %s47
      %p53 = scmp.eq.s32.totalorder %s34, 0
      %p54 = por %p52, %p53
      %p55 = scmp.ne.s32.totalorder %s44, %s47
      %p56 = scmp.eq.s32.totalorder %s39, 1
      %p57 = por %p55, %p56
      %p58 = scmp.ne.s32.totalorder %s47, %s48
      %p59 = scmp.eq.s32.totalorder %s39, 0
      %p60 = por %p58, %p59
      %p61 = scmp.ne.s32.totalorder %s47, %s48
      %p62 = scmp.eq.s32.totalorder %s40, 1
      %p63 = por %p61, %p62
      %p65 = scmp.ne.s32.totalorder %s48, %s64
      %p66 = scmp.eq.s32.totalorder %s40, 0
      %p67 = por %p65, %p66
      %s68 = ssub.s32 %s34, %s41
      %p69 = scmp.eq.s32.totalorder %s68, 0
      %s71 = sadd.s32 %s70, 1
      %s72 = scalar_select %p69, %s70, %s71
      %p75 = pneg %p69
      %p76 = scmp.eq.s32.totalorder %s34, 1
      %p77 = por %p75, %p76
      %p78 = scmp.ne.s32.totalorder %s70, %s73
      %p79 = scmp.eq.s32.totalorder %s34, 0
      %p80 = por %p78, %p79
      %p81 = scmp.ne.s32.totalorder %s70, %s73
      %p82 = scmp.eq.s32.totalorder %s39, 1
      %p83 = por %p81, %p82
      %p84 = scmp.ne.s32.totalorder %s73, %s74
      %p85 = scmp.eq.s32.totalorder %s39, 0
      %p86 = por %p84, %p85
      %p87 = scmp.ne.s32.totalorder %s73, %s74
      %p88 = scmp.eq.s32.totalorder %s40, 1
      %p89 = por %p87, %p88
      %p91 = scmp.ne.s32.totalorder %s74, %s90
      %p92 = scmp.eq.s32.totalorder %s40, 0
      %p93 = por %p91, %p92
      %s94 = ssub.s32 %s34, %s41
      %p95 = scmp.eq.s32.totalorder %s94, 0
      %s97 = sadd.s32 %s96, 1
      %s98 = scalar_select %p95, %s96, %s97
      %p101 = pneg %p95
      %p102 = scmp.eq.s32.totalorder %s34, 1
      %p103 = por %p101, %p102
      %p104 = scmp.ne.s32.totalorder %s96, %s99
      %p105 = scmp.eq.s32.totalorder %s34, 0
      %p106 = por %p104, %p105
      %p107 = scmp.ne.s32.totalorder %s96, %s99
      %p108 = scmp.eq.s32.totalorder %s39, 1
      %p109 = por %p107, %p108
      %p110 = scmp.ne.s32.totalorder %s99, %s100
      %p111 = scmp.eq.s32.totalorder %s39, 0
      %p112 = por %p110, %p111
      %p113 = scmp.ne.s32.totalorder %s99, %s100
      %p114 = scmp.eq.s32.totalorder %s40, 1
      %p115 = por %p113, %p114
      %p117 = scmp.ne.s32.totalorder %s100, %s116
      %p118 = scmp.eq.s32.totalorder %s40, 0
      %p119 = por %p117, %p118
      %s121 = sadd.s32 %s120, 1
      %p124 = scmp.eq.s32.totalorder %s34, 1
      %p125 = scmp.ne.s32.totalorder %s120, %s122
      %p126 = scmp.eq.s32.totalorder %s34, 0
      %p127 = por %p125, %p126
      %p128 = scmp.ne.s32.totalorder %s120, %s122
      %p129 = scmp.eq.s32.totalorder %s39, 1
      %p130 = por %p128, %p129
      %p131 = scmp.ne.s32.totalorder %s122, %s123
      %p132 = scmp.eq.s32.totalorder %s39, 0
      %p133 = por %p131, %p132
      %p134 = scmp.ne.s32.totalorder %s122, %s123
      %p135 = scmp.eq.s32.totalorder %s40, 1
      %p136 = por %p134, %p135
      %p138 = scmp.ne.s32.totalorder %s123, %s137
      %p139 = scmp.eq.s32.totalorder %s40, 0
      %p140 = por %p138, %p139
      %s142 = sadd.s32 %s141, 1
      %p145 = scmp.eq.s32.totalorder %s34, 1
      %p146 = scmp.ne.s32.totalorder %s141, %s143
      %p147 = scmp.eq.s32.totalorder %s34, 0
      %p148 = por %p146, %p147
      %p149 = scmp.ne.s32.totalorder %s141, %s143
      %p150 = scmp.eq.s32.totalorder %s39, 1
      %p151 = por %p149, %p150
      %p152 = scmp.ne.s32.totalorder %s143, %s144
      %p153 = scmp.eq.s32.totalorder %s39, 0
      %p154 = por %p152, %p153
      %p155 = scmp.ne.s32.totalorder %s143, %s144
      %p156 = scmp.eq.s32.totalorder %s40, 1
      %p157 = por %p155, %p156
      %p159 = scmp.ne.s32.totalorder %s144, %s158
      %p160 = scmp.eq.s32.totalorder %s40, 0
      %p161 = por %p159, %p160
      %s163 = sadd.s32 %s162, 1
      %p166 = scmp.eq.s32.totalorder %s34, 1
      %p167 = scmp.ne.s32.totalorder %s162, %s164
      %p168 = scmp.eq.s32.totalorder %s34, 0
      %p169 = por %p167, %p168
      %p170 = scmp.ne.s32.totalorder %s162, %s164
      %p171 = scmp.eq.s32.totalorder %s39, 1
      %p172 = por %p170, %p171
      %p173 = scmp.ne.s32.totalorder %s164, %s165
      %p174 = scmp.eq.s32.totalorder %s39, 0
      %p175 = por %p173, %p174
      %p176 = scmp.ne.s32.totalorder %s164, %s165
      %p177 = scmp.eq.s32.totalorder %s40, 1
      %p178 = por %p176, %p177
      %p180 = scmp.ne.s32.totalorder %s165, %s179
      %p181 = scmp.eq.s32.totalorder %s40, 0
      %p182 = por %p180, %p181
      %s184 = sadd.s32 %s183, 1
      %p187 = scmp.eq.s32.totalorder %s34, 1
      %p188 = scmp.ne.s32.totalorder %s183, %s185
      %p189 = scmp.eq.s32.totalorder %s34, 0
      %p190 = por %p188, %p189
      %p191 = scmp.ne.s32.totalorder %s183, %s185
      %p192 = scmp.eq.s32.totalorder %s39, 1
      %p193 = por %p191, %p192
      %p194 = scmp.ne.s32.totalorder %s185, %s186
      %p195 = scmp.eq.s32.totalorder %s39, 0
      %p196 = por %p194, %p195
      %p197 = scmp.ne.s32.totalorder %s185, %s186
      %p198 = scmp.eq.s32.totalorder %s40, 1
      %p199 = por %p197, %p198
      %p201 = scmp.ne.s32.totalorder %s186, %s200
      %p202 = scmp.eq.s32.totalorder %s40, 0
      %p203 = por %p201, %p202
      %s205 = sadd.s32 %s204, 1
      %p208 = scmp.eq.s32.totalorder %s34, 1
      %p209 = scmp.ne.s32.totalorder %s204, %s206
      %p210 = scmp.eq.s32.totalorder %s34, 0
      %p211 = por %p209, %p210
      %p212 = scmp.ne.s32.totalorder %s204, %s206
      %p213 = scmp.eq.s32.totalorder %s39, 1
      %p214 = por %p212, %p213
      %p215 = scmp.ne.s32.totalorder %s206, %s207
      %p216 = scmp.eq.s32.totalorder %s39, 0
      %p217 = por %p215, %p216
      %p218 = scmp.ne.s32.totalorder %s206, %s207
      %p219 = scmp.eq.s32.totalorder %s40, 1
      %p220 = por %p218, %p219
      %p222 = scmp.ne.s32.totalorder %s207, %s221
      %p223 = scmp.eq.s32.totalorder %s40, 0
      %p224 = por %p222, %p223
      %s226 = sadd.s32 %s225, 1
      %p229 = scmp.eq.s32.totalorder %s34, 1
      %p230 = scmp.ne.s32.totalorder %s225, %s227
      %p231 = scmp.eq.s32.totalorder %s34, 0
      %p232 = por %p230, %p231
      %p233 = scmp.ne.s32.totalorder %s225, %s227
      %p234 = scmp.eq.s32.totalorder %s39, 1
      %p235 = por %p233, %p234
      %p236 = scmp.ne.s32.totalorder %s227, %s228
      %p237 = scmp.eq.s32.totalorder %s39, 0
      %p238 = por %p236, %p237
      %p239 = scmp.ne.s32.totalorder %s227, %s228
      %p240 = scmp.eq.s32.totalorder %s40, 1
      %p241 = por %p239, %p240
      %p243 = scmp.ne.s32.totalorder %s228, %s242
      %p244 = scmp.eq.s32.totalorder %s40, 0
      %p245 = por %p243, %p244
      %s247 = sadd.s32 %s246, 1
      %p250 = scmp.eq.s32.totalorder %s34, 1
      %p251 = scmp.ne.s32.totalorder %s246, %s248
      %p252 = scmp.eq.s32.totalorder %s34, 0
      %p253 = por %p251, %p252
      %p254 = scmp.ne.s32.totalorder %s246, %s248
      %p255 = scmp.eq.s32.totalorder %s39, 1
      %p256 = por %p254, %p255
      %p257 = scmp.ne.s32.totalorder %s248, %s249
      %p258 = scmp.eq.s32.totalorder %s39, 0
      %p259 = por %p257, %p258
      %p260 = scmp.ne.s32.totalorder %s248, %s249
      %p261 = scmp.eq.s32.totalorder %s40, 1
      %p262 = por %p260, %p261
      %p264 = scmp.ne.s32.totalorder %s249, %s263
      %p265 = scmp.eq.s32.totalorder %s40, 0
      %p266 = por %p264, %p265
      %s268 = sadd.s32 %s267, 1
      %p271 = scmp.eq.s32.totalorder %s34, 1
      %p272 = scmp.ne.s32.totalorder %s267, %s269
      %p273 = scmp.eq.s32.totalorder %s34, 0
      %p274 = por %p272, %p273
      %p275 = scmp.ne.s32.totalorder %s267, %s269
      %p276 = scmp.eq.s32.totalorder %s39, 1
      %p277 = por %p275, %p276
      %p278 = scmp.ne.s32.totalorder %s269, %s270
      %p279 = scmp.eq.s32.totalorder %s39, 0
      %p280 = por %p278, %p279
      %p281 = scmp.ne.s32.totalorder %s269, %s270
      %p282 = scmp.eq.s32.totalorder %s40, 1
      %p283 = por %p281, %p282
      %p285 = scmp.ne.s32.totalorder %s270, %s284
      %p286 = scmp.eq.s32.totalorder %s40, 0
      %p287 = por %p285, %p286
      %s289 = sadd.s32 %s288, 1
      %p292 = scmp.eq.s32.totalorder %s34, 1
      %p293 = scmp.ne.s32.totalorder %s288, %s290
      %p294 = scmp.eq.s32.totalorder %s34, 0
      %p295 = por %p293, %p294
      %p296 = scmp.ne.s32.totalorder %s288, %s290
      %p297 = scmp.eq.s32.totalorder %s39, 1
      %p298 = por %p296, %p297
      %p299 = scmp.ne.s32.totalorder %s290, %s291
      %p300 = scmp.eq.s32.totalorder %s39, 0
      %p301 = por %p299, %p300
      %p302 = scmp.ne.s32.totalorder %s290, %s291
      %p303 = scmp.eq.s32.totalorder %s40, 1
      %p304 = por %p302, %p303
      %p306 = scmp.ne.s32.totalorder %s291, %s305
      %p307 = scmp.eq.s32.totalorder %s40, 0
      %p308 = por %p306, %p307
      %s310 = sadd.s32 %s309, 1
      %p313 = scmp.eq.s32.totalorder %s34, 1
      %p314 = scmp.ne.s32.totalorder %s309, %s311
      %p315 = scmp.eq.s32.totalorder %s34, 0
      %p316 = por %p314, %p315
      %p317 = scmp.ne.s32.totalorder %s309, %s311
      %p318 = scmp.eq.s32.totalorder %s39, 1
      %p319 = por %p317, %p318
      %p320 = scmp.ne.s32.totalorder %s311, %s312
      %p321 = scmp.eq.s32.totalorder %s39, 0
      %p322 = por %p320, %p321
      %p323 = scmp.ne.s32.totalorder %s311, %s312
      %p324 = scmp.eq.s32.totalorder %s40, 1
      %p325 = por %p323, %p324
      %p327 = scmp.ne.s32.totalorder %s312, %s326
      %p328 = scmp.eq.s32.totalorder %s40, 0
      %p329 = por %p327, %p328
      %s331 = sadd.s32 %s330, 1
      %p334 = scmp.eq.s32.totalorder %s34, 1
      %p335 = scmp.ne.s32.totalorder %s330, %s332
      %p336 = scmp.eq.s32.totalorder %s34, 0
      %p337 = por %p335, %p336
      %p338 = scmp.ne.s32.totalorder %s330, %s332
      %p339 = scmp.eq.s32.totalorder %s39, 1
      %p340 = por %p338, %p339
      %p341 = scmp.ne.s32.totalorder %s332, %s333
      %p342 = scmp.eq.s32.totalorder %s39, 0
      %p343 = por %p341, %p342
      %p344 = scmp.ne.s32.totalorder %s332, %s333
      %p345 = scmp.eq.s32.totalorder %s40, 1
      %p346 = por %p344, %p345
      %p348 = scmp.ne.s32.totalorder %s333, %s347
      %p349 = scmp.eq.s32.totalorder %s40, 0
      %p350 = por %p348, %p349
      %s352 = sadd.s32 %s351, 1
      %p355 = scmp.eq.s32.totalorder %s34, 1
      %p356 = scmp.ne.s32.totalorder %s351, %s353
      %p357 = scmp.eq.s32.totalorder %s34, 0
      %p358 = por %p356, %p357
      %p359 = scmp.ne.s32.totalorder %s351, %s353
      %p360 = scmp.eq.s32.totalorder %s39, 1
      %p361 = por %p359, %p360
      %p362 = scmp.ne.s32.totalorder %s353, %s354
      %p363 = scmp.eq.s32.totalorder %s39, 0
      %p364 = por %p362, %p363
      %p365 = scmp.ne.s32.totalorder %s353, %s354
      %p366 = scmp.eq.s32.totalorder %s40, 1
      %p367 = por %p365, %p366
      %p369 = scmp.ne.s32.totalorder %s354, %s368
      %p370 = scmp.eq.s32.totalorder %s40, 0
      %p371 = por %p369, %p370
      %s373 = sadd.s32 %s372, 1
      %p376 = scmp.eq.s32.totalorder %s34, 1
      %p377 = scmp.ne.s32.totalorder %s372, %s374
      %p378 = scmp.eq.s32.totalorder %s34, 0
      %p379 = por %p377, %p378
      %p380 = scmp.ne.s32.totalorder %s372, %s374
      %p381 = scmp.eq.s32.totalorder %s39, 1
      %p382 = por %p380, %p381
      %p383 = scmp.ne.s32.totalorder %s374, %s375
      %p384 = scmp.eq.s32.totalorder %s39, 0
      %p385 = por %p383, %p384
      %p386 = scmp.ne.s32.totalorder %s374, %s375
      %p387 = scmp.eq.s32.totalorder %s40, 1
      %p388 = por %p386, %p387
      %p390 = scmp.ne.s32.totalorder %s375, %s389
      %p391 = scmp.eq.s32.totalorder %s40, 0
      %p392 = por %p390, %p391
      %s394 = sadd.s32 %s393, 1
      %p397 = scmp.eq.s32.totalorder %s34, 1
      %p398 = scmp.ne.s32.totalorder %s393, %s395
      %p399 = scmp.eq.s32.totalorder %s34, 0
      %p400 = por %p398, %p399
      %p401 = scmp.ne.s32.totalorder %s393, %s395
      %p402 = scmp.eq.s32.totalorder %s39, 1
      %p403 = por %p401, %p402
      %p404 = scmp.ne.s32.totalorder %s395, %s396
      %p405 = scmp.eq.s32.totalorder %s39, 0
      %p406 = por %p404, %p405
      %p407 = scmp.ne.s32.totalorder %s395, %s396
      %p408 = scmp.eq.s32.totalorder %s40, 1
      %p409 = por %p407, %p408
      %p411 = scmp.ne.s32.totalorder %s396, %s410
      %p412 = scmp.eq.s32.totalorder %s40, 0
      %p413 = por %p411, %p412
      %s415 = sadd.s32 %s414, 1
      %p418 = scmp.eq.s32.totalorder %s34, 1
      %p419 = scmp.ne.s32.totalorder %s414, %s416
      %p420 = scmp.eq.s32.totalorder %s34, 0
      %p421 = por %p419, %p420
      %p422 = scmp.ne.s32.totalorder %s414, %s416
      %p423 = scmp.eq.s32.totalorder %s39, 1
      %p424 = por %p422, %p423
      %p425 = scmp.ne.s32.totalorder %s416, %s417
      %p426 = scmp.eq.s32.totalorder %s39, 0
      %p427 = por %p425, %p426
      %p428 = scmp.ne.s32.totalorder %s416, %s417
      %p429 = scmp.eq.s32.totalorder %s40, 1
      %p430 = por %p428, %p429
      %p432 = scmp.ne.s32.totalorder %s417, %s431
      %p433 = scmp.eq.s32.totalorder %s40, 0
      %p434 = por %p432, %p433
      %s436 = sadd.s32 %s435, 1
      %p439 = scmp.eq.s32.totalorder %s34, 1
      %p440 = scmp.ne.s32.totalorder %s435, %s437
      %p441 = scmp.eq.s32.totalorder %s34, 0
      %p442 = por %p440, %p441
      %p443 = scmp.ne.s32.totalorder %s435, %s437
      %p444 = scmp.eq.s32.totalorder %s39, 1
      %p445 = por %p443, %p444
      %p446 = scmp.ne.s32.totalorder %s437, %s438
      %p447 = scmp.eq.s32.totalorder %s39, 0
      %p448 = por %p446, %p447
      %p449 = scmp.ne.s32.totalorder %s437, %s438
      %p450 = scmp.eq.s32.totalorder %s40, 1
      %p451 = por %p449, %p450
      %p453 = scmp.ne.s32.totalorder %s438, %s452
      %p454 = scmp.eq.s32.totalorder %s40, 0
      %p455 = por %p453, %p454
      %s457 = sadd.s32 %s456, 1
      %p460 = scmp.eq.s32.totalorder %s34, 1
      %p461 = scmp.ne.s32.totalorder %s456, %s458
      %p462 = scmp.eq.s32.totalorder %s34, 0
      %p463 = por %p461, %p462
      %p464 = scmp.ne.s32.totalorder %s456, %s458
      %p465 = scmp.eq.s32.totalorder %s39, 1
      %p466 = por %p464, %p465
      %p467 = scmp.ne.s32.totalorder %s458, %s459
      %p468 = scmp.eq.s32.totalorder %s39, 0
      %p469 = por %p467, %p468
      %p470 = scmp.ne.s32.totalorder %s458, %s459
      %p471 = scmp.eq.s32.totalorder %s40, 1
      %p472 = por %p470, %p471
      %p474 = scmp.ne.s32.totalorder %s459, %s473
      %p475 = scmp.eq.s32.totalorder %s40, 0
      %p476 = por %p474, %p475
      %s478 = sadd.s32 %s477, 1
      %p481 = scmp.eq.s32.totalorder %s34, 1
      %p482 = scmp.ne.s32.totalorder %s477, %s479
      %p483 = scmp.eq.s32.totalorder %s34, 0
      %p484 = por %p482, %p483
      %p485 = scmp.ne.s32.totalorder %s477, %s479
      %p486 = scmp.eq.s32.totalorder %s39, 1
      %p487 = por %p485, %p486
      %p488 = scmp.ne.s32.totalorder %s479, %s480
      %p489 = scmp.eq.s32.totalorder %s39, 0
      %p490 = por %p488, %p489
      %p491 = scmp.ne.s32.totalorder %s479, %s480
      %p492 = scmp.eq.s32.totalorder %s40, 1
      %p493 = por %p491, %p492
      %p495 = scmp.ne.s32.totalorder %s480, %s494
      %p496 = scmp.eq.s32.totalorder %s40, 0
      %p497 = por %p495, %p496
      %s499 = sadd.s32 %s498, 1
      %p502 = scmp.eq.s32.totalorder %s34, 1
      %p503 = scmp.ne.s32.totalorder %s498, %s500
      %p504 = scmp.eq.s32.totalorder %s34, 0
      %p505 = por %p503, %p504
      %p506 = scmp.ne.s32.totalorder %s498, %s500
      %p507 = scmp.eq.s32.totalorder %s39, 1
      %p508 = por %p506, %p507
      %p509 = scmp.ne.s32.totalorder %s500, %s501
      %p510 = scmp.eq.s32.totalorder %s39, 0
      %p511 = por %p509, %p510
      %p512 = scmp.ne.s32.totalorder %s500, %s501
      %p513 = scmp.eq.s32.totalorder %s40, 1
      %p514 = por %p512, %p513
      %p516 = scmp.ne.s32.totalorder %s501, %s515
      %p517 = scmp.eq.s32.totalorder %s40, 0
      %p518 = por %p516, %p517
      %s519 = ssub.s32 %s34, %s41
      %p520 = scmp.eq.s32.totalorder %s519, 0
      %s522 = sadd.s32 %s521, 1
      %s523 = scalar_select %p520, %s521, %s522
      %p526 = pneg %p520
      %p527 = scmp.eq.s32.totalorder %s34, 1
      %p528 = por %p526, %p527
      %p529 = scmp.ne.s32.totalorder %s521, %s524
      %p530 = scmp.eq.s32.totalorder %s34, 0
      %p531 = por %p529, %p530
      %p532 = scmp.ne.s32.totalorder %s521, %s524
      %p533 = scmp.eq.s32.totalorder %s39, 1
      %p534 = por %p532, %p533
      %p535 = scmp.ne.s32.totalorder %s524, %s525
      %p536 = scmp.eq.s32.totalorder %s39, 0
      %p537 = por %p535, %p536
      %p538 = scmp.ne.s32.totalorder %s524, %s525
      %p539 = scmp.eq.s32.totalorder %s40, 1
      %p540 = por %p538, %p539
      %p542 = scmp.ne.s32.totalorder %s525, %s541
      %p543 = scmp.eq.s32.totalorder %s40, 0
      %p544 = por %p542, %p543
      %p545 = scmp.le.s32.totalorder 1, %s34
      %p546 = scmp.lt.s32.totalorder %s34, 3
      %p547 = pnand %p545, %p546
      %p548 = pneg %p547
      // Predicated region
      $region9: #{tpu_custom_call.1} parent=5 // pred_check
        _
      $region10: #{tpu_custom_call.1} parent=5 // pred_check_branch
        %550 = sbr.rel (%p547) target = $region12
      $region11: #{tpu_custom_call.1} parent=5 // pred_region
        %s551 = ssub.s32 %s34, 1
        // Predicated region
        $region13: #{tpu_custom_call.1} parent=11 // pred_check
          %p552 = pneg %p133
        $region14: #{tpu_custom_call.1} parent=11 // pred_check_branch
          %554 = sbr.rel (%p552) target = $region16
        $region15: #{tpu_custom_call.1} parent=11 // pred_region
          _
        $region16: #{tpu_custom_call.1} parent=11 // pred_fallthru
          _
        // Predicated region
        $region17: #{tpu_custom_call.1} parent=11 // pred_check
          %p555 = pneg %p154
        $region18: #{tpu_custom_call.1} parent=11 // pred_check_branch
          %557 = sbr.rel (%p555) target = $region20
        $region19: #{tpu_custom_call.1} parent=11 // pred_region
          %s559 = ssub.s32 16, 16
          %560 = vsyncadd [#allocation3], %s559
          %s562 = sshll.u32 [#allocation2], 4
          %s563 = int_to_ptr.vmem [resolvable:$true] %s562
          %565 = dma.hbm_to_vmem [thread:$0]  %s4, 16, %s563, [#allocation3]
        $region20: #{tpu_custom_call.1} parent=11 // pred_fallthru
          _
        // Predicated region
        $region21: #{tpu_custom_call.1} parent=11 // pred_check
          %p566 = pneg %p175
        $region22: #{tpu_custom_call.1} parent=11 // pred_check_branch
          %568 = sbr.rel (%p566) target = $region24
        $region23: #{tpu_custom_call.1} parent=11 // pred_region
          _
        $region24: #{tpu_custom_call.1} parent=11 // pred_fallthru
          _
        // Predicated region
        $region25: #{tpu_custom_call.1} parent=11 // pred_check
          %p569 = pneg %p196
        $region26: #{tpu_custom_call.1} parent=11 // pred_check_branch
          %571 = sbr.rel (%p569) target = $region28
        $region27: #{tpu_custom_call.1} parent=11 // pred_region
          _
        $region28: #{tpu_custom_call.1} parent=11 // pred_fallthru
          _
        // Predicated region
        $region29: #{tpu_custom_call.1} parent=11 // pred_check
          %p572 = pneg %p217
        $region30: #{tpu_custom_call.1} parent=11 // pred_check_branch
          %574 = sbr.rel (%p572) target = $region32
        $region31: #{tpu_custom_call.1} parent=11 // pred_region
          _
        $region32: #{tpu_custom_call.1} parent=11 // pred_fallthru
          _
        // Predicated region
        $region33: #{tpu_custom_call.1} parent=11 // pred_check
          %p575 = pneg %p238
        $region34: #{tpu_custom_call.1} parent=11 // pred_check_branch
          %577 = sbr.rel (%p575) target = $region36
        $region35: #{tpu_custom_call.1} parent=11 // pred_region
          _
        $region36: #{tpu_custom_call.1} parent=11 // pred_fallthru
          _
        // Predicated region
        $region37: #{tpu_custom_call.1} parent=11 // pred_check
          %p578 = pneg %p259
        $region38: #{tpu_custom_call.1} parent=11 // pred_check_branch
          %580 = sbr.rel (%p578) target = $region40
        $region39: #{tpu_custom_call.1} parent=11 // pred_region
          _
        $region40: #{tpu_custom_call.1} parent=11 // pred_fallthru
          _
        // Predicated region
        $region41: #{tpu_custom_call.1} parent=11 // pred_check
          %p581 = pneg %p280
        $region42: #{tpu_custom_call.1} parent=11 // pred_check_branch
          %583 = sbr.rel (%p581) target = $region44
        $region43: #{tpu_custom_call.1} parent=11 // pred_region
          %s585 = ssub.s32 32, 32
          %586 = vsyncadd [#allocation6], %s585
          %s587 = sshll.u32 [#allocation5], 4
          %s588 = int_to_ptr.vmem [resolvable:$true] %s587
          %593 = dma.hbm_to_vmem [thread:$0]  %s10, 32, %s588, [#allocation6], 16, 16, 1
        $region44: #{tpu_custom_call.1} parent=11 // pred_fallthru
          _
        // Predicated region
        $region45: #{tpu_custom_call.1} parent=11 // pred_check
          %p594 = pneg %p301
        $region46: #{tpu_custom_call.1} parent=11 // pred_check_branch
          %596 = sbr.rel (%p594) target = $region48
        $region47: #{tpu_custom_call.1} parent=11 // pred_region
          %s598 = ssub.s32 512, 512
          %599 = vsyncadd [#allocation6], %s598
          %s600 = sshll.u32 [#allocation7], 4
          %s601 = int_to_ptr.vmem [resolvable:$true] %s600
          %606 = dma.hbm_to_vmem [thread:$0]  %s11, 512, %s601, [#allocation6], 64, 64, 4
        $region48: #{tpu_custom_call.1} parent=11 // pred_fallthru
          _
        // Predicated region
        $region49: #{tpu_custom_call.1} parent=11 // pred_check
          %p607 = pneg %p322
        $region50: #{tpu_custom_call.1} parent=11 // pred_check_branch
          %609 = sbr.rel (%p607) target = $region52
        $region51: #{tpu_custom_call.1} parent=11 // pred_region
          %s611 = ssub.s32 32, 32
          %612 = vsyncadd [#allocation9], %s611
          %s613 = sshll.u32 [#allocation8], 4
          %s614 = int_to_ptr.vmem [resolvable:$true] %s613
          %619 = dma.hbm_to_vmem [thread:$0]  %s12, 32, %s614, [#allocation9], 16, 16, 1
        $region52: #{tpu_custom_call.1} parent=11 // pred_fallthru
          _
        // Predicated region
        $region53: #{tpu_custom_call.1} parent=11 // pred_check
          %p620 = pneg %p343
        $region54: #{tpu_custom_call.1} parent=11 // pred_check_branch
          %622 = sbr.rel (%p620) target = $region56
        $region55: #{tpu_custom_call.1} parent=11 // pred_region
          _
        $region56: #{tpu_custom_call.1} parent=11 // pred_fallthru
          _
        // Predicated region
        $region57: #{tpu_custom_call.1} parent=11 // pred_check
          %p623 = pneg %p364
        $region58: #{tpu_custom_call.1} parent=11 // pred_check_branch
          %625 = sbr.rel (%p623) target = $region60
        $region59: #{tpu_custom_call.1} parent=11 // pred_region
          _
        $region60: #{tpu_custom_call.1} parent=11 // pred_fallthru
          _
        // Predicated region
        $region61: #{tpu_custom_call.1} parent=11 // pred_check
          %p626 = pneg %p385
        $region62: #{tpu_custom_call.1} parent=11 // pred_check_branch
          %628 = sbr.rel (%p626) target = $region64
        $region63: #{tpu_custom_call.1} parent=11 // pred_region
          _
        $region64: #{tpu_custom_call.1} parent=11 // pred_fallthru
          _
        // Predicated region
        $region65: #{tpu_custom_call.1} parent=11 // pred_check
          %p629 = pneg %p406
        $region66: #{tpu_custom_call.1} parent=11 // pred_check_branch
          %631 = sbr.rel (%p629) target = $region68
        $region67: #{tpu_custom_call.1} parent=11 // pred_region
          _
        $region68: #{tpu_custom_call.1} parent=11 // pred_fallthru
          _
        // Predicated region
        $region69: #{tpu_custom_call.1} parent=11 // pred_check
          %p632 = pneg %p427
        $region70: #{tpu_custom_call.1} parent=11 // pred_check_branch
          %634 = sbr.rel (%p632) target = $region72
        $region71: #{tpu_custom_call.1} parent=11 // pred_region
          _
        $region72: #{tpu_custom_call.1} parent=11 // pred_fallthru
          _
        // Predicated region
        $region73: #{tpu_custom_call.1} parent=11 // pred_check
          %p635 = pneg %p448
        $region74: #{tpu_custom_call.1} parent=11 // pred_check_branch
          %637 = sbr.rel (%p635) target = $region76
        $region75: #{tpu_custom_call.1} parent=11 // pred_region
          _
        $region76: #{tpu_custom_call.1} parent=11 // pred_fallthru
          _
        // Predicated region
        $region77: #{tpu_custom_call.1} parent=11 // pred_check
          %p638 = pneg %p469
        $region78: #{tpu_custom_call.1} parent=11 // pred_check_branch
          %640 = sbr.rel (%p638) target = $region80
        $region79: #{tpu_custom_call.1} parent=11 // pred_region
          _
        $region80: #{tpu_custom_call.1} parent=11 // pred_fallthru
          _
        // Predicated region
        $region81: #{tpu_custom_call.1} parent=11 // pred_check
          %p641 = pneg %p490
        $region82: #{tpu_custom_call.1} parent=11 // pred_check_branch
          %643 = sbr.rel (%p641) target = $region84
        $region83: #{tpu_custom_call.1} parent=11 // pred_region
          _
        $region84: #{tpu_custom_call.1} parent=11 // pred_fallthru
          _
        // Predicated region
        $region85: #{tpu_custom_call.1} parent=11 // pred_check
          %p644 = pneg %p511
        $region86: #{tpu_custom_call.1} parent=11 // pred_check_branch
          %646 = sbr.rel (%p644) target = $region88
        $region87: #{tpu_custom_call.1} parent=11 // pred_region
          _
        $region88: #{tpu_custom_call.1} parent=11 // pred_fallthru
          _
      $region12: #{tpu_custom_call.1} parent=5 // pred_fallthru
        _
      %p647 = scmp.lt.s32.totalorder %s34, 2
      // Predicated region
      $region89: #{tpu_custom_call.1} parent=5 // pred_check
        %p648 = pneg %p647
      $region90: #{tpu_custom_call.1} parent=5 // pred_check_branch
        %650 = sbr.rel (%p648) target = $region92
      $region91: #{tpu_custom_call.1} parent=5 // pred_region
        // Predicated region
        $region93: #{tpu_custom_call.1} parent=91 // pred_check
          %p651 = pneg %p54
        $region94: #{tpu_custom_call.1} parent=91 // pred_check_branch
          %653 = sbr.rel (%p651) target = $region96
        $region95: #{tpu_custom_call.1} parent=91 // pred_region
          %s654 = smul.u32 2, %s34
          %p655 = scmp.lt.s32.totalorder %s654, 3
          %s656 = scalar_select %p655, %s654, 3
          %s657 = smul.addr %s656, 8
          %s658 = scalar_lea.vmem %s0, %s657
          %s659 = smul.u32 2, %s34
        $region96: #{tpu_custom_call.1} parent=91 // pred_fallthru
          _
        // Predicated region
        $region97: #{tpu_custom_call.1} parent=91 // pred_check
          %p660 = pneg %p80
        $region98: #{tpu_custom_call.1} parent=91 // pred_check_branch
          %662 = sbr.rel (%p660) target = $region100
        $region99: #{tpu_custom_call.1} parent=91 // pred_region
          %s663 = smul.u32 2, %s34
          %p664 = scmp.lt.s32.totalorder %s663, 3
          %s665 = scalar_select %p664, %s663, 3
          %s666 = scalar_lea.vmem %s1, %s665
          %s667 = smul.u32 2, %s34
        $region100: #{tpu_custom_call.1} parent=91 // pred_fallthru
          _
        // Predicated region
        $region101: #{tpu_custom_call.1} parent=91 // pred_check
          %p668 = pneg %p106
        $region102: #{tpu_custom_call.1} parent=91 // pred_check_branch
          %670 = sbr.rel (%p668) target = $region104
        $region103: #{tpu_custom_call.1} parent=91 // pred_region
          %s671 = smul.u32 2, %s34
          %p672 = scmp.lt.s32.totalorder %s671, 3
          %s673 = scalar_select %p672, %s671, 3
          %s674 = scalar_lea.vmem %s2, %s673
          %s675 = smul.u32 2, %s34
        $region104: #{tpu_custom_call.1} parent=91 // pred_fallthru
          _
      $region92: #{tpu_custom_call.1} parent=5 // pred_fallthru
        _
      %p676 = scmp.le.s32.totalorder 1, %s34
      %p677 = scmp.lt.s32.totalorder %s34, 3
      %p678 = pnand %p676, %p677
      %p679 = pneg %p678
      // Predicated region
      $region105: #{tpu_custom_call.1} parent=5 // pred_check
        _
      $region106: #{tpu_custom_call.1} parent=5 // pred_check_branch
        %681 = sbr.rel (%p678) target = $region108
      $region107: #{tpu_custom_call.1} parent=5 // pred_region
        %s682 = ssub.s32 %s34, 1
        // Predicated region
        $region109: #{tpu_custom_call.1} parent=107 // pred_check
          %p683 = pneg %p154
        $region110: #{tpu_custom_call.1} parent=107 // pred_check_branch
          %685 = sbr.rel (%p683) target = $region112
        $region111: #{tpu_custom_call.1} parent=107 // pred_region
          %686 = dma.done [#allocation3], 16
        $region112: #{tpu_custom_call.1} parent=107 // pred_fallthru
          _
        // Predicated region
        $region113: #{tpu_custom_call.1} parent=107 // pred_check
          %p687 = pneg %p280
        $region114: #{tpu_custom_call.1} parent=107 // pred_check_branch
          %689 = sbr.rel (%p687) target = $region116
        $region115: #{tpu_custom_call.1} parent=107 // pred_region
          %690 = dma.done [#allocation6], 32
        $region116: #{tpu_custom_call.1} parent=107 // pred_fallthru
          _
        // Predicated region
        $region117: #{tpu_custom_call.1} parent=107 // pred_check
          %p691 = pneg %p301
        $region118: #{tpu_custom_call.1} parent=107 // pred_check_branch
          %693 = sbr.rel (%p691) target = $region120
        $region119: #{tpu_custom_call.1} parent=107 // pred_region
          %694 = dma.done [#allocation6], 512
        $region120: #{tpu_custom_call.1} parent=107 // pred_fallthru
          _
        // Predicated region
        $region121: #{tpu_custom_call.1} parent=107 // pred_check
          %p695 = pneg %p322
        $region122: #{tpu_custom_call.1} parent=107 // pred_check_branch
          %697 = sbr.rel (%p695) target = $region124
        $region123: #{tpu_custom_call.1} parent=107 // pred_region
          %698 = dma.done [#allocation9], 32
        $region124: #{tpu_custom_call.1} parent=107 // pred_fallthru
          _
        %s699 = smul.u32 2, %s39
        %p700 = scmp.lt.s32.totalorder %s699, 3
        %s701 = scalar_select %p700, %s699, 3
        %s702 = smul.addr %s701, 8
        %s703 = scalar_lea.vmem %s0, %s702
        %p704 = pneg %p60
        %p705 = pneg %p57
        %s706 = smul.u32 2, %s39
        %p707 = scmp.lt.s32.totalorder %s706, 3
        %s708 = scalar_select %p707, %s706, 3
        %s709 = scalar_lea.vmem %s1, %s708
        %p710 = pneg %p86
        %p711 = pneg %p83
        %s712 = smul.u32 2, %s39
        %p713 = scmp.lt.s32.totalorder %s712, 3
        %s714 = scalar_select %p713, %s712, 3
        %s715 = scalar_lea.vmem %s2, %s714
        %p716 = pneg %p112
        %p717 = pneg %p109
        %p718 = pneg %p133
        %p719 = pneg %p130
        %p720 = pneg %p154
        %p721 = pneg %p151
        %p722 = pneg %p175
        %p723 = pneg %p172
        %p724 = pneg %p196
        %p725 = pneg %p193
        %p726 = pneg %p217
        %p727 = pneg %p214
        %p728 = pneg %p238
        %p729 = pneg %p235
        %p730 = pneg %p259
        %p731 = pneg %p256
        %p732 = pneg %p280
        %p733 = pneg %p277
        %p734 = pneg %p301
        %p735 = pneg %p298
        %p736 = pneg %p322
        %p737 = pneg %p319
        %p738 = pneg %p343
        %p739 = pneg %p340
        %p740 = pneg %p364
        %p741 = pneg %p361
        %p742 = pneg %p385
        %p743 = pneg %p382
        %p744 = pneg %p406
        %p745 = pneg %p403
        %p746 = pneg %p427
        %p747 = pneg %p424
        %p748 = pneg %p448
        %p749 = pneg %p445
        %p750 = pneg %p469
        %p751 = pneg %p466
        %p752 = pneg %p490
        %p753 = pneg %p487
        %p754 = pneg %p511
        %p755 = pneg %p508
        %p756 = pneg %p537
        %p757 = pneg %p534
        %s758 = sand.u32 %s524, 1
        %s759 = scalar_lea.sflag [#allocation4], %s758
        %s760 = sand.u32 %s524, 1
        %s761 = smul.addr %s760, 2
        %s762 = scalar_lea.vmem [#allocation10], %s761
        %s763 = smul.u32 2, %s39
        %p764 = scmp.lt.s32.totalorder %s763, 3
        %s765 = scalar_select %p764, %s763, 3
        %s766 = smul.addr %s765, 8
        %s767 = scalar_lea.vmem %s0, %s766
        %s768 = smul.u32 2, %s39
        %s769 = smul.u32 2, %s39
        %p770 = scmp.lt.s32.totalorder %s769, 3
        %s771 = scalar_select %p770, %s769, 3
        %s772 = scalar_lea.vmem %s1, %s771
        %s773 = smul.u32 2, %s39
        %s774 = smul.u32 2, %s39
        %p775 = scmp.lt.s32.totalorder %s774, 3
        %s776 = scalar_select %p775, %s774, 3
        %s777 = scalar_lea.vmem %s2, %s776
        %s778 = smul.u32 2, %s39
        %s779 = smul.u32 2, %s39
        %v781 = vlaneseq
        %v782 = vshrl.u32 %v781, 7
        %v783 = vlaneseq
        %v784 = vand.u32 %v783, 127
        %vm785 = vcmp.le.s32.totalorder %v784, %v782
        %v786 = vsel %vm785, 0.0, -10000.0
        %v787 = vld [vmem:[%s772] sm:$0x1]
        %v788 = vld [vmem:[%s772 + $0x1] sm:$0x1]
        %v789 = vsub.f32 1.0, %v787
        %v790 = vsub.f32 1.0, %v788
        %v791 = vmul.f32 %v789, -10000.0
        %v792 = vmul.f32 %v790, -10000.0
        %v793 = vld [vmem:[%s767] sm:$0xff]
        %v794 = vld [vmem:[%s767 + $0x8] sm:$0xff]
        %v795 = vld [vmem:[%s3] sm:$0x1]
        %v796 = vld [vmem:[#allocation2] sm:$0x1]
        %vm797 = vcmask 261120
        %v798 = vsel %vm797, %v793, 0.0
        %799 = vadd.xlane.f32.xlu0 %v798
        %v800 = vpop.xlane.xlu0 %799
        %v801 = vsel %vm797, %v794, 0.0
        %802 = vadd.xlane.f32.xlu0 %v801
        %v803 = vpop.xlane.xlu0 %802
        %v804 = vrcp.pop 32.0
        %v805 = vmul.f32 %v800, %v804
        %v806 = vmul.f32 %v803, %v804
        %v807 = vsub.f32 %v793, %v805
        %v808 = vsub.f32 %v794, %v806
        %v809 = vmul.f32 %v807, %v807
        %v810 = vmul.f32 %v808, %v808
        %v811 = vsel %vm797, %v809, 0.0
        %812 = vadd.xlane.f32.xlu0 %v811
        %v813 = vpop.xlane.xlu0 %812
        %v814 = vsel %vm797, %v810, 0.0
        %815 = vadd.xlane.f32.xlu0 %v814
        %v816 = vpop.xlane.xlu0 %815
        %v817 = vmul.f32 %v813, %v804
        %v818 = vmul.f32 %v816, %v804
        %v819 = vadd.f32 %v817, 1e-12
        %v820 = vadd.f32 %v818, 1e-12
        %v821 = vrsqrt.pop %v819
        %v822 = vrsqrt.pop %v820
        %v823 = vmul.f32 %v807, %v821
        %v824 = vmul.f32 %v808, %v822
        %v826 = vlaneseq
        %v827 = vshrl.u32 %v826, 7
        %v828 = vsub.s32 0, %v827
        %v829 = vrot.slane %v795, %v828
        %v831 = vmul.f32 %v823, %v829
        %v832 = vmul.f32 %v824, %v829
        %v834 = vlaneseq
        %v835 = vshrl.u32 %v834, 7
        %v836 = vsub.s32 0, %v835
        %v837 = vrot.slane %v796, %v836
        %v839 = vadd.f32 %v831, %v837
        %v840 = vadd.f32 %v832, %v837
        %v841 = vpack.c.bf16 %v840, %v839
        %v842 = vld [vmem:[%s5] sm:$0xf]
        %v843 = vld [vmem:[%s5 + $0x4] sm:$0xf]
        %v844 = vld [vmem:[%s5 + $0x8] sm:$0xf]
        %v845 = vld [vmem:[%s5 + $0xc] sm:$0xf]
        %v846 = vld [vmem:[%s6] sm:$0x1]
        %v848 = vlaneseq
        %v849 = vshrl.u32 %v848, 7
        %v850 = vsub.s32 0, %v849
        %v851 = vrot.slane %v846, %v850
        %v857 = vunpack.c.l.b16 %v842
        %v858 = vunpack.c.l.b16 %v843
        %v859 = vunpack.c.l.b16 %v844
        %v860 = vunpack.c.l.b16 %v845
        %v861 = vpack.c.b16 %v858, %v857
        %v862 = vpack.c.b16 %v860, %v859
        %v866 = vsel %vm797, %v841, 0
        %868 = vmatprep.subr.bf16.mxu0 0
        %869 = vmatpush1.bf16.msra.mxu0 %v861
        %870 = vmatprep.subr.bf16.mxu0 0
        %871 = vmatpush1.bf16.msra.mxu0 %v862
        %872 = vmatprep.subr.bf16.mxu0 0
        %873 = vmatpush1.bf16.msra.mxu0 0
        %874 = vmatprep.subr.bf16.mxu0 0
        %875 = vmatpush1.bf16.msra.mxu0 0
        %876 = vmatprep.subr.bf16.mxu0 0
        %877 = vmatpush1.bf16.msra.mxu0 0
        %878 = vmatprep.subr.bf16.mxu0 0
        %879 = vmatpush1.bf16.msra.mxu0 0
        %880 = vmatprep.subr.bf16.mxu0 0
        %881 = vmatpush1.bf16.msra.mxu0 0
        %882 = vmatprep.subr.bf16.mxu0 0
        %883 = vmatpush1.bf16.msra.mxu0 0
        %884 = vmatprep.subr.bf16.mxu0 0
        %885 = vmatpush1.bf16.msra.mxu0 0
        %886 = vmatprep.subr.bf16.mxu0 0
        %887 = vmatpush1.bf16.msra.mxu0 0
        %888 = vmatprep.subr.bf16.mxu0 0
        %889 = vmatpush1.bf16.msra.mxu0 0
        %890 = vmatprep.subr.bf16.mxu0 0
        %891 = vmatpush1.bf16.msra.mxu0 0
        %892 = vmatprep.subr.bf16.mxu0 0
        %893 = vmatpush1.bf16.msra.mxu0 0
        %894 = vmatprep.subr.bf16.mxu0 0
        %895 = vmatpush1.bf16.msra.mxu0 0
        %896 = vmatprep.subr.bf16.mxu0 0
        %897 = vmatpush1.bf16.msra.mxu0 0
        %898 = vmatprep.subr.bf16.mxu0 0
        %899 = vmatpush1.bf16.msra.mxu0 0
        %900 = vmatprep.mubr.bf16.mxu0 0
        %901 = vmatmul.mubr.bf16.gmra.mrb[0].mxu0 %v866
        %v902 = vpop.f32.mrb[0].mxu0
        %v903 = vadd.f32 %v851, %v902
        %v904 = vpop.f32.mrb[0].mxu0
        %v905 = vpop.f32.mrb[0].mxu0
        %v906 = vadd.f32 %v851, %v905
        %v907 = vpop.f32.mrb[0].mxu0
        %908 = vdwg.mxu0
        %v909 = vmul.f32 %v903, 0.25
        %v910 = vmul.f32 %v906, 0.25
        %v911 = vld [vmem:[%s7] sm:$0xf]
        %v912 = vld [vmem:[%s7 + $0x4] sm:$0xf]
        %v913 = vld [vmem:[%s7 + $0x8] sm:$0xf]
        %v914 = vld [vmem:[%s7 + $0xc] sm:$0xf]
        %v915 = vpack.c.bf16 %v909, %v909
        %v916 = vpack.c.bf16 %v910, %v910
        %v917 = vpack.c.bf16 %v903, %v903
        %v918 = vpack.c.bf16 %v906, %v906
        %920 = vrot.lane.b32.xlu0 %v917, 96
        %v921 = vpop.permute.xlu0 %920
        %vm922 = vcmask 130048
        %v924 = vsel %vm922, %v915, 0
        %v927 = vsel %vm922, %v921, 0
        %929 = vmatprep.subr.bf16.mxu0 0
        %930 = vmatpush1.bf16.xpose.msra.mxu0 %v927
        %931 = vmatprep.subr.bf16.mxu0 0
        %932 = vmatpush1.bf16.xpose.msra.mxu0 0
        %933 = vmatprep.subr.bf16.mxu0 0
        %934 = vmatpush1.bf16.xpose.msra.mxu0 0
        %935 = vmatprep.subr.bf16.mxu0 0
        %936 = vmatpush1.bf16.xpose.msra.mxu0 0
        %937 = vmatprep.subr.bf16.mxu0 0
        %938 = vmatpush1.bf16.xpose.msra.mxu0 0
        %939 = vmatprep.subr.bf16.mxu0 0
        %940 = vmatpush1.bf16.xpose.msra.mxu0 0
        %941 = vmatprep.subr.bf16.mxu0 0
        %942 = vmatpush1.bf16.xpose.msra.mxu0 0
        %943 = vmatprep.subr.bf16.mxu0 0
        %944 = vmatpush1.bf16.xpose.msra.mxu0 0
        %945 = vmatprep.subr.bf16.mxu0 0
        %946 = vmatpush1.bf16.xpose.msra.mxu0 0
        %947 = vmatprep.subr.bf16.mxu0 0
        %948 = vmatpush1.bf16.xpose.msra.mxu0 0
        %949 = vmatprep.subr.bf16.mxu0 0
        %950 = vmatpush1.bf16.xpose.msra.mxu0 0
        %951 = vmatprep.subr.bf16.mxu0 0
        %952 = vmatpush1.bf16.xpose.msra.mxu0 0
        %953 = vmatprep.subr.bf16.mxu0 0
        %954 = vmatpush1.bf16.xpose.msra.mxu0 0
        %955 = vmatprep.subr.bf16.mxu0 0
        %956 = vmatpush1.bf16.xpose.msra.mxu0 0
        %957 = vmatprep.subr.bf16.mxu0 0
        %958 = vmatpush1.bf16.xpose.msra.mxu0 0
        %959 = vmatprep.subr.bf16.mxu0 0
        %960 = vmatpush1.bf16.xpose.msra.mxu0 0
        %961 = vmatprep.mubr.bf16.mxu0 0
        %962 = vmatmul.mubr.bf16.gmra.mrb[0].mxu0 %v924
        %v963 = vpop.f32.mrb[0].mxu0
        %v964 = vadd.f32 %v786, %v963
        %v965 = vpop.f32.mrb[0].mxu0
        %v966 = vpop.f32.mrb[0].mxu0
        %v967 = vpop.f32.mrb[0].mxu0
        %968 = vdwg.mxu0
        %970 = vrot.lane.b32.xlu0 %v918, 96
        %v971 = vpop.permute.xlu0 %970
        %v973 = vsel %vm922, %v916, 0
        %v976 = vsel %vm922, %v971, 0
        %978 = vmatprep.subr.bf16.mxu0 0
        %979 = vmatpush1.bf16.xpose.msra.mxu0 %v976
        %980 = vmatprep.subr.bf16.mxu0 0
        %981 = vmatpush1.bf16.xpose.msra.mxu0 0
        %982 = vmatprep.subr.bf16.mxu0 0
        %983 = vmatpush1.bf16.xpose.msra.mxu0 0
        %984 = vmatprep.subr.bf16.mxu0 0
        %985 = vmatpush1.bf16.xpose.msra.mxu0 0
        %986 = vmatprep.subr.bf16.mxu0 0
        %987 = vmatpush1.bf16.xpose.msra.mxu0 0
        %988 = vmatprep.subr.bf16.mxu0 0
        %989 = vmatpush1.bf16.xpose.msra.mxu0 0
        %990 = vmatprep.subr.bf16.mxu0 0
        %991 = vmatpush1.bf16.xpose.msra.mxu0 0
        %992 = vmatprep.subr.bf16.mxu0 0
        %993 = vmatpush1.bf16.xpose.msra.mxu0 0
        %994 = vmatprep.subr.bf16.mxu0 0
        %995 = vmatpush1.bf16.xpose.msra.mxu0 0
        %996 = vmatprep.subr.bf16.mxu0 0
        %997 = vmatpush1.bf16.xpose.msra.mxu0 0
        %998 = vmatprep.subr.bf16.mxu0 0
        %999 = vmatpush1.bf16.xpose.msra.mxu0 0
        %1000 = vmatprep.subr.bf16.mxu0 0
        %1001 = vmatpush1.bf16.xpose.msra.mxu0 0
        %1002 = vmatprep.subr.bf16.mxu0 0
        %1003 = vmatpush1.bf16.xpose.msra.mxu0 0
        %1004 = vmatprep.subr.bf16.mxu0 0
        %1005 = vmatpush1.bf16.xpose.msra.mxu0 0
        %1006 = vmatprep.subr.bf16.mxu0 0
        %1007 = vmatpush1.bf16.xpose.msra.mxu0 0
        %1008 = vmatprep.subr.bf16.mxu0 0
        %1009 = vmatpush1.bf16.xpose.msra.mxu0 0
        %1010 = vmatprep.mubr.bf16.mxu0 0
        %1011 = vmatmul.mubr.bf16.gmra.mrb[0].mxu0 %v973
        %v1012 = vpop.f32.mrb[0].mxu0
        %v1013 = vadd.f32 %v786, %v1012
        %v1014 = vpop.f32.mrb[0].mxu0
        %v1015 = vpop.f32.mrb[0].mxu0
        %v1016 = vpop.f32.mrb[0].mxu0
        %1017 = vdwg.mxu0
        %v1020 = vlaneseq
        %v1021 = vshrl.u32 %v1020, 7
        %v1022 = vsub.s32 0, %v1021
        %v1023 = vrot.slane %v791, %v1022
        %v1024 = vlaneseq
        %v1025 = vshrl.u32 %v1024, 7
        %v1026 = vsub.s32 0, %v1025
        %v1027 = vrot.slane %v792, %v1026
        %v1030 = vadd.f32 %v964, %v1023
        %v1031 = vadd.f32 %v1013, %v1027
        %vm1032 = vcmask 64512
        %v1033 = vsel %vm1032, %v1030, -inf
        %1034 = vmax.xlane.f32.xlu0 %v1033
        %v1035 = vpop.xlane.xlu0 %1034
        %v1036 = vsel %vm1032, %v1031, -inf
        %1037 = vmax.xlane.f32.xlu0 %v1036
        %v1038 = vpop.xlane.xlu0 %1037
        %v1039 = vsub.f32 %v1030, %v1035
        %v1040 = vsub.f32 %v1031, %v1038
        %v1041 = vmul.f32 %v1039, 1.442695
        %v1042 = vpow.pop %v1041
        %v1043 = vmul.f32 %v1040, 1.442695
        %v1044 = vpow.pop %v1043
        %v1045 = vsel %vm1032, %v1042, 0.0
        %1046 = vadd.xlane.f32.xlu0 %v1045
        %v1047 = vpop.xlane.xlu0 %1046
        %v1048 = vsel %vm1032, %v1044, 0.0
        %1049 = vadd.xlane.f32.xlu0 %v1048
        %v1050 = vpop.xlane.xlu0 %1049
        %v1051 = vrcp.pop %v1047
        %v1052 = vrcp.pop %v1050
        %v1053 = vmul.f32 %v1042, %v1051
        %v1054 = vmul.f32 %v1044, %v1052
        %v1055 = vpack.c.bf16 %v1053, %v1053
        %v1056 = vpack.c.bf16 %v1054, %v1054
        %1057 = vrot.lane.b32.xlu0 %v917, 64
        %v1058 = vpop.permute.xlu0 %1057
        %v1060 = vsel %vm1032, %v1055, 0
        %vm1062 = vcmask 1043456
        %v1064 = vsel %vm1062, %v1058, 0
        %1066 = vmatprep.subr.bf16.mxu0 0
        %1067 = vmatpush1.bf16.msra.mxu0 %v1064
        %1068 = vmatprep.subr.bf16.mxu0 0
        %1069 = vmatpush1.bf16.msra.mxu0 0
        %1070 = vmatprep.subr.bf16.mxu0 0
        %1071 = vmatpush1.bf16.msra.mxu0 0
        %1072 = vmatprep.subr.bf16.mxu0 0
        %1073 = vmatpush1.bf16.msra.mxu0 0
        %1074 = vmatprep.subr.bf16.mxu0 0
        %1075 = vmatpush1.bf16.msra.mxu0 0
        %1076 = vmatprep.subr.bf16.mxu0 0
        %1077 = vmatpush1.bf16.msra.mxu0 0
        %1078 = vmatprep.subr.bf16.mxu0 0
        %1079 = vmatpush1.bf16.msra.mxu0 0
        %1080 = vmatprep.subr.bf16.mxu0 0
        %1081 = vmatpush1.bf16.msra.mxu0 0
        %1082 = vmatprep.subr.bf16.mxu0 0
        %1083 = vmatpush1.bf16.msra.mxu0 0
        %1084 = vmatprep.subr.bf16.mxu0 0
        %1085 = vmatpush1.bf16.msra.mxu0 0
        %1086 = vmatprep.subr.bf16.mxu0 0
        %1087 = vmatpush1.bf16.msra.mxu0 0
        %1088 = vmatprep.subr.bf16.mxu0 0
        %1089 = vmatpush1.bf16.msra.mxu0 0
        %1090 = vmatprep.subr.bf16.mxu0 0
        %1091 = vmatpush1.bf16.msra.mxu0 0
        %1092 = vmatprep.subr.bf16.mxu0 0
        %1093 = vmatpush1.bf16.msra.mxu0 0
        %1094 = vmatprep.subr.bf16.mxu0 0
        %1095 = vmatpush1.bf16.msra.mxu0 0
        %1096 = vmatprep.subr.bf16.mxu0 0
        %1097 = vmatpush1.bf16.msra.mxu0 0
        %1098 = vmatprep.mubr.bf16.mxu0 0
        %1099 = vmatmul.mubr.bf16.gmra.mrb[0].mxu0 %v1060
        %v1100 = vpop.f32.mrb[0].mxu0
        %v1101 = vadd.f32 0.0, %v1100
        %v1102 = vpop.f32.mrb[0].mxu0
        %v1103 = vpop.f32.mrb[0].mxu0
        %v1104 = vpop.f32.mrb[0].mxu0
        %1105 = vdwg.mxu0
        %1106 = vrot.lane.b32.xlu0 %v918, 64
        %v1107 = vpop.permute.xlu0 %1106
        %v1109 = vsel %vm1032, %v1056, 0
        %v1112 = vsel %vm1062, %v1107, 0
        %1114 = vmatprep.subr.bf16.mxu0 0
        %1115 = vmatpush1.bf16.msra.mxu0 %v1112
        %1116 = vmatprep.subr.bf16.mxu0 0
        %1117 = vmatpush1.bf16.msra.mxu0 0
        %1118 = vmatprep.subr.bf16.mxu0 0
        %1119 = vmatpush1.bf16.msra.mxu0 0
        %1120 = vmatprep.subr.bf16.mxu0 0
        %1121 = vmatpush1.bf16.msra.mxu0 0
        %1122 = vmatprep.subr.bf16.mxu0 0
        %1123 = vmatpush1.bf16.msra.mxu0 0
        %1124 = vmatprep.subr.bf16.mxu0 0
        %1125 = vmatpush1.bf16.msra.mxu0 0
        %1126 = vmatprep.subr.bf16.mxu0 0
        %1127 = vmatpush1.bf16.msra.mxu0 0
        %1128 = vmatprep.subr.bf16.mxu0 0
        %1129 = vmatpush1.bf16.msra.mxu0 0
        %1130 = vmatprep.subr.bf16.mxu0 0
        %1131 = vmatpush1.bf16.msra.mxu0 0
        %1132 = vmatprep.subr.bf16.mxu0 0
        %1133 = vmatpush1.bf16.msra.mxu0 0
        %1134 = vmatprep.subr.bf16.mxu0 0
        %1135 = vmatpush1.bf16.msra.mxu0 0
        %1136 = vmatprep.subr.bf16.mxu0 0
        %1137 = vmatpush1.bf16.msra.mxu0 0
        %1138 = vmatprep.subr.bf16.mxu0 0
        %1139 = vmatpush1.bf16.msra.mxu0 0
        %1140 = vmatprep.subr.bf16.mxu0 0
        %1141 = vmatpush1.bf16.msra.mxu0 0
        %1142 = vmatprep.subr.bf16.mxu0 0
        %1143 = vmatpush1.bf16.msra.mxu0 0
        %1144 = vmatprep.subr.bf16.mxu0 0
        %1145 = vmatpush1.bf16.msra.mxu0 0
        %1146 = vmatprep.mubr.bf16.mxu0 0
        %1147 = vmatmul.mubr.bf16.gmra.mrb[0].mxu0 %v1109
        %v1148 = vpop.f32.mrb[0].mxu0
        %v1149 = vadd.f32 0.0, %v1148
        %v1150 = vpop.f32.mrb[0].mxu0
        %v1151 = vpop.f32.mrb[0].mxu0
        %v1152 = vpop.f32.mrb[0].mxu0
        %1153 = vdwg.mxu0
        %v1154 = vpack.c.bf16 %v1149, %v1101
        %1156 = vrot.lane.b32.xlu0 %v915, 112
        %v1157 = vpop.permute.xlu0 %1156
        %1158 = vrot.lane.b32.xlu0 %v917, 80
        %v1159 = vpop.permute.xlu0 %1158
        %v1161 = vsel %vm922, %v1157, 0
        %v1164 = vsel %vm922, %v1159, 0
        %1166 = vmatprep.subr.bf16.mxu0 0
        %1167 = vmatpush1.bf16.xpose.msra.mxu0 %v1164
        %1168 = vmatprep.subr.bf16.mxu0 0
        %1169 = vmatpush1.bf16.xpose.msra.mxu0 0
        %1170 = vmatprep.subr.bf16.mxu0 0
        %1171 = vmatpush1.bf16.xpose.msra.mxu0 0
        %1172 = vmatprep.subr.bf16.mxu0 0
        %1173 = vmatpush1.bf16.xpose.msra.mxu0 0
        %1174 = vmatprep.subr.bf16.mxu0 0
        %1175 = vmatpush1.bf16.xpose.msra.mxu0 0
        %1176 = vmatprep.subr.bf16.mxu0 0
        %1177 = vmatpush1.bf16.xpose.msra.mxu0 0
        %1178 = vmatprep.subr.bf16.mxu0 0
        %1179 = vmatpush1.bf16.xpose.msra.mxu0 0
        %1180 = vmatprep.subr.bf16.mxu0 0
        %1181 = vmatpush1.bf16.xpose.msra.mxu0 0
        %1182 = vmatprep.subr.bf16.mxu0 0
        %1183 = vmatpush1.bf16.xpose.msra.mxu0 0
        %1184 = vmatprep.subr.bf16.mxu0 0
        %1185 = vmatpush1.bf16.xpose.msra.mxu0 0
        %1186 = vmatprep.subr.bf16.mxu0 0
        %1187 = vmatpush1.bf16.xpose.msra.mxu0 0
        %1188 = vmatprep.subr.bf16.mxu0 0
        %1189 = vmatpush1.bf16.xpose.msra.mxu0 0
        %1190 = vmatprep.subr.bf16.mxu0 0
        %1191 = vmatpush1.bf16.xpose.msra.mxu0 0
        %1192 = vmatprep.subr.bf16.mxu0 0
        %1193 = vmatpush1.bf16.xpose.msra.mxu0 0
        %1194 = vmatprep.subr.bf16.mxu0 0
        %1195 = vmatpush1.bf16.xpose.msra.mxu0 0
        %1196 = vmatprep.subr.bf16.mxu0 0
        %1197 = vmatpush1.bf16.xpose.msra.mxu0 0
        %1198 = vmatprep.mubr.bf16.mxu0 0
        %1199 = vmatmul.mubr.bf16.gmra.mrb[0].mxu0 %v1161
        %v1200 = vpop.f32.mrb[0].mxu0
        %v1201 = vadd.f32 %v786, %v1200
        %v1202 = vpop.f32.mrb[0].mxu0
        %v1203 = vpop.f32.mrb[0].mxu0
        %v1204 = vpop.f32.mrb[0].mxu0
        %1205 = vdwg.mxu0
        %1207 = vrot.lane.b32.xlu0 %v916, 112
        %v1208 = vpop.permute.xlu0 %1207
        %1209 = vrot.lane.b32.xlu0 %v918, 80
        %v1210 = vpop.permute.xlu0 %1209
        %v1212 = vsel %vm922, %v1208, 0
        %v1215 = vsel %vm922, %v1210, 0
        %1217 = vmatprep.subr.bf16.mxu0 0
        %1218 = vmatpush1.bf16.xpose.msra.mxu0 %v1215
        %1219 = vmatprep.subr.bf16.mxu0 0
        %1220 = vmatpush1.bf16.xpose.msra.mxu0 0
        %1221 = vmatprep.subr.bf16.mxu0 0
        %1222 = vmatpush1.bf16.xpose.msra.mxu0 0
        %1223 = vmatprep.subr.bf16.mxu0 0
        %1224 = vmatpush1.bf16.xpose.msra.mxu0 0
        %1225 = vmatprep.subr.bf16.mxu0 0
        %1226 = vmatpush1.bf16.xpose.msra.mxu0 0
        %1227 = vmatprep.subr.bf16.mxu0 0
        %1228 = vmatpush1.bf16.xpose.msra.mxu0 0
        %1229 = vmatprep.subr.bf16.mxu0 0
        %1230 = vmatpush1.bf16.xpose.msra.mxu0 0
        %1231 = vmatprep.subr.bf16.mxu0 0
        %1232 = vmatpush1.bf16.xpose.msra.mxu0 0
        %1233 = vmatprep.subr.bf16.mxu0 0
        %1234 = vmatpush1.bf16.xpose.msra.mxu0 0
        %1235 = vmatprep.subr.bf16.mxu0 0
        %1236 = vmatpush1.bf16.xpose.msra.mxu0 0
        %1237 = vmatprep.subr.bf16.mxu0 0
        %1238 = vmatpush1.bf16.xpose.msra.mxu0 0
        %1239 = vmatprep.subr.bf16.mxu0 0
        %1240 = vmatpush1.bf16.xpose.msra.mxu0 0
        %1241 = vmatprep.subr.bf16.mxu0 0
        %1242 = vmatpush1.bf16.xpose.msra.mxu0 0
        %1243 = vmatprep.subr.bf16.mxu0 0
        %1244 = vmatpush1.bf16.xpose.msra.mxu0 0
        %1245 = vmatprep.subr.bf16.mxu0 0
        %1246 = vmatpush1.bf16.xpose.msra.mxu0 0
        %1247 = vmatprep.subr.bf16.mxu0 0
        %1248 = vmatpush1.bf16.xpose.msra.mxu0 0
        %1249 = vmatprep.mubr.bf16.mxu0 0
        %1250 = vmatmul.mubr.bf16.gmra.mrb[0].mxu0 %v1212
        %v1251 = vpop.f32.mrb[0].mxu0
        %v1252 = vadd.f32 %v786, %v1251
        %v1253 = vpop.f32.mrb[0].mxu0
        %v1254 = vpop.f32.mrb[0].mxu0
        %v1255 = vpop.f32.mrb[0].mxu0
        %1256 = vdwg.mxu0
        %v1257 = vadd.f32 %v1201, %v1023
        %v1258 = vadd.f32 %v1252, %v1027
        %v1259 = vsel %vm1032, %v1257, -inf
        %1260 = vmax.xlane.f32.xlu0 %v1259
        %v1261 = vpop.xlane.xlu0 %1260
        %v1262 = vsel %vm1032, %v1258, -inf
        %1263 = vmax.xlane.f32.xlu0 %v1262
        %v1264 = vpop.xlane.xlu0 %1263
        %v1265 = vsub.f32 %v1257, %v1261
        %v1266 = vsub.f32 %v1258, %v1264
        %v1267 = vmul.f32 %v1265, 1.442695
        %v1268 = vpow.pop %v1267
        %v1269 = vmul.f32 %v1266, 1.442695
        %v1270 = vpow.pop %v1269
        %v1271 = vsel %vm1032, %v1268, 0.0
        %1272 = vadd.xlane.f32.xlu0 %v1271
        %v1273 = vpop.xlane.xlu0 %1272
        %v1274 = vsel %vm1032, %v1270, 0.0
        %1275 = vadd.xlane.f32.xlu0 %v1274
        %v1276 = vpop.xlane.xlu0 %1275
        %v1277 = vrcp.pop %v1273
        %v1278 = vrcp.pop %v1276
        %v1279 = vmul.f32 %v1268, %v1277
        %v1280 = vmul.f32 %v1270, %v1278
        %v1281 = vpack.c.bf16 %v1279, %v1279
        %v1282 = vpack.c.bf16 %v1280, %v1280
        %1283 = vrot.lane.b32.xlu0 %v917, 48
        %v1284 = vpop.permute.xlu0 %1283
        %v1286 = vsel %vm1032, %v1281, 0
        %v1289 = vsel %vm1062, %v1284, 0
        %1291 = vmatprep.subr.bf16.mxu0 0
        %1292 = vmatpush1.bf16.msra.mxu0 %v1289
        %1293 = vmatprep.subr.bf16.mxu0 0
        %1294 = vmatpush1.bf16.msra.mxu0 0
        %1295 = vmatprep.subr.bf16.mxu0 0
        %1296 = vmatpush1.bf16.msra.mxu0 0
        %1297 = vmatprep.subr.bf16.mxu0 0
        %1298 = vmatpush1.bf16.msra.mxu0 0
        %1299 = vmatprep.subr.bf16.mxu0 0
        %1300 = vmatpush1.bf16.msra.mxu0 0
        %1301 = vmatprep.subr.bf16.mxu0 0
        %1302 = vmatpush1.bf16.msra.mxu0 0
        %1303 = vmatprep.subr.bf16.mxu0 0
        %1304 = vmatpush1.bf16.msra.mxu0 0
        %1305 = vmatprep.subr.bf16.mxu0 0
        %1306 = vmatpush1.bf16.msra.mxu0 0
        %1307 = vmatprep.subr.bf16.mxu0 0
        %1308 = vmatpush1.bf16.msra.mxu0 0
        %1309 = vmatprep.subr.bf16.mxu0 0
        %1310 = vmatpush1.bf16.msra.mxu0 0
        %1311 = vmatprep.subr.bf16.mxu0 0
        %1312 = vmatpush1.bf16.msra.mxu0 0
        %1313 = vmatprep.subr.bf16.mxu0 0
        %1314 = vmatpush1.bf16.msra.mxu0 0
        %1315 = vmatprep.subr.bf16.mxu0 0
        %1316 = vmatpush1.bf16.msra.mxu0 0
        %1317 = vmatprep.subr.bf16.mxu0 0
        %1318 = vmatpush1.bf16.msra.mxu0 0
        %1319 = vmatprep.subr.bf16.mxu0 0
        %1320 = vmatpush1.bf16.msra.mxu0 0
        %1321 = vmatprep.subr.bf16.mxu0 0
        %1322 = vmatpush1.bf16.msra.mxu0 0
        %1323 = vmatprep.mubr.bf16.mxu0 0
        %1324 = vmatmul.mubr.bf16.gmra.mrb[0].mxu0 %v1286
        %v1325 = vpop.f32.mrb[0].mxu0
        %v1326 = vadd.f32 0.0, %v1325
        %v1327 = vpop.f32.mrb[0].mxu0
        %v1328 = vpop.f32.mrb[0].mxu0
        %v1329 = vpop.f32.mrb[0].mxu0
        %1330 = vdwg.mxu0
        %1331 = vrot.lane.b32.xlu0 %v918, 48
        %v1332 = vpop.permute.xlu0 %1331
        %v1334 = vsel %vm1032, %v1282, 0
        %v1337 = vsel %vm1062, %v1332, 0
        %1339 = vmatprep.subr.bf16.mxu0 0
        %1340 = vmatpush1.bf16.msra.mxu0 %v1337
        %1341 = vmatprep.subr.bf16.mxu0 0
        %1342 = vmatpush1.bf16.msra.mxu0 0
        %1343 = vmatprep.subr.bf16.mxu0 0
        %1344 = vmatpush1.bf16.msra.mxu0 0
        %1345 = vmatprep.subr.bf16.mxu0 0
        %1346 = vmatpush1.bf16.msra.mxu0 0
        %1347 = vmatprep.subr.bf16.mxu0 0
        %1348 = vmatpush1.bf16.msra.mxu0 0
        %1349 = vmatprep.subr.bf16.mxu0 0
        %1350 = vmatpush1.bf16.msra.mxu0 0
        %1351 = vmatprep.subr.bf16.mxu0 0
        %1352 = vmatpush1.bf16.msra.mxu0 0
        %1353 = vmatprep.subr.bf16.mxu0 0
        %1354 = vmatpush1.bf16.msra.mxu0 0
        %1355 = vmatprep.subr.bf16.mxu0 0
        %1356 = vmatpush1.bf16.msra.mxu0 0
        %1357 = vmatprep.subr.bf16.mxu0 0
        %1358 = vmatpush1.bf16.msra.mxu0 0
        %1359 = vmatprep.subr.bf16.mxu0 0
        %1360 = vmatpush1.bf16.msra.mxu0 0
        %1361 = vmatprep.subr.bf16.mxu0 0
        %1362 = vmatpush1.bf16.msra.mxu0 0
        %1363 = vmatprep.subr.bf16.mxu0 0
        %1364 = vmatpush1.bf16.msra.mxu0 0
        %1365 = vmatprep.subr.bf16.mxu0 0
        %1366 = vmatpush1.bf16.msra.mxu0 0
        %1367 = vmatprep.subr.bf16.mxu0 0
        %1368 = vmatpush1.bf16.msra.mxu0 0
        %1369 = vmatprep.subr.bf16.mxu0 0
        %1370 = vmatpush1.bf16.msra.mxu0 0
        %1371 = vmatprep.mubr.bf16.mxu0 0
        %1372 = vmatmul.mubr.bf16.gmra.mrb[0].mxu0 %v1334
        %v1373 = vpop.f32.mrb[0].mxu0
        %v1374 = vadd.f32 0.0, %v1373
        %v1375 = vpop.f32.mrb[0].mxu0
        %v1376 = vpop.f32.mrb[0].mxu0
        %v1377 = vpop.f32.mrb[0].mxu0
        %1378 = vdwg.mxu0
        %v1379 = vpack.c.bf16 %v1374, %v1326
        %v1382 = vunpack.c.l.b16 %v913
        %v1383 = vunpack.c.l.b16 %v914
        %v1384 = vpack.c.b16 %v1383, %v1382
        %v1387 = vsel %vm922, %v1379, 0
        %1389 = vmatprep.subr.bf16.mxu0 0
        %1390 = vmatpush1.bf16.msra.mxu0 %v1384
        %1391 = vmatprep.subr.bf16.mxu0 0
        %1392 = vmatpush1.bf16.msra.mxu0 0
        %1393 = vmatprep.subr.bf16.mxu0 0
        %1394 = vmatpush1.bf16.msra.mxu0 0
        %1395 = vmatprep.subr.bf16.mxu0 0
        %1396 = vmatpush1.bf16.msra.mxu0 0
        %1397 = vmatprep.subr.bf16.mxu0 0
        %1398 = vmatpush1.bf16.msra.mxu0 0
        %1399 = vmatprep.subr.bf16.mxu0 0
        %1400 = vmatpush1.bf16.msra.mxu0 0
        %1401 = vmatprep.subr.bf16.mxu0 0
        %1402 = vmatpush1.bf16.msra.mxu0 0
        %1403 = vmatprep.subr.bf16.mxu0 0
        %1404 = vmatpush1.bf16.msra.mxu0 0
        %1405 = vmatprep.subr.bf16.mxu0 0
        %1406 = vmatpush1.bf16.msra.mxu0 0
        %1407 = vmatprep.subr.bf16.mxu0 0
        %1408 = vmatpush1.bf16.msra.mxu0 0
        %1409 = vmatprep.subr.bf16.mxu0 0
        %1410 = vmatpush1.bf16.msra.mxu0 0
        %1411 = vmatprep.subr.bf16.mxu0 0
        %1412 = vmatpush1.bf16.msra.mxu0 0
        %1413 = vmatprep.subr.bf16.mxu0 0
        %1414 = vmatpush1.bf16.msra.mxu0 0
        %1415 = vmatprep.subr.bf16.mxu0 0
        %1416 = vmatpush1.bf16.msra.mxu0 0
        %1417 = vmatprep.subr.bf16.mxu0 0
        %1418 = vmatpush1.bf16.msra.mxu0 0
        %1419 = vmatprep.subr.bf16.mxu0 0
        %1420 = vmatpush1.bf16.msra.mxu0 0
        %1421 = vmatprep.mubr.bf16.mxu0 0
        %1422 = vmatmul.mubr.bf16.gmra.mrb[0].mxu0 %v1387
        %v1423 = vpop.f32.mrb[0].mxu0
        %v1424 = vadd.f32 0.0, %v1423
        %v1425 = vpop.f32.mrb[0].mxu0
        %v1426 = vpop.f32.mrb[0].mxu0
        %v1427 = vadd.f32 0.0, %v1426
        %v1428 = vpop.f32.mrb[0].mxu0
        %1429 = vdwg.mxu0
        %v1432 = vunpack.c.l.b16 %v911
        %v1433 = vunpack.c.l.b16 %v912
        %v1434 = vpack.c.b16 %v1433, %v1432
        %v1437 = vsel %vm922, %v1154, 0
        %1439 = vmatprep.subr.bf16.mxu0 0
        %1440 = vmatpush1.bf16.msra.mxu0 %v1434
        %1441 = vmatprep.subr.bf16.mxu0 0
        %1442 = vmatpush1.bf16.msra.mxu0 0
        %1443 = vmatprep.subr.bf16.mxu0 0
        %1444 = vmatpush1.bf16.msra.mxu0 0
        %1445 = vmatprep.subr.bf16.mxu0 0
        %1446 = vmatpush1.bf16.msra.mxu0 0
        %1447 = vmatprep.subr.bf16.mxu0 0
        %1448 = vmatpush1.bf16.msra.mxu0 0
        %1449 = vmatprep.subr.bf16.mxu0 0
        %1450 = vmatpush1.bf16.msra.mxu0 0
        %1451 = vmatprep.subr.bf16.mxu0 0
        %1452 = vmatpush1.bf16.msra.mxu0 0
        %1453 = vmatprep.subr.bf16.mxu0 0
        %1454 = vmatpush1.bf16.msra.mxu0 0
        %1455 = vmatprep.subr.bf16.mxu0 0
        %1456 = vmatpush1.bf16.msra.mxu0 0
        %1457 = vmatprep.subr.bf16.mxu0 0
        %1458 = vmatpush1.bf16.msra.mxu0 0
        %1459 = vmatprep.subr.bf16.mxu0 0
        %1460 = vmatpush1.bf16.msra.mxu0 0
        %1461 = vmatprep.subr.bf16.mxu0 0
        %1462 = vmatpush1.bf16.msra.mxu0 0
        %1463 = vmatprep.subr.bf16.mxu0 0
        %1464 = vmatpush1.bf16.msra.mxu0 0
        %1465 = vmatprep.subr.bf16.mxu0 0
        %1466 = vmatpush1.bf16.msra.mxu0 0
        %1467 = vmatprep.subr.bf16.mxu0 0
        %1468 = vmatpush1.bf16.msra.mxu0 0
        %1469 = vmatprep.subr.bf16.mxu0 0
        %1470 = vmatpush1.bf16.msra.mxu0 0
        %1471 = vmatprep.mubr.bf16.mxu0 0
        %1472 = vmatmul.mubr.bf16.gmra.mrb[0].mxu0 %v1437
        %v1473 = vpop.f32.mrb[0].mxu0
        %v1474 = vadd.f32 %v1424, %v1473
        %v1475 = vpop.f32.mrb[0].mxu0
        %v1476 = vpop.f32.mrb[0].mxu0
        %v1477 = vadd.f32 %v1427, %v1476
        %v1478 = vpop.f32.mrb[0].mxu0
        %1479 = vdwg.mxu0
        %v1480 = vld [vmem:[%s8] sm:$0x1]
        %v1482 = vlaneseq
        %v1483 = vshrl.u32 %v1482, 7
        %v1484 = vsub.s32 0, %v1483
        %v1485 = vrot.slane %v1480, %v1484
        %v1487 = vadd.f32 %v1474, %v1485
        %v1488 = vadd.f32 %v1477, %v1485
        %v1489 = vadd.f32 %v1487, %v839
        %v1490 = vadd.f32 %v1488, %v840
        %v1491 = vld [vmem:[%s9] sm:$0x1]
        %v1492 = vld [vmem:[#allocation5] sm:$0x1]
        %v1493 = vsel %vm797, %v1489, 0.0
        %1494 = vadd.xlane.f32.xlu0 %v1493
        %v1495 = vpop.xlane.xlu0 %1494
        %v1496 = vsel %vm797, %v1490, 0.0
        %1497 = vadd.xlane.f32.xlu0 %v1496
        %v1498 = vpop.xlane.xlu0 %1497
        %v1499 = vmul.f32 %v1495, %v804
        %v1500 = vmul.f32 %v1498, %v804
        %v1501 = vsub.f32 %v1489, %v1499
        %v1502 = vsub.f32 %v1490, %v1500
        %v1503 = vmul.f32 %v1501, %v1501
        %v1504 = vmul.f32 %v1502, %v1502
        %v1505 = vsel %vm797, %v1503, 0.0
        %1506 = vadd.xlane.f32.xlu0 %v1505
        %v1507 = vpop.xlane.xlu0 %1506
        %v1508 = vsel %vm797, %v1504, 0.0
        %1509 = vadd.xlane.f32.xlu0 %v1508
        %v1510 = vpop.xlane.xlu0 %1509
        %v1511 = vmul.f32 %v1507, %v804
        %v1512 = vmul.f32 %v1510, %v804
        %v1513 = vadd.f32 %v1511, 1e-12
        %v1514 = vadd.f32 %v1512, 1e-12
        %v1515 = vrsqrt.pop %v1513
        %v1516 = vrsqrt.pop %v1514
        %v1517 = vmul.f32 %v1501, %v1515
        %v1518 = vmul.f32 %v1502, %v1516
        %v1520 = vlaneseq
        %v1521 = vshrl.u32 %v1520, 7
        %v1522 = vsub.s32 0, %v1521
        %v1523 = vrot.slane %v1491, %v1522
        %v1525 = vmul.f32 %v1517, %v1523
        %v1526 = vmul.f32 %v1518, %v1523
        %v1528 = vlaneseq
        %v1529 = vshrl.u32 %v1528, 7
        %v1530 = vsub.s32 0, %v1529
        %v1531 = vrot.slane %v1492, %v1530
        %v1533 = vadd.f32 %v1525, %v1531
        %v1534 = vadd.f32 %v1526, %v1531
        %v1535 = vpack.c.bf16 %v1534, %v1533
        %v1536 = vld [vmem:[#allocation7] sm:$0xf]
        %v1537 = vld [vmem:[#allocation7 + $0x4] sm:$0xf]
        %v1538 = vld [vmem:[#allocation7 + $0x8] sm:$0xf]
        %v1539 = vld [vmem:[#allocation7 + $0xc] sm:$0xf]
        %v1540 = vld [vmem:[#allocation8] sm:$0x1]
        %v1542 = vlaneseq
        %v1543 = vshrl.u32 %v1542, 7
        %v1544 = vsub.s32 0, %v1543
        %v1545 = vrot.slane %v1540, %v1544
        %v1551 = vunpack.c.l.b16 %v1536
        %v1552 = vunpack.c.l.b16 %v1537
        %v1553 = vunpack.c.l.b16 %v1538
        %v1554 = vunpack.c.l.b16 %v1539
        %v1555 = vpack.c.b16 %v1552, %v1551
        %v1556 = vpack.c.b16 %v1554, %v1553
        %v1560 = vsel %vm797, %v1535, 0
        %1562 = vmatprep.subr.bf16.mxu0 0
        %1563 = vmatpush1.bf16.msra.mxu0 %v1555
        %1564 = vmatprep.subr.bf16.mxu0 0
        %1565 = vmatpush1.bf16.msra.mxu0 %v1556
        %1566 = vmatprep.subr.bf16.mxu0 0
        %1567 = vmatpush1.bf16.msra.mxu0 0
        %1568 = vmatprep.subr.bf16.mxu0 0
        %1569 = vmatpush1.bf16.msra.mxu0 0
        %1570 = vmatprep.subr.bf16.mxu0 0
        %1571 = vmatpush1.bf16.msra.mxu0 0
        %1572 = vmatprep.subr.bf16.mxu0 0
        %1573 = vmatpush1.bf16.msra.mxu0 0
        %1574 = vmatprep.subr.bf16.mxu0 0
        %1575 = vmatpush1.bf16.msra.mxu0 0
        %1576 = vmatprep.subr.bf16.mxu0 0
        %1577 = vmatpush1.bf16.msra.mxu0 0
        %1578 = vmatprep.subr.bf16.mxu0 0
        %1579 = vmatpush1.bf16.msra.mxu0 0
        %1580 = vmatprep.subr.bf16.mxu0 0
        %1581 = vmatpush1.bf16.msra.mxu0 0
        %1582 = vmatprep.subr.bf16.mxu0 0
        %1583 = vmatpush1.bf16.msra.mxu0 0
        %1584 = vmatprep.subr.bf16.mxu0 0
        %1585 = vmatpush1.bf16.msra.mxu0 0
        %1586 = vmatprep.subr.bf16.mxu0 0
        %1587 = vmatpush1.bf16.msra.mxu0 0
        %1588 = vmatprep.subr.bf16.mxu0 0
        %1589 = vmatpush1.bf16.msra.mxu0 0
        %1590 = vmatprep.subr.bf16.mxu0 0
        %1591 = vmatpush1.bf16.msra.mxu0 0
        %1592 = vmatprep.subr.bf16.mxu0 0
        %1593 = vmatpush1.bf16.msra.mxu0 0
        %1594 = vmatprep.mubr.bf16.mxu0 0
        %1595 = vmatmul.mubr.bf16.gmra.mrb[0].mxu0 %v1560
        %v1596 = vpop.f32.mrb[0].mxu0
        %v1597 = vadd.f32 %v1545, %v1596
        %v1598 = vpop.f32.mrb[0].mxu0
        %v1599 = vpop.f32.mrb[0].mxu0
        %v1600 = vadd.f32 %v1545, %v1599
        %v1601 = vpop.f32.mrb[0].mxu0
        %1602 = vdwg.mxu0
        %v1603 = vmul.f32 %v1597, 0.70710677
        %v1604 = vmul.f32 %v1600, 0.70710677
        %v1605 = vand.u32 2147483647, %v1603
        %v1606 = vand.u32 2147483647, %v1604
        %v1607 = vmul.f32 %v1605, 0.3275911
        %v1608 = vmul.f32 %v1606, 0.3275911
        %v1609 = vadd.f32 %v1607, 1.0
        %v1610 = vadd.f32 %v1608, 1.0
        %v1611 = vrcp.pop %v1609
        %v1612 = vrcp.pop %v1610
        %v1613 = vmul.f32 %v1611, 1.0614054
        %v1614 = vmul.f32 %v1612, 1.0614054
        %v1615 = vadd.f32 %v1613, -1.4531521
        %v1616 = vadd.f32 %v1614, -1.4531521
        %v1617 = vmul.f32 %v1615, %v1611
        %v1618 = vmul.f32 %v1616, %v1612
        %v1619 = vadd.f32 %v1617, 1.4214138
        %v1620 = vadd.f32 %v1618, 1.4214138
        %v1621 = vmul.f32 %v1619, %v1611
        %v1622 = vmul.f32 %v1620, %v1612
        %v1623 = vadd.f32 %v1621, -0.28449672
        %v1624 = vadd.f32 %v1622, -0.28449672
        %v1625 = vmul.f32 %v1623, %v1611
        %v1626 = vmul.f32 %v1624, %v1612
        %v1627 = vadd.f32 %v1625, 0.2548296
        %v1628 = vadd.f32 %v1626, 0.2548296
        %v1629 = vmul.f32 %v1627, %v1611
        %v1630 = vmul.f32 %v1628, %v1612
        %v1631 = vsub.f32 0.0, %v1605
        %v1632 = vsub.f32 0.0, %v1606
        %v1633 = vmul.f32 %v1631, %v1605
        %v1634 = vmul.f32 %v1632, %v1606
        %v1635 = vmul.f32 %v1633, 1.442695
        %v1636 = vpow.pop %v1635
        %v1637 = vmul.f32 %v1634, 1.442695
        %v1638 = vpow.pop %v1637
        %v1639 = vmul.f32 %v1629, %v1636
        %v1640 = vmul.f32 %v1630, %v1638
        %v1641 = vsub.f32 1.0, %v1639
        %v1642 = vsub.f32 1.0, %v1640
        %vm1643 = vcmp.ge.f32.partialorder %v1603, 0.0
        %vm1644 = vcmp.ge.f32.partialorder %v1604, 0.0
        %v1645 = vsel %vm1643, 1.0, -1.0
        %v1646 = vsel %vm1644, 1.0, -1.0
        %v1647 = vmul.f32 %v1645, %v1641
        %v1648 = vmul.f32 %v1646, %v1642
        %v1649 = vmul.f32 %v1597, 0.5
        %v1650 = vmul.f32 %v1600, 0.5
        %v1651 = vadd.f32 %v1647, 1.0
        %v1652 = vadd.f32 %v1648, 1.0
        %v1653 = vmul.f32 %v1649, %v1651
        %v1654 = vmul.f32 %v1650, %v1652
        %v1655 = vpack.c.bf16 %v1654, %v1653
        %v1656 = vld [vmem:[%s13] sm:$0xf]
        %v1657 = vld [vmem:[%s13 + $0x4] sm:$0xf]
        %v1658 = vld [vmem:[%s13 + $0x8] sm:$0xf]
        %v1659 = vld [vmem:[%s13 + $0xc] sm:$0xf]
        %v1660 = vld [vmem:[%s13 + $0x10] sm:$0xf]
        %v1661 = vld [vmem:[%s13 + $0x14] sm:$0xf]
        %v1662 = vld [vmem:[%s13 + $0x18] sm:$0xf]
        %v1663 = vld [vmem:[%s13 + $0x1c] sm:$0xf]
        %v1664 = vld [vmem:[%s14] sm:$0x1]
        %v1666 = vlaneseq
        %v1667 = vshrl.u32 %v1666, 7
        %v1668 = vsub.s32 0, %v1667
        %v1669 = vrot.slane %v1664, %v1668
        %v1679 = vunpack.c.l.b16 %v1656
        %v1680 = vunpack.c.l.b16 %v1657
        %v1681 = vunpack.c.l.b16 %v1658
        %v1682 = vunpack.c.l.b16 %v1659
        %v1683 = vunpack.c.l.b16 %v1660
        %v1684 = vunpack.c.l.b16 %v1661
        %v1685 = vunpack.c.l.b16 %v1662
        %v1686 = vunpack.c.l.b16 %v1663
        %v1687 = vpack.c.b16 %v1680, %v1679
        %v1688 = vpack.c.b16 %v1682, %v1681
        %v1689 = vpack.c.b16 %v1684, %v1683
        %v1690 = vpack.c.b16 %v1686, %v1685
        %vm1695 = vcmask 523264
        %v1697 = vsel %vm1695, %v1655, 0
        %1699 = vmatprep.subr.bf16.mxu0 0
        %1700 = vmatpush1.bf16.msra.mxu0 %v1687
        %1701 = vmatprep.subr.bf16.mxu0 0
        %1702 = vmatpush1.bf16.msra.mxu0 %v1688
        %1703 = vmatprep.subr.bf16.mxu0 0
        %1704 = vmatpush1.bf16.msra.mxu0 %v1689
        %1705 = vmatprep.subr.bf16.mxu0 0
        %1706 = vmatpush1.bf16.msra.mxu0 %v1690
        %1707 = vmatprep.subr.bf16.mxu0 0
        %1708 = vmatpush1.bf16.msra.mxu0 0
        %1709 = vmatprep.subr.bf16.mxu0 0
        %1710 = vmatpush1.bf16.msra.mxu0 0
        %1711 = vmatprep.subr.bf16.mxu0 0
        %1712 = vmatpush1.bf16.msra.mxu0 0
        %1713 = vmatprep.subr.bf16.mxu0 0
        %1714 = vmatpush1.bf16.msra.mxu0 0
        %1715 = vmatprep.subr.bf16.mxu0 0
        %1716 = vmatpush1.bf16.msra.mxu0 0
        %1717 = vmatprep.subr.bf16.mxu0 0
        %1718 = vmatpush1.bf16.msra.mxu0 0
        %1719 = vmatprep.subr.bf16.mxu0 0
        %1720 = vmatpush1.bf16.msra.mxu0 0
        %1721 = vmatprep.subr.bf16.mxu0 0
        %1722 = vmatpush1.bf16.msra.mxu0 0
        %1723 = vmatprep.subr.bf16.mxu0 0
        %1724 = vmatpush1.bf16.msra.mxu0 0
        %1725 = vmatprep.subr.bf16.mxu0 0
        %1726 = vmatpush1.bf16.msra.mxu0 0
        %1727 = vmatprep.subr.bf16.mxu0 0
        %1728 = vmatpush1.bf16.msra.mxu0 0
        %1729 = vmatprep.subr.bf16.mxu0 0
        %1730 = vmatpush1.bf16.msra.mxu0 0
        %1731 = vmatprep.mubr.bf16.mxu0 0
        %1732 = vmatmul.mubr.bf16.gmra.mrb[0].mxu0 %v1697
        %v1733 = vpop.f32.mrb[0].mxu0
        %v1734 = vadd.f32 %v1669, %v1733
        %v1735 = vpop.f32.mrb[0].mxu0
        %v1736 = vpop.f32.mrb[0].mxu0
        %v1737 = vadd.f32 %v1669, %v1736
        %v1738 = vpop.f32.mrb[0].mxu0
        %1739 = vdwg.mxu0
        %v1740 = vadd.f32 %v1734, %v1533
        %v1741 = vadd.f32 %v1737, %v1534
        %v1742 = vld [vmem:[%s15] sm:$0x1]
        %v1743 = vld [vmem:[%s16] sm:$0x1]
        %v1744 = vsel %vm797, %v1740, 0.0
        %1745 = vadd.xlane.f32.xlu0 %v1744
        %v1746 = vpop.xlane.xlu0 %1745
        %v1747 = vsel %vm797, %v1741, 0.0
        %1748 = vadd.xlane.f32.xlu0 %v1747
        %v1749 = vpop.xlane.xlu0 %1748
        %v1750 = vmul.f32 %v1746, %v804
        %v1751 = vmul.f32 %v1749, %v804
        %v1752 = vsub.f32 %v1740, %v1750
        %v1753 = vsub.f32 %v1741, %v1751
        %v1754 = vmul.f32 %v1752, %v1752
        %v1755 = vmul.f32 %v1753, %v1753
        %v1756 = vsel %vm797, %v1754, 0.0
        %1757 = vadd.xlane.f32.xlu0 %v1756
        %v1758 = vpop.xlane.xlu0 %1757
        %v1759 = vsel %vm797, %v1755, 0.0
        %1760 = vadd.xlane.f32.xlu0 %v1759
        %v1761 = vpop.xlane.xlu0 %1760
        %v1762 = vmul.f32 %v1758, %v804
        %v1763 = vmul.f32 %v1761, %v804
        %v1764 = vadd.f32 %v1762, 1e-12
        %v1765 = vadd.f32 %v1763, 1e-12
        %v1766 = vrsqrt.pop %v1764
        %v1767 = vrsqrt.pop %v1765
        %v1768 = vmul.f32 %v1752, %v1766
        %v1769 = vmul.f32 %v1753, %v1767
        %v1771 = vlaneseq
        %v1772 = vshrl.u32 %v1771, 7
        %v1773 = vsub.s32 0, %v1772
        %v1774 = vrot.slane %v1742, %v1773
        %v1776 = vmul.f32 %v1768, %v1774
        %v1777 = vmul.f32 %v1769, %v1774
        %v1779 = vlaneseq
        %v1780 = vshrl.u32 %v1779, 7
        %v1781 = vsub.s32 0, %v1780
        %v1782 = vrot.slane %v1743, %v1781
        %v1784 = vadd.f32 %v1776, %v1782
        %v1785 = vadd.f32 %v1777, %v1782
        %v1786 = vpack.c.bf16 %v1785, %v1784
        %s1787 = scalar_lea.vmem %s5, 16
        %v1788 = vld [vmem:[%s1787] sm:$0xf]
        %v1789 = vld [vmem:[%s1787 + $0x4] sm:$0xf]
        %v1790 = vld [vmem:[%s1787 + $0x8] sm:$0xf]
        %v1791 = vld [vmem:[%s1787 + $0xc] sm:$0xf]
        %s1792 = scalar_lea.vmem %s6, 1
        %v1793 = vld [vmem:[%s1792] sm:$0x1]
        %v1795 = vlaneseq
        %v1796 = vshrl.u32 %v1795, 7
        %v1797 = vsub.s32 0, %v1796
        %v1798 = vrot.slane %v1793, %v1797
        %v1804 = vunpack.c.l.b16 %v1788
        %v1805 = vunpack.c.l.b16 %v1789
        %v1806 = vunpack.c.l.b16 %v1790
        %v1807 = vunpack.c.l.b16 %v1791
        %v1808 = vpack.c.b16 %v1805, %v1804
        %v1809 = vpack.c.b16 %v1807, %v1806
        %v1813 = vsel %vm797, %v1786, 0
        %1815 = vmatprep.subr.bf16.mxu0 0
        %1816 = vmatpush1.bf16.msra.mxu0 %v1808
        %1817 = vmatprep.subr.bf16.mxu0 0
        %1818 = vmatpush1.bf16.msra.mxu0 %v1809
        %1819 = vmatprep.subr.bf16.mxu0 0
        %1820 = vmatpush1.bf16.msra.mxu0 0
        %1821 = vmatprep.subr.bf16.mxu0 0
        %1822 = vmatpush1.bf16.msra.mxu0 0
        %1823 = vmatprep.subr.bf16.mxu0 0
        %1824 = vmatpush1.bf16.msra.mxu0 0
        %1825 = vmatprep.subr.bf16.mxu0 0
        %1826 = vmatpush1.bf16.msra.mxu0 0
        %1827 = vmatprep.subr.bf16.mxu0 0
        %1828 = vmatpush1.bf16.msra.mxu0 0
        %1829 = vmatprep.subr.bf16.mxu0 0
        %1830 = vmatpush1.bf16.msra.mxu0 0
        %1831 = vmatprep.subr.bf16.mxu0 0
        %1832 = vmatpush1.bf16.msra.mxu0 0
        %1833 = vmatprep.subr.bf16.mxu0 0
        %1834 = vmatpush1.bf16.msra.mxu0 0
        %1835 = vmatprep.subr.bf16.mxu0 0
        %1836 = vmatpush1.bf16.msra.mxu0 0
        %1837 = vmatprep.subr.bf16.mxu0 0
        %1838 = vmatpush1.bf16.msra.mxu0 0
        %1839 = vmatprep.subr.bf16.mxu0 0
        %1840 = vmatpush1.bf16.msra.mxu0 0
        %1841 = vmatprep.subr.bf16.mxu0 0
        %1842 = vmatpush1.bf16.msra.mxu0 0
        %1843 = vmatprep.subr.bf16.mxu0 0
        %1844 = vmatpush1.bf16.msra.mxu0 0
        %1845 = vmatprep.subr.bf16.mxu0 0
        %1846 = vmatpush1.bf16.msra.mxu0 0
        %1847 = vmatprep.mubr.bf16.mxu0 0
        %1848 = vmatmul.mubr.bf16.gmra.mrb[0].mxu0 %v1813
        %v1849 = vpop.f32.mrb[0].mxu0
        %v1850 = vadd.f32 %v1798, %v1849
        %v1851 = vpop.f32.mrb[0].mxu0
        %v1852 = vpop.f32.mrb[0].mxu0
        %v1853 = vadd.f32 %v1798, %v1852
        %v1854 = vpop.f32.mrb[0].mxu0
        %1855 = vdwg.mxu0
        %v1856 = vmul.f32 %v1850, 0.25
        %v1857 = vmul.f32 %v1853, 0.25
        %s1858 = scalar_lea.vmem %s7, 16
        %v1859 = vld [vmem:[%s1858] sm:$0xf]
        %v1860 = vld [vmem:[%s1858 + $0x4] sm:$0xf]
        %v1861 = vld [vmem:[%s1858 + $0x8] sm:$0xf]
        %v1862 = vld [vmem:[%s1858 + $0xc] sm:$0xf]
        %v1863 = vpack.c.bf16 %v1856, %v1856
        %v1864 = vpack.c.bf16 %v1857, %v1857
        %v1865 = vpack.c.bf16 %v1850, %v1850
        %v1866 = vpack.c.bf16 %v1853, %v1853
        %1868 = vrot.lane.b32.xlu0 %v1865, 96
        %v1869 = vpop.permute.xlu0 %1868
        %v1871 = vsel %vm922, %v1863, 0
        %v1874 = vsel %vm922, %v1869, 0
        %1876 = vmatprep.subr.bf16.mxu0 0
        %1877 = vmatpush1.bf16.xpose.msra.mxu0 %v1874
        %1878 = vmatprep.subr.bf16.mxu0 0
        %1879 = vmatpush1.bf16.xpose.msra.mxu0 0
        %1880 = vmatprep.subr.bf16.mxu0 0
        %1881 = vmatpush1.bf16.xpose.msra.mxu0 0
        %1882 = vmatprep.subr.bf16.mxu0 0
        %1883 = vmatpush1.bf16.xpose.msra.mxu0 0
        %1884 = vmatprep.subr.bf16.mxu0 0
        %1885 = vmatpush1.bf16.xpose.msra.mxu0 0
        %1886 = vmatprep.subr.bf16.mxu0 0
        %1887 = vmatpush1.bf16.xpose.msra.mxu0 0
        %1888 = vmatprep.subr.bf16.mxu0 0
        %1889 = vmatpush1.bf16.xpose.msra.mxu0 0
        %1890 = vmatprep.subr.bf16.mxu0 0
        %1891 = vmatpush1.bf16.xpose.msra.mxu0 0
        %1892 = vmatprep.subr.bf16.mxu0 0
        %1893 = vmatpush1.bf16.xpose.msra.mxu0 0
        %1894 = vmatprep.subr.bf16.mxu0 0
        %1895 = vmatpush1.bf16.xpose.msra.mxu0 0
        %1896 = vmatprep.subr.bf16.mxu0 0
        %1897 = vmatpush1.bf16.xpose.msra.mxu0 0
        %1898 = vmatprep.subr.bf16.mxu0 0
        %1899 = vmatpush1.bf16.xpose.msra.mxu0 0
        %1900 = vmatprep.subr.bf16.mxu0 0
        %1901 = vmatpush1.bf16.xpose.msra.mxu0 0
        %1902 = vmatprep.subr.bf16.mxu0 0
        %1903 = vmatpush1.bf16.xpose.msra.mxu0 0
        %1904 = vmatprep.subr.bf16.mxu0 0
        %1905 = vmatpush1.bf16.xpose.msra.mxu0 0
        %1906 = vmatprep.subr.bf16.mxu0 0
        %1907 = vmatpush1.bf16.xpose.msra.mxu0 0
        %1908 = vmatprep.mubr.bf16.mxu0 0
        %1909 = vmatmul.mubr.bf16.gmra.mrb[0].mxu0 %v1871
        %v1910 = vpop.f32.mrb[0].mxu0
        %v1911 = vadd.f32 %v786, %v1910
        %v1912 = vpop.f32.mrb[0].mxu0
        %v1913 = vpop.f32.mrb[0].mxu0
        %v1914 = vpop.f32.mrb[0].mxu0
        %1915 = vdwg.mxu0
        %1917 = vrot.lane.b32.xlu0 %v1866, 96
        %v1918 = vpop.permute.xlu0 %1917
        %v1920 = vsel %vm922, %v1864, 0
        %v1923 = vsel %vm922, %v1918, 0
        %1925 = vmatprep.subr.bf16.mxu0 0
        %1926 = vmatpush1.bf16.xpose.msra.mxu0 %v1923
        %1927 = vmatprep.subr.bf16.mxu0 0
        %1928 = vmatpush1.bf16.xpose.msra.mxu0 0
        %1929 = vmatprep.subr.bf16.mxu0 0
        %1930 = vmatpush1.bf16.xpose.msra.mxu0 0
        %1931 = vmatprep.subr.bf16.mxu0 0
        %1932 = vmatpush1.bf16.xpose.msra.mxu0 0
        %1933 = vmatprep.subr.bf16.mxu0 0
        %1934 = vmatpush1.bf16.xpose.msra.mxu0 0
        %1935 = vmatprep.subr.bf16.mxu0 0
        %1936 = vmatpush1.bf16.xpose.msra.mxu0 0
        %1937 = vmatprep.subr.bf16.mxu0 0
        %1938 = vmatpush1.bf16.xpose.msra.mxu0 0
        %1939 = vmatprep.subr.bf16.mxu0 0
        %1940 = vmatpush1.bf16.xpose.msra.mxu0 0
        %1941 = vmatprep.subr.bf16.mxu0 0
        %1942 = vmatpush1.bf16.xpose.msra.mxu0 0
        %1943 = vmatprep.subr.bf16.mxu0 0
        %1944 = vmatpush1.bf16.xpose.msra.mxu0 0
        %1945 = vmatprep.subr.bf16.mxu0 0
        %1946 = vmatpush1.bf16.xpose.msra.mxu0 0
        %1947 = vmatprep.subr.bf16.mxu0 0
        %1948 = vmatpush1.bf16.xpose.msra.mxu0 0
        %1949 = vmatprep.subr.bf16.mxu0 0
        %1950 = vmatpush1.bf16.xpose.msra.mxu0 0
        %1951 = vmatprep.subr.bf16.mxu0 0
        %1952 = vmatpush1.bf16.xpose.msra.mxu0 0
        %1953 = vmatprep.subr.bf16.mxu0 0
        %1954 = vmatpush1.bf16.xpose.msra.mxu0 0
        %1955 = vmatprep.subr.bf16.mxu0 0
        %1956 = vmatpush1.bf16.xpose.msra.mxu0 0
        %1957 = vmatprep.mubr.bf16.mxu0 0
        %1958 = vmatmul.mubr.bf16.gmra.mrb[0].mxu0 %v1920
        %v1959 = vpop.f32.mrb[0].mxu0
        %v1960 = vadd.f32 %v786, %v1959
        %v1961 = vpop.f32.mrb[0].mxu0
        %v1962 = vpop.f32.mrb[0].mxu0
        %v1963 = vpop.f32.mrb[0].mxu0
        %1964 = vdwg.mxu0
        %v1965 = vadd.f32 %v1911, %v1023
        %v1966 = vadd.f32 %v1960, %v1027
        %v1967 = vsel %vm1032, %v1965, -inf
        %1968 = vmax.xlane.f32.xlu0 %v1967
        %v1969 = vpop.xlane.xlu0 %1968
        %v1970 = vsel %vm1032, %v1966, -inf
        %1971 = vmax.xlane.f32.xlu0 %v1970
        %v1972 = vpop.xlane.xlu0 %1971
        %v1973 = vsub.f32 %v1965, %v1969
        %v1974 = vsub.f32 %v1966, %v1972
        %v1975 = vmul.f32 %v1973, 1.442695
        %v1976 = vpow.pop %v1975
        %v1977 = vmul.f32 %v1974, 1.442695
        %v1978 = vpow.pop %v1977
        %v1979 = vsel %vm1032, %v1976, 0.0
        %1980 = vadd.xlane.f32.xlu0 %v1979
        %v1981 = vpop.xlane.xlu0 %1980
        %v1982 = vsel %vm1032, %v1978, 0.0
        %1983 = vadd.xlane.f32.xlu0 %v1982
        %v1984 = vpop.xlane.xlu0 %1983
        %v1985 = vrcp.pop %v1981
        %v1986 = vrcp.pop %v1984
        %v1987 = vmul.f32 %v1976, %v1985
        %v1988 = vmul.f32 %v1978, %v1986
        %v1989 = vpack.c.bf16 %v1987, %v1987
        %v1990 = vpack.c.bf16 %v1988, %v1988
        %1991 = vrot.lane.b32.xlu0 %v1865, 64
        %v1992 = vpop.permute.xlu0 %1991
        %v1994 = vsel %vm1032, %v1989, 0
        %v1997 = vsel %vm1062, %v1992, 0
        %1999 = vmatprep.subr.bf16.mxu0 0
        %2000 = vmatpush1.bf16.msra.mxu0 %v1997
        %2001 = vmatprep.subr.bf16.mxu0 0
        %2002 = vmatpush1.bf16.msra.mxu0 0
        %2003 = vmatprep.subr.bf16.mxu0 0
        %2004 = vmatpush1.bf16.msra.mxu0 0
        %2005 = vmatprep.subr.bf16.mxu0 0
        %2006 = vmatpush1.bf16.msra.mxu0 0
        %2007 = vmatprep.subr.bf16.mxu0 0
        %2008 = vmatpush1.bf16.msra.mxu0 0
        %2009 = vmatprep.subr.bf16.mxu0 0
        %2010 = vmatpush1.bf16.msra.mxu0 0
        %2011 = vmatprep.subr.bf16.mxu0 0
        %2012 = vmatpush1.bf16.msra.mxu0 0
        %2013 = vmatprep.subr.bf16.mxu0 0
        %2014 = vmatpush1.bf16.msra.mxu0 0
        %2015 = vmatprep.subr.bf16.mxu0 0
        %2016 = vmatpush1.bf16.msra.mxu0 0
        %2017 = vmatprep.subr.bf16.mxu0 0
        %2018 = vmatpush1.bf16.msra.mxu0 0
        %2019 = vmatprep.subr.bf16.mxu0 0
        %2020 = vmatpush1.bf16.msra.mxu0 0
        %2021 = vmatprep.subr.bf16.mxu0 0
        %2022 = vmatpush1.bf16.msra.mxu0 0
        %2023 = vmatprep.subr.bf16.mxu0 0
        %2024 = vmatpush1.bf16.msra.mxu0 0
        %2025 = vmatprep.subr.bf16.mxu0 0
        %2026 = vmatpush1.bf16.msra.mxu0 0
        %2027 = vmatprep.subr.bf16.mxu0 0
        %2028 = vmatpush1.bf16.msra.mxu0 0
        %2029 = vmatprep.subr.bf16.mxu0 0
        %2030 = vmatpush1.bf16.msra.mxu0 0
        %2031 = vmatprep.mubr.bf16.mxu0 0
        %2032 = vmatmul.mubr.bf16.gmra.mrb[0].mxu0 %v1994
        %v2033 = vpop.f32.mrb[0].mxu0
        %v2034 = vadd.f32 0.0, %v2033
        %v2035 = vpop.f32.mrb[0].mxu0
        %v2036 = vpop.f32.mrb[0].mxu0
        %v2037 = vpop.f32.mrb[0].mxu0
        %2038 = vdwg.mxu0
        %2039 = vrot.lane.b32.xlu0 %v1866, 64
        %v2040 = vpop.permute.xlu0 %2039
        %v2042 = vsel %vm1032, %v1990, 0
        %v2045 = vsel %vm1062, %v2040, 0
        %2047 = vmatprep.subr.bf16.mxu0 0
        %2048 = vmatpush1.bf16.msra.mxu0 %v2045
        %2049 = vmatprep.subr.bf16.mxu0 0
        %2050 = vmatpush1.bf16.msra.mxu0 0
        %2051 = vmatprep.subr.bf16.mxu0 0
        %2052 = vmatpush1.bf16.msra.mxu0 0
        %2053 = vmatprep.subr.bf16.mxu0 0
        %2054 = vmatpush1.bf16.msra.mxu0 0
        %2055 = vmatprep.subr.bf16.mxu0 0
        %2056 = vmatpush1.bf16.msra.mxu0 0
        %2057 = vmatprep.subr.bf16.mxu0 0
        %2058 = vmatpush1.bf16.msra.mxu0 0
        %2059 = vmatprep.subr.bf16.mxu0 0
        %2060 = vmatpush1.bf16.msra.mxu0 0
        %2061 = vmatprep.subr.bf16.mxu0 0
        %2062 = vmatpush1.bf16.msra.mxu0 0
        %2063 = vmatprep.subr.bf16.mxu0 0
        %2064 = vmatpush1.bf16.msra.mxu0 0
        %2065 = vmatprep.subr.bf16.mxu0 0
        %2066 = vmatpush1.bf16.msra.mxu0 0
        %2067 = vmatprep.subr.bf16.mxu0 0
        %2068 = vmatpush1.bf16.msra.mxu0 0
        %2069 = vmatprep.subr.bf16.mxu0 0
        %2070 = vmatpush1.bf16.msra.mxu0 0
        %2071 = vmatprep.subr.bf16.mxu0 0
        %2072 = vmatpush1.bf16.msra.mxu0 0
        %2073 = vmatprep.subr.bf16.mxu0 0
        %2074 = vmatpush1.bf16.msra.mxu0 0
        %2075 = vmatprep.subr.bf16.mxu0 0
        %2076 = vmatpush1.bf16.msra.mxu0 0
        %2077 = vmatprep.subr.bf16.mxu0 0
        %2078 = vmatpush1.bf16.msra.mxu0 0
        %2079 = vmatprep.mubr.bf16.mxu0 0
        %2080 = vmatmul.mubr.bf16.gmra.mrb[0].mxu0 %v2042
        %v2081 = vpop.f32.mrb[0].mxu0
        %v2082 = vadd.f32 0.0, %v2081
        %v2083 = vpop.f32.mrb[0].mxu0
        %v2084 = vpop.f32.mrb[0].mxu0
        %v2085 = vpop.f32.mrb[0].mxu0
        %2086 = vdwg.mxu0
        %v2087 = vpack.c.bf16 %v2082, %v2034
        %2089 = vrot.lane.b32.xlu0 %v1863, 112
        %v2090 = vpop.permute.xlu0 %2089
        %2091 = vrot.lane.b32.xlu0 %v1865, 80
        %v2092 = vpop.permute.xlu0 %2091
        %v2094 = vsel %vm922, %v2090, 0
        %v2097 = vsel %vm922, %v2092, 0
        %2099 = vmatprep.subr.bf16.mxu0 0
        %2100 = vmatpush1.bf16.xpose.msra.mxu0 %v2097
        %2101 = vmatprep.subr.bf16.mxu0 0
        %2102 = vmatpush1.bf16.xpose.msra.mxu0 0
        %2103 = vmatprep.subr.bf16.mxu0 0
        %2104 = vmatpush1.bf16.xpose.msra.mxu0 0
        %2105 = vmatprep.subr.bf16.mxu0 0
        %2106 = vmatpush1.bf16.xpose.msra.mxu0 0
        %2107 = vmatprep.subr.bf16.mxu0 0
        %2108 = vmatpush1.bf16.xpose.msra.mxu0 0
        %2109 = vmatprep.subr.bf16.mxu0 0
        %2110 = vmatpush1.bf16.xpose.msra.mxu0 0
        %2111 = vmatprep.subr.bf16.mxu0 0
        %2112 = vmatpush1.bf16.xpose.msra.mxu0 0
        %2113 = vmatprep.subr.bf16.mxu0 0
        %2114 = vmatpush1.bf16.xpose.msra.mxu0 0
        %2115 = vmatprep.subr.bf16.mxu0 0
        %2116 = vmatpush1.bf16.xpose.msra.mxu0 0
        %2117 = vmatprep.subr.bf16.mxu0 0
        %2118 = vmatpush1.bf16.xpose.msra.mxu0 0
        %2119 = vmatprep.subr.bf16.mxu0 0
        %2120 = vmatpush1.bf16.xpose.msra.mxu0 0
        %2121 = vmatprep.subr.bf16.mxu0 0
        %2122 = vmatpush1.bf16.xpose.msra.mxu0 0
        %2123 = vmatprep.subr.bf16.mxu0 0
        %2124 = vmatpush1.bf16.xpose.msra.mxu0 0
        %2125 = vmatprep.subr.bf16.mxu0 0
        %2126 = vmatpush1.bf16.xpose.msra.mxu0 0
        %2127 = vmatprep.subr.bf16.mxu0 0
        %2128 = vmatpush1.bf16.xpose.msra.mxu0 0
        %2129 = vmatprep.subr.bf16.mxu0 0
        %2130 = vmatpush1.bf16.xpose.msra.mxu0 0
        %2131 = vmatprep.mubr.bf16.mxu0 0
        %2132 = vmatmul.mubr.bf16.gmra.mrb[0].mxu0 %v2094
        %v2133 = vpop.f32.mrb[0].mxu0
        %v2134 = vadd.f32 %v786, %v2133
        %v2135 = vpop.f32.mrb[0].mxu0
        %v2136 = vpop.f32.mrb[0].mxu0
        %v2137 = vpop.f32.mrb[0].mxu0
        %2138 = vdwg.mxu0
        %2140 = vrot.lane.b32.xlu0 %v1864, 112
        %v2141 = vpop.permute.xlu0 %2140
        %2142 = vrot.lane.b32.xlu0 %v1866, 80
        %v2143 = vpop.permute.xlu0 %2142
        %v2145 = vsel %vm922, %v2141, 0
        %v2148 = vsel %vm922, %v2143, 0
        %2150 = vmatprep.subr.bf16.mxu0 0
        %2151 = vmatpush1.bf16.xpose.msra.mxu0 %v2148
        %2152 = vmatprep.subr.bf16.mxu0 0
        %2153 = vmatpush1.bf16.xpose.msra.mxu0 0
        %2154 = vmatprep.subr.bf16.mxu0 0
        %2155 = vmatpush1.bf16.xpose.msra.mxu0 0
        %2156 = vmatprep.subr.bf16.mxu0 0
        %2157 = vmatpush1.bf16.xpose.msra.mxu0 0
        %2158 = vmatprep.subr.bf16.mxu0 0
        %2159 = vmatpush1.bf16.xpose.msra.mxu0 0
        %2160 = vmatprep.subr.bf16.mxu0 0
        %2161 = vmatpush1.bf16.xpose.msra.mxu0 0
        %2162 = vmatprep.subr.bf16.mxu0 0
        %2163 = vmatpush1.bf16.xpose.msra.mxu0 0
        %2164 = vmatprep.subr.bf16.mxu0 0
        %2165 = vmatpush1.bf16.xpose.msra.mxu0 0
        %2166 = vmatprep.subr.bf16.mxu0 0
        %2167 = vmatpush1.bf16.xpose.msra.mxu0 0
        %2168 = vmatprep.subr.bf16.mxu0 0
        %2169 = vmatpush1.bf16.xpose.msra.mxu0 0
        %2170 = vmatprep.subr.bf16.mxu0 0
        %2171 = vmatpush1.bf16.xpose.msra.mxu0 0
        %2172 = vmatprep.subr.bf16.mxu0 0
        %2173 = vmatpush1.bf16.xpose.msra.mxu0 0
        %2174 = vmatprep.subr.bf16.mxu0 0
        %2175 = vmatpush1.bf16.xpose.msra.mxu0 0
        %2176 = vmatprep.subr.bf16.mxu0 0
        %2177 = vmatpush1.bf16.xpose.msra.mxu0 0
        %2178 = vmatprep.subr.bf16.mxu0 0
        %2179 = vmatpush1.bf16.xpose.msra.mxu0 0
        %2180 = vmatprep.subr.bf16.mxu0 0
        %2181 = vmatpush1.bf16.xpose.msra.mxu0 0
        %2182 = vmatprep.mubr.bf16.mxu0 0
        %2183 = vmatmul.mubr.bf16.gmra.mrb[0].mxu0 %v2145
        %v2184 = vpop.f32.mrb[0].mxu0
        %v2185 = vadd.f32 %v786, %v2184
        %v2186 = vpop.f32.mrb[0].mxu0
        %v2187 = vpop.f32.mrb[0].mxu0
        %v2188 = vpop.f32.mrb[0].mxu0
        %2189 = vdwg.mxu0
        %v2190 = vadd.f32 %v2134, %v1023
        %v2191 = vadd.f32 %v2185, %v1027
        %v2192 = vsel %vm1032, %v2190, -inf
        %2193 = vmax.xlane.f32.xlu0 %v2192
        %v2194 = vpop.xlane.xlu0 %2193
        %v2195 = vsel %vm1032, %v2191, -inf
        %2196 = vmax.xlane.f32.xlu0 %v2195
        %v2197 = vpop.xlane.xlu0 %2196
        %v2198 = vsub.f32 %v2190, %v2194
        %v2199 = vsub.f32 %v2191, %v2197
        %v2200 = vmul.f32 %v2198, 1.442695
        %v2201 = vpow.pop %v2200
        %v2202 = vmul.f32 %v2199, 1.442695
        %v2203 = vpow.pop %v2202
        %v2204 = vsel %vm1032, %v2201, 0.0
        %2205 = vadd.xlane.f32.xlu0 %v2204
        %v2206 = vpop.xlane.xlu0 %2205
        %v2207 = vsel %vm1032, %v2203, 0.0
        %2208 = vadd.xlane.f32.xlu0 %v2207
        %v2209 = vpop.xlane.xlu0 %2208
        %v2210 = vrcp.pop %v2206
        %v2211 = vrcp.pop %v2209
        %v2212 = vmul.f32 %v2201, %v2210
        %v2213 = vmul.f32 %v2203, %v2211
        %v2214 = vpack.c.bf16 %v2212, %v2212
        %v2215 = vpack.c.bf16 %v2213, %v2213
        %2216 = vrot.lane.b32.xlu0 %v1865, 48
        %v2217 = vpop.permute.xlu0 %2216
        %v2219 = vsel %vm1032, %v2214, 0
        %v2222 = vsel %vm1062, %v2217, 0
        %2224 = vmatprep.subr.bf16.mxu0 0
        %2225 = vmatpush1.bf16.msra.mxu0 %v2222
        %2226 = vmatprep.subr.bf16.mxu0 0
        %2227 = vmatpush1.bf16.msra.mxu0 0
        %2228 = vmatprep.subr.bf16.mxu0 0
        %2229 = vmatpush1.bf16.msra.mxu0 0
        %2230 = vmatprep.subr.bf16.mxu0 0
        %2231 = vmatpush1.bf16.msra.mxu0 0
        %2232 = vmatprep.subr.bf16.mxu0 0
        %2233 = vmatpush1.bf16.msra.mxu0 0
        %2234 = vmatprep.subr.bf16.mxu0 0
        %2235 = vmatpush1.bf16.msra.mxu0 0
        %2236 = vmatprep.subr.bf16.mxu0 0
        %2237 = vmatpush1.bf16.msra.mxu0 0
        %2238 = vmatprep.subr.bf16.mxu0 0
        %2239 = vmatpush1.bf16.msra.mxu0 0
        %2240 = vmatprep.subr.bf16.mxu0 0
        %2241 = vmatpush1.bf16.msra.mxu0 0
        %2242 = vmatprep.subr.bf16.mxu0 0
        %2243 = vmatpush1.bf16.msra.mxu0 0
        %2244 = vmatprep.subr.bf16.mxu0 0
        %2245 = vmatpush1.bf16.msra.mxu0 0
        %2246 = vmatprep.subr.bf16.mxu0 0
        %2247 = vmatpush1.bf16.msra.mxu0 0
        %2248 = vmatprep.subr.bf16.mxu0 0
        %2249 = vmatpush1.bf16.msra.mxu0 0
        %2250 = vmatprep.subr.bf16.mxu0 0
        %2251 = vmatpush1.bf16.msra.mxu0 0
        %2252 = vmatprep.subr.bf16.mxu0 0
        %2253 = vmatpush1.bf16.msra.mxu0 0
        %2254 = vmatprep.subr.bf16.mxu0 0
        %2255 = vmatpush1.bf16.msra.mxu0 0
        %2256 = vmatprep.mubr.bf16.mxu0 0
        %2257 = vmatmul.mubr.bf16.gmra.mrb[0].mxu0 %v2219
        %v2258 = vpop.f32.mrb[0].mxu0
        %v2259 = vadd.f32 0.0, %v2258
        %v2260 = vpop.f32.mrb[0].mxu0
        %v2261 = vpop.f32.mrb[0].mxu0
        %v2262 = vpop.f32.mrb[0].mxu0
        %2263 = vdwg.mxu0
        %2264 = vrot.lane.b32.xlu0 %v1866, 48
        %v2265 = vpop.permute.xlu0 %2264
        %v2267 = vsel %vm1032, %v2215, 0
        %v2270 = vsel %vm1062, %v2265, 0
        %2272 = vmatprep.subr.bf16.mxu0 0
        %2273 = vmatpush1.bf16.msra.mxu0 %v2270
        %2274 = vmatprep.subr.bf16.mxu0 0
        %2275 = vmatpush1.bf16.msra.mxu0 0
        %2276 = vmatprep.subr.bf16.mxu0 0
        %2277 = vmatpush1.bf16.msra.mxu0 0
        %2278 = vmatprep.subr.bf16.mxu0 0
        %2279 = vmatpush1.bf16.msra.mxu0 0
        %2280 = vmatprep.subr.bf16.mxu0 0
        %2281 = vmatpush1.bf16.msra.mxu0 0
        %2282 = vmatprep.subr.bf16.mxu0 0
        %2283 = vmatpush1.bf16.msra.mxu0 0
        %2284 = vmatprep.subr.bf16.mxu0 0
        %2285 = vmatpush1.bf16.msra.mxu0 0
        %2286 = vmatprep.subr.bf16.mxu0 0
        %2287 = vmatpush1.bf16.msra.mxu0 0
        %2288 = vmatprep.subr.bf16.mxu0 0
        %2289 = vmatpush1.bf16.msra.mxu0 0
        %2290 = vmatprep.subr.bf16.mxu0 0
        %2291 = vmatpush1.bf16.msra.mxu0 0
        %2292 = vmatprep.subr.bf16.mxu0 0
        %2293 = vmatpush1.bf16.msra.mxu0 0
        %2294 = vmatprep.subr.bf16.mxu0 0
        %2295 = vmatpush1.bf16.msra.mxu0 0
        %2296 = vmatprep.subr.bf16.mxu0 0
        %2297 = vmatpush1.bf16.msra.mxu0 0
        %2298 = vmatprep.subr.bf16.mxu0 0
        %2299 = vmatpush1.bf16.msra.mxu0 0
        %2300 = vmatprep.subr.bf16.mxu0 0
        %2301 = vmatpush1.bf16.msra.mxu0 0
        %2302 = vmatprep.subr.bf16.mxu0 0
        %2303 = vmatpush1.bf16.msra.mxu0 0
        %2304 = vmatprep.mubr.bf16.mxu0 0
        %2305 = vmatmul.mubr.bf16.gmra.mrb[0].mxu0 %v2267
        %v2306 = vpop.f32.mrb[0].mxu0
        %v2307 = vadd.f32 0.0, %v2306
        %v2308 = vpop.f32.mrb[0].mxu0
        %v2309 = vpop.f32.mrb[0].mxu0
        %v2310 = vpop.f32.mrb[0].mxu0
        %2311 = vdwg.mxu0
        %v2312 = vpack.c.bf16 %v2307, %v2259
        %v2315 = vunpack.c.l.b16 %v1861
        %v2316 = vunpack.c.l.b16 %v1862
        %v2317 = vpack.c.b16 %v2316, %v2315
        %v2320 = vsel %vm922, %v2312, 0
        %2322 = vmatprep.subr.bf16.mxu0 0
        %2323 = vmatpush1.bf16.msra.mxu0 %v2317
        %2324 = vmatprep.subr.bf16.mxu0 0
        %2325 = vmatpush1.bf16.msra.mxu0 0
        %2326 = vmatprep.subr.bf16.mxu0 0
        %2327 = vmatpush1.bf16.msra.mxu0 0
        %2328 = vmatprep.subr.bf16.mxu0 0
        %2329 = vmatpush1.bf16.msra.mxu0 0
        %2330 = vmatprep.subr.bf16.mxu0 0
        %2331 = vmatpush1.bf16.msra.mxu0 0
        %2332 = vmatprep.subr.bf16.mxu0 0
        %2333 = vmatpush1.bf16.msra.mxu0 0
        %2334 = vmatprep.subr.bf16.mxu0 0
        %2335 = vmatpush1.bf16.msra.mxu0 0
        %2336 = vmatprep.subr.bf16.mxu0 0
        %2337 = vmatpush1.bf16.msra.mxu0 0
        %2338 = vmatprep.subr.bf16.mxu0 0
        %2339 = vmatpush1.bf16.msra.mxu0 0
        %2340 = vmatprep.subr.bf16.mxu0 0
        %2341 = vmatpush1.bf16.msra.mxu0 0
        %2342 = vmatprep.subr.bf16.mxu0 0
        %2343 = vmatpush1.bf16.msra.mxu0 0
        %2344 = vmatprep.subr.bf16.mxu0 0
        %2345 = vmatpush1.bf16.msra.mxu0 0
        %2346 = vmatprep.subr.bf16.mxu0 0
        %2347 = vmatpush1.bf16.msra.mxu0 0
        %2348 = vmatprep.subr.bf16.mxu0 0
        %2349 = vmatpush1.bf16.msra.mxu0 0
        %2350 = vmatprep.subr.bf16.mxu0 0
        %2351 = vmatpush1.bf16.msra.mxu0 0
        %2352 = vmatprep.subr.bf16.mxu0 0
        %2353 = vmatpush1.bf16.msra.mxu0 0
        %2354 = vmatprep.mubr.bf16.mxu0 0
        %2355 = vmatmul.mubr.bf16.gmra.mrb[0].mxu0 %v2320
        %v2356 = vpop.f32.mrb[0].mxu0
        %v2357 = vadd.f32 0.0, %v2356
        %v2358 = vpop.f32.mrb[0].mxu0
        %v2359 = vpop.f32.mrb[0].mxu0
        %v2360 = vadd.f32 0.0, %v2359
        %v2361 = vpop.f32.mrb[0].mxu0
        %2362 = vdwg.mxu0
        %v2365 = vunpack.c.l.b16 %v1859
        %v2366 = vunpack.c.l.b16 %v1860
        %v2367 = vpack.c.b16 %v2366, %v2365
        %v2370 = vsel %vm922, %v2087, 0
        %2372 = vmatprep.subr.bf16.mxu0 0
        %2373 = vmatpush1.bf16.msra.mxu0 %v2367
        %2374 = vmatprep.subr.bf16.mxu0 0
        %2375 = vmatpush1.bf16.msra.mxu0 0
        %2376 = vmatprep.subr.bf16.mxu0 0
        %2377 = vmatpush1.bf16.msra.mxu0 0
        %2378 = vmatprep.subr.bf16.mxu0 0
        %2379 = vmatpush1.bf16.msra.mxu0 0
        %2380 = vmatprep.subr.bf16.mxu0 0
        %2381 = vmatpush1.bf16.msra.mxu0 0
        %2382 = vmatprep.subr.bf16.mxu0 0
        %2383 = vmatpush1.bf16.msra.mxu0 0
        %2384 = vmatprep.subr.bf16.mxu0 0
        %2385 = vmatpush1.bf16.msra.mxu0 0
        %2386 = vmatprep.subr.bf16.mxu0 0
        %2387 = vmatpush1.bf16.msra.mxu0 0
        %2388 = vmatprep.subr.bf16.mxu0 0
        %2389 = vmatpush1.bf16.msra.mxu0 0
        %2390 = vmatprep.subr.bf16.mxu0 0
        %2391 = vmatpush1.bf16.msra.mxu0 0
        %2392 = vmatprep.subr.bf16.mxu0 0
        %2393 = vmatpush1.bf16.msra.mxu0 0
        %2394 = vmatprep.subr.bf16.mxu0 0
        %2395 = vmatpush1.bf16.msra.mxu0 0
        %2396 = vmatprep.subr.bf16.mxu0 0
        %2397 = vmatpush1.bf16.msra.mxu0 0
        %2398 = vmatprep.subr.bf16.mxu0 0
        %2399 = vmatpush1.bf16.msra.mxu0 0
        %2400 = vmatprep.subr.bf16.mxu0 0
        %2401 = vmatpush1.bf16.msra.mxu0 0
        %2402 = vmatprep.subr.bf16.mxu0 0
        %2403 = vmatpush1.bf16.msra.mxu0 0
        %2404 = vmatprep.mubr.bf16.mxu0 0
        %2405 = vmatmul.mubr.bf16.gmra.mrb[0].mxu0 %v2370
        %v2406 = vpop.f32.mrb[0].mxu0
        %v2407 = vadd.f32 %v2357, %v2406
        %v2408 = vpop.f32.mrb[0].mxu0
        %v2409 = vpop.f32.mrb[0].mxu0
        %v2410 = vadd.f32 %v2360, %v2409
        %v2411 = vpop.f32.mrb[0].mxu0
        %2412 = vdwg.mxu0
        %s2413 = scalar_lea.vmem %s8, 1
        %v2414 = vld [vmem:[%s2413] sm:$0x1]
        %v2416 = vlaneseq
        %v2417 = vshrl.u32 %v2416, 7
        %v2418 = vsub.s32 0, %v2417
        %v2419 = vrot.slane %v2414, %v2418
        %v2421 = vadd.f32 %v2407, %v2419
        %v2422 = vadd.f32 %v2410, %v2419
        %v2423 = vadd.f32 %v2421, %v1784
        %v2424 = vadd.f32 %v2422, %v1785
        %s2425 = scalar_lea.vmem %s9, 1
        %v2426 = vld [vmem:[%s2425] sm:$0x1]
        %s2427 = scalar_lea.vmem [#allocation5], 1
        %v2428 = vld [vmem:[%s2427] sm:$0x1]
        %v2429 = vsel %vm797, %v2423, 0.0
        %2430 = vadd.xlane.f32.xlu0 %v2429
        %v2431 = vpop.xlane.xlu0 %2430
        %v2432 = vsel %vm797, %v2424, 0.0
        %2433 = vadd.xlane.f32.xlu0 %v2432
        %v2434 = vpop.xlane.xlu0 %2433
        %v2435 = vmul.f32 %v2431, %v804
        %v2436 = vmul.f32 %v2434, %v804
        %v2437 = vsub.f32 %v2423, %v2435
        %v2438 = vsub.f32 %v2424, %v2436
        %v2439 = vmul.f32 %v2437, %v2437
        %v2440 = vmul.f32 %v2438, %v2438
        %v2441 = vsel %vm797, %v2439, 0.0
        %2442 = vadd.xlane.f32.xlu0 %v2441
        %v2443 = vpop.xlane.xlu0 %2442
        %v2444 = vsel %vm797, %v2440, 0.0
        %2445 = vadd.xlane.f32.xlu0 %v2444
        %v2446 = vpop.xlane.xlu0 %2445
        %v2447 = vmul.f32 %v2443, %v804
        %v2448 = vmul.f32 %v2446, %v804
        %v2449 = vadd.f32 %v2447, 1e-12
        %v2450 = vadd.f32 %v2448, 1e-12
        %v2451 = vrsqrt.pop %v2449
        %v2452 = vrsqrt.pop %v2450
        %v2453 = vmul.f32 %v2437, %v2451
        %v2454 = vmul.f32 %v2438, %v2452
        %v2456 = vlaneseq
        %v2457 = vshrl.u32 %v2456, 7
        %v2458 = vsub.s32 0, %v2457
        %v2459 = vrot.slane %v2426, %v2458
        %v2461 = vmul.f32 %v2453, %v2459
        %v2462 = vmul.f32 %v2454, %v2459
        %v2464 = vlaneseq
        %v2465 = vshrl.u32 %v2464, 7
        %v2466 = vsub.s32 0, %v2465
        %v2467 = vrot.slane %v2428, %v2466
        %v2469 = vadd.f32 %v2461, %v2467
        %v2470 = vadd.f32 %v2462, %v2467
        %v2471 = vpack.c.bf16 %v2470, %v2469
        %s2472 = scalar_lea.vmem [#allocation7], 16
        %v2473 = vld [vmem:[%s2472] sm:$0xf]
        %v2474 = vld [vmem:[%s2472 + $0x4] sm:$0xf]
        %v2475 = vld [vmem:[%s2472 + $0x8] sm:$0xf]
        %v2476 = vld [vmem:[%s2472 + $0xc] sm:$0xf]
        %s2477 = scalar_lea.vmem [#allocation8], 1
        %v2478 = vld [vmem:[%s2477] sm:$0x1]
        %v2480 = vlaneseq
        %v2481 = vshrl.u32 %v2480, 7
        %v2482 = vsub.s32 0, %v2481
        %v2483 = vrot.slane %v2478, %v2482
        %v2489 = vunpack.c.l.b16 %v2473
        %v2490 = vunpack.c.l.b16 %v2474
        %v2491 = vunpack.c.l.b16 %v2475
        %v2492 = vunpack.c.l.b16 %v2476
        %v2493 = vpack.c.b16 %v2490, %v2489
        %v2494 = vpack.c.b16 %v2492, %v2491
        %v2498 = vsel %vm797, %v2471, 0
        %2500 = vmatprep.subr.bf16.mxu0 0
        %2501 = vmatpush1.bf16.msra.mxu0 %v2493
        %2502 = vmatprep.subr.bf16.mxu0 0
        %2503 = vmatpush1.bf16.msra.mxu0 %v2494
        %2504 = vmatprep.subr.bf16.mxu0 0
        %2505 = vmatpush1.bf16.msra.mxu0 0
        %2506 = vmatprep.subr.bf16.mxu0 0
        %2507 = vmatpush1.bf16.msra.mxu0 0
        %2508 = vmatprep.subr.bf16.mxu0 0
        %2509 = vmatpush1.bf16.msra.mxu0 0
        %2510 = vmatprep.subr.bf16.mxu0 0
        %2511 = vmatpush1.bf16.msra.mxu0 0
        %2512 = vmatprep.subr.bf16.mxu0 0
        %2513 = vmatpush1.bf16.msra.mxu0 0
        %2514 = vmatprep.subr.bf16.mxu0 0
        %2515 = vmatpush1.bf16.msra.mxu0 0
        %2516 = vmatprep.subr.bf16.mxu0 0
        %2517 = vmatpush1.bf16.msra.mxu0 0
        %2518 = vmatprep.subr.bf16.mxu0 0
        %2519 = vmatpush1.bf16.msra.mxu0 0
        %2520 = vmatprep.subr.bf16.mxu0 0
        %2521 = vmatpush1.bf16.msra.mxu0 0
        %2522 = vmatprep.subr.bf16.mxu0 0
        %2523 = vmatpush1.bf16.msra.mxu0 0
        %2524 = vmatprep.subr.bf16.mxu0 0
        %2525 = vmatpush1.bf16.msra.mxu0 0
        %2526 = vmatprep.subr.bf16.mxu0 0
        %2527 = vmatpush1.bf16.msra.mxu0 0
        %2528 = vmatprep.subr.bf16.mxu0 0
        %2529 = vmatpush1.bf16.msra.mxu0 0
        %2530 = vmatprep.subr.bf16.mxu0 0
        %2531 = vmatpush1.bf16.msra.mxu0 0
        %2532 = vmatprep.mubr.bf16.mxu0 0
        %2533 = vmatmul.mubr.bf16.gmra.mrb[0].mxu0 %v2498
        %v2534 = vpop.f32.mrb[0].mxu0
        %v2535 = vadd.f32 %v2483, %v2534
        %v2536 = vpop.f32.mrb[0].mxu0
        %v2537 = vpop.f32.mrb[0].mxu0
        %v2538 = vadd.f32 %v2483, %v2537
        %v2539 = vpop.f32.mrb[0].mxu0
        %2540 = vdwg.mxu0
        %v2541 = vmul.f32 %v2535, 0.70710677
        %v2542 = vmul.f32 %v2538, 0.70710677
        %v2543 = vand.u32 2147483647, %v2541
        %v2544 = vand.u32 2147483647, %v2542
        %v2545 = vmul.f32 %v2543, 0.3275911
        %v2546 = vmul.f32 %v2544, 0.3275911
        %v2547 = vadd.f32 %v2545, 1.0
        %v2548 = vadd.f32 %v2546, 1.0
        %v2549 = vrcp.pop %v2547
        %v2550 = vrcp.pop %v2548
        %v2551 = vmul.f32 %v2549, 1.0614054
        %v2552 = vmul.f32 %v2550, 1.0614054
        %v2553 = vadd.f32 %v2551, -1.4531521
        %v2554 = vadd.f32 %v2552, -1.4531521
        %v2555 = vmul.f32 %v2553, %v2549
        %v2556 = vmul.f32 %v2554, %v2550
        %v2557 = vadd.f32 %v2555, 1.4214138
        %v2558 = vadd.f32 %v2556, 1.4214138
        %v2559 = vmul.f32 %v2557, %v2549
        %v2560 = vmul.f32 %v2558, %v2550
        %v2561 = vadd.f32 %v2559, -0.28449672
        %v2562 = vadd.f32 %v2560, -0.28449672
        %v2563 = vmul.f32 %v2561, %v2549
        %v2564 = vmul.f32 %v2562, %v2550
        %v2565 = vadd.f32 %v2563, 0.2548296
        %v2566 = vadd.f32 %v2564, 0.2548296
        %v2567 = vmul.f32 %v2565, %v2549
        %v2568 = vmul.f32 %v2566, %v2550
        %v2569 = vsub.f32 0.0, %v2543
        %v2570 = vsub.f32 0.0, %v2544
        %v2571 = vmul.f32 %v2569, %v2543
        %v2572 = vmul.f32 %v2570, %v2544
        %v2573 = vmul.f32 %v2571, 1.442695
        %v2574 = vpow.pop %v2573
        %v2575 = vmul.f32 %v2572, 1.442695
        %v2576 = vpow.pop %v2575
        %v2577 = vmul.f32 %v2567, %v2574
        %v2578 = vmul.f32 %v2568, %v2576
        %v2579 = vsub.f32 1.0, %v2577
        %v2580 = vsub.f32 1.0, %v2578
        %vm2581 = vcmp.ge.f32.partialorder %v2541, 0.0
        %vm2582 = vcmp.ge.f32.partialorder %v2542, 0.0
        %v2583 = vsel %vm2581, 1.0, -1.0
        %v2584 = vsel %vm2582, 1.0, -1.0
        %v2585 = vmul.f32 %v2583, %v2579
        %v2586 = vmul.f32 %v2584, %v2580
        %v2587 = vmul.f32 %v2535, 0.5
        %v2588 = vmul.f32 %v2538, 0.5
        %v2589 = vadd.f32 %v2585, 1.0
        %v2590 = vadd.f32 %v2586, 1.0
        %v2591 = vmul.f32 %v2587, %v2589
        %v2592 = vmul.f32 %v2588, %v2590
        %v2593 = vpack.c.bf16 %v2592, %v2591
        %s2594 = scalar_lea.vmem %s13, 32
        %v2595 = vld [vmem:[%s2594] sm:$0xf]
        %v2596 = vld [vmem:[%s2594 + $0x4] sm:$0xf]
        %v2597 = vld [vmem:[%s2594 + $0x8] sm:$0xf]
        %v2598 = vld [vmem:[%s2594 + $0xc] sm:$0xf]
        %v2599 = vld [vmem:[%s2594 + $0x10] sm:$0xf]
        %v2600 = vld [vmem:[%s2594 + $0x14] sm:$0xf]
        %v2601 = vld [vmem:[%s2594 + $0x18] sm:$0xf]
        %v2602 = vld [vmem:[%s2594 + $0x1c] sm:$0xf]
        %s2603 = scalar_lea.vmem %s14, 1
        %v2604 = vld [vmem:[%s2603] sm:$0x1]
        %v2606 = vlaneseq
        %v2607 = vshrl.u32 %v2606, 7
        %v2608 = vsub.s32 0, %v2607
        %v2609 = vrot.slane %v2604, %v2608
        %v2619 = vunpack.c.l.b16 %v2595
        %v2620 = vunpack.c.l.b16 %v2596
        %v2621 = vunpack.c.l.b16 %v2597
        %v2622 = vunpack.c.l.b16 %v2598
        %v2623 = vunpack.c.l.b16 %v2599
        %v2624 = vunpack.c.l.b16 %v2600
        %v2625 = vunpack.c.l.b16 %v2601
        %v2626 = vunpack.c.l.b16 %v2602
        %v2627 = vpack.c.b16 %v2620, %v2619
        %v2628 = vpack.c.b16 %v2622, %v2621
        %v2629 = vpack.c.b16 %v2624, %v2623
        %v2630 = vpack.c.b16 %v2626, %v2625
        %v2636 = vsel %vm1695, %v2593, 0
        %2638 = vmatprep.subr.bf16.mxu0 0
        %2639 = vmatpush1.bf16.msra.mxu0 %v2627
        %2640 = vmatprep.subr.bf16.mxu0 0
        %2641 = vmatpush1.bf16.msra.mxu0 %v2628
        %2642 = vmatprep.subr.bf16.mxu0 0
        %2643 = vmatpush1.bf16.msra.mxu0 %v2629
        %2644 = vmatprep.subr.bf16.mxu0 0
        %2645 = vmatpush1.bf16.msra.mxu0 %v2630
        %2646 = vmatprep.subr.bf16.mxu0 0
        %2647 = vmatpush1.bf16.msra.mxu0 0
        %2648 = vmatprep.subr.bf16.mxu0 0
        %2649 = vmatpush1.bf16.msra.mxu0 0
        %2650 = vmatprep.subr.bf16.mxu0 0
        %2651 = vmatpush1.bf16.msra.mxu0 0
        %2652 = vmatprep.subr.bf16.mxu0 0
        %2653 = vmatpush1.bf16.msra.mxu0 0
        %2654 = vmatprep.subr.bf16.mxu0 0
        %2655 = vmatpush1.bf16.msra.mxu0 0
        %2656 = vmatprep.subr.bf16.mxu0 0
        %2657 = vmatpush1.bf16.msra.mxu0 0
        %2658 = vmatprep.subr.bf16.mxu0 0
        %2659 = vmatpush1.bf16.msra.mxu0 0
        %2660 = vmatprep.subr.bf16.mxu0 0
        %2661 = vmatpush1.bf16.msra.mxu0 0
        %2662 = vmatprep.subr.bf16.mxu0 0
        %2663 = vmatpush1.bf16.msra.mxu0 0
        %2664 = vmatprep.subr.bf16.mxu0 0
        %2665 = vmatpush1.bf16.msra.mxu0 0
        %2666 = vmatprep.subr.bf16.mxu0 0
        %2667 = vmatpush1.bf16.msra.mxu0 0
        %2668 = vmatprep.subr.bf16.mxu0 0
        %2669 = vmatpush1.bf16.msra.mxu0 0
        %2670 = vmatprep.mubr.bf16.mxu0 0
        %2671 = vmatmul.mubr.bf16.gmra.mrb[0].mxu0 %v2636
        %v2672 = vpop.f32.mrb[0].mxu0
        %v2673 = vadd.f32 %v2609, %v2672
        %v2674 = vpop.f32.mrb[0].mxu0
        %v2675 = vpop.f32.mrb[0].mxu0
        %v2676 = vadd.f32 %v2609, %v2675
        %v2677 = vpop.f32.mrb[0].mxu0
        %2678 = vdwg.mxu0
        %v2679 = vadd.f32 %v2673, %v2469
        %v2680 = vadd.f32 %v2676, %v2470
        %s2681 = scalar_lea.vmem %s15, 1
        %v2682 = vld [vmem:[%s2681] sm:$0x1]
        %s2683 = scalar_lea.vmem %s16, 1
        %v2684 = vld [vmem:[%s2683] sm:$0x1]
        %v2685 = vsel %vm797, %v2679, 0.0
        %2686 = vadd.xlane.f32.xlu0 %v2685
        %v2687 = vpop.xlane.xlu0 %2686
        %v2688 = vsel %vm797, %v2680, 0.0
        %2689 = vadd.xlane.f32.xlu0 %v2688
        %v2690 = vpop.xlane.xlu0 %2689
        %v2691 = vmul.f32 %v2687, %v804
        %v2692 = vmul.f32 %v2690, %v804
        %v2693 = vsub.f32 %v2679, %v2691
        %v2694 = vsub.f32 %v2680, %v2692
        %v2695 = vmul.f32 %v2693, %v2693
        %v2696 = vmul.f32 %v2694, %v2694
        %v2697 = vsel %vm797, %v2695, 0.0
        %2698 = vadd.xlane.f32.xlu0 %v2697
        %v2699 = vpop.xlane.xlu0 %2698
        %v2700 = vsel %vm797, %v2696, 0.0
        %2701 = vadd.xlane.f32.xlu0 %v2700
        %v2702 = vpop.xlane.xlu0 %2701
        %v2703 = vmul.f32 %v2699, %v804
        %v2704 = vmul.f32 %v2702, %v804
        %v2705 = vadd.f32 %v2703, 1e-12
        %v2706 = vadd.f32 %v2704, 1e-12
        %v2707 = vrsqrt.pop %v2705
        %v2708 = vrsqrt.pop %v2706
        %v2709 = vmul.f32 %v2693, %v2707
        %v2710 = vmul.f32 %v2694, %v2708
        %v2712 = vlaneseq
        %v2713 = vshrl.u32 %v2712, 7
        %v2714 = vsub.s32 0, %v2713
        %v2715 = vrot.slane %v2682, %v2714
        %v2717 = vmul.f32 %v2709, %v2715
        %v2718 = vmul.f32 %v2710, %v2715
        %v2720 = vlaneseq
        %v2721 = vshrl.u32 %v2720, 7
        %v2722 = vsub.s32 0, %v2721
        %v2723 = vrot.slane %v2684, %v2722
        %v2725 = vadd.f32 %v2717, %v2723
        %v2726 = vadd.f32 %v2718, %v2723
        %v2727 = vld [vmem:[%s777] sm:$0x1]
        %v2728 = vld [vmem:[%s777 + $0x1] sm:$0x1]
        %v2729 = vlaneseq
        %v2730 = vshrl.u32 %v2729, 7
        %v2731 = vsub.s32 0, %v2730
        %v2732 = vrot.slane %v2727, %v2731
        %2734 = vbcast.lane.b32.xlu0 %v2732, 256
        %v2735 = vpop.permute.xlu0 %2734
        %v2736 = vlaneseq
        %v2737 = vshrl.u32 %v2736, 7
        %v2738 = vsub.s32 0, %v2737
        %v2739 = vrot.slane %v2728, %v2738
        %2741 = vbcast.lane.b32.xlu0 %v2739, 256
        %v2742 = vpop.permute.xlu0 %2741
        %v2743 = vmul.f32 %v2725, %v2735
        %v2744 = vmul.f32 %v2726, %v2742
        %v2745 = vsel %vm797, %v2743, 0.0
        %v2746 = vrot.slane %v2745, 4
        %v2747 = vadd.f32 %v2745, %v2746
        %v2748 = vrot.slane %v2747, 2
        %v2749 = vadd.f32 %v2747, %v2748
        %v2750 = vrot.slane %v2749, 1
        %v2751 = vadd.f32 %v2749, %v2750
        %v2752 = vsel %vm797, %v2744, 0.0
        %v2753 = vrot.slane %v2752, 4
        %v2754 = vadd.f32 %v2752, %v2753
        %v2755 = vrot.slane %v2754, 2
        %v2756 = vadd.f32 %v2754, %v2755
        %v2757 = vrot.slane %v2756, 1
        %v2758 = vadd.f32 %v2756, %v2757
        %v2759 = vpack.c.bf16 %v2751, %v2751
        %v2760 = vpack.c.bf16 %v2758, %v2758
        %v2761 = vld [vmem:[%s17] sm:$0xf]
        %v2762 = vld [vmem:[%s17 + $0x4] sm:$0xf]
        %v2763 = vld [vmem:[%s17 + $0x8] sm:$0xf]
        %v2764 = vld [vmem:[%s17 + $0xc] sm:$0xf]
        %v2765 = vld [vmem:[%s18] sm:$0x1]
        %v2767 = vlaneseq
        %v2768 = vshrl.u32 %v2767, 7
        %v2769 = vsub.s32 0, %v2768
        %v2770 = vrot.slane %v2765, %v2769
        %v2774 = vunpack.c.l.b16 %v2759
        %v2775 = vunpack.c.l.b16 %v2760
        %vm2776 = vcmask 1041409
        %v2777 = vsel %vm2776, %v2775, %v2774
        %v2778 = vpack.c.b16 %v2777, %v2777
        %v2783 = vunpack.c.l.b16 %v2761
        %v2784 = vunpack.c.l.b16 %v2762
        %v2785 = vunpack.c.l.b16 %v2763
        %v2786 = vunpack.c.l.b16 %v2764
        %v2787 = vpack.c.b16 %v2784, %v2783
        %v2788 = vpack.c.b16 %v2786, %v2785
        %v2792 = vsel %vm797, %v2778, 0
        %2794 = vmatprep.subr.bf16.mxu0 0
        %2795 = vmatpush1.bf16.msra.mxu0 %v2787
        %2796 = vmatprep.subr.bf16.mxu0 0
        %2797 = vmatpush1.bf16.msra.mxu0 %v2788
        %2798 = vmatprep.subr.bf16.mxu0 0
        %2799 = vmatpush1.bf16.msra.mxu0 0
        %2800 = vmatprep.subr.bf16.mxu0 0
        %2801 = vmatpush1.bf16.msra.mxu0 0
        %2802 = vmatprep.subr.bf16.mxu0 0
        %2803 = vmatpush1.bf16.msra.mxu0 0
        %2804 = vmatprep.subr.bf16.mxu0 0
        %2805 = vmatpush1.bf16.msra.mxu0 0
        %2806 = vmatprep.subr.bf16.mxu0 0
        %2807 = vmatpush1.bf16.msra.mxu0 0
        %2808 = vmatprep.subr.bf16.mxu0 0
        %2809 = vmatpush1.bf16.msra.mxu0 0
        %2810 = vmatprep.subr.bf16.mxu0 0
        %2811 = vmatpush1.bf16.msra.mxu0 0
        %2812 = vmatprep.subr.bf16.mxu0 0
        %2813 = vmatpush1.bf16.msra.mxu0 0
        %2814 = vmatprep.subr.bf16.mxu0 0
        %2815 = vmatpush1.bf16.msra.mxu0 0
        %2816 = vmatprep.subr.bf16.mxu0 0
        %2817 = vmatpush1.bf16.msra.mxu0 0
        %2818 = vmatprep.subr.bf16.mxu0 0
        %2819 = vmatpush1.bf16.msra.mxu0 0
        %2820 = vmatprep.subr.bf16.mxu0 0
        %2821 = vmatpush1.bf16.msra.mxu0 0
        %2822 = vmatprep.subr.bf16.mxu0 0
        %2823 = vmatpush1.bf16.msra.mxu0 0
        %2824 = vmatprep.subr.bf16.mxu0 0
        %2825 = vmatpush1.bf16.msra.mxu0 0
        %2826 = vmatprep.mubr.bf16.mxu0 0
        %2827 = vmatmul.mubr.bf16.gmra.mrb[0].mxu0 %v2792
        %v2828 = vpop.f32.mrb[0].mxu0
        %v2829 = vadd.f32 %v2770, %v2828
        %v2830 = vpop.f32.mrb[0].mxu0
        %v2831 = vpop.f32.mrb[0].mxu0
        %v2832 = vpop.f32.mrb[0].mxu0
        %2833 = vdwg.mxu0
        %v2834 = vmax.f32 %v2829, 0.0
        %v2835 = vpack.c.bf16 %v2834, %v2834
        %v2836 = vld [vmem:[%s19] sm:$0xf]
        %v2837 = vld [vmem:[%s19 + $0x4] sm:$0xf]
        %v2838 = vld [vmem:[%s19 + $0x8] sm:$0xf]
        %v2839 = vld [vmem:[%s19 + $0xc] sm:$0xf]
        %v2840 = vld [vmem:[%s20] sm:$0x1]
        %v2842 = vlaneseq
        %v2843 = vshrl.u32 %v2842, 7
        %v2844 = vsub.s32 0, %v2843
        %v2845 = vrot.slane %v2840, %v2844
        %v2851 = vunpack.c.l.b16 %v2836
        %v2852 = vunpack.c.l.b16 %v2837
        %v2853 = vunpack.c.l.b16 %v2838
        %v2854 = vunpack.c.l.b16 %v2839
        %v2855 = vpack.c.b16 %v2852, %v2851
        %v2856 = vpack.c.b16 %v2854, %v2853
        %v2860 = vsel %vm797, %v2835, 0
        %2862 = vmatprep.subr.bf16.mxu0 0
        %2863 = vmatpush1.bf16.msra.mxu0 %v2855
        %2864 = vmatprep.subr.bf16.mxu0 0
        %2865 = vmatpush1.bf16.msra.mxu0 %v2856
        %2866 = vmatprep.subr.bf16.mxu0 0
        %2867 = vmatpush1.bf16.msra.mxu0 0
        %2868 = vmatprep.subr.bf16.mxu0 0
        %2869 = vmatpush1.bf16.msra.mxu0 0
        %2870 = vmatprep.subr.bf16.mxu0 0
        %2871 = vmatpush1.bf16.msra.mxu0 0
        %2872 = vmatprep.subr.bf16.mxu0 0
        %2873 = vmatpush1.bf16.msra.mxu0 0
        %2874 = vmatprep.subr.bf16.mxu0 0
        %2875 = vmatpush1.bf16.msra.mxu0 0
        %2876 = vmatprep.subr.bf16.mxu0 0
        %2877 = vmatpush1.bf16.msra.mxu0 0
        %2878 = vmatprep.subr.bf16.mxu0 0
        %2879 = vmatpush1.bf16.msra.mxu0 0
        %2880 = vmatprep.subr.bf16.mxu0 0
        %2881 = vmatpush1.bf16.msra.mxu0 0
        %2882 = vmatprep.subr.bf16.mxu0 0
        %2883 = vmatpush1.bf16.msra.mxu0 0
        %2884 = vmatprep.subr.bf16.mxu0 0
        %2885 = vmatpush1.bf16.msra.mxu0 0
        %2886 = vmatprep.subr.bf16.mxu0 0
        %2887 = vmatpush1.bf16.msra.mxu0 0
        %2888 = vmatprep.subr.bf16.mxu0 0
        %2889 = vmatpush1.bf16.msra.mxu0 0
        %2890 = vmatprep.subr.bf16.mxu0 0
        %2891 = vmatpush1.bf16.msra.mxu0 0
        %2892 = vmatprep.subr.bf16.mxu0 0
        %2893 = vmatpush1.bf16.msra.mxu0 0
        %2894 = vmatprep.mubr.bf16.mxu0 0
        %2895 = vmatmul.mubr.bf16.gmra.mrb[0].mxu0 %v2860
        %v2896 = vpop.f32.mrb[0].mxu0
        %v2897 = vadd.f32 %v2845, %v2896
        %v2898 = vpop.f32.mrb[0].mxu0
        %v2899 = vpop.f32.mrb[0].mxu0
        %v2900 = vpop.f32.mrb[0].mxu0
        %2901 = vdwg.mxu0
        %v2902 = vpack.c.bf16 %v2897, %v2897
        %v2903 = vld [vmem:[%s21] sm:$0x3]
        %vm2904 = vcmask 31744
        %v2906 = vsel %vm2904, %v2902, 0
        %vm2908 = vcmask 1041408
        %v2910 = vsel %vm2908, %v2903, 0
        %2912 = vmatprep.subr.bf16.mxu0 0
        %2913 = vmatpush1.bf16.msra.mxu0 %v2910
        %2914 = vmatprep.subr.bf16.mxu0 0
        %2915 = vmatpush1.bf16.msra.mxu0 0
        %2916 = vmatprep.subr.bf16.mxu0 0
        %2917 = vmatpush1.bf16.msra.mxu0 0
        %2918 = vmatprep.subr.bf16.mxu0 0
        %2919 = vmatpush1.bf16.msra.mxu0 0
        %2920 = vmatprep.subr.bf16.mxu0 0
        %2921 = vmatpush1.bf16.msra.mxu0 0
        %2922 = vmatprep.subr.bf16.mxu0 0
        %2923 = vmatpush1.bf16.msra.mxu0 0
        %2924 = vmatprep.subr.bf16.mxu0 0
        %2925 = vmatpush1.bf16.msra.mxu0 0
        %2926 = vmatprep.subr.bf16.mxu0 0
        %2927 = vmatpush1.bf16.msra.mxu0 0
        %2928 = vmatprep.subr.bf16.mxu0 0
        %2929 = vmatpush1.bf16.msra.mxu0 0
        %2930 = vmatprep.subr.bf16.mxu0 0
        %2931 = vmatpush1.bf16.msra.mxu0 0
        %2932 = vmatprep.subr.bf16.mxu0 0
        %2933 = vmatpush1.bf16.msra.mxu0 0
        %2934 = vmatprep.subr.bf16.mxu0 0
        %2935 = vmatpush1.bf16.msra.mxu0 0
        %2936 = vmatprep.subr.bf16.mxu0 0
        %2937 = vmatpush1.bf16.msra.mxu0 0
        %2938 = vmatprep.subr.bf16.mxu0 0
        %2939 = vmatpush1.bf16.msra.mxu0 0
        %2940 = vmatprep.subr.bf16.mxu0 0
        %2941 = vmatpush1.bf16.msra.mxu0 0
        %2942 = vmatprep.subr.bf16.mxu0 0
        %2943 = vmatpush1.bf16.msra.mxu0 0
        %2944 = vmatprep.mubr.bf16.mxu0 0
        %2945 = vmatmul.mubr.bf16.gmra.mrb[0].mxu0 %v2906
        %v2946 = vpop.f32.mrb[0].mxu0
        %v2947 = vadd.f32 0.0, %v2946
        %v2948 = vpop.f32.mrb[0].mxu0
        %v2949 = vpop.f32.mrb[0].mxu0
        %v2950 = vpop.f32.mrb[0].mxu0
        %2951 = vdwg.mxu0
        %v2953 = vrot.slane %v2947, 1
        %v2956 = vadd.f32 %v2751, %v2947
        %v2957 = vadd.f32 %v2758, %v2953
        %vm2958 = vcmask 253952
        %2959 = vst.msk [vmem:[%s762] sm:$0x1] %vm2958, %v2956
        %2960 = vst.msk [vmem:[%s762 + $0x1] sm:$0x1] %vm2958, %v2957
        %s2961 = sand.u32 %s524, 1
        %s2962 = scalar_lea.sflag [#allocation4], %s2961
        %s2963 = sand.u32 %s524, 1
        %s2964 = smul.addr %s2963, 2
        %s2965 = scalar_lea.vmem [#allocation10], %s2964
        // Predicated region
        $region125: #{tpu_custom_call.1} parent=107 // pred_check
          %p2966 = pneg %p534
        $region126: #{tpu_custom_call.1} parent=107 // pred_check_branch
          %2968 = sbr.rel (%p2966) target = $region128
        $region127: #{tpu_custom_call.1} parent=107 // pred_region
          %s2969 = smul.u32 2, %s39
          %s2971 = ssub.s32 32, 32
          %2972 = vsyncadd %s2962, %s2971
          %s2973 = smul.addr %s2969, 16
          %s2974 = scalar_lea.hbm %s22, %s2973
          %s2975 = sshll.u32 %s2965, 4
          %s2976 = int_to_ptr.vmem [resolvable:$true] %s2975
          %2981 = dma.vmem_to_hbm [thread:$0]  %s2976, 32, %s2974, %s2962, 16, 16, 1
        $region128: #{tpu_custom_call.1} parent=107 // pred_fallthru
          _
      $region108: #{tpu_custom_call.1} parent=5 // pred_fallthru
        _
      %p2982 = scmp.le.s32.totalorder 2, %s34
      // Predicated region
      $region129: #{tpu_custom_call.1} parent=5 // pred_check
        %p2983 = pneg %p2982
      $region130: #{tpu_custom_call.1} parent=5 // pred_check_branch
        %2985 = sbr.rel (%p2983) target = $region132
      $region131: #{tpu_custom_call.1} parent=5 // pred_region
        %s2986 = ssub.s32 %s34, 2
        // Predicated region
        $region133: #{tpu_custom_call.1} parent=131 // pred_check
          %p2987 = pneg %p540
        $region134: #{tpu_custom_call.1} parent=131 // pred_check_branch
          %2989 = sbr.rel (%p2987) target = $region136
        $region135: #{tpu_custom_call.1} parent=131 // pred_region
          %s2990 = sand.u32 %s525, 1
          %s2991 = scalar_lea.sflag [#allocation4], %s2990
          %s2992 = sand.u32 %s525, 1
          %s2993 = smul.addr %s2992, 2
          %s2994 = scalar_lea.vmem [#allocation10], %s2993
          %2995 = dma.done %s2991, 32
        $region136: #{tpu_custom_call.1} parent=131 // pred_fallthru
          _
      $region132: #{tpu_custom_call.1} parent=5 // pred_fallthru
        _
    $region6: #{tpu_custom_call.1} parent=1 // loop_footer
      %s38 = sadd.s32 1, %s34
    $region7: #{tpu_custom_call.1} parent=1 // loop_footer_branch
      %33 = sbr.rel target = $region3
    $region8: #{tpu_custom_call.1} parent=1 // loop_exit
      _
    %2996 = vsyncpa [#allocation3], 1
    %s2997 = scalar_lea.sflag [#allocation3], 1
    %2998 = vsyncpa %s2997, 1
    %2999 = vsyncpa [#allocation6], 1
    %3000 = vsyncpa [#allocation9], 1
    %3001 = vsyncpa [#allocation4], 1
    %s3002 = scalar_lea.sflag [#allocation4], 1
    %3003 = vsyncpa %s3002, 1

</llo_original>
